<compile_context>
chip_gen: v6e
topology: v6e:2x2x1
jax: 0.10.0
libtpu: 0.0.40
codegen_flags: <defaults>
</compile_context>

<pallas_src>
import jax
import jax.numpy as jnp
from jax.experimental import pallas as pl
from jax.experimental.pallas import tpu as pltpu

D = 300          # gnn input/hidden/output dim
DR = 1200        # dim_reduction width (4 * 300)
H1 = 1024        # predictor hidden
N_LAYERS = 4     # GAT layers
EPS = 1e-5       # LayerNorm eps (torch default)


def _leaky(x, slope=0.2):
    return jnp.where(x >= 0, x, slope * x)


def matching_kernel(adj_ref, feat_ref, q_ref, qproj_ref,
                    w_gat_ref, w_p_ref, b_p_ref, ln_g_ref, ln_b_ref,
                    w_dt_ref, w_d3_ref, b_d_ref,
                    w1_ref, b1_ref, w2_ref, b2_ref,
                    out_ref):
    adj = adj_ref[...]                       # [2N, 2N] f32 block-diagonal, self-loops
    h = feat_ref[...]                        # [2N, D] f32
    n2 = h.shape[0]
    n = n2 // 2

    # additive attention mask, computed once (adjacency is constant across layers)
    mask_add = jnp.where(adj > 0, jnp.float32(0.0), jnp.float32(-1e30))    # [2N, 2N]

    # ---------------- GATEncoder: 4 single-head GAT layers, LeakyReLU(0.2) ----------
    # TODO(synk): GATEncoder is defined outside the given module; implemented here as
    # standard single-head GAT layers (300->300) with LeakyReLU(0.2) activation.
    for l in range(N_LAYERS):
        # one MXU matmul per layer produces z plus both folded attention logits
        zea = jnp.dot(h.astype(jnp.bfloat16), w_gat_ref[l],
                      preferred_element_type=jnp.float32)                  # [2N, D+2]
        z = zea[:, :D]                                                     # [2N, D]
        e_src = zea[:, D:D + 1]                                            # [2N, 1]
        e_dst = zea[:, D + 1:D + 2]                                        # [2N, 1]
        e = _leaky(e_src + e_dst.T) + mask_add                             # [2N, 2N]
        e = e - jnp.max(e, axis=1, keepdims=True)
        p = jnp.exp(e)                     # masked entries underflow to exactly 0
        alpha = p * pl.reciprocal(jnp.sum(p, axis=1, keepdims=True), approx=True)
        h = _leaky(jnp.dot(alpha.astype(jnp.bfloat16), z.astype(jnp.bfloat16),
                           preferred_element_type=jnp.float32))            # [2N, D]

    # ---------------- project_table: Linear(300,300) + LayerNorm(300) ---------------
    t = jnp.dot(h.astype(jnp.bfloat16), w_p_ref[...],
                preferred_element_type=jnp.float32) + b_p_ref[...]
    mu = jnp.mean(t, axis=-1, keepdims=True)
    var = jnp.mean((t - mu) * (t - mu), axis=-1, keepdims=True)
    t = (t - mu) * jax.lax.rsqrt(var + EPS) * ln_g_ref[...] + ln_b_ref[...]  # [2N, D]

    # ---------------- dim_reduction, all 4 (table, query) combos at once ------------
    # hidden = tanh(cat(t, q, t-q, t*q) @ W_d + b_d)
    #        = tanh( t@(W0+W2) + q@(W1-W2) + (t*q)@W3 + b_d )
    # table part: one matmul for both tables (weight streamed once)
    tpart = jnp.dot(t.astype(jnp.bfloat16), w_dt_ref[...],
                    preferred_element_type=jnp.float32)                    # [2N, DR]

    # (t*q) part: stack all 4 combos [ta*qa; ta*qb; tb*qa; tb*qb] -> one matmul
    q = q_ref[...]                                                         # [2, D]
    ta, tb = t[:n], t[n:]
    tq = jnp.concatenate([ta * q[0:1], ta * q[1:2],
                          tb * q[0:1], tb * q[1:2]], axis=0)               # [4N, D]
    h3 = jnp.dot(tq.astype(jnp.bfloat16), w_d3_ref[...],
                 preferred_element_type=jnp.float32)                       # [4N, DR]

    tpart_e = jnp.concatenate([tpart[:n], tpart[:n],
                               tpart[n:], tpart[n:]], axis=0)              # [4N, DR]
    q0 = jnp.broadcast_to(qproj_ref[0:1], (n, DR))
    q1 = jnp.broadcast_to(qproj_ref[1:2], (n, DR))
    qpart_e = jnp.concatenate([q0, q1, q0, q1], axis=0)                    # [4N, DR]

    hid = jnp.tanh(tpart_e + qpart_e + h3 + b_d_ref[...])                  # [4N, DR]
    hmax = jnp.max(hid.reshape(4, n, DR), axis=1)                          # [4, DR]

    # ---------------- predictor: Dropout -> 1200->1024 -> LeakyReLU -> 1024->1 ------
    # TODO(synk): Dropout(0.1) implemented as eval-mode identity (no RNG needed).
    p1 = _leaky(jnp.dot(hmax.astype(jnp.bfloat16), w1_ref[...],
                        preferred_element_type=jnp.float32) + b1_ref[...])  # [4, H1]
    # final 1024->1 layer as a VPU dot against the pre-transposed weight row
    logits = jnp.sum(p1 * w2_ref[...], axis=1, keepdims=True) + b2_ref[...]  # [4, 1]
    out_ref[...] = logits


@jax.jit
def fused_matching(adj_bd, feat2, q2, qproj, kparams):
    vmem = pl.BlockSpec(memory_space=pltpu.MemorySpace.VMEM)
    n_in = 4 + len(kparams)
    kernel = pl.pallas_call(
        matching_kernel,
        out_shape=jax.ShapeDtypeStruct((4, 1), jnp.float32),
        in_specs=[vmem] * n_in,
        out_specs=vmem,
        compiler_params=pltpu.CompilerParams(
            vmem_limit_bytes=32 * 1024 * 1024,
        ),
    )
    out = kernel(adj_bd, feat2, q2, qproj, *kparams)     # [4, 1]
    return out.reshape(4)                                # (taqa, taqb, tbqa, tbqb)


def init_params(key):
    ks = jax.random.split(key, 12)
    s = 0.05
    w_gat = s * jax.random.normal(ks[0], (N_LAYERS, D, D), jnp.float32)
    a_src = s * jax.random.normal(ks[1], (N_LAYERS, 1, D), jnp.float32)
    a_dst = s * jax.random.normal(ks[2], (N_LAYERS, 1, D), jnp.float32)
    w_p = s * jax.random.normal(ks[3], (D, D), jnp.float32)
    b_p = s * jax.random.normal(ks[4], (1, D), jnp.float32)
    ln_g = jnp.ones((1, D), jnp.float32)
    ln_b = jnp.zeros((1, D), jnp.float32)
    w_d_full = s * jax.random.normal(ks[5], (DR, DR), jnp.float32)  # [in, out]
    b_d = s * jax.random.normal(ks[6], (1, DR), jnp.float32)
    w1 = s * jax.random.normal(ks[7], (DR, H1), jnp.float32)
    b1 = s * jax.random.normal(ks[8], (1, H1), jnp.float32)
    w2 = s * jax.random.normal(ks[9], (H1, 1), jnp.float32)
    b2 = s * jax.random.normal(ks[10], (1, 1), jnp.float32)
    return dict(w_gat=w_gat, a_src=a_src, a_dst=a_dst, w_p=w_p, b_p=b_p,
                ln_g=ln_g, ln_b=ln_b, w_d=w_d_full, b_d=b_d,
                w1=w1, b1=b1, w2=w2, b2=b2)


def prepare_device_params(p):
    """Host-side weight prep:
       * fold GAT attention vectors into the layer weight as 2 extra output columns,
       * fold the dim_reduction blocks: t @ (W0 + W2) on-chip, q @ (W1 - W2) hoisted
         to the wrapper, (t*q) @ W3 on-chip,
       * cast big matmul weights to bf16 (f32 MXU accumulation)."""
    wa_src = jnp.matmul(p["w_gat"], jnp.swapaxes(p["a_src"], 1, 2))  # [L, D, 1]
    wa_dst = jnp.matmul(p["w_gat"], jnp.swapaxes(p["a_dst"], 1, 2))  # [L, D, 1]
    w_gat_ext = jnp.concatenate([p["w_gat"], wa_src, wa_dst],
                                axis=2).astype(jnp.bfloat16)          # [L, D, D+2]

    # dim_reduction weight [in=1200, out=1200] split into the 4 input blocks
    # corresponding to the concatenated inputs (t, q, t-q, t*q).
    w_d = p["w_d"].reshape(4, D, DR)
    w_dt = (w_d[0] + w_d[2]).astype(jnp.bfloat16)   # multiplies t
    w_dq = w_d[1] - w_d[2]                          # multiplies q (used in wrapper, f32)
    w_d3 = w_d[3].astype(jnp.bfloat16)              # multiplies t*q

    kernel_params = (
        w_gat_ext,
        p["w_p"].astype(jnp.bfloat16),
        p["b_p"], p["ln_g"], p["ln_b"],
        w_dt, w_d3, p["b_d"],
        p["w1"].astype(jnp.bfloat16), p["b1"],
        p["w2"].T,          # [1, H1] f32 — final layer done as a VPU dot
        p["b2"],
    )
    return dict(kernel=kernel_params, w_dq=w_dq)


def pretrain_matching_forward(adj_a, adj_b, feat_a, feat_b,
                              caption_a, caption_b, pgtitle_a, pgtitle_b,
                              sectitle_a, sectitle_b, dev):
    # query mean of (caption, pgtitle, sectitle) done in the wrapper
    qa = jnp.mean(jnp.stack([caption_a, pgtitle_a, sectitle_a]), axis=0)
    qb = jnp.mean(jnp.stack([caption_b, pgtitle_b, sectitle_b]), axis=0)
    q2 = jnp.stack([qa, qb])                                # [2, D]
    # table-independent part of dim_reduction, computed once per forward
    qproj = q2 @ dev["w_dq"]                                # [2, DR]

    n = adj_a.shape[0]
    zero = jnp.zeros((n, n), jnp.float32)
    adj_bd = jnp.concatenate(
        [jnp.concatenate([adj_a, zero], axis=1),
         jnp.concatenate([zero, adj_b], axis=1)], axis=0)   # [2N, 2N] block-diagonal
    feat2 = jnp.concatenate([feat_a, feat_b], axis=0)       # [2N, D]

    # Output order matches the PyTorch forward: (taqa, taqb, tbqa, tbqb).
    return fused_matching(adj_bd, feat2, q2, qproj, dev["kernel"])


if __name__ == "__main__":
    key = jax.random.PRNGKey(0)
    k_par, k_ga, k_gb, k_fa, k_fb, k_t = jax.random.split(key, 6)

    N = 8  # nodes per table graph (small synthetic size)

    def make_adj(k):
        a = (jax.random.uniform(k, (N, N)) < 0.4).astype(jnp.float32)
        return jnp.maximum(a, jnp.eye(N, dtype=jnp.float32))  # self-loops

    adj_a = make_adj(k_ga)
    adj_b = make_adj(k_gb)
    feat_a = jax.random.normal(k_fa, (N, D), jnp.float32)
    feat_b = jax.random.normal(k_fb, (N, D), jnp.float32)
    tk = jax.random.split(k_t, 6)
    caption_a = jax.random.normal(tk[0], (D,), jnp.float32)
    caption_b = jax.random.normal(tk[1], (D,), jnp.float32)
    pgtitle_a = jax.random.normal(tk[2], (D,), jnp.float32)
    pgtitle_b = jax.random.normal(tk[3], (D,), jnp.float32)
    sectitle_a = jax.random.normal(tk[4], (D,), jnp.float32)
    sectitle_b = jax.random.normal(tk[5], (D,), jnp.float32)

    params = init_params(k_par)
    dev = prepare_device_params(params)

    logits = pretrain_matching_forward(
        adj_a, adj_b, feat_a, feat_b,
        caption_a, caption_b, pgtitle_a, pgtitle_b,
        sectitle_a, sectitle_b, dev)
    jax.block_until_ready(logits)
    assert logits.shape == (4,)
    assert bool(jnp.all(jnp.isfinite(logits)))
    print("KERNEL_OK")
</pallas_src>

<mosaic_0001>
module attributes {stable_mosaic.version = 11 : i64} {
  func.func @matching_kernel(%arg0: memref<16x16xf32, #tpu.memory_space<vmem>>, %arg1: memref<16x300xf32, #tpu.memory_space<vmem>>, %arg2: memref<2x300xf32, #tpu.memory_space<vmem>>, %arg3: memref<2x1200xf32, #tpu.memory_space<vmem>>, %arg4: memref<4x300x302xbf16, #tpu.memory_space<vmem>>, %arg5: memref<300x300xbf16, #tpu.memory_space<vmem>>, %arg6: memref<1x300xf32, #tpu.memory_space<vmem>>, %arg7: memref<1x300xf32, #tpu.memory_space<vmem>>, %arg8: memref<1x300xf32, #tpu.memory_space<vmem>>, %arg9: memref<300x1200xbf16, #tpu.memory_space<vmem>>, %arg10: memref<300x1200xbf16, #tpu.memory_space<vmem>>, %arg11: memref<1x1200xf32, #tpu.memory_space<vmem>>, %arg12: memref<1200x1024xbf16, #tpu.memory_space<vmem>>, %arg13: memref<1x1024xf32, #tpu.memory_space<vmem>>, %arg14: memref<1x1024xf32, #tpu.memory_space<vmem>>, %arg15: memref<1x1xf32, #tpu.memory_space<vmem>>, %arg16: memref<4x1xf32, #tpu.memory_space<vmem>>) attributes {dimension_semantics = [], scalar_prefetch = 0 : i64, scratch_operands = 0 : i64, tpu.core_type = #tpu.core_type<tc>} {
    %c0 = arith.constant 0 : index
    %c0_0 = arith.constant 0 : index
    %0 = vector.load %arg0[%c0, %c0_0] : memref<16x16xf32, #tpu.memory_space<vmem>>, vector<16x16xf32>
    %c0_1 = arith.constant 0 : index
    %c0_2 = arith.constant 0 : index
    %1 = vector.load %arg1[%c0_1, %c0_2] : memref<16x300xf32, #tpu.memory_space<vmem>>, vector<16x300xf32>
    %cst = arith.constant 0.000000e+00 : f32
    %2 = vector.broadcast %cst : f32 to vector<16x16xf32>
    %3 = arith.cmpf ogt, %0, %2 : vector<16x16xf32>
    %cst_3 = arith.constant 0.000000e+00 : f32
    %cst_4 = arith.constant -1.000000e+30 : f32
    %4 = vector.broadcast %cst_3 : f32 to vector<16x16xf32>
    %5 = vector.broadcast %cst_4 : f32 to vector<16x16xf32>
    %6 = arith.select %3, %4, %5 : vector<16x16xi1>, vector<16x16xf32>
    %7 = arith.truncf %1 : vector<16x300xf32> to vector<16x300xbf16>
    %c0_5 = arith.constant 0 : index
    %c0_6 = arith.constant 0 : index
    %c0_7 = arith.constant 0 : index
    %8 = vector.load %arg4[%c0_5, %c0_6, %c0_7] : memref<4x300x302xbf16, #tpu.memory_space<vmem>>, vector<1x300x302xbf16>
    %9 = vector.shape_cast %8 : vector<1x300x302xbf16> to vector<300x302xbf16>
    %cst_8 = arith.constant dense<0.000000e+00> : vector<16x302xf32>
    %10 = tpu.matmul %7, %9, %cst_8 {dimension_numbers = #tpu.dot_dimension_numbers<[1], [0], [0], [1], [0, 0, 1, 1], [], []>} : vector<16x300xbf16>, vector<300x302xbf16>, vector<16x302xf32> -> vector<16x302xf32>
    %11 = vector.extract_strided_slice %10 {offsets = [0, 0], sizes = [16, 300], strides = [1, 1]} : vector<16x302xf32> to vector<16x300xf32>
    %12 = vector.extract_strided_slice %10 {offsets = [0, 300], sizes = [16, 1], strides = [1, 1]} : vector<16x302xf32> to vector<16x1xf32>
    %13 = vector.extract_strided_slice %10 {offsets = [0, 301], sizes = [16, 1], strides = [1, 1]} : vector<16x302xf32> to vector<16x1xf32>
    %14 = tpu.transpose %13, [1, 0] : vector<16x1xf32> -> vector<1x16xf32>
    %15 = vector.broadcast %12 : vector<16x1xf32> to vector<16x16xf32>
    %16 = vector.broadcast %14 : vector<1x16xf32> to vector<16x16xf32>
    %17 = arith.addf %15, %16 : vector<16x16xf32>
    %cst_9 = arith.constant 0.000000e+00 : f32
    %18 = vector.broadcast %cst_9 : f32 to vector<16x16xf32>
    %19 = arith.cmpf oge, %17, %18 : vector<16x16xf32>
    %cst_10 = arith.constant 2.000000e-01 : f32
    %20 = vector.broadcast %cst_10 : f32 to vector<16x16xf32>
    %21 = arith.mulf %20, %17 : vector<16x16xf32>
    %22 = arith.select %19, %17, %21 : vector<16x16xi1>, vector<16x16xf32>
    %23 = arith.addf %22, %6 : vector<16x16xf32>
    %cst_11 = arith.constant dense<0xFF800000> : vector<16xf32>
    %24 = vector.multi_reduction <maximumf>, %23, %cst_11 [1] : vector<16x16xf32> to vector<16xf32>
    %25 = vector.shape_cast %24 : vector<16xf32> to vector<16x1xf32>
    %26 = vector.broadcast %25 : vector<16x1xf32> to vector<16x16xf32>
    %27 = arith.subf %23, %26 : vector<16x16xf32>
    %28 = math.exp %27 : vector<16x16xf32>
    %cst_12 = arith.constant dense<0.000000e+00> : vector<16xf32>
    %29 = vector.multi_reduction <add>, %28, %cst_12 [1] : vector<16x16xf32> to vector<16xf32>
    %30 = vector.shape_cast %29 : vector<16xf32> to vector<16x1xf32>
    %31 = tpu.reciprocal %30 {approx = true} : vector<16x1xf32> -> vector<16x1xf32>
    %32 = vector.broadcast %31 : vector<16x1xf32> to vector<16x16xf32>
    %33 = arith.mulf %28, %32 : vector<16x16xf32>
    %34 = arith.truncf %33 : vector<16x16xf32> to vector<16x16xbf16>
    %35 = arith.truncf %11 : vector<16x300xf32> to vector<16x300xbf16>
    %cst_13 = arith.constant dense<0.000000e+00> : vector<16x300xf32>
    %36 = tpu.matmul %34, %35, %cst_13 {dimension_numbers = #tpu.dot_dimension_numbers<[1], [0], [0], [1], [0, 0, 1, 1], [], []>} : vector<16x16xbf16>, vector<16x300xbf16>, vector<16x300xf32> -> vector<16x300xf32>
    %cst_14 = arith.constant 0.000000e+00 : f32
    %37 = vector.broadcast %cst_14 : f32 to vector<16x300xf32>
    %38 = arith.cmpf oge, %36, %37 : vector<16x300xf32>
    %cst_15 = arith.constant 2.000000e-01 : f32
    %39 = vector.broadcast %cst_15 : f32 to vector<16x300xf32>
    %40 = arith.mulf %39, %36 : vector<16x300xf32>
    %41 = arith.select %38, %36, %40 : vector<16x300xi1>, vector<16x300xf32>
    %42 = arith.truncf %41 : vector<16x300xf32> to vector<16x300xbf16>
    %c1 = arith.constant 1 : index
    %c0_16 = arith.constant 0 : index
    %c0_17 = arith.constant 0 : index
    %43 = vector.load %arg4[%c1, %c0_16, %c0_17] : memref<4x300x302xbf16, #tpu.memory_space<vmem>>, vector<1x300x302xbf16>
    %44 = vector.shape_cast %43 : vector<1x300x302xbf16> to vector<300x302xbf16>
    %cst_18 = arith.constant dense<0.000000e+00> : vector<16x302xf32>
    %45 = tpu.matmul %42, %44, %cst_18 {dimension_numbers = #tpu.dot_dimension_numbers<[1], [0], [0], [1], [0, 0, 1, 1], [], []>} : vector<16x300xbf16>, vector<300x302xbf16>, vector<16x302xf32> -> vector<16x302xf32>
    %46 = vector.extract_strided_slice %45 {offsets = [0, 0], sizes = [16, 300], strides = [1, 1]} : vector<16x302xf32> to vector<16x300xf32>
    %47 = vector.extract_strided_slice %45 {offsets = [0, 300], sizes = [16, 1], strides = [1, 1]} : vector<16x302xf32> to vector<16x1xf32>
    %48 = vector.extract_strided_slice %45 {offsets = [0, 301], sizes = [16, 1], strides = [1, 1]} : vector<16x302xf32> to vector<16x1xf32>
    %49 = tpu.transpose %48, [1, 0] : vector<16x1xf32> -> vector<1x16xf32>
    %50 = vector.broadcast %47 : vector<16x1xf32> to vector<16x16xf32>
    %51 = vector.broadcast %49 : vector<1x16xf32> to vector<16x16xf32>
    %52 = arith.addf %50, %51 : vector<16x16xf32>
    %cst_19 = arith.constant 0.000000e+00 : f32
    %53 = vector.broadcast %cst_19 : f32 to vector<16x16xf32>
    %54 = arith.cmpf oge, %52, %53 : vector<16x16xf32>
    %cst_20 = arith.constant 2.000000e-01 : f32
    %55 = vector.broadcast %cst_20 : f32 to vector<16x16xf32>
    %56 = arith.mulf %55, %52 : vector<16x16xf32>
    %57 = arith.select %54, %52, %56 : vector<16x16xi1>, vector<16x16xf32>
    %58 = arith.addf %57, %6 : vector<16x16xf32>
    %cst_21 = arith.constant dense<0xFF800000> : vector<16xf32>
    %59 = vector.multi_reduction <maximumf>, %58, %cst_21 [1] : vector<16x16xf32> to vector<16xf32>
    %60 = vector.shape_cast %59 : vector<16xf32> to vector<16x1xf32>
    %61 = vector.broadcast %60 : vector<16x1xf32> to vector<16x16xf32>
    %62 = arith.subf %58, %61 : vector<16x16xf32>
    %63 = math.exp %62 : vector<16x16xf32>
    %cst_22 = arith.constant dense<0.000000e+00> : vector<16xf32>
    %64 = vector.multi_reduction <add>, %63, %cst_22 [1] : vector<16x16xf32> to vector<16xf32>
    %65 = vector.shape_cast %64 : vector<16xf32> to vector<16x1xf32>
    %66 = tpu.reciprocal %65 {approx = true} : vector<16x1xf32> -> vector<16x1xf32>
    %67 = vector.broadcast %66 : vector<16x1xf32> to vector<16x16xf32>
    %68 = arith.mulf %63, %67 : vector<16x16xf32>
    %69 = arith.truncf %68 : vector<16x16xf32> to vector<16x16xbf16>
    %70 = arith.truncf %46 : vector<16x300xf32> to vector<16x300xbf16>
    %cst_23 = arith.constant dense<0.000000e+00> : vector<16x300xf32>
    %71 = tpu.matmul %69, %70, %cst_23 {dimension_numbers = #tpu.dot_dimension_numbers<[1], [0], [0], [1], [0, 0, 1, 1], [], []>} : vector<16x16xbf16>, vector<16x300xbf16>, vector<16x300xf32> -> vector<16x300xf32>
    %cst_24 = arith.constant 0.000000e+00 : f32
    %72 = vector.broadcast %cst_24 : f32 to vector<16x300xf32>
    %73 = arith.cmpf oge, %71, %72 : vector<16x300xf32>
    %cst_25 = arith.constant 2.000000e-01 : f32
    %74 = vector.broadcast %cst_25 : f32 to vector<16x300xf32>
    %75 = arith.mulf %74, %71 : vector<16x300xf32>
    %76 = arith.select %73, %71, %75 : vector<16x300xi1>, vector<16x300xf32>
    %77 = arith.truncf %76 : vector<16x300xf32> to vector<16x300xbf16>
    %c2 = arith.constant 2 : index
    %c0_26 = arith.constant 0 : index
    %c0_27 = arith.constant 0 : index
    %78 = vector.load %arg4[%c2, %c0_26, %c0_27] : memref<4x300x302xbf16, #tpu.memory_space<vmem>>, vector<1x300x302xbf16>
    %79 = vector.shape_cast %78 : vector<1x300x302xbf16> to vector<300x302xbf16>
    %cst_28 = arith.constant dense<0.000000e+00> : vector<16x302xf32>
    %80 = tpu.matmul %77, %79, %cst_28 {dimension_numbers = #tpu.dot_dimension_numbers<[1], [0], [0], [1], [0, 0, 1, 1], [], []>} : vector<16x300xbf16>, vector<300x302xbf16>, vector<16x302xf32> -> vector<16x302xf32>
    %81 = vector.extract_strided_slice %80 {offsets = [0, 0], sizes = [16, 300], strides = [1, 1]} : vector<16x302xf32> to vector<16x300xf32>
    %82 = vector.extract_strided_slice %80 {offsets = [0, 300], sizes = [16, 1], strides = [1, 1]} : vector<16x302xf32> to vector<16x1xf32>
    %83 = vector.extract_strided_slice %80 {offsets = [0, 301], sizes = [16, 1], strides = [1, 1]} : vector<16x302xf32> to vector<16x1xf32>
    %84 = tpu.transpose %83, [1, 0] : vector<16x1xf32> -> vector<1x16xf32>
    %85 = vector.broadcast %82 : vector<16x1xf32> to vector<16x16xf32>
    %86 = vector.broadcast %84 : vector<1x16xf32> to vector<16x16xf32>
    %87 = arith.addf %85, %86 : vector<16x16xf32>
    %cst_29 = arith.constant 0.000000e+00 : f32
    %88 = vector.broadcast %cst_29 : f32 to vector<16x16xf32>
    %89 = arith.cmpf oge, %87, %88 : vector<16x16xf32>
    %cst_30 = arith.constant 2.000000e-01 : f32
    %90 = vector.broadcast %cst_30 : f32 to vector<16x16xf32>
    %91 = arith.mulf %90, %87 : vector<16x16xf32>
    %92 = arith.select %89, %87, %91 : vector<16x16xi1>, vector<16x16xf32>
    %93 = arith.addf %92, %6 : vector<16x16xf32>
    %cst_31 = arith.constant dense<0xFF800000> : vector<16xf32>
    %94 = vector.multi_reduction <maximumf>, %93, %cst_31 [1] : vector<16x16xf32> to vector<16xf32>
    %95 = vector.shape_cast %94 : vector<16xf32> to vector<16x1xf32>
    %96 = vector.broadcast %95 : vector<16x1xf32> to vector<16x16xf32>
    %97 = arith.subf %93, %96 : vector<16x16xf32>
    %98 = math.exp %97 : vector<16x16xf32>
    %cst_32 = arith.constant dense<0.000000e+00> : vector<16xf32>
    %99 = vector.multi_reduction <add>, %98, %cst_32 [1] : vector<16x16xf32> to vector<16xf32>
    %100 = vector.shape_cast %99 : vector<16xf32> to vector<16x1xf32>
    %101 = tpu.reciprocal %100 {approx = true} : vector<16x1xf32> -> vector<16x1xf32>
    %102 = vector.broadcast %101 : vector<16x1xf32> to vector<16x16xf32>
    %103 = arith.mulf %98, %102 : vector<16x16xf32>
    %104 = arith.truncf %103 : vector<16x16xf32> to vector<16x16xbf16>
    %105 = arith.truncf %81 : vector<16x300xf32> to vector<16x300xbf16>
    %cst_33 = arith.constant dense<0.000000e+00> : vector<16x300xf32>
    %106 = tpu.matmul %104, %105, %cst_33 {dimension_numbers = #tpu.dot_dimension_numbers<[1], [0], [0], [1], [0, 0, 1, 1], [], []>} : vector<16x16xbf16>, vector<16x300xbf16>, vector<16x300xf32> -> vector<16x300xf32>
    %cst_34 = arith.constant 0.000000e+00 : f32
    %107 = vector.broadcast %cst_34 : f32 to vector<16x300xf32>
    %108 = arith.cmpf oge, %106, %107 : vector<16x300xf32>
    %cst_35 = arith.constant 2.000000e-01 : f32
    %109 = vector.broadcast %cst_35 : f32 to vector<16x300xf32>
    %110 = arith.mulf %109, %106 : vector<16x300xf32>
    %111 = arith.select %108, %106, %110 : vector<16x300xi1>, vector<16x300xf32>
    %112 = arith.truncf %111 : vector<16x300xf32> to vector<16x300xbf16>
    %c3 = arith.constant 3 : index
    %c0_36 = arith.constant 0 : index
    %c0_37 = arith.constant 0 : index
    %113 = vector.load %arg4[%c3, %c0_36, %c0_37] : memref<4x300x302xbf16, #tpu.memory_space<vmem>>, vector<1x300x302xbf16>
    %114 = vector.shape_cast %113 : vector<1x300x302xbf16> to vector<300x302xbf16>
    %cst_38 = arith.constant dense<0.000000e+00> : vector<16x302xf32>
    %115 = tpu.matmul %112, %114, %cst_38 {dimension_numbers = #tpu.dot_dimension_numbers<[1], [0], [0], [1], [0, 0, 1, 1], [], []>} : vector<16x300xbf16>, vector<300x302xbf16>, vector<16x302xf32> -> vector<16x302xf32>
    %116 = vector.extract_strided_slice %115 {offsets = [0, 0], sizes = [16, 300], strides = [1, 1]} : vector<16x302xf32> to vector<16x300xf32>
    %117 = vector.extract_strided_slice %115 {offsets = [0, 300], sizes = [16, 1], strides = [1, 1]} : vector<16x302xf32> to vector<16x1xf32>
    %118 = vector.extract_strided_slice %115 {offsets = [0, 301], sizes = [16, 1], strides = [1, 1]} : vector<16x302xf32> to vector<16x1xf32>
    %119 = tpu.transpose %118, [1, 0] : vector<16x1xf32> -> vector<1x16xf32>
    %120 = vector.broadcast %117 : vector<16x1xf32> to vector<16x16xf32>
    %121 = vector.broadcast %119 : vector<1x16xf32> to vector<16x16xf32>
    %122 = arith.addf %120, %121 : vector<16x16xf32>
    %cst_39 = arith.constant 0.000000e+00 : f32
    %123 = vector.broadcast %cst_39 : f32 to vector<16x16xf32>
    %124 = arith.cmpf oge, %122, %123 : vector<16x16xf32>
    %cst_40 = arith.constant 2.000000e-01 : f32
    %125 = vector.broadcast %cst_40 : f32 to vector<16x16xf32>
    %126 = arith.mulf %125, %122 : vector<16x16xf32>
    %127 = arith.select %124, %122, %126 : vector<16x16xi1>, vector<16x16xf32>
    %128 = arith.addf %127, %6 : vector<16x16xf32>
    %cst_41 = arith.constant dense<0xFF800000> : vector<16xf32>
    %129 = vector.multi_reduction <maximumf>, %128, %cst_41 [1] : vector<16x16xf32> to vector<16xf32>
    %130 = vector.shape_cast %129 : vector<16xf32> to vector<16x1xf32>
    %131 = vector.broadcast %130 : vector<16x1xf32> to vector<16x16xf32>
    %132 = arith.subf %128, %131 : vector<16x16xf32>
    %133 = math.exp %132 : vector<16x16xf32>
    %cst_42 = arith.constant dense<0.000000e+00> : vector<16xf32>
    %134 = vector.multi_reduction <add>, %133, %cst_42 [1] : vector<16x16xf32> to vector<16xf32>
    %135 = vector.shape_cast %134 : vector<16xf32> to vector<16x1xf32>
    %136 = tpu.reciprocal %135 {approx = true} : vector<16x1xf32> -> vector<16x1xf32>
    %137 = vector.broadcast %136 : vector<16x1xf32> to vector<16x16xf32>
    %138 = arith.mulf %133, %137 : vector<16x16xf32>
    %139 = arith.truncf %138 : vector<16x16xf32> to vector<16x16xbf16>
    %140 = arith.truncf %116 : vector<16x300xf32> to vector<16x300xbf16>
    %cst_43 = arith.constant dense<0.000000e+00> : vector<16x300xf32>
    %141 = tpu.matmul %139, %140, %cst_43 {dimension_numbers = #tpu.dot_dimension_numbers<[1], [0], [0], [1], [0, 0, 1, 1], [], []>} : vector<16x16xbf16>, vector<16x300xbf16>, vector<16x300xf32> -> vector<16x300xf32>
    %cst_44 = arith.constant 0.000000e+00 : f32
    %142 = vector.broadcast %cst_44 : f32 to vector<16x300xf32>
    %143 = arith.cmpf oge, %141, %142 : vector<16x300xf32>
    %cst_45 = arith.constant 2.000000e-01 : f32
    %144 = vector.broadcast %cst_45 : f32 to vector<16x300xf32>
    %145 = arith.mulf %144, %141 : vector<16x300xf32>
    %146 = arith.select %143, %141, %145 : vector<16x300xi1>, vector<16x300xf32>
    %147 = arith.truncf %146 : vector<16x300xf32> to vector<16x300xbf16>
    %c0_46 = arith.constant 0 : index
    %c0_47 = arith.constant 0 : index
    %148 = vector.load %arg5[%c0_46, %c0_47] : memref<300x300xbf16, #tpu.memory_space<vmem>>, vector<300x300xbf16>
    %cst_48 = arith.constant dense<0.000000e+00> : vector<16x300xf32>
    %149 = tpu.matmul %147, %148, %cst_48 {dimension_numbers = #tpu.dot_dimension_numbers<[1], [0], [0], [1], [0, 0, 1, 1], [], []>} : vector<16x300xbf16>, vector<300x300xbf16>, vector<16x300xf32> -> vector<16x300xf32>
    %c0_49 = arith.constant 0 : index
    %c0_50 = arith.constant 0 : index
    %150 = vector.load %arg6[%c0_49, %c0_50] : memref<1x300xf32, #tpu.memory_space<vmem>>, vector<1x300xf32>
    %151 = vector.broadcast %150 : vector<1x300xf32> to vector<16x300xf32>
    %152 = arith.addf %149, %151 : vector<16x300xf32>
    %cst_51 = arith.constant dense<0.000000e+00> : vector<16xf32>
    %153 = vector.multi_reduction <add>, %152, %cst_51 [1] : vector<16x300xf32> to vector<16xf32>
    %154 = vector.shape_cast %153 : vector<16xf32> to vector<16x1xf32>
    %cst_52 = arith.constant 3.000000e+02 : f32
    %155 = vector.broadcast %cst_52 : f32 to vector<16x1xf32>
    %156 = arith.divf %154, %155 : vector<16x1xf32>
    %157 = vector.broadcast %156 : vector<16x1xf32> to vector<16x300xf32>
    %158 = arith.subf %152, %157 : vector<16x300xf32>
    %159 = vector.broadcast %156 : vector<16x1xf32> to vector<16x300xf32>
    %160 = arith.subf %152, %159 : vector<16x300xf32>
    %161 = arith.mulf %158, %160 : vector<16x300xf32>
    %cst_53 = arith.constant dense<0.000000e+00> : vector<16xf32>
    %162 = vector.multi_reduction <add>, %161, %cst_53 [1] : vector<16x300xf32> to vector<16xf32>
    %163 = vector.shape_cast %162 : vector<16xf32> to vector<16x1xf32>
    %cst_54 = arith.constant 3.000000e+02 : f32
    %164 = vector.broadcast %cst_54 : f32 to vector<16x1xf32>
    %165 = arith.divf %163, %164 : vector<16x1xf32>
    %166 = vector.broadcast %156 : vector<16x1xf32> to vector<16x300xf32>
    %167 = arith.subf %152, %166 : vector<16x300xf32>
    %cst_55 = arith.constant 9.99999974E-6 : f32
    %168 = vector.broadcast %cst_55 : f32 to vector<16x1xf32>
    %169 = arith.addf %165, %168 : vector<16x1xf32>
    %170 = math.rsqrt %169 : vector<16x1xf32>
    %171 = vector.broadcast %170 : vector<16x1xf32> to vector<16x300xf32>
    %172 = arith.mulf %167, %171 : vector<16x300xf32>
    %c0_56 = arith.constant 0 : index
    %c0_57 = arith.constant 0 : index
    %173 = vector.load %arg7[%c0_56, %c0_57] : memref<1x300xf32, #tpu.memory_space<vmem>>, vector<1x300xf32>
    %174 = vector.broadcast %173 : vector<1x300xf32> to vector<16x300xf32>
    %175 = arith.mulf %172, %174 : vector<16x300xf32>
    %c0_58 = arith.constant 0 : index
    %c0_59 = arith.constant 0 : index
    %176 = vector.load %arg8[%c0_58, %c0_59] : memref<1x300xf32, #tpu.memory_space<vmem>>, vector<1x300xf32>
    %177 = vector.broadcast %176 : vector<1x300xf32> to vector<16x300xf32>
    %178 = arith.addf %175, %177 : vector<16x300xf32>
    %179 = arith.truncf %178 : vector<16x300xf32> to vector<16x300xbf16>
    %c0_60 = arith.constant 0 : index
    %c0_61 = arith.constant 0 : index
    %180 = vector.load %arg9[%c0_60, %c0_61] : memref<300x1200xbf16, #tpu.memory_space<vmem>>, vector<300x1200xbf16>
    %cst_62 = arith.constant dense<0.000000e+00> : vector<16x1200xf32>
    %181 = tpu.matmul %179, %180, %cst_62 {dimension_numbers = #tpu.dot_dimension_numbers<[1], [0], [0], [1], [0, 0, 1, 1], [], []>} : vector<16x300xbf16>, vector<300x1200xbf16>, vector<16x1200xf32> -> vector<16x1200xf32>
    %c0_63 = arith.constant 0 : index
    %c0_64 = arith.constant 0 : index
    %182 = vector.load %arg2[%c0_63, %c0_64] : memref<2x300xf32, #tpu.memory_space<vmem>>, vector<2x300xf32>
    %183 = vector.extract_strided_slice %178 {offsets = [0, 0], sizes = [8, 300], strides = [1, 1]} : vector<16x300xf32> to vector<8x300xf32>
    %184 = vector.extract_strided_slice %178 {offsets = [8, 0], sizes = [8, 300], strides = [1, 1]} : vector<16x300xf32> to vector<8x300xf32>
    %185 = vector.extract_strided_slice %182 {offsets = [0, 0], sizes = [1, 300], strides = [1, 1]} : vector<2x300xf32> to vector<1x300xf32>
    %186 = vector.broadcast %185 : vector<1x300xf32> to vector<8x300xf32>
    %187 = arith.mulf %183, %186 : vector<8x300xf32>
    %188 = vector.extract_strided_slice %182 {offsets = [1, 0], sizes = [1, 300], strides = [1, 1]} : vector<2x300xf32> to vector<1x300xf32>
    %189 = vector.broadcast %188 : vector<1x300xf32> to vector<8x300xf32>
    %190 = arith.mulf %183, %189 : vector<8x300xf32>
    %191 = vector.extract_strided_slice %182 {offsets = [0, 0], sizes = [1, 300], strides = [1, 1]} : vector<2x300xf32> to vector<1x300xf32>
    %192 = vector.broadcast %191 : vector<1x300xf32> to vector<8x300xf32>
    %193 = arith.mulf %184, %192 : vector<8x300xf32>
    %194 = vector.extract_strided_slice %182 {offsets = [1, 0], sizes = [1, 300], strides = [1, 1]} : vector<2x300xf32> to vector<1x300xf32>
    %195 = vector.broadcast %194 : vector<1x300xf32> to vector<8x300xf32>
    %196 = arith.mulf %184, %195 : vector<8x300xf32>
    %197 = tpu.concatenate %187, %190, %193, %196 in 0 : vector<8x300xf32>, vector<8x300xf32>, vector<8x300xf32>, vector<8x300xf32> -> vector<32x300xf32>
    %198 = arith.truncf %197 : vector<32x300xf32> to vector<32x300xbf16>
    %c0_65 = arith.constant 0 : index
    %c0_66 = arith.constant 0 : index
    %199 = vector.load %arg10[%c0_65, %c0_66] : memref<300x1200xbf16, #tpu.memory_space<vmem>>, vector<300x1200xbf16>
    %cst_67 = arith.constant dense<0.000000e+00> : vector<32x1200xf32>
    %200 = tpu.matmul %198, %199, %cst_67 {dimension_numbers = #tpu.dot_dimension_numbers<[1], [0], [0], [1], [0, 0, 1, 1], [], []>} : vector<32x300xbf16>, vector<300x1200xbf16>, vector<32x1200xf32> -> vector<32x1200xf32>
    %201 = vector.extract_strided_slice %181 {offsets = [0, 0], sizes = [8, 1200], strides = [1, 1]} : vector<16x1200xf32> to vector<8x1200xf32>
    %202 = vector.extract_strided_slice %181 {offsets = [0, 0], sizes = [8, 1200], strides = [1, 1]} : vector<16x1200xf32> to vector<8x1200xf32>
    %203 = vector.extract_strided_slice %181 {offsets = [8, 0], sizes = [8, 1200], strides = [1, 1]} : vector<16x1200xf32> to vector<8x1200xf32>
    %204 = vector.extract_strided_slice %181 {offsets = [8, 0], sizes = [8, 1200], strides = [1, 1]} : vector<16x1200xf32> to vector<8x1200xf32>
    %205 = tpu.concatenate %201, %202, %203, %204 in 0 : vector<8x1200xf32>, vector<8x1200xf32>, vector<8x1200xf32>, vector<8x1200xf32> -> vector<32x1200xf32>
    %c0_68 = arith.constant 0 : index
    %c0_69 = arith.constant 0 : index
    %206 = vector.load %arg3[%c0_68, %c0_69] : memref<2x1200xf32, #tpu.memory_space<vmem>>, vector<1x1200xf32>
    %207 = vector.shape_cast %206 : vector<1x1200xf32> to vector<1x1200xf32>
    %208 = vector.broadcast %207 : vector<1x1200xf32> to vector<8x1200xf32>
    %c1_70 = arith.constant 1 : index
    %c0_71 = arith.constant 0 : index
    %209 = vector.load %arg3[%c1_70, %c0_71] : memref<2x1200xf32, #tpu.memory_space<vmem>>, vector<1x1200xf32>
    %210 = vector.shape_cast %209 : vector<1x1200xf32> to vector<1x1200xf32>
    %211 = vector.broadcast %210 : vector<1x1200xf32> to vector<8x1200xf32>
    %212 = tpu.concatenate %208, %211, %208, %211 in 0 : vector<8x1200xf32>, vector<8x1200xf32>, vector<8x1200xf32>, vector<8x1200xf32> -> vector<32x1200xf32>
    %213 = arith.addf %205, %212 : vector<32x1200xf32>
    %214 = arith.addf %213, %200 : vector<32x1200xf32>
    %c0_72 = arith.constant 0 : index
    %c0_73 = arith.constant 0 : index
    %215 = vector.load %arg11[%c0_72, %c0_73] : memref<1x1200xf32, #tpu.memory_space<vmem>>, vector<1x1200xf32>
    %216 = vector.broadcast %215 : vector<1x1200xf32> to vector<32x1200xf32>
    %217 = arith.addf %214, %216 : vector<32x1200xf32>
    %218 = math.tanh %217 : vector<32x1200xf32>
    %219 = vector.shape_cast %218 : vector<32x1200xf32> to vector<4x8x1200xf32>
    %cst_74 = arith.constant dense<0xFF800000> : vector<4x1200xf32>
    %220 = vector.multi_reduction <maximumf>, %219, %cst_74 [1] : vector<4x8x1200xf32> to vector<4x1200xf32>
    %221 = arith.truncf %220 : vector<4x1200xf32> to vector<4x1200xbf16>
    %c0_75 = arith.constant 0 : index
    %c0_76 = arith.constant 0 : index
    %222 = vector.load %arg12[%c0_75, %c0_76] : memref<1200x1024xbf16, #tpu.memory_space<vmem>>, vector<1200x1024xbf16>
    %cst_77 = arith.constant dense<0.000000e+00> : vector<4x1024xf32>
    %223 = tpu.matmul %221, %222, %cst_77 {dimension_numbers = #tpu.dot_dimension_numbers<[1], [0], [0], [1], [0, 0, 1, 1], [], []>} : vector<4x1200xbf16>, vector<1200x1024xbf16>, vector<4x1024xf32> -> vector<4x1024xf32>
    %c0_78 = arith.constant 0 : index
    %c0_79 = arith.constant 0 : index
    %224 = vector.load %arg13[%c0_78, %c0_79] : memref<1x1024xf32, #tpu.memory_space<vmem>>, vector<1x1024xf32>
    %225 = vector.broadcast %224 : vector<1x1024xf32> to vector<4x1024xf32>
    %226 = arith.addf %223, %225 : vector<4x1024xf32>
    %cst_80 = arith.constant 0.000000e+00 : f32
    %227 = vector.broadcast %cst_80 : f32 to vector<4x1024xf32>
    %228 = arith.cmpf oge, %226, %227 : vector<4x1024xf32>
    %cst_81 = arith.constant 2.000000e-01 : f32
    %229 = vector.broadcast %cst_81 : f32 to vector<4x1024xf32>
    %230 = arith.mulf %229, %226 : vector<4x1024xf32>
    %231 = arith.select %228, %226, %230 : vector<4x1024xi1>, vector<4x1024xf32>
    %c0_82 = arith.constant 0 : index
    %c0_83 = arith.constant 0 : index
    %232 = vector.load %arg14[%c0_82, %c0_83] : memref<1x1024xf32, #tpu.memory_space<vmem>>, vector<1x1024xf32>
    %233 = vector.broadcast %232 : vector<1x1024xf32> to vector<4x1024xf32>
    %234 = arith.mulf %231, %233 : vector<4x1024xf32>
    %cst_84 = arith.constant dense<0.000000e+00> : vector<4xf32>
    %235 = vector.multi_reduction <add>, %234, %cst_84 [1] : vector<4x1024xf32> to vector<4xf32>
    %236 = vector.shape_cast %235 : vector<4xf32> to vector<4x1xf32>
    %c0_85 = arith.constant 0 : index
    %c0_86 = arith.constant 0 : index
    %237 = vector.load %arg15[%c0_85, %c0_86] : memref<1x1xf32, #tpu.memory_space<vmem>>, vector<1x1xf32>
    %238 = vector.broadcast %237 : vector<1x1xf32> to vector<4x1xf32>
    %239 = arith.addf %236, %238 : vector<4x1xf32>
    %c0_87 = arith.constant 0 : index
    %c0_88 = arith.constant 0 : index
    %240 = vector.load %arg16[%c0_87, %c0_88] : memref<4x1xf32, #tpu.memory_space<vmem>>, vector<4x1xf32>
    tpu.vector_store %arg16[%c0_87, %c0_88], %239 {strides = array<i32>} : memref<4x1xf32, #tpu.memory_space<vmem>>, vector<4x1xf32>,
    return
  }
}

</mosaic_0001>

<llo_original>
// kernel: fused_matching.1
$region0: #{fused_matching.1}
  #allocation0 [shape = 'u32[]', space=smem, size = 0x4, offset = 0x4, fixed_abs, tag = 'smem constant byte address 0x4 - core index']
  #allocation1 [shape = 'u32[144,128]{1,0:T(1,128)}', space=vmem, size = 0x12000, scoped, tag = 'internal scratch']
  #allocation2 [shape = 'f32[1,1]{1,0:T(1,128)S(1)}', space=vmem, size = 0x200, scoped, tag = 'scoped memory for fused_matching.1']
  %s0 = inlined_call_operand.hbm [shape: f32[16,16], index: 0, kind: input, shape index: {}]
  %s1 = inlined_call_operand.hbm [shape: f32[16,300], index: 1, kind: input, shape index: {}]
  %s2 = inlined_call_operand.hbm [shape: f32[2,300], index: 2, kind: input, shape index: {}]
  %s3 = inlined_call_operand.hbm [shape: f32[2,1200], index: 3, kind: input, shape index: {}]
  %s4 = inlined_call_operand.vmem [shape: bf16[4,300,302], index: 4, kind: input, shape index: {}]
  %s5 = inlined_call_operand.hbm [shape: bf16[300,300], index: 5, kind: input, shape index: {}]
  %s6 = inlined_call_operand.hbm [shape: f32[1,300], index: 6, kind: input, shape index: {}]
  %s7 = inlined_call_operand.hbm [shape: f32[1,300], index: 7, kind: input, shape index: {}]
  %s8 = inlined_call_operand.hbm [shape: f32[1,300], index: 8, kind: input, shape index: {}]
  %s9 = inlined_call_operand.vmem [shape: bf16[300,1200], index: 9, kind: input, shape index: {}]
  %s10 = inlined_call_operand.vmem [shape: bf16[300,1200], index: 10, kind: input, shape index: {}]
  %s11 = inlined_call_operand.hbm [shape: f32[1,1200], index: 11, kind: input, shape index: {}]
  %s12 = inlined_call_operand.hbm [shape: bf16[1200,1024], index: 12, kind: input, shape index: {}]
  %s13 = inlined_call_operand.hbm [shape: f32[1,1024], index: 13, kind: input, shape index: {}]
  %s14 = inlined_call_operand.hbm [shape: f32[1,1024], index: 14, kind: input, shape index: {}]
  %s15 = inlined_call_operand.<no memory space> [shape: f32[1,1], index: 15, kind: input, shape index: {}]
  %s16 = inlined_call_operand.vmem [shape: f32[4,1], index: 16, kind: output, shape index: {}]
  %s17 = sld [smem:[#allocation0]]
  $region122: #{fused_matching.1} parent=0
    _
  %s19 = ssub.s32 1, %s17
  %s20 = scalar_select 0, %s19, %s17
  %v21 = vstv %s15
  %22 = vst [vmem:[#allocation2] sm:$0x1] %v21
  $region1: #{fused_matching.1} parent=0
    #allocation3 [shape = 'u8[8192]{0}', space=vmem, size = 0x2000, scoped, tag = 'input window, operand 0, single buffered']
    #allocation4 [shape = 's32[1]{0}', space=sflag, size = 0x4, scoped, tag = 'scoped memory for fused_matching.1']
    #allocation5 [shape = 'u8[24576]{0}', space=vmem, size = 0x6000, scoped, tag = 'input window, operand 1, single buffered']
    #allocation6 [shape = 's32[1]{0}', space=sflag, size = 0x4, scoped, tag = 'scoped memory for fused_matching.1']
    #allocation7 [shape = 'u8[3072]{0}', space=vmem, size = 0xc00, scoped, tag = 'input window, operand 2, single buffered']
    #allocation8 [shape = 'u8[10240]{0}', space=vmem, size = 0x2800, scoped, tag = 'input window, operand 3, single buffered']
    #allocation9 [shape = 's32[1]{0}', space=sflag, size = 0x4, scoped, tag = 'scoped memory for fused_matching.1']
    #allocation10 [shape = 'u8[233472]{0}', space=vmem, size = 0x39000, scoped, tag = 'input window, operand 5, single buffered']
    #allocation11 [shape = 'u8[1536]{0}', space=vmem, size = 0x800, scoped, tag = 'input window, operand 6, single buffered']
    #allocation12 [shape = 's32[1]{0}', space=sflag, size = 0x4, scoped, tag = 'scoped memory for fused_matching.1']
    #allocation13 [shape = 'u8[1536]{0}', space=vmem, size = 0x800, scoped, tag = 'input window, operand 7, single buffered']
    #allocation14 [shape = 'u8[1536]{0}', space=vmem, size = 0x800, scoped, tag = 'input window, operand 8, single buffered']
    #allocation15 [shape = 's32[1]{0}', space=sflag, size = 0x4, scoped, tag = 'scoped memory for fused_matching.1']
    #allocation16 [shape = 'u8[5120]{0}', space=vmem, size = 0x1400, scoped, tag = 'input window, operand 11, single buffered']
    #allocation17 [shape = 'u8[2457600]{0}', space=vmem, size = 0x258000, scoped, tag = 'input window, operand 12, single buffered']
    #allocation18 [shape = 's32[1]{0}', space=sflag, size = 0x4, scoped, tag = 'scoped memory for fused_matching.1']
    #allocation19 [shape = 'u8[4096]{0}', space=vmem, size = 0x1000, scoped, tag = 'input window, operand 13, single buffered']
    #allocation20 [shape = 'u8[4096]{0}', space=vmem, size = 0x1000, scoped, tag = 'input window, operand 14, single buffered']
    #allocation21 [shape = 's32[1]{0}', space=sflag, size = 0x4, scoped, tag = 'scoped memory for fused_matching.1']
    %23 = vsyncpa [#allocation4], 0
    %24 = vsyncpa [#allocation6], 0
    %25 = vsyncpa [#allocation9], 0
    %26 = vsyncpa [#allocation12], 0
    %27 = vsyncpa [#allocation15], 0
    %28 = vsyncpa [#allocation18], 0
    %29 = vsyncpa [#allocation21], 0
    // Predicated region
    $region2: #{fused_matching.1} parent=1 // pred_check
      _
    $region3: #{fused_matching.1} parent=1 // pred_check_branch
      %31 = sbr.rel (0) target = $region5
    $region4: #{fused_matching.1} parent=1 // pred_region
      %s33 = ssub.s32 256, 256
      %34 = vsyncadd [#allocation4], %s33
      %s35 = sshll.u32 [#allocation3], 4
      %s36 = int_to_ptr.vmem [resolvable:$true] %s35
      %41 = dma.hbm_to_vmem [thread:$0]  %s0, 256, %s36, [#allocation4], 128, 128, 8
    $region5: #{fused_matching.1} parent=1 // pred_fallthru
      _
    // Predicated region
    $region6: #{fused_matching.1} parent=1 // pred_check
      _
    $region7: #{fused_matching.1} parent=1 // pred_check_branch
      %43 = sbr.rel (0) target = $region9
    $region8: #{fused_matching.1} parent=1 // pred_region
      %s45 = ssub.s32 768, 768
      %46 = vsyncadd [#allocation6], %s45
      %s47 = sshll.u32 [#allocation5], 4
      %s48 = int_to_ptr.vmem [resolvable:$true] %s47
      %53 = dma.hbm_to_vmem [thread:$0]  %s1, 768, %s48, [#allocation6], 384, 384, 24
    $region9: #{fused_matching.1} parent=1 // pred_fallthru
      _
    // Predicated region
    $region10: #{fused_matching.1} parent=1 // pred_check
      _
    $region11: #{fused_matching.1} parent=1 // pred_check_branch
      %55 = sbr.rel (0) target = $region13
    $region12: #{fused_matching.1} parent=1 // pred_region
      %s57 = ssub.s32 96, 96
      %58 = vsyncadd [#allocation6], %s57
      %s60 = sshll.u32 [#allocation7], 4
      %s61 = int_to_ptr.vmem [resolvable:$true] %s60
      %63 = dma.hbm_to_vmem [thread:$0]  %s2, 96, %s61, [#allocation6]
    $region13: #{fused_matching.1} parent=1 // pred_fallthru
      _
    // Predicated region
    $region14: #{fused_matching.1} parent=1 // pred_check
      _
    $region15: #{fused_matching.1} parent=1 // pred_check_branch
      %65 = sbr.rel (0) target = $region17
    $region16: #{fused_matching.1} parent=1 // pred_region
      %s67 = ssub.s32 320, 320
      %68 = vsyncadd [#allocation9], %s67
      %s70 = sshll.u32 [#allocation8], 4
      %s71 = int_to_ptr.vmem [resolvable:$true] %s70
      %73 = dma.hbm_to_vmem [thread:$0]  %s3, 320, %s71, [#allocation9]
    $region17: #{fused_matching.1} parent=1 // pred_fallthru
      _
    // Predicated region
    $region18: #{fused_matching.1} parent=1 // pred_check
      _
    $region19: #{fused_matching.1} parent=1 // pred_check_branch
      %75 = sbr.rel (0) target = $region21
    $region20: #{fused_matching.1} parent=1 // pred_region
      _
    $region21: #{fused_matching.1} parent=1 // pred_fallthru
      _
    // Predicated region
    $region22: #{fused_matching.1} parent=1 // pred_check
      _
    $region23: #{fused_matching.1} parent=1 // pred_check_branch
      %77 = sbr.rel (0) target = $region25
    $region24: #{fused_matching.1} parent=1 // pred_region
      %s79 = ssub.s32 7296, 7296
      %80 = vsyncadd [#allocation9], %s79
      %s81 = sshll.u32 [#allocation10], 4
      %s82 = int_to_ptr.vmem [resolvable:$true] %s81
      %87 = dma.hbm_to_vmem [thread:$0]  %s5, 7296, %s82, [#allocation9], 192, 192, 12
    $region25: #{fused_matching.1} parent=1 // pred_fallthru
      _
    // Predicated region
    $region26: #{fused_matching.1} parent=1 // pred_check
      _
    $region27: #{fused_matching.1} parent=1 // pred_check_branch
      %89 = sbr.rel (0) target = $region29
    $region28: #{fused_matching.1} parent=1 // pred_region
      %s91 = ssub.s32 48, 48
      %92 = vsyncadd [#allocation12], %s91
      %s94 = sshll.u32 [#allocation11], 4
      %s95 = int_to_ptr.vmem [resolvable:$true] %s94
      %97 = dma.hbm_to_vmem [thread:$0]  %s6, 48, %s95, [#allocation12]
    $region29: #{fused_matching.1} parent=1 // pred_fallthru
      _
    // Predicated region
    $region30: #{fused_matching.1} parent=1 // pred_check
      _
    $region31: #{fused_matching.1} parent=1 // pred_check_branch
      %99 = sbr.rel (0) target = $region33
    $region32: #{fused_matching.1} parent=1 // pred_region
      %s101 = ssub.s32 48, 48
      %102 = vsyncadd [#allocation12], %s101
      %s104 = sshll.u32 [#allocation13], 4
      %s105 = int_to_ptr.vmem [resolvable:$true] %s104
      %107 = dma.hbm_to_vmem [thread:$0]  %s7, 48, %s105, [#allocation12]
    $region33: #{fused_matching.1} parent=1 // pred_fallthru
      _
    // Predicated region
    $region34: #{fused_matching.1} parent=1 // pred_check
      _
    $region35: #{fused_matching.1} parent=1 // pred_check_branch
      %109 = sbr.rel (0) target = $region37
    $region36: #{fused_matching.1} parent=1 // pred_region
      %s111 = ssub.s32 48, 48
      %112 = vsyncadd [#allocation15], %s111
      %s114 = sshll.u32 [#allocation14], 4
      %s115 = int_to_ptr.vmem [resolvable:$true] %s114
      %117 = dma.hbm_to_vmem [thread:$0]  %s8, 48, %s115, [#allocation15]
    $region37: #{fused_matching.1} parent=1 // pred_fallthru
      _
    // Predicated region
    $region38: #{fused_matching.1} parent=1 // pred_check
      _
    $region39: #{fused_matching.1} parent=1 // pred_check_branch
      %119 = sbr.rel (0) target = $region41
    $region40: #{fused_matching.1} parent=1 // pred_region
      _
    $region41: #{fused_matching.1} parent=1 // pred_fallthru
      _
    // Predicated region
    $region42: #{fused_matching.1} parent=1 // pred_check
      _
    $region43: #{fused_matching.1} parent=1 // pred_check_branch
      %121 = sbr.rel (0) target = $region45
    $region44: #{fused_matching.1} parent=1 // pred_region
      _
    $region45: #{fused_matching.1} parent=1 // pred_fallthru
      _
    // Predicated region
    $region46: #{fused_matching.1} parent=1 // pred_check
      _
    $region47: #{fused_matching.1} parent=1 // pred_check_branch
      %123 = sbr.rel (0) target = $region49
    $region48: #{fused_matching.1} parent=1 // pred_region
      %s125 = ssub.s32 160, 160
      %126 = vsyncadd [#allocation15], %s125
      %s128 = sshll.u32 [#allocation16], 4
      %s129 = int_to_ptr.vmem [resolvable:$true] %s128
      %131 = dma.hbm_to_vmem [thread:$0]  %s11, 160, %s129, [#allocation15]
    $region49: #{fused_matching.1} parent=1 // pred_fallthru
      _
    // Predicated region
    $region50: #{fused_matching.1} parent=1 // pred_check
      _
    $region51: #{fused_matching.1} parent=1 // pred_check_branch
      %133 = sbr.rel (0) target = $region53
    $region52: #{fused_matching.1} parent=1 // pred_region
      %s135 = ssub.s32 76800, 76800
      %136 = vsyncadd [#allocation18], %s135
      %s137 = sshll.u32 [#allocation17], 4
      %s138 = int_to_ptr.vmem [resolvable:$true] %s137
      %143 = dma.hbm_to_vmem [thread:$0]  %s12, 76800, %s138, [#allocation18], 512, 512, 32
    $region53: #{fused_matching.1} parent=1 // pred_fallthru
      _
    // Predicated region
    $region54: #{fused_matching.1} parent=1 // pred_check
      _
    $region55: #{fused_matching.1} parent=1 // pred_check_branch
      %145 = sbr.rel (0) target = $region57
    $region56: #{fused_matching.1} parent=1 // pred_region
      %s147 = ssub.s32 128, 128
      %148 = vsyncadd [#allocation18], %s147
      %s150 = sshll.u32 [#allocation19], 4
      %s151 = int_to_ptr.vmem [resolvable:$true] %s150
      %153 = dma.hbm_to_vmem [thread:$0]  %s13, 128, %s151, [#allocation18]
    $region57: #{fused_matching.1} parent=1 // pred_fallthru
      _
    // Predicated region
    $region58: #{fused_matching.1} parent=1 // pred_check
      _
    $region59: #{fused_matching.1} parent=1 // pred_check_branch
      %155 = sbr.rel (0) target = $region61
    $region60: #{fused_matching.1} parent=1 // pred_region
      %s157 = ssub.s32 128, 128
      %158 = vsyncadd [#allocation21], %s157
      %s160 = sshll.u32 [#allocation20], 4
      %s161 = int_to_ptr.vmem [resolvable:$true] %s160
      %163 = dma.hbm_to_vmem [thread:$0]  %s14, 128, %s161, [#allocation21]
    $region61: #{fused_matching.1} parent=1 // pred_fallthru
      _
    // Predicated region
    $region62: #{fused_matching.1} parent=1 // pred_check
      _
    $region63: #{fused_matching.1} parent=1 // pred_check_branch
      %165 = sbr.rel (0) target = $region65
    $region64: #{fused_matching.1} parent=1 // pred_region
      _
    $region65: #{fused_matching.1} parent=1 // pred_fallthru
      _
    // Predicated region
    $region66: #{fused_matching.1} parent=1 // pred_check
      _
    $region67: #{fused_matching.1} parent=1 // pred_check_branch
      %167 = sbr.rel (0) target = $region69
    $region68: #{fused_matching.1} parent=1 // pred_region
      %168 = dma.done [#allocation4], 256
    $region69: #{fused_matching.1} parent=1 // pred_fallthru
      _
    // Predicated region
    $region70: #{fused_matching.1} parent=1 // pred_check
      _
    $region71: #{fused_matching.1} parent=1 // pred_check_branch
      %170 = sbr.rel (0) target = $region73
    $region72: #{fused_matching.1} parent=1 // pred_region
      %171 = dma.done [#allocation6], 768
    $region73: #{fused_matching.1} parent=1 // pred_fallthru
      _
    // Predicated region
    $region74: #{fused_matching.1} parent=1 // pred_check
      _
    $region75: #{fused_matching.1} parent=1 // pred_check_branch
      %173 = sbr.rel (0) target = $region77
    $region76: #{fused_matching.1} parent=1 // pred_region
      %174 = dma.done [#allocation6], 96
    $region77: #{fused_matching.1} parent=1 // pred_fallthru
      _
    // Predicated region
    $region78: #{fused_matching.1} parent=1 // pred_check
      _
    $region79: #{fused_matching.1} parent=1 // pred_check_branch
      %176 = sbr.rel (0) target = $region81
    $region80: #{fused_matching.1} parent=1 // pred_region
      %177 = dma.done [#allocation9], 320
    $region81: #{fused_matching.1} parent=1 // pred_fallthru
      _
    // Predicated region
    $region82: #{fused_matching.1} parent=1 // pred_check
      _
    $region83: #{fused_matching.1} parent=1 // pred_check_branch
      %179 = sbr.rel (0) target = $region85
    $region84: #{fused_matching.1} parent=1 // pred_region
      %180 = dma.done [#allocation9], 7296
    $region85: #{fused_matching.1} parent=1 // pred_fallthru
      _
    // Predicated region
    $region86: #{fused_matching.1} parent=1 // pred_check
      _
    $region87: #{fused_matching.1} parent=1 // pred_check_branch
      %182 = sbr.rel (0) target = $region89
    $region88: #{fused_matching.1} parent=1 // pred_region
      %183 = dma.done [#allocation12], 48
    $region89: #{fused_matching.1} parent=1 // pred_fallthru
      _
    // Predicated region
    $region90: #{fused_matching.1} parent=1 // pred_check
      _
    $region91: #{fused_matching.1} parent=1 // pred_check_branch
      %185 = sbr.rel (0) target = $region93
    $region92: #{fused_matching.1} parent=1 // pred_region
      %186 = dma.done [#allocation12], 48
    $region93: #{fused_matching.1} parent=1 // pred_fallthru
      _
    // Predicated region
    $region94: #{fused_matching.1} parent=1 // pred_check
      _
    $region95: #{fused_matching.1} parent=1 // pred_check_branch
      %188 = sbr.rel (0) target = $region97
    $region96: #{fused_matching.1} parent=1 // pred_region
      %189 = dma.done [#allocation15], 48
    $region97: #{fused_matching.1} parent=1 // pred_fallthru
      _
    // Predicated region
    $region98: #{fused_matching.1} parent=1 // pred_check
      _
    $region99: #{fused_matching.1} parent=1 // pred_check_branch
      %191 = sbr.rel (0) target = $region101
    $region100: #{fused_matching.1} parent=1 // pred_region
      %192 = dma.done [#allocation15], 160
    $region101: #{fused_matching.1} parent=1 // pred_fallthru
      _
    // Predicated region
    $region102: #{fused_matching.1} parent=1 // pred_check
      _
    $region103: #{fused_matching.1} parent=1 // pred_check_branch
      %194 = sbr.rel (0) target = $region105
    $region104: #{fused_matching.1} parent=1 // pred_region
      %195 = dma.done [#allocation18], 76800
    $region105: #{fused_matching.1} parent=1 // pred_fallthru
      _
    // Predicated region
    $region106: #{fused_matching.1} parent=1 // pred_check
      _
    $region107: #{fused_matching.1} parent=1 // pred_check_branch
      %197 = sbr.rel (0) target = $region109
    $region108: #{fused_matching.1} parent=1 // pred_region
      %198 = dma.done [#allocation18], 128
    $region109: #{fused_matching.1} parent=1 // pred_fallthru
      _
    // Predicated region
    $region110: #{fused_matching.1} parent=1 // pred_check
      _
    $region111: #{fused_matching.1} parent=1 // pred_check_branch
      %200 = sbr.rel (0) target = $region113
    $region112: #{fused_matching.1} parent=1 // pred_region
      %201 = dma.done [#allocation21], 128
    $region113: #{fused_matching.1} parent=1 // pred_fallthru
      _
    %v203 = vld [vmem:[#allocation3] sm:$0xff]
    %v204 = vld [vmem:[#allocation3 + $0x8] sm:$0xff]
    %v205 = vld [vmem:[#allocation5] sm:$0xff]
    %v206 = vld [vmem:[#allocation5 + $0x8] sm:$0xff]
    %v207 = vld [vmem:[#allocation5 + $0x10] sm:$0xff]
    %v208 = vld [vmem:[#allocation5 + $0x18] sm:$0xff]
    %v209 = vld [vmem:[#allocation5 + $0x20] sm:$0xff]
    %v210 = vld [vmem:[#allocation5 + $0x28] sm:$0xff]
    %vm211 = vcmp.gt.f32.partialorder %v203, 0.0
    %vm212 = vcmp.gt.f32.partialorder %v204, 0.0
    %v213 = vsel %vm211, 0.0, -1e+30
    %v214 = vsel %vm212, 0.0, -1e+30
    %v215 = vpack.c.bf16 %v208, %v205
    %v216 = vpack.c.bf16 %v209, %v206
    %v217 = vpack.c.bf16 %v210, %v207
    %v218 = vld [vmem:[%s4] sm:$0xff]
    %v219 = vld [vmem:[%s4 + $0x8] sm:$0xf]
    %v220 = vld [vmem:[%s4 + $0xc] sm:$0xff]
    %v221 = vld [vmem:[%s4 + $0x14] sm:$0xf]
    %v222 = vld [vmem:[%s4 + $0x18] sm:$0xff]
    %v223 = vld [vmem:[%s4 + $0x20] sm:$0xf]
    %v224 = vld [vmem:[%s4 + $0x24] sm:$0xff]
    %v225 = vld [vmem:[%s4 + $0x2c] sm:$0xf]
    %v226 = vld [vmem:[%s4 + $0x30] sm:$0xff]
    %v227 = vld [vmem:[%s4 + $0x38] sm:$0xf]
    %v228 = vld [vmem:[%s4 + $0x3c] sm:$0xff]
    %v229 = vld [vmem:[%s4 + $0x44] sm:$0xf]
    %v230 = vld [vmem:[%s4 + $0x48] sm:$0xff]
    %v231 = vld [vmem:[%s4 + $0x50] sm:$0xf]
    %v232 = vld [vmem:[%s4 + $0x54] sm:$0xff]
    %v233 = vld [vmem:[%s4 + $0x5c] sm:$0xf]
    %v234 = vld [vmem:[%s4 + $0x60] sm:$0xff]
    %v235 = vld [vmem:[%s4 + $0x68] sm:$0xf]
    %v236 = vld [vmem:[%s4 + $0x6c] sm:$0xff]
    %v237 = vld [vmem:[%s4 + $0x74] sm:$0xf]
    %v238 = vld [vmem:[%s4 + $0x78] sm:$0xff]
    %v239 = vld [vmem:[%s4 + $0x80] sm:$0xf]
    %v240 = vld [vmem:[%s4 + $0x84] sm:$0xff]
    %v241 = vld [vmem:[%s4 + $0x8c] sm:$0xf]
    %v242 = vld [vmem:[%s4 + $0x90] sm:$0xff]
    %v243 = vld [vmem:[%s4 + $0x98] sm:$0xf]
    %v244 = vld [vmem:[%s4 + $0x9c] sm:$0xff]
    %v245 = vld [vmem:[%s4 + $0xa4] sm:$0xf]
    %v246 = vld [vmem:[%s4 + $0xa8] sm:$0xff]
    %v247 = vld [vmem:[%s4 + $0xb0] sm:$0xf]
    %v248 = vld [vmem:[%s4 + $0xb4] sm:$0xff]
    %v249 = vld [vmem:[%s4 + $0xbc] sm:$0xf]
    %v250 = vld [vmem:[%s4 + $0xc0] sm:$0xff]
    %v251 = vld [vmem:[%s4 + $0xc8] sm:$0xf]
    %v252 = vld [vmem:[%s4 + $0xcc] sm:$0xff]
    %v253 = vld [vmem:[%s4 + $0xd4] sm:$0xf]
    %v254 = vld [vmem:[%s4 + $0xd8] sm:$0xff]
    %v255 = vld [vmem:[%s4 + $0xe0] sm:$0xf]
    %v256 = vld [vmem:[%s4 + $0xe4] sm:$0xff]
    %v257 = vld [vmem:[%s4 + $0xec] sm:$0xf]
    %v258 = vld [vmem:[%s4 + $0xf0] sm:$0xff]
    %v259 = vld [vmem:[%s4 + $0xf8] sm:$0xf]
    %v260 = vld [vmem:[%s4 + $0xfc] sm:$0xff]
    %v261 = vld [vmem:[%s4 + $0x104] sm:$0xf]
    %v262 = vld [vmem:[%s4 + $0x108] sm:$0xff]
    %v263 = vld [vmem:[%s4 + $0x110] sm:$0xf]
    %v264 = vld [vmem:[%s4 + $0x114] sm:$0xff]
    %v265 = vld [vmem:[%s4 + $0x11c] sm:$0xf]
    %v266 = vld [vmem:[%s4 + $0x120] sm:$0xff]
    %v267 = vld [vmem:[%s4 + $0x128] sm:$0xf]
    %v268 = vld [vmem:[%s4 + $0x12c] sm:$0xff]
    %v269 = vld [vmem:[%s4 + $0x134] sm:$0xf]
    %v270 = vld [vmem:[%s4 + $0x138] sm:$0xff]
    %v271 = vld [vmem:[%s4 + $0x140] sm:$0xf]
    %v272 = vld [vmem:[%s4 + $0x144] sm:$0xff]
    %v273 = vld [vmem:[%s4 + $0x14c] sm:$0xf]
    %v274 = vld [vmem:[%s4 + $0x150] sm:$0xff]
    %v275 = vld [vmem:[%s4 + $0x158] sm:$0xf]
    %v276 = vld [vmem:[%s4 + $0x15c] sm:$0xff]
    %v277 = vld [vmem:[%s4 + $0x164] sm:$0xf]
    %v278 = vld [vmem:[%s4 + $0x168] sm:$0xff]
    %v279 = vld [vmem:[%s4 + $0x170] sm:$0xf]
    %v280 = vld [vmem:[%s4 + $0x174] sm:$0xff]
    %v281 = vld [vmem:[%s4 + $0x17c] sm:$0xf]
    %v282 = vld [vmem:[%s4 + $0x180] sm:$0xff]
    %v283 = vld [vmem:[%s4 + $0x188] sm:$0xf]
    %v284 = vld [vmem:[%s4 + $0x18c] sm:$0xff]
    %v285 = vld [vmem:[%s4 + $0x194] sm:$0xf]
    %v286 = vld [vmem:[%s4 + $0x198] sm:$0xff]
    %v287 = vld [vmem:[%s4 + $0x1a0] sm:$0xf]
    %v288 = vld [vmem:[%s4 + $0x1a4] sm:$0xff]
    %v289 = vld [vmem:[%s4 + $0x1ac] sm:$0xf]
    %v290 = vld [vmem:[%s4 + $0x1b0] sm:$0xff]
    %v291 = vld [vmem:[%s4 + $0x1b8] sm:$0xf]
    %v292 = vld [vmem:[%s4 + $0x1bc] sm:$0x33]
    %v293 = vld [vmem:[%s4 + $0x1c4] sm:$0x3]
    %v370 = vunpack.c.l.b16 %v218
    %v371 = vunpack.c.h.b16 %v218
    %v372 = vunpack.c.l.b16 %v219
    %v373 = vunpack.c.l.b16 %v220
    %v374 = vunpack.c.h.b16 %v220
    %v375 = vunpack.c.l.b16 %v221
    %v376 = vunpack.c.l.b16 %v222
    %v377 = vunpack.c.h.b16 %v222
    %v378 = vunpack.c.l.b16 %v223
    %v379 = vunpack.c.l.b16 %v224
    %v380 = vunpack.c.h.b16 %v224
    %v381 = vunpack.c.l.b16 %v225
    %v382 = vunpack.c.l.b16 %v226
    %v383 = vunpack.c.h.b16 %v226
    %v384 = vunpack.c.l.b16 %v227
    %v385 = vunpack.c.l.b16 %v228
    %v386 = vunpack.c.h.b16 %v228
    %v387 = vunpack.c.l.b16 %v229
    %v388 = vunpack.c.l.b16 %v230
    %v389 = vunpack.c.h.b16 %v230
    %v390 = vunpack.c.l.b16 %v231
    %v391 = vunpack.c.l.b16 %v232
    %v392 = vunpack.c.h.b16 %v232
    %v393 = vunpack.c.l.b16 %v233
    %v394 = vunpack.c.l.b16 %v234
    %v395 = vunpack.c.h.b16 %v234
    %v396 = vunpack.c.l.b16 %v235
    %v397 = vunpack.c.l.b16 %v236
    %v398 = vunpack.c.h.b16 %v236
    %v399 = vunpack.c.l.b16 %v237
    %v400 = vunpack.c.l.b16 %v238
    %v401 = vunpack.c.h.b16 %v238
    %v402 = vunpack.c.l.b16 %v239
    %v403 = vunpack.c.l.b16 %v240
    %v404 = vunpack.c.h.b16 %v240
    %v405 = vunpack.c.l.b16 %v241
    %v406 = vunpack.c.l.b16 %v242
    %v407 = vunpack.c.h.b16 %v242
    %v408 = vunpack.c.l.b16 %v243
    %v409 = vunpack.c.l.b16 %v244
    %v410 = vunpack.c.h.b16 %v244
    %v411 = vunpack.c.l.b16 %v245
    %v412 = vunpack.c.l.b16 %v246
    %v413 = vunpack.c.h.b16 %v246
    %v414 = vunpack.c.l.b16 %v247
    %v415 = vunpack.c.l.b16 %v248
    %v416 = vunpack.c.h.b16 %v248
    %v417 = vunpack.c.l.b16 %v249
    %v418 = vunpack.c.l.b16 %v250
    %v419 = vunpack.c.h.b16 %v250
    %v420 = vunpack.c.l.b16 %v251
    %v421 = vunpack.c.l.b16 %v252
    %v422 = vunpack.c.h.b16 %v252
    %v423 = vunpack.c.l.b16 %v253
    %v424 = vunpack.c.l.b16 %v254
    %v425 = vunpack.c.h.b16 %v254
    %v426 = vunpack.c.l.b16 %v255
    %v427 = vunpack.c.l.b16 %v256
    %v428 = vunpack.c.h.b16 %v256
    %v429 = vunpack.c.l.b16 %v257
    %v430 = vunpack.c.l.b16 %v258
    %v431 = vunpack.c.h.b16 %v258
    %v432 = vunpack.c.l.b16 %v259
    %v433 = vunpack.c.l.b16 %v260
    %v434 = vunpack.c.h.b16 %v260
    %v435 = vunpack.c.l.b16 %v261
    %v436 = vunpack.c.l.b16 %v262
    %v437 = vunpack.c.h.b16 %v262
    %v438 = vunpack.c.l.b16 %v263
    %v439 = vunpack.c.l.b16 %v264
    %v440 = vunpack.c.h.b16 %v264
    %v441 = vunpack.c.l.b16 %v265
    %v442 = vunpack.c.l.b16 %v266
    %v443 = vunpack.c.h.b16 %v266
    %v444 = vunpack.c.l.b16 %v267
    %v445 = vunpack.c.l.b16 %v268
    %v446 = vunpack.c.h.b16 %v268
    %v447 = vunpack.c.l.b16 %v269
    %v448 = vunpack.c.l.b16 %v270
    %v449 = vunpack.c.h.b16 %v270
    %v450 = vunpack.c.l.b16 %v271
    %v451 = vunpack.c.l.b16 %v272
    %v452 = vunpack.c.h.b16 %v272
    %v453 = vunpack.c.l.b16 %v273
    %v454 = vunpack.c.l.b16 %v274
    %v455 = vunpack.c.h.b16 %v274
    %v456 = vunpack.c.l.b16 %v275
    %v457 = vunpack.c.l.b16 %v276
    %v458 = vunpack.c.h.b16 %v276
    %v459 = vunpack.c.l.b16 %v277
    %v460 = vunpack.c.l.b16 %v278
    %v461 = vunpack.c.h.b16 %v278
    %v462 = vunpack.c.l.b16 %v279
    %v463 = vunpack.c.l.b16 %v280
    %v464 = vunpack.c.h.b16 %v280
    %v465 = vunpack.c.l.b16 %v281
    %v466 = vunpack.c.l.b16 %v282
    %v467 = vunpack.c.h.b16 %v282
    %v468 = vunpack.c.l.b16 %v283
    %v469 = vunpack.c.l.b16 %v284
    %v470 = vunpack.c.h.b16 %v284
    %v471 = vunpack.c.l.b16 %v285
    %v472 = vunpack.c.l.b16 %v286
    %v473 = vunpack.c.h.b16 %v286
    %v474 = vunpack.c.l.b16 %v287
    %v475 = vunpack.c.l.b16 %v288
    %v476 = vunpack.c.h.b16 %v288
    %v477 = vunpack.c.l.b16 %v289
    %v478 = vunpack.c.l.b16 %v290
    %v479 = vunpack.c.h.b16 %v290
    %v480 = vunpack.c.l.b16 %v291
    %v481 = vunpack.c.l.b16 %v292
    %v482 = vunpack.c.h.b16 %v292
    %v483 = vunpack.c.l.b16 %v293
    %v484 = vpack.c.b16 %v373, %v370
    %v485 = vpack.c.b16 %v374, %v371
    %v486 = vpack.c.b16 %v375, %v372
    %v487 = vpack.c.b16 %v379, %v376
    %v488 = vpack.c.b16 %v380, %v377
    %v489 = vpack.c.b16 %v381, %v378
    %v490 = vpack.c.b16 %v385, %v382
    %v491 = vpack.c.b16 %v386, %v383
    %v492 = vpack.c.b16 %v387, %v384
    %v493 = vpack.c.b16 %v391, %v388
    %v494 = vpack.c.b16 %v392, %v389
    %v495 = vpack.c.b16 %v393, %v390
    %v496 = vpack.c.b16 %v397, %v394
    %v497 = vpack.c.b16 %v398, %v395
    %v498 = vpack.c.b16 %v399, %v396
    %v499 = vpack.c.b16 %v403, %v400
    %v500 = vpack.c.b16 %v404, %v401
    %v501 = vpack.c.b16 %v405, %v402
    %v502 = vpack.c.b16 %v409, %v406
    %v503 = vpack.c.b16 %v410, %v407
    %v504 = vpack.c.b16 %v411, %v408
    %v505 = vpack.c.b16 %v415, %v412
    %v506 = vpack.c.b16 %v416, %v413
    %v507 = vpack.c.b16 %v417, %v414
    %v508 = vpack.c.b16 %v421, %v418
    %v509 = vpack.c.b16 %v422, %v419
    %v510 = vpack.c.b16 %v423, %v420
    %v511 = vpack.c.b16 %v427, %v424
    %v512 = vpack.c.b16 %v428, %v425
    %v513 = vpack.c.b16 %v429, %v426
    %v514 = vpack.c.b16 %v433, %v430
    %v515 = vpack.c.b16 %v434, %v431
    %v516 = vpack.c.b16 %v435, %v432
    %v517 = vpack.c.b16 %v439, %v436
    %v518 = vpack.c.b16 %v440, %v437
    %v519 = vpack.c.b16 %v441, %v438
    %v520 = vpack.c.b16 %v445, %v442
    %v521 = vpack.c.b16 %v446, %v443
    %v522 = vpack.c.b16 %v447, %v444
    %v523 = vpack.c.b16 %v451, %v448
    %v524 = vpack.c.b16 %v452, %v449
    %v525 = vpack.c.b16 %v453, %v450
    %v526 = vpack.c.b16 %v457, %v454
    %v527 = vpack.c.b16 %v458, %v455
    %v528 = vpack.c.b16 %v459, %v456
    %v529 = vpack.c.b16 %v463, %v460
    %v530 = vpack.c.b16 %v464, %v461
    %v531 = vpack.c.b16 %v465, %v462
    %v532 = vpack.c.b16 %v469, %v466
    %v533 = vpack.c.b16 %v470, %v467
    %v534 = vpack.c.b16 %v471, %v468
    %v535 = vpack.c.b16 %v475, %v472
    %v536 = vpack.c.b16 %v476, %v473
    %v537 = vpack.c.b16 %v477, %v474
    %v538 = vpack.c.b16 %v481, %v478
    %v539 = vpack.c.b16 %v482, %v479
    %v540 = vpack.c.b16 %v483, %v480
    %vm595 = vcmask 359424
    %v597 = vsel %vm595, %v217, 0
    %vm599 = vcmask 1045504
    %v601 = vsel %vm599, %v538, 0
    %v604 = vsel %vm599, %v539, 0
    %v607 = vsel %vm599, %v540, 0
    %609 = vmatprep.subr.bf16.mxu0 %v506
    %610 = vmatpush1.bf16.msra.mxu0 %v505
    %611 = vmatprep.subr.bf16.mxu0 %v503
    %612 = vmatpush1.bf16.msra.mxu0 %v502
    %613 = vmatprep.subr.bf16.mxu0 %v500
    %614 = vmatpush1.bf16.msra.mxu0 %v499
    %615 = vmatprep.subr.bf16.mxu0 %v497
    %616 = vmatpush1.bf16.msra.mxu0 %v496
    %617 = vmatprep.subr.bf16.mxu0 %v494
    %618 = vmatpush1.bf16.msra.mxu0 %v493
    %619 = vmatprep.subr.bf16.mxu0 %v491
    %620 = vmatpush1.bf16.msra.mxu0 %v490
    %621 = vmatprep.subr.bf16.mxu0 %v488
    %622 = vmatpush1.bf16.msra.mxu0 %v487
    %623 = vmatprep.subr.bf16.mxu0 %v485
    %624 = vmatpush1.bf16.msra.mxu0 %v484
    %625 = vmatprep.subr.bf16.mxu0 %v530
    %626 = vmatpush2.bf16.msra.mxu0 %v529
    %627 = vmatprep.subr.bf16.mxu0 %v527
    %628 = vmatpush2.bf16.msra.mxu0 %v526
    %629 = vmatprep.subr.bf16.mxu0 %v524
    %630 = vmatpush2.bf16.msra.mxu0 %v523
    %631 = vmatprep.subr.bf16.mxu0 %v521
    %632 = vmatpush2.bf16.msra.mxu0 %v520
    %633 = vmatprep.subr.bf16.mxu0 %v518
    %634 = vmatpush2.bf16.msra.mxu0 %v517
    %635 = vmatprep.subr.bf16.mxu0 %v515
    %636 = vmatpush2.bf16.msra.mxu0 %v514
    %637 = vmatprep.subr.bf16.mxu0 %v512
    %638 = vmatpush2.bf16.msra.mxu0 %v511
    %639 = vmatprep.subr.bf16.mxu0 %v509
    %640 = vmatpush2.bf16.msra.mxu0 %v508
    %641 = vmatprep.mubr.bf16.mxu0 %v216
    %642 = vmatmul.mubr.bf16.gmra.mxu0 %v215
    %v643 = vpop.f32.mrf.mxu0
    %v644 = vadd.f32 0.0, %v643
    %v645 = vpop.f32.mrf.mxu0
    %v646 = vadd.f32 0.0, %v645
    %v647 = vpop.f32.mrf.mxu0
    %v648 = vadd.f32 0.0, %v647
    %v649 = vpop.f32.mrf.mxu0
    %v650 = vadd.f32 0.0, %v649
    %651 = vdwg.mxu0
    %652 = vmatprep.subr.bf16.mxu0 0
    %653 = vmatpush1.bf16.msra.mxu0 0
    %654 = vmatprep.subr.bf16.mxu0 0
    %655 = vmatpush1.bf16.msra.mxu0 0
    %656 = vmatprep.subr.bf16.mxu0 0
    %657 = vmatpush1.bf16.msra.mxu0 0
    %658 = vmatprep.subr.bf16.mxu0 0
    %659 = vmatpush1.bf16.msra.mxu0 0
    %660 = vmatprep.subr.bf16.mxu0 0
    %661 = vmatpush1.bf16.msra.mxu0 0
    %662 = vmatprep.subr.bf16.mxu0 %v604
    %663 = vmatpush1.bf16.msra.mxu0 %v601
    %664 = vmatprep.subr.bf16.mxu0 %v536
    %665 = vmatpush1.bf16.msra.mxu0 %v535
    %666 = vmatprep.subr.bf16.mxu0 %v533
    %667 = vmatpush1.bf16.msra.mxu0 %v532
    %668 = vmatprep.subr.bf16.mxu0 0
    %669 = vmatpush2.bf16.msra.mxu0 0
    %670 = vmatprep.subr.bf16.mxu0 0
    %671 = vmatpush2.bf16.msra.mxu0 0
    %672 = vmatprep.subr.bf16.mxu0 0
    %673 = vmatpush2.bf16.msra.mxu0 0
    %674 = vmatprep.subr.bf16.mxu0 0
    %675 = vmatpush2.bf16.msra.mxu0 0
    %676 = vmatprep.subr.bf16.mxu0 0
    %677 = vmatpush2.bf16.msra.mxu0 0
    %678 = vmatprep.subr.bf16.mxu0 0
    %679 = vmatpush2.bf16.msra.mxu0 0
    %680 = vmatprep.subr.bf16.mxu0 0
    %681 = vmatpush2.bf16.msra.mxu0 0
    %682 = vmatprep.subr.bf16.mxu0 0
    %683 = vmatpush2.bf16.msra.mxu0 0
    %684 = vmatprep.mubr.bf16.mxu0 0
    %685 = vmatmul.mubr.bf16.gmra.mxu0 %v597
    %v686 = vpop.f32.mrf.mxu0
    %v687 = vadd.f32 %v644, %v686
    %v688 = vpop.f32.mrf.mxu0
    %v689 = vadd.f32 %v646, %v688
    %v690 = vpop.f32.mrf.mxu0
    %v691 = vadd.f32 %v648, %v690
    %v692 = vpop.f32.mrf.mxu0
    %v693 = vadd.f32 %v650, %v692
    %694 = vdwg.mxu0
    %695 = vmatprep.subr.bf16.mxu0 0
    %696 = vmatpush1.bf16.msra.mxu0 %v507
    %697 = vmatprep.subr.bf16.mxu0 0
    %698 = vmatpush1.bf16.msra.mxu0 %v504
    %699 = vmatprep.subr.bf16.mxu0 0
    %700 = vmatpush1.bf16.msra.mxu0 %v501
    %701 = vmatprep.subr.bf16.mxu0 0
    %702 = vmatpush1.bf16.msra.mxu0 %v498
    %703 = vmatprep.subr.bf16.mxu0 0
    %704 = vmatpush1.bf16.msra.mxu0 %v495
    %705 = vmatprep.subr.bf16.mxu0 0
    %706 = vmatpush1.bf16.msra.mxu0 %v492
    %707 = vmatprep.subr.bf16.mxu0 0
    %708 = vmatpush1.bf16.msra.mxu0 %v489
    %709 = vmatprep.subr.bf16.mxu0 0
    %710 = vmatpush1.bf16.msra.mxu0 %v486
    %711 = vmatprep.subr.bf16.mxu0 0
    %712 = vmatpush2.bf16.msra.mxu0 %v531
    %713 = vmatprep.subr.bf16.mxu0 0
    %714 = vmatpush2.bf16.msra.mxu0 %v528
    %715 = vmatprep.subr.bf16.mxu0 0
    %716 = vmatpush2.bf16.msra.mxu0 %v525
    %717 = vmatprep.subr.bf16.mxu0 0
    %718 = vmatpush2.bf16.msra.mxu0 %v522
    %719 = vmatprep.subr.bf16.mxu0 0
    %720 = vmatpush2.bf16.msra.mxu0 %v519
    %721 = vmatprep.subr.bf16.mxu0 0
    %722 = vmatpush2.bf16.msra.mxu0 %v516
    %723 = vmatprep.subr.bf16.mxu0 0
    %724 = vmatpush2.bf16.msra.mxu0 %v513
    %725 = vmatprep.subr.bf16.mxu0 0
    %726 = vmatpush2.bf16.msra.mxu0 %v510
    %727 = vmatprep.mubr.bf16.mxu0 %v216
    %728 = vmatmul.mubr.bf16.gmra.mxu0 %v215
    %v729 = vpop.f32.mrf.mxu0
    %v730 = vadd.f32 0.0, %v729
    %v731 = vpop.f32.mrf.mxu0
    %v732 = vpop.f32.mrf.mxu0
    %v733 = vadd.f32 0.0, %v732
    %v734 = vpop.f32.mrf.mxu0
    %735 = vdwg.mxu0
    %736 = vmatprep.subr.bf16.mxu0 0
    %737 = vmatpush1.bf16.msra.mxu0 0
    %738 = vmatprep.subr.bf16.mxu0 0
    %739 = vmatpush1.bf16.msra.mxu0 0
    %740 = vmatprep.subr.bf16.mxu0 0
    %741 = vmatpush1.bf16.msra.mxu0 0
    %742 = vmatprep.subr.bf16.mxu0 0
    %743 = vmatpush1.bf16.msra.mxu0 0
    %744 = vmatprep.subr.bf16.mxu0 0
    %745 = vmatpush1.bf16.msra.mxu0 0
    %746 = vmatprep.subr.bf16.mxu0 0
    %747 = vmatpush1.bf16.msra.mxu0 %v607
    %748 = vmatprep.subr.bf16.mxu0 0
    %749 = vmatpush1.bf16.msra.mxu0 %v537
    %750 = vmatprep.subr.bf16.mxu0 0
    %751 = vmatpush1.bf16.msra.mxu0 %v534
    %752 = vmatprep.subr.bf16.mxu0 0
    %753 = vmatpush2.bf16.msra.mxu0 0
    %754 = vmatprep.subr.bf16.mxu0 0
    %755 = vmatpush2.bf16.msra.mxu0 0
    %756 = vmatprep.subr.bf16.mxu0 0
    %757 = vmatpush2.bf16.msra.mxu0 0
    %758 = vmatprep.subr.bf16.mxu0 0
    %759 = vmatpush2.bf16.msra.mxu0 0
    %760 = vmatprep.subr.bf16.mxu0 0
    %761 = vmatpush2.bf16.msra.mxu0 0
    %762 = vmatprep.subr.bf16.mxu0 0
    %763 = vmatpush2.bf16.msra.mxu0 0
    %764 = vmatprep.subr.bf16.mxu0 0
    %765 = vmatpush2.bf16.msra.mxu0 0
    %766 = vmatprep.subr.bf16.mxu0 0
    %767 = vmatpush2.bf16.msra.mxu0 0
    %768 = vmatprep.mubr.bf16.mxu0 0
    %769 = vmatmul.mubr.bf16.gmra.mxu0 %v597
    %v770 = vpop.f32.mrf.mxu0
    %v771 = vadd.f32 %v730, %v770
    %v772 = vpop.f32.mrf.mxu0
    %v773 = vpop.f32.mrf.mxu0
    %v774 = vadd.f32 %v733, %v773
    %v775 = vpop.f32.mrf.mxu0
    %776 = vdwg.mxu0
    %779 = vrot.lane.b32.xlu0 %v771, 83
    %v780 = vpop.permute.xlu0 %779
    %781 = vrot.lane.b32.xlu0 %v774, 83
    %v782 = vpop.permute.xlu0 %781
    %785 = vxpose.xlu0.b32.start [1/16] %v780, 128
    %786 = vxpose.xlu0.b32.cont [2/16] %v782, 128
    %787 = vxpose.xlu0.b32.cont [3/16] 0.0, 128
    %788 = vxpose.xlu0.b32.cont [4/16] 0.0, 128
    %789 = vxpose.xlu0.b32.cont [5/16] 0.0, 128
    %790 = vxpose.xlu0.b32.cont [6/16] 0.0, 128
    %791 = vxpose.xlu0.b32.cont [7/16] 0.0, 128
    %792 = vxpose.xlu0.b32.cont [8/16] 0.0, 128
    %793 = vxpose.xlu0.b32.cont [9/16] 0.0, 128
    %794 = vxpose.xlu0.b32.cont [10/16] 0.0, 128
    %795 = vxpose.xlu0.b32.cont [11/16] 0.0, 128
    %796 = vxpose.xlu0.b32.cont [12/16] 0.0, 128
    %797 = vxpose.xlu0.b32.cont [13/16] 0.0, 128
    %798 = vxpose.xlu0.b32.cont [14/16] 0.0, 128
    %799 = vxpose.xlu0.b32.cont [15/16] 0.0, 128
    %800 = vxpose.xlu0.b32.end [16/16] 0.0, 128
    %v801 = vpop.trf.xlu0
    %v802 = vpop.trf.xlu0
    %v803 = vpop.trf.xlu0
    %v804 = vpop.trf.xlu0
    %v805 = vpop.trf.xlu0
    %v806 = vpop.trf.xlu0
    %v807 = vpop.trf.xlu0
    %v808 = vpop.trf.xlu0
    %v809 = vpop.trf.xlu0
    %v810 = vpop.trf.xlu0
    %v811 = vpop.trf.xlu0
    %v812 = vpop.trf.xlu0
    %v813 = vpop.trf.xlu0
    %v814 = vpop.trf.xlu0
    %v815 = vpop.trf.xlu0
    %v816 = vpop.trf.xlu0
    %817 = vset.pattern.permute.xlu0 44
    %818 = vperm.xlu0 %817, %v771
    %v819 = vpop.permute.xlu0 %818
    %821 = vset.pattern.permute.xlu0 44
    %822 = vperm.xlu0 %821, %v774
    %v823 = vpop.permute.xlu0 %822
    %v825 = vlaneseq
    %v826 = vshrl.u32 %v825, 7
    %v827 = vsub.s32 0, %v826
    %v828 = vrot.slane %v801, %v827
    %v829 = vadd.f32 %v819, %v828
    %v830 = vadd.f32 %v823, %v828
    %vm831 = vcmp.ge.f32.partialorder %v829, 0.0
    %vm832 = vcmp.ge.f32.partialorder %v830, 0.0
    %v833 = vmul.f32 %v829, 0.2
    %v834 = vmul.f32 %v830, 0.2
    %v835 = vsel %vm831, %v829, %v833
    %v836 = vsel %vm832, %v830, %v834
    %v837 = vadd.f32 %v835, %v213
    %v838 = vadd.f32 %v836, %v214
    %vm839 = vcmask 130048
    %v840 = vsel %vm839, %v837, -inf
    %841 = vmax.xlane.f32.xlu0 %v840
    %v842 = vpop.xlane.xlu0 %841
    %v843 = vsel %vm839, %v838, -inf
    %844 = vmax.xlane.f32.xlu0 %v843
    %v845 = vpop.xlane.xlu0 %844
    %v846 = vsub.f32 %v837, %v842
    %v847 = vsub.f32 %v838, %v845
    %v848 = vmul.f32 %v846, 1.442695
    %v849 = vpow.pop %v848
    %v850 = vmul.f32 %v847, 1.442695
    %v851 = vpow.pop %v850
    %v852 = vsel %vm839, %v849, 0.0
    %853 = vadd.xlane.f32.xlu0 %v852
    %v854 = vpop.xlane.xlu0 %853
    %v855 = vsel %vm839, %v851, 0.0
    %856 = vadd.xlane.f32.xlu0 %v855
    %v857 = vpop.xlane.xlu0 %856
    %v858 = vrcp.pop %v854
    %v859 = vrcp.pop %v857
    %v860 = vmul.f32 %v849, %v858
    %v861 = vmul.f32 %v851, %v859
    %v862 = vpack.c.bf16 %v861, %v860
    %v863 = vpack.c.bf16 %v691, %v687
    %v864 = vpack.c.bf16 %v693, %v689
    %v865 = vpack.c.bf16 %v774, %v771
    %v867 = vsel %vm839, %v862, 0
    %869 = vmatprep.subr.bf16.mxu0 0
    %870 = vmatpush1.bf16.msra.mxu0 0
    %871 = vmatprep.subr.bf16.mxu0 0
    %872 = vmatpush1.bf16.msra.mxu0 0
    %873 = vmatprep.subr.bf16.mxu0 0
    %874 = vmatpush1.bf16.msra.mxu0 0
    %875 = vmatprep.subr.bf16.mxu0 0
    %876 = vmatpush1.bf16.msra.mxu0 0
    %877 = vmatprep.subr.bf16.mxu0 0
    %878 = vmatpush1.bf16.msra.mxu0 0
    %879 = vmatprep.subr.bf16.mxu0 0
    %880 = vmatpush1.bf16.msra.mxu0 0
    %881 = vmatprep.subr.bf16.mxu0 0
    %882 = vmatpush1.bf16.msra.mxu0 0
    %883 = vmatprep.subr.bf16.mxu0 %v864
    %884 = vmatpush1.bf16.msra.mxu0 %v863
    %885 = vmatprep.subr.bf16.mxu0 0
    %886 = vmatpush2.bf16.msra.mxu0 0
    %887 = vmatprep.subr.bf16.mxu0 0
    %888 = vmatpush2.bf16.msra.mxu0 0
    %889 = vmatprep.subr.bf16.mxu0 0
    %890 = vmatpush2.bf16.msra.mxu0 0
    %891 = vmatprep.subr.bf16.mxu0 0
    %892 = vmatpush2.bf16.msra.mxu0 0
    %893 = vmatprep.subr.bf16.mxu0 0
    %894 = vmatpush2.bf16.msra.mxu0 0
    %895 = vmatprep.subr.bf16.mxu0 0
    %896 = vmatpush2.bf16.msra.mxu0 0
    %897 = vmatprep.subr.bf16.mxu0 0
    %898 = vmatpush2.bf16.msra.mxu0 0
    %899 = vmatprep.subr.bf16.mxu0 0
    %900 = vmatpush2.bf16.msra.mxu0 0
    %901 = vmatprep.mubr.bf16.mxu0 0
    %902 = vmatmul.mubr.bf16.gmra.mxu0 %v867
    %v903 = vpop.f32.mrf.mxu0
    %v904 = vadd.f32 0.0, %v903
    %v905 = vpop.f32.mrf.mxu0
    %v906 = vadd.f32 0.0, %v905
    %v907 = vpop.f32.mrf.mxu0
    %v908 = vadd.f32 0.0, %v907
    %v909 = vpop.f32.mrf.mxu0
    %v910 = vadd.f32 0.0, %v909
    %911 = vdwg.mxu0
    %912 = vmatprep.subr.bf16.mxu0 0
    %913 = vmatpush1.bf16.msra.mxu0 0
    %914 = vmatprep.subr.bf16.mxu0 0
    %915 = vmatpush1.bf16.msra.mxu0 0
    %916 = vmatprep.subr.bf16.mxu0 0
    %917 = vmatpush1.bf16.msra.mxu0 0
    %918 = vmatprep.subr.bf16.mxu0 0
    %919 = vmatpush1.bf16.msra.mxu0 0
    %920 = vmatprep.subr.bf16.mxu0 0
    %921 = vmatpush1.bf16.msra.mxu0 0
    %922 = vmatprep.subr.bf16.mxu0 0
    %923 = vmatpush1.bf16.msra.mxu0 0
    %924 = vmatprep.subr.bf16.mxu0 0
    %925 = vmatpush1.bf16.msra.mxu0 0
    %926 = vmatprep.subr.bf16.mxu0 0
    %927 = vmatpush1.bf16.msra.mxu0 %v865
    %928 = vmatprep.subr.bf16.mxu0 0
    %929 = vmatpush2.bf16.msra.mxu0 0
    %930 = vmatprep.subr.bf16.mxu0 0
    %931 = vmatpush2.bf16.msra.mxu0 0
    %932 = vmatprep.subr.bf16.mxu0 0
    %933 = vmatpush2.bf16.msra.mxu0 0
    %934 = vmatprep.subr.bf16.mxu0 0
    %935 = vmatpush2.bf16.msra.mxu0 0
    %936 = vmatprep.subr.bf16.mxu0 0
    %937 = vmatpush2.bf16.msra.mxu0 0
    %938 = vmatprep.subr.bf16.mxu0 0
    %939 = vmatpush2.bf16.msra.mxu0 0
    %940 = vmatprep.subr.bf16.mxu0 0
    %941 = vmatpush2.bf16.msra.mxu0 0
    %942 = vmatprep.subr.bf16.mxu0 0
    %943 = vmatpush2.bf16.msra.mxu0 0
    %944 = vmatprep.mubr.bf16.mxu0 0
    %945 = vmatmul.mubr.bf16.gmra.mxu0 %v867
    %v946 = vpop.f32.mrf.mxu0
    %v947 = vadd.f32 0.0, %v946
    %v948 = vpop.f32.mrf.mxu0
    %v949 = vpop.f32.mrf.mxu0
    %v950 = vadd.f32 0.0, %v949
    %v951 = vpop.f32.mrf.mxu0
    %952 = vdwg.mxu0
    %vm953 = vcmp.ge.f32.partialorder %v904, 0.0
    %vm954 = vcmp.ge.f32.partialorder %v906, 0.0
    %vm955 = vcmp.ge.f32.partialorder %v947, 0.0
    %vm956 = vcmp.ge.f32.partialorder %v908, 0.0
    %vm957 = vcmp.ge.f32.partialorder %v910, 0.0
    %vm958 = vcmp.ge.f32.partialorder %v950, 0.0
    %v959 = vmul.f32 %v904, 0.2
    %v960 = vmul.f32 %v906, 0.2
    %v961 = vmul.f32 %v947, 0.2
    %v962 = vmul.f32 %v908, 0.2
    %v963 = vmul.f32 %v910, 0.2
    %v964 = vmul.f32 %v950, 0.2
    %v965 = vsel %vm953, %v904, %v959
    %v966 = vsel %vm954, %v906, %v960
    %v967 = vsel %vm955, %v947, %v961
    %v968 = vsel %vm956, %v908, %v962
    %v969 = vsel %vm957, %v910, %v963
    %v970 = vsel %vm958, %v950, %v964
    %v971 = vpack.c.bf16 %v968, %v965
    %v972 = vpack.c.bf16 %v969, %v966
    %v973 = vpack.c.bf16 %v970, %v967
    %s974 = scalar_lea.vmem %s4, 456
    %v975 = vld [vmem:[%s974] sm:$0xff]
    %v976 = vld [vmem:[%s974 + $0x8] sm:$0xf]
    %v977 = vld [vmem:[%s974 + $0xc] sm:$0xff]
    %v978 = vld [vmem:[%s974 + $0x14] sm:$0xf]
    %v979 = vld [vmem:[%s974 + $0x18] sm:$0xff]
    %v980 = vld [vmem:[%s974 + $0x20] sm:$0xf]
    %v981 = vld [vmem:[%s974 + $0x24] sm:$0xff]
    %v982 = vld [vmem:[%s974 + $0x2c] sm:$0xf]
    %v983 = vld [vmem:[%s974 + $0x30] sm:$0xff]
    %v984 = vld [vmem:[%s974 + $0x38] sm:$0xf]
    %v985 = vld [vmem:[%s974 + $0x3c] sm:$0xff]
    %v986 = vld [vmem:[%s974 + $0x44] sm:$0xf]
    %v987 = vld [vmem:[%s974 + $0x48] sm:$0xff]
    %v988 = vld [vmem:[%s974 + $0x50] sm:$0xf]
    %v989 = vld [vmem:[%s974 + $0x54] sm:$0xff]
    %v990 = vld [vmem:[%s974 + $0x5c] sm:$0xf]
    %v991 = vld [vmem:[%s974 + $0x60] sm:$0xff]
    %v992 = vld [vmem:[%s974 + $0x68] sm:$0xf]
    %v993 = vld [vmem:[%s974 + $0x6c] sm:$0xff]
    %v994 = vld [vmem:[%s974 + $0x74] sm:$0xf]
    %v995 = vld [vmem:[%s974 + $0x78] sm:$0xff]
    %v996 = vld [vmem:[%s974 + $0x80] sm:$0xf]
    %v997 = vld [vmem:[%s974 + $0x84] sm:$0xff]
    %v998 = vld [vmem:[%s974 + $0x8c] sm:$0xf]
    %v999 = vld [vmem:[%s974 + $0x90] sm:$0xff]
    %v1000 = vld [vmem:[%s974 + $0x98] sm:$0xf]
    %v1001 = vld [vmem:[%s974 + $0x9c] sm:$0xff]
    %v1002 = vld [vmem:[%s974 + $0xa4] sm:$0xf]
    %v1003 = vld [vmem:[%s974 + $0xa8] sm:$0xff]
    %v1004 = vld [vmem:[%s974 + $0xb0] sm:$0xf]
    %v1005 = vld [vmem:[%s974 + $0xb4] sm:$0xff]
    %v1006 = vld [vmem:[%s974 + $0xbc] sm:$0xf]
    %v1007 = vld [vmem:[%s974 + $0xc0] sm:$0xff]
    %v1008 = vld [vmem:[%s974 + $0xc8] sm:$0xf]
    %v1009 = vld [vmem:[%s974 + $0xcc] sm:$0xff]
    %v1010 = vld [vmem:[%s974 + $0xd4] sm:$0xf]
    %v1011 = vld [vmem:[%s974 + $0xd8] sm:$0xff]
    %v1012 = vld [vmem:[%s974 + $0xe0] sm:$0xf]
    %v1013 = vld [vmem:[%s974 + $0xe4] sm:$0xff]
    %v1014 = vld [vmem:[%s974 + $0xec] sm:$0xf]
    %v1015 = vld [vmem:[%s974 + $0xf0] sm:$0xff]
    %v1016 = vld [vmem:[%s974 + $0xf8] sm:$0xf]
    %v1017 = vld [vmem:[%s974 + $0xfc] sm:$0xff]
    %v1018 = vld [vmem:[%s974 + $0x104] sm:$0xf]
    %v1019 = vld [vmem:[%s974 + $0x108] sm:$0xff]
    %v1020 = vld [vmem:[%s974 + $0x110] sm:$0xf]
    %v1021 = vld [vmem:[%s974 + $0x114] sm:$0xff]
    %v1022 = vld [vmem:[%s974 + $0x11c] sm:$0xf]
    %v1023 = vld [vmem:[%s974 + $0x120] sm:$0xff]
    %v1024 = vld [vmem:[%s974 + $0x128] sm:$0xf]
    %v1025 = vld [vmem:[%s974 + $0x12c] sm:$0xff]
    %v1026 = vld [vmem:[%s974 + $0x134] sm:$0xf]
    %v1027 = vld [vmem:[%s974 + $0x138] sm:$0xff]
    %v1028 = vld [vmem:[%s974 + $0x140] sm:$0xf]
    %v1029 = vld [vmem:[%s974 + $0x144] sm:$0xff]
    %v1030 = vld [vmem:[%s974 + $0x14c] sm:$0xf]
    %v1031 = vld [vmem:[%s974 + $0x150] sm:$0xff]
    %v1032 = vld [vmem:[%s974 + $0x158] sm:$0xf]
    %v1033 = vld [vmem:[%s974 + $0x15c] sm:$0xff]
    %v1034 = vld [vmem:[%s974 + $0x164] sm:$0xf]
    %v1035 = vld [vmem:[%s974 + $0x168] sm:$0xff]
    %v1036 = vld [vmem:[%s974 + $0x170] sm:$0xf]
    %v1037 = vld [vmem:[%s974 + $0x174] sm:$0xff]
    %v1038 = vld [vmem:[%s974 + $0x17c] sm:$0xf]
    %v1039 = vld [vmem:[%s974 + $0x180] sm:$0xff]
    %v1040 = vld [vmem:[%s974 + $0x188] sm:$0xf]
    %v1041 = vld [vmem:[%s974 + $0x18c] sm:$0xff]
    %v1042 = vld [vmem:[%s974 + $0x194] sm:$0xf]
    %v1043 = vld [vmem:[%s974 + $0x198] sm:$0xff]
    %v1044 = vld [vmem:[%s974 + $0x1a0] sm:$0xf]
    %v1045 = vld [vmem:[%s974 + $0x1a4] sm:$0xff]
    %v1046 = vld [vmem:[%s974 + $0x1ac] sm:$0xf]
    %v1047 = vld [vmem:[%s974 + $0x1b0] sm:$0xff]
    %v1048 = vld [vmem:[%s974 + $0x1b8] sm:$0xf]
    %v1049 = vld [vmem:[%s974 + $0x1bc] sm:$0x33]
    %v1050 = vld [vmem:[%s974 + $0x1c4] sm:$0x3]
    %v1127 = vunpack.c.l.b16 %v975
    %v1128 = vunpack.c.h.b16 %v975
    %v1129 = vunpack.c.l.b16 %v976
    %v1130 = vunpack.c.l.b16 %v977
    %v1131 = vunpack.c.h.b16 %v977
    %v1132 = vunpack.c.l.b16 %v978
    %v1133 = vunpack.c.l.b16 %v979
    %v1134 = vunpack.c.h.b16 %v979
    %v1135 = vunpack.c.l.b16 %v980
    %v1136 = vunpack.c.l.b16 %v981
    %v1137 = vunpack.c.h.b16 %v981
    %v1138 = vunpack.c.l.b16 %v982
    %v1139 = vunpack.c.l.b16 %v983
    %v1140 = vunpack.c.h.b16 %v983
    %v1141 = vunpack.c.l.b16 %v984
    %v1142 = vunpack.c.l.b16 %v985
    %v1143 = vunpack.c.h.b16 %v985
    %v1144 = vunpack.c.l.b16 %v986
    %v1145 = vunpack.c.l.b16 %v987
    %v1146 = vunpack.c.h.b16 %v987
    %v1147 = vunpack.c.l.b16 %v988
    %v1148 = vunpack.c.l.b16 %v989
    %v1149 = vunpack.c.h.b16 %v989
    %v1150 = vunpack.c.l.b16 %v990
    %v1151 = vunpack.c.l.b16 %v991
    %v1152 = vunpack.c.h.b16 %v991
    %v1153 = vunpack.c.l.b16 %v992
    %v1154 = vunpack.c.l.b16 %v993
    %v1155 = vunpack.c.h.b16 %v993
    %v1156 = vunpack.c.l.b16 %v994
    %v1157 = vunpack.c.l.b16 %v995
    %v1158 = vunpack.c.h.b16 %v995
    %v1159 = vunpack.c.l.b16 %v996
    %v1160 = vunpack.c.l.b16 %v997
    %v1161 = vunpack.c.h.b16 %v997
    %v1162 = vunpack.c.l.b16 %v998
    %v1163 = vunpack.c.l.b16 %v999
    %v1164 = vunpack.c.h.b16 %v999
    %v1165 = vunpack.c.l.b16 %v1000
    %v1166 = vunpack.c.l.b16 %v1001
    %v1167 = vunpack.c.h.b16 %v1001
    %v1168 = vunpack.c.l.b16 %v1002
    %v1169 = vunpack.c.l.b16 %v1003
    %v1170 = vunpack.c.h.b16 %v1003
    %v1171 = vunpack.c.l.b16 %v1004
    %v1172 = vunpack.c.l.b16 %v1005
    %v1173 = vunpack.c.h.b16 %v1005
    %v1174 = vunpack.c.l.b16 %v1006
    %v1175 = vunpack.c.l.b16 %v1007
    %v1176 = vunpack.c.h.b16 %v1007
    %v1177 = vunpack.c.l.b16 %v1008
    %v1178 = vunpack.c.l.b16 %v1009
    %v1179 = vunpack.c.h.b16 %v1009
    %v1180 = vunpack.c.l.b16 %v1010
    %v1181 = vunpack.c.l.b16 %v1011
    %v1182 = vunpack.c.h.b16 %v1011
    %v1183 = vunpack.c.l.b16 %v1012
    %v1184 = vunpack.c.l.b16 %v1013
    %v1185 = vunpack.c.h.b16 %v1013
    %v1186 = vunpack.c.l.b16 %v1014
    %v1187 = vunpack.c.l.b16 %v1015
    %v1188 = vunpack.c.h.b16 %v1015
    %v1189 = vunpack.c.l.b16 %v1016
    %v1190 = vunpack.c.l.b16 %v1017
    %v1191 = vunpack.c.h.b16 %v1017
    %v1192 = vunpack.c.l.b16 %v1018
    %v1193 = vunpack.c.l.b16 %v1019
    %v1194 = vunpack.c.h.b16 %v1019
    %v1195 = vunpack.c.l.b16 %v1020
    %v1196 = vunpack.c.l.b16 %v1021
    %v1197 = vunpack.c.h.b16 %v1021
    %v1198 = vunpack.c.l.b16 %v1022
    %v1199 = vunpack.c.l.b16 %v1023
    %v1200 = vunpack.c.h.b16 %v1023
    %v1201 = vunpack.c.l.b16 %v1024
    %v1202 = vunpack.c.l.b16 %v1025
    %v1203 = vunpack.c.h.b16 %v1025
    %v1204 = vunpack.c.l.b16 %v1026
    %v1205 = vunpack.c.l.b16 %v1027
    %v1206 = vunpack.c.h.b16 %v1027
    %v1207 = vunpack.c.l.b16 %v1028
    %v1208 = vunpack.c.l.b16 %v1029
    %v1209 = vunpack.c.h.b16 %v1029
    %v1210 = vunpack.c.l.b16 %v1030
    %v1211 = vunpack.c.l.b16 %v1031
    %v1212 = vunpack.c.h.b16 %v1031
    %v1213 = vunpack.c.l.b16 %v1032
    %v1214 = vunpack.c.l.b16 %v1033
    %v1215 = vunpack.c.h.b16 %v1033
    %v1216 = vunpack.c.l.b16 %v1034
    %v1217 = vunpack.c.l.b16 %v1035
    %v1218 = vunpack.c.h.b16 %v1035
    %v1219 = vunpack.c.l.b16 %v1036
    %v1220 = vunpack.c.l.b16 %v1037
    %v1221 = vunpack.c.h.b16 %v1037
    %v1222 = vunpack.c.l.b16 %v1038
    %v1223 = vunpack.c.l.b16 %v1039
    %v1224 = vunpack.c.h.b16 %v1039
    %v1225 = vunpack.c.l.b16 %v1040
    %v1226 = vunpack.c.l.b16 %v1041
    %v1227 = vunpack.c.h.b16 %v1041
    %v1228 = vunpack.c.l.b16 %v1042
    %v1229 = vunpack.c.l.b16 %v1043
    %v1230 = vunpack.c.h.b16 %v1043
    %v1231 = vunpack.c.l.b16 %v1044
    %v1232 = vunpack.c.l.b16 %v1045
    %v1233 = vunpack.c.h.b16 %v1045
    %v1234 = vunpack.c.l.b16 %v1046
    %v1235 = vunpack.c.l.b16 %v1047
    %v1236 = vunpack.c.h.b16 %v1047
    %v1237 = vunpack.c.l.b16 %v1048
    %v1238 = vunpack.c.l.b16 %v1049
    %v1239 = vunpack.c.h.b16 %v1049
    %v1240 = vunpack.c.l.b16 %v1050
    %v1241 = vpack.c.b16 %v1130, %v1127
    %v1242 = vpack.c.b16 %v1131, %v1128
    %v1243 = vpack.c.b16 %v1132, %v1129
    %v1244 = vpack.c.b16 %v1136, %v1133
    %v1245 = vpack.c.b16 %v1137, %v1134
    %v1246 = vpack.c.b16 %v1138, %v1135
    %v1247 = vpack.c.b16 %v1142, %v1139
    %v1248 = vpack.c.b16 %v1143, %v1140
    %v1249 = vpack.c.b16 %v1144, %v1141
    %v1250 = vpack.c.b16 %v1148, %v1145
    %v1251 = vpack.c.b16 %v1149, %v1146
    %v1252 = vpack.c.b16 %v1150, %v1147
    %v1253 = vpack.c.b16 %v1154, %v1151
    %v1254 = vpack.c.b16 %v1155, %v1152
    %v1255 = vpack.c.b16 %v1156, %v1153
    %v1256 = vpack.c.b16 %v1160, %v1157
    %v1257 = vpack.c.b16 %v1161, %v1158
    %v1258 = vpack.c.b16 %v1162, %v1159
    %v1259 = vpack.c.b16 %v1166, %v1163
    %v1260 = vpack.c.b16 %v1167, %v1164
    %v1261 = vpack.c.b16 %v1168, %v1165
    %v1262 = vpack.c.b16 %v1172, %v1169
    %v1263 = vpack.c.b16 %v1173, %v1170
    %v1264 = vpack.c.b16 %v1174, %v1171
    %v1265 = vpack.c.b16 %v1178, %v1175
    %v1266 = vpack.c.b16 %v1179, %v1176
    %v1267 = vpack.c.b16 %v1180, %v1177
    %v1268 = vpack.c.b16 %v1184, %v1181
    %v1269 = vpack.c.b16 %v1185, %v1182
    %v1270 = vpack.c.b16 %v1186, %v1183
    %v1271 = vpack.c.b16 %v1190, %v1187
    %v1272 = vpack.c.b16 %v1191, %v1188
    %v1273 = vpack.c.b16 %v1192, %v1189
    %v1274 = vpack.c.b16 %v1196, %v1193
    %v1275 = vpack.c.b16 %v1197, %v1194
    %v1276 = vpack.c.b16 %v1198, %v1195
    %v1277 = vpack.c.b16 %v1202, %v1199
    %v1278 = vpack.c.b16 %v1203, %v1200
    %v1279 = vpack.c.b16 %v1204, %v1201
    %v1280 = vpack.c.b16 %v1208, %v1205
    %v1281 = vpack.c.b16 %v1209, %v1206
    %v1282 = vpack.c.b16 %v1210, %v1207
    %v1283 = vpack.c.b16 %v1214, %v1211
    %v1284 = vpack.c.b16 %v1215, %v1212
    %v1285 = vpack.c.b16 %v1216, %v1213
    %v1286 = vpack.c.b16 %v1220, %v1217
    %v1287 = vpack.c.b16 %v1221, %v1218
    %v1288 = vpack.c.b16 %v1222, %v1219
    %v1289 = vpack.c.b16 %v1226, %v1223
    %v1290 = vpack.c.b16 %v1227, %v1224
    %v1291 = vpack.c.b16 %v1228, %v1225
    %v1292 = vpack.c.b16 %v1232, %v1229
    %v1293 = vpack.c.b16 %v1233, %v1230
    %v1294 = vpack.c.b16 %v1234, %v1231
    %v1295 = vpack.c.b16 %v1238, %v1235
    %v1296 = vpack.c.b16 %v1239, %v1236
    %v1297 = vpack.c.b16 %v1240, %v1237
    %v1353 = vsel %vm595, %v973, 0
    %v1356 = vsel %vm599, %v1295, 0
    %v1359 = vsel %vm599, %v1296, 0
    %v1362 = vsel %vm599, %v1297, 0
    %1364 = vmatprep.subr.bf16.mxu0 %v1263
    %1365 = vmatpush1.bf16.msra.mxu0 %v1262
    %1366 = vmatprep.subr.bf16.mxu0 %v1260
    %1367 = vmatpush1.bf16.msra.mxu0 %v1259
    %1368 = vmatprep.subr.bf16.mxu0 %v1257
    %1369 = vmatpush1.bf16.msra.mxu0 %v1256
    %1370 = vmatprep.subr.bf16.mxu0 %v1254
    %1371 = vmatpush1.bf16.msra.mxu0 %v1253
    %1372 = vmatprep.subr.bf16.mxu0 %v1251
    %1373 = vmatpush1.bf16.msra.mxu0 %v1250
    %1374 = vmatprep.subr.bf16.mxu0 %v1248
    %1375 = vmatpush1.bf16.msra.mxu0 %v1247
    %1376 = vmatprep.subr.bf16.mxu0 %v1245
    %1377 = vmatpush1.bf16.msra.mxu0 %v1244
    %1378 = vmatprep.subr.bf16.mxu0 %v1242
    %1379 = vmatpush1.bf16.msra.mxu0 %v1241
    %1380 = vmatprep.subr.bf16.mxu0 %v1287
    %1381 = vmatpush2.bf16.msra.mxu0 %v1286
    %1382 = vmatprep.subr.bf16.mxu0 %v1284
    %1383 = vmatpush2.bf16.msra.mxu0 %v1283
    %1384 = vmatprep.subr.bf16.mxu0 %v1281
    %1385 = vmatpush2.bf16.msra.mxu0 %v1280
    %1386 = vmatprep.subr.bf16.mxu0 %v1278
    %1387 = vmatpush2.bf16.msra.mxu0 %v1277
    %1388 = vmatprep.subr.bf16.mxu0 %v1275
    %1389 = vmatpush2.bf16.msra.mxu0 %v1274
    %1390 = vmatprep.subr.bf16.mxu0 %v1272
    %1391 = vmatpush2.bf16.msra.mxu0 %v1271
    %1392 = vmatprep.subr.bf16.mxu0 %v1269
    %1393 = vmatpush2.bf16.msra.mxu0 %v1268
    %1394 = vmatprep.subr.bf16.mxu0 %v1266
    %1395 = vmatpush2.bf16.msra.mxu0 %v1265
    %1396 = vmatprep.mubr.bf16.mxu0 %v972
    %1397 = vmatmul.mubr.bf16.gmra.mxu0 %v971
    %v1398 = vpop.f32.mrf.mxu0
    %v1399 = vadd.f32 0.0, %v1398
    %v1400 = vpop.f32.mrf.mxu0
    %v1401 = vadd.f32 0.0, %v1400
    %v1402 = vpop.f32.mrf.mxu0
    %v1403 = vadd.f32 0.0, %v1402
    %v1404 = vpop.f32.mrf.mxu0
    %v1405 = vadd.f32 0.0, %v1404
    %1406 = vdwg.mxu0
    %1407 = vmatprep.subr.bf16.mxu0 0
    %1408 = vmatpush1.bf16.msra.mxu0 0
    %1409 = vmatprep.subr.bf16.mxu0 0
    %1410 = vmatpush1.bf16.msra.mxu0 0
    %1411 = vmatprep.subr.bf16.mxu0 0
    %1412 = vmatpush1.bf16.msra.mxu0 0
    %1413 = vmatprep.subr.bf16.mxu0 0
    %1414 = vmatpush1.bf16.msra.mxu0 0
    %1415 = vmatprep.subr.bf16.mxu0 0
    %1416 = vmatpush1.bf16.msra.mxu0 0
    %1417 = vmatprep.subr.bf16.mxu0 %v1359
    %1418 = vmatpush1.bf16.msra.mxu0 %v1356
    %1419 = vmatprep.subr.bf16.mxu0 %v1293
    %1420 = vmatpush1.bf16.msra.mxu0 %v1292
    %1421 = vmatprep.subr.bf16.mxu0 %v1290
    %1422 = vmatpush1.bf16.msra.mxu0 %v1289
    %1423 = vmatprep.subr.bf16.mxu0 0
    %1424 = vmatpush2.bf16.msra.mxu0 0
    %1425 = vmatprep.subr.bf16.mxu0 0
    %1426 = vmatpush2.bf16.msra.mxu0 0
    %1427 = vmatprep.subr.bf16.mxu0 0
    %1428 = vmatpush2.bf16.msra.mxu0 0
    %1429 = vmatprep.subr.bf16.mxu0 0
    %1430 = vmatpush2.bf16.msra.mxu0 0
    %1431 = vmatprep.subr.bf16.mxu0 0
    %1432 = vmatpush2.bf16.msra.mxu0 0
    %1433 = vmatprep.subr.bf16.mxu0 0
    %1434 = vmatpush2.bf16.msra.mxu0 0
    %1435 = vmatprep.subr.bf16.mxu0 0
    %1436 = vmatpush2.bf16.msra.mxu0 0
    %1437 = vmatprep.subr.bf16.mxu0 0
    %1438 = vmatpush2.bf16.msra.mxu0 0
    %1439 = vmatprep.mubr.bf16.mxu0 0
    %1440 = vmatmul.mubr.bf16.gmra.mxu0 %v1353
    %v1441 = vpop.f32.mrf.mxu0
    %v1442 = vadd.f32 %v1399, %v1441
    %v1443 = vpop.f32.mrf.mxu0
    %v1444 = vadd.f32 %v1401, %v1443
    %v1445 = vpop.f32.mrf.mxu0
    %v1446 = vadd.f32 %v1403, %v1445
    %v1447 = vpop.f32.mrf.mxu0
    %v1448 = vadd.f32 %v1405, %v1447
    %1449 = vdwg.mxu0
    %1450 = vmatprep.subr.bf16.mxu0 0
    %1451 = vmatpush1.bf16.msra.mxu0 %v1264
    %1452 = vmatprep.subr.bf16.mxu0 0
    %1453 = vmatpush1.bf16.msra.mxu0 %v1261
    %1454 = vmatprep.subr.bf16.mxu0 0
    %1455 = vmatpush1.bf16.msra.mxu0 %v1258
    %1456 = vmatprep.subr.bf16.mxu0 0
    %1457 = vmatpush1.bf16.msra.mxu0 %v1255
    %1458 = vmatprep.subr.bf16.mxu0 0
    %1459 = vmatpush1.bf16.msra.mxu0 %v1252
    %1460 = vmatprep.subr.bf16.mxu0 0
    %1461 = vmatpush1.bf16.msra.mxu0 %v1249
    %1462 = vmatprep.subr.bf16.mxu0 0
    %1463 = vmatpush1.bf16.msra.mxu0 %v1246
    %1464 = vmatprep.subr.bf16.mxu0 0
    %1465 = vmatpush1.bf16.msra.mxu0 %v1243
    %1466 = vmatprep.subr.bf16.mxu0 0
    %1467 = vmatpush2.bf16.msra.mxu0 %v1288
    %1468 = vmatprep.subr.bf16.mxu0 0
    %1469 = vmatpush2.bf16.msra.mxu0 %v1285
    %1470 = vmatprep.subr.bf16.mxu0 0
    %1471 = vmatpush2.bf16.msra.mxu0 %v1282
    %1472 = vmatprep.subr.bf16.mxu0 0
    %1473 = vmatpush2.bf16.msra.mxu0 %v1279
    %1474 = vmatprep.subr.bf16.mxu0 0
    %1475 = vmatpush2.bf16.msra.mxu0 %v1276
    %1476 = vmatprep.subr.bf16.mxu0 0
    %1477 = vmatpush2.bf16.msra.mxu0 %v1273
    %1478 = vmatprep.subr.bf16.mxu0 0
    %1479 = vmatpush2.bf16.msra.mxu0 %v1270
    %1480 = vmatprep.subr.bf16.mxu0 0
    %1481 = vmatpush2.bf16.msra.mxu0 %v1267
    %1482 = vmatprep.mubr.bf16.mxu0 %v972
    %1483 = vmatmul.mubr.bf16.gmra.mxu0 %v971
    %v1484 = vpop.f32.mrf.mxu0
    %v1485 = vadd.f32 0.0, %v1484
    %v1486 = vpop.f32.mrf.mxu0
    %v1487 = vpop.f32.mrf.mxu0
    %v1488 = vadd.f32 0.0, %v1487
    %v1489 = vpop.f32.mrf.mxu0
    %1490 = vdwg.mxu0
    %1491 = vmatprep.subr.bf16.mxu0 0
    %1492 = vmatpush1.bf16.msra.mxu0 0
    %1493 = vmatprep.subr.bf16.mxu0 0
    %1494 = vmatpush1.bf16.msra.mxu0 0
    %1495 = vmatprep.subr.bf16.mxu0 0
    %1496 = vmatpush1.bf16.msra.mxu0 0
    %1497 = vmatprep.subr.bf16.mxu0 0
    %1498 = vmatpush1.bf16.msra.mxu0 0
    %1499 = vmatprep.subr.bf16.mxu0 0
    %1500 = vmatpush1.bf16.msra.mxu0 0
    %1501 = vmatprep.subr.bf16.mxu0 0
    %1502 = vmatpush1.bf16.msra.mxu0 %v1362
    %1503 = vmatprep.subr.bf16.mxu0 0
    %1504 = vmatpush1.bf16.msra.mxu0 %v1294
    %1505 = vmatprep.subr.bf16.mxu0 0
    %1506 = vmatpush1.bf16.msra.mxu0 %v1291
    %1507 = vmatprep.subr.bf16.mxu0 0
    %1508 = vmatpush2.bf16.msra.mxu0 0
    %1509 = vmatprep.subr.bf16.mxu0 0
    %1510 = vmatpush2.bf16.msra.mxu0 0
    %1511 = vmatprep.subr.bf16.mxu0 0
    %1512 = vmatpush2.bf16.msra.mxu0 0
    %1513 = vmatprep.subr.bf16.mxu0 0
    %1514 = vmatpush2.bf16.msra.mxu0 0
    %1515 = vmatprep.subr.bf16.mxu0 0
    %1516 = vmatpush2.bf16.msra.mxu0 0
    %1517 = vmatprep.subr.bf16.mxu0 0
    %1518 = vmatpush2.bf16.msra.mxu0 0
    %1519 = vmatprep.subr.bf16.mxu0 0
    %1520 = vmatpush2.bf16.msra.mxu0 0
    %1521 = vmatprep.subr.bf16.mxu0 0
    %1522 = vmatpush2.bf16.msra.mxu0 0
    %1523 = vmatprep.mubr.bf16.mxu0 0
    %1524 = vmatmul.mubr.bf16.gmra.mxu0 %v1353
    %v1525 = vpop.f32.mrf.mxu0
    %v1526 = vadd.f32 %v1485, %v1525
    %v1527 = vpop.f32.mrf.mxu0
    %v1528 = vpop.f32.mrf.mxu0
    %v1529 = vadd.f32 %v1488, %v1528
    %v1530 = vpop.f32.mrf.mxu0
    %1531 = vdwg.mxu0
    %1534 = vrot.lane.b32.xlu0 %v1526, 83
    %v1535 = vpop.permute.xlu0 %1534
    %1536 = vrot.lane.b32.xlu0 %v1529, 83
    %v1537 = vpop.permute.xlu0 %1536
    %1540 = vxpose.xlu0.b32.start [1/16] %v1535, 128
    %1541 = vxpose.xlu0.b32.cont [2/16] %v1537, 128
    %1542 = vxpose.xlu0.b32.cont [3/16] 0.0, 128
    %1543 = vxpose.xlu0.b32.cont [4/16] 0.0, 128
    %1544 = vxpose.xlu0.b32.cont [5/16] 0.0, 128
    %1545 = vxpose.xlu0.b32.cont [6/16] 0.0, 128
    %1546 = vxpose.xlu0.b32.cont [7/16] 0.0, 128
    %1547 = vxpose.xlu0.b32.cont [8/16] 0.0, 128
    %1548 = vxpose.xlu0.b32.cont [9/16] 0.0, 128
    %1549 = vxpose.xlu0.b32.cont [10/16] 0.0, 128
    %1550 = vxpose.xlu0.b32.cont [11/16] 0.0, 128
    %1551 = vxpose.xlu0.b32.cont [12/16] 0.0, 128
    %1552 = vxpose.xlu0.b32.cont [13/16] 0.0, 128
    %1553 = vxpose.xlu0.b32.cont [14/16] 0.0, 128
    %1554 = vxpose.xlu0.b32.cont [15/16] 0.0, 128
    %1555 = vxpose.xlu0.b32.end [16/16] 0.0, 128
    %v1556 = vpop.trf.xlu0
    %v1557 = vpop.trf.xlu0
    %v1558 = vpop.trf.xlu0
    %v1559 = vpop.trf.xlu0
    %v1560 = vpop.trf.xlu0
    %v1561 = vpop.trf.xlu0
    %v1562 = vpop.trf.xlu0
    %v1563 = vpop.trf.xlu0
    %v1564 = vpop.trf.xlu0
    %v1565 = vpop.trf.xlu0
    %v1566 = vpop.trf.xlu0
    %v1567 = vpop.trf.xlu0
    %v1568 = vpop.trf.xlu0
    %v1569 = vpop.trf.xlu0
    %v1570 = vpop.trf.xlu0
    %v1571 = vpop.trf.xlu0
    %1572 = vset.pattern.permute.xlu0 44
    %1573 = vperm.xlu0 %1572, %v1526
    %v1574 = vpop.permute.xlu0 %1573
    %1576 = vset.pattern.permute.xlu0 44
    %1577 = vperm.xlu0 %1576, %v1529
    %v1578 = vpop.permute.xlu0 %1577
    %v1580 = vlaneseq
    %v1581 = vshrl.u32 %v1580, 7
    %v1582 = vsub.s32 0, %v1581
    %v1583 = vrot.slane %v1556, %v1582
    %v1584 = vadd.f32 %v1574, %v1583
    %v1585 = vadd.f32 %v1578, %v1583
    %vm1586 = vcmp.ge.f32.partialorder %v1584, 0.0
    %vm1587 = vcmp.ge.f32.partialorder %v1585, 0.0
    %v1588 = vmul.f32 %v1584, 0.2
    %v1589 = vmul.f32 %v1585, 0.2
    %v1590 = vsel %vm1586, %v1584, %v1588
    %v1591 = vsel %vm1587, %v1585, %v1589
    %v1592 = vadd.f32 %v1590, %v213
    %v1593 = vadd.f32 %v1591, %v214
    %v1594 = vsel %vm839, %v1592, -inf
    %1595 = vmax.xlane.f32.xlu0 %v1594
    %v1596 = vpop.xlane.xlu0 %1595
    %v1597 = vsel %vm839, %v1593, -inf
    %1598 = vmax.xlane.f32.xlu0 %v1597
    %v1599 = vpop.xlane.xlu0 %1598
    %v1600 = vsub.f32 %v1592, %v1596
    %v1601 = vsub.f32 %v1593, %v1599
    %v1602 = vmul.f32 %v1600, 1.442695
    %v1603 = vpow.pop %v1602
    %v1604 = vmul.f32 %v1601, 1.442695
    %v1605 = vpow.pop %v1604
    %v1606 = vsel %vm839, %v1603, 0.0
    %1607 = vadd.xlane.f32.xlu0 %v1606
    %v1608 = vpop.xlane.xlu0 %1607
    %v1609 = vsel %vm839, %v1605, 0.0
    %1610 = vadd.xlane.f32.xlu0 %v1609
    %v1611 = vpop.xlane.xlu0 %1610
    %v1612 = vrcp.pop %v1608
    %v1613 = vrcp.pop %v1611
    %v1614 = vmul.f32 %v1603, %v1612
    %v1615 = vmul.f32 %v1605, %v1613
    %v1616 = vpack.c.bf16 %v1615, %v1614
    %v1617 = vpack.c.bf16 %v1446, %v1442
    %v1618 = vpack.c.bf16 %v1448, %v1444
    %v1619 = vpack.c.bf16 %v1529, %v1526
    %v1621 = vsel %vm839, %v1616, 0
    %1623 = vmatprep.subr.bf16.mxu0 0
    %1624 = vmatpush1.bf16.msra.mxu0 0
    %1625 = vmatprep.subr.bf16.mxu0 0
    %1626 = vmatpush1.bf16.msra.mxu0 0
    %1627 = vmatprep.subr.bf16.mxu0 0
    %1628 = vmatpush1.bf16.msra.mxu0 0
    %1629 = vmatprep.subr.bf16.mxu0 0
    %1630 = vmatpush1.bf16.msra.mxu0 0
    %1631 = vmatprep.subr.bf16.mxu0 0
    %1632 = vmatpush1.bf16.msra.mxu0 0
    %1633 = vmatprep.subr.bf16.mxu0 0
    %1634 = vmatpush1.bf16.msra.mxu0 0
    %1635 = vmatprep.subr.bf16.mxu0 0
    %1636 = vmatpush1.bf16.msra.mxu0 0
    %1637 = vmatprep.subr.bf16.mxu0 %v1618
    %1638 = vmatpush1.bf16.msra.mxu0 %v1617
    %1639 = vmatprep.subr.bf16.mxu0 0
    %1640 = vmatpush2.bf16.msra.mxu0 0
    %1641 = vmatprep.subr.bf16.mxu0 0
    %1642 = vmatpush2.bf16.msra.mxu0 0
    %1643 = vmatprep.subr.bf16.mxu0 0
    %1644 = vmatpush2.bf16.msra.mxu0 0
    %1645 = vmatprep.subr.bf16.mxu0 0
    %1646 = vmatpush2.bf16.msra.mxu0 0
    %1647 = vmatprep.subr.bf16.mxu0 0
    %1648 = vmatpush2.bf16.msra.mxu0 0
    %1649 = vmatprep.subr.bf16.mxu0 0
    %1650 = vmatpush2.bf16.msra.mxu0 0
    %1651 = vmatprep.subr.bf16.mxu0 0
    %1652 = vmatpush2.bf16.msra.mxu0 0
    %1653 = vmatprep.subr.bf16.mxu0 0
    %1654 = vmatpush2.bf16.msra.mxu0 0
    %1655 = vmatprep.mubr.bf16.mxu0 0
    %1656 = vmatmul.mubr.bf16.gmra.mxu0 %v1621
    %v1657 = vpop.f32.mrf.mxu0
    %v1658 = vadd.f32 0.0, %v1657
    %v1659 = vpop.f32.mrf.mxu0
    %v1660 = vadd.f32 0.0, %v1659
    %v1661 = vpop.f32.mrf.mxu0
    %v1662 = vadd.f32 0.0, %v1661
    %v1663 = vpop.f32.mrf.mxu0
    %v1664 = vadd.f32 0.0, %v1663
    %1665 = vdwg.mxu0
    %1666 = vmatprep.subr.bf16.mxu0 0
    %1667 = vmatpush1.bf16.msra.mxu0 0
    %1668 = vmatprep.subr.bf16.mxu0 0
    %1669 = vmatpush1.bf16.msra.mxu0 0
    %1670 = vmatprep.subr.bf16.mxu0 0
    %1671 = vmatpush1.bf16.msra.mxu0 0
    %1672 = vmatprep.subr.bf16.mxu0 0
    %1673 = vmatpush1.bf16.msra.mxu0 0
    %1674 = vmatprep.subr.bf16.mxu0 0
    %1675 = vmatpush1.bf16.msra.mxu0 0
    %1676 = vmatprep.subr.bf16.mxu0 0
    %1677 = vmatpush1.bf16.msra.mxu0 0
    %1678 = vmatprep.subr.bf16.mxu0 0
    %1679 = vmatpush1.bf16.msra.mxu0 0
    %1680 = vmatprep.subr.bf16.mxu0 0
    %1681 = vmatpush1.bf16.msra.mxu0 %v1619
    %1682 = vmatprep.subr.bf16.mxu0 0
    %1683 = vmatpush2.bf16.msra.mxu0 0
    %1684 = vmatprep.subr.bf16.mxu0 0
    %1685 = vmatpush2.bf16.msra.mxu0 0
    %1686 = vmatprep.subr.bf16.mxu0 0
    %1687 = vmatpush2.bf16.msra.mxu0 0
    %1688 = vmatprep.subr.bf16.mxu0 0
    %1689 = vmatpush2.bf16.msra.mxu0 0
    %1690 = vmatprep.subr.bf16.mxu0 0
    %1691 = vmatpush2.bf16.msra.mxu0 0
    %1692 = vmatprep.subr.bf16.mxu0 0
    %1693 = vmatpush2.bf16.msra.mxu0 0
    %1694 = vmatprep.subr.bf16.mxu0 0
    %1695 = vmatpush2.bf16.msra.mxu0 0
    %1696 = vmatprep.subr.bf16.mxu0 0
    %1697 = vmatpush2.bf16.msra.mxu0 0
    %1698 = vmatprep.mubr.bf16.mxu0 0
    %1699 = vmatmul.mubr.bf16.gmra.mxu0 %v1621
    %v1700 = vpop.f32.mrf.mxu0
    %v1701 = vadd.f32 0.0, %v1700
    %v1702 = vpop.f32.mrf.mxu0
    %v1703 = vpop.f32.mrf.mxu0
    %v1704 = vadd.f32 0.0, %v1703
    %v1705 = vpop.f32.mrf.mxu0
    %1706 = vdwg.mxu0
    %vm1707 = vcmp.ge.f32.partialorder %v1658, 0.0
    %vm1708 = vcmp.ge.f32.partialorder %v1660, 0.0
    %vm1709 = vcmp.ge.f32.partialorder %v1701, 0.0
    %vm1710 = vcmp.ge.f32.partialorder %v1662, 0.0
    %vm1711 = vcmp.ge.f32.partialorder %v1664, 0.0
    %vm1712 = vcmp.ge.f32.partialorder %v1704, 0.0
    %v1713 = vmul.f32 %v1658, 0.2
    %v1714 = vmul.f32 %v1660, 0.2
    %v1715 = vmul.f32 %v1701, 0.2
    %v1716 = vmul.f32 %v1662, 0.2
    %v1717 = vmul.f32 %v1664, 0.2
    %v1718 = vmul.f32 %v1704, 0.2
    %v1719 = vsel %vm1707, %v1658, %v1713
    %v1720 = vsel %vm1708, %v1660, %v1714
    %v1721 = vsel %vm1709, %v1701, %v1715
    %v1722 = vsel %vm1710, %v1662, %v1716
    %v1723 = vsel %vm1711, %v1664, %v1717
    %v1724 = vsel %vm1712, %v1704, %v1718
    %v1725 = vpack.c.bf16 %v1722, %v1719
    %v1726 = vpack.c.bf16 %v1723, %v1720
    %v1727 = vpack.c.bf16 %v1724, %v1721
    %s1728 = scalar_lea.vmem %s4, 912
    %v1729 = vld [vmem:[%s1728] sm:$0xff]
    %v1730 = vld [vmem:[%s1728 + $0x8] sm:$0xf]
    %v1731 = vld [vmem:[%s1728 + $0xc] sm:$0xff]
    %v1732 = vld [vmem:[%s1728 + $0x14] sm:$0xf]
    %v1733 = vld [vmem:[%s1728 + $0x18] sm:$0xff]
    %v1734 = vld [vmem:[%s1728 + $0x20] sm:$0xf]
    %v1735 = vld [vmem:[%s1728 + $0x24] sm:$0xff]
    %v1736 = vld [vmem:[%s1728 + $0x2c] sm:$0xf]
    %v1737 = vld [vmem:[%s1728 + $0x30] sm:$0xff]
    %v1738 = vld [vmem:[%s1728 + $0x38] sm:$0xf]
    %v1739 = vld [vmem:[%s1728 + $0x3c] sm:$0xff]
    %v1740 = vld [vmem:[%s1728 + $0x44] sm:$0xf]
    %v1741 = vld [vmem:[%s1728 + $0x48] sm:$0xff]
    %v1742 = vld [vmem:[%s1728 + $0x50] sm:$0xf]
    %v1743 = vld [vmem:[%s1728 + $0x54] sm:$0xff]
    %v1744 = vld [vmem:[%s1728 + $0x5c] sm:$0xf]
    %v1745 = vld [vmem:[%s1728 + $0x60] sm:$0xff]
    %v1746 = vld [vmem:[%s1728 + $0x68] sm:$0xf]
    %v1747 = vld [vmem:[%s1728 + $0x6c] sm:$0xff]
    %v1748 = vld [vmem:[%s1728 + $0x74] sm:$0xf]
    %v1749 = vld [vmem:[%s1728 + $0x78] sm:$0xff]
    %v1750 = vld [vmem:[%s1728 + $0x80] sm:$0xf]
    %v1751 = vld [vmem:[%s1728 + $0x84] sm:$0xff]
    %v1752 = vld [vmem:[%s1728 + $0x8c] sm:$0xf]
    %v1753 = vld [vmem:[%s1728 + $0x90] sm:$0xff]
    %v1754 = vld [vmem:[%s1728 + $0x98] sm:$0xf]
    %v1755 = vld [vmem:[%s1728 + $0x9c] sm:$0xff]
    %v1756 = vld [vmem:[%s1728 + $0xa4] sm:$0xf]
    %v1757 = vld [vmem:[%s1728 + $0xa8] sm:$0xff]
    %v1758 = vld [vmem:[%s1728 + $0xb0] sm:$0xf]
    %v1759 = vld [vmem:[%s1728 + $0xb4] sm:$0xff]
    %v1760 = vld [vmem:[%s1728 + $0xbc] sm:$0xf]
    %v1761 = vld [vmem:[%s1728 + $0xc0] sm:$0xff]
    %v1762 = vld [vmem:[%s1728 + $0xc8] sm:$0xf]
    %v1763 = vld [vmem:[%s1728 + $0xcc] sm:$0xff]
    %v1764 = vld [vmem:[%s1728 + $0xd4] sm:$0xf]
    %v1765 = vld [vmem:[%s1728 + $0xd8] sm:$0xff]
    %v1766 = vld [vmem:[%s1728 + $0xe0] sm:$0xf]
    %v1767 = vld [vmem:[%s1728 + $0xe4] sm:$0xff]
    %v1768 = vld [vmem:[%s1728 + $0xec] sm:$0xf]
    %v1769 = vld [vmem:[%s1728 + $0xf0] sm:$0xff]
    %v1770 = vld [vmem:[%s1728 + $0xf8] sm:$0xf]
    %v1771 = vld [vmem:[%s1728 + $0xfc] sm:$0xff]
    %v1772 = vld [vmem:[%s1728 + $0x104] sm:$0xf]
    %v1773 = vld [vmem:[%s1728 + $0x108] sm:$0xff]
    %v1774 = vld [vmem:[%s1728 + $0x110] sm:$0xf]
    %v1775 = vld [vmem:[%s1728 + $0x114] sm:$0xff]
    %v1776 = vld [vmem:[%s1728 + $0x11c] sm:$0xf]
    %v1777 = vld [vmem:[%s1728 + $0x120] sm:$0xff]
    %v1778 = vld [vmem:[%s1728 + $0x128] sm:$0xf]
    %v1779 = vld [vmem:[%s1728 + $0x12c] sm:$0xff]
    %v1780 = vld [vmem:[%s1728 + $0x134] sm:$0xf]
    %v1781 = vld [vmem:[%s1728 + $0x138] sm:$0xff]
    %v1782 = vld [vmem:[%s1728 + $0x140] sm:$0xf]
    %v1783 = vld [vmem:[%s1728 + $0x144] sm:$0xff]
    %v1784 = vld [vmem:[%s1728 + $0x14c] sm:$0xf]
    %v1785 = vld [vmem:[%s1728 + $0x150] sm:$0xff]
    %v1786 = vld [vmem:[%s1728 + $0x158] sm:$0xf]
    %v1787 = vld [vmem:[%s1728 + $0x15c] sm:$0xff]
    %v1788 = vld [vmem:[%s1728 + $0x164] sm:$0xf]
    %v1789 = vld [vmem:[%s1728 + $0x168] sm:$0xff]
    %v1790 = vld [vmem:[%s1728 + $0x170] sm:$0xf]
    %v1791 = vld [vmem:[%s1728 + $0x174] sm:$0xff]
    %v1792 = vld [vmem:[%s1728 + $0x17c] sm:$0xf]
    %v1793 = vld [vmem:[%s1728 + $0x180] sm:$0xff]
    %v1794 = vld [vmem:[%s1728 + $0x188] sm:$0xf]
    %v1795 = vld [vmem:[%s1728 + $0x18c] sm:$0xff]
    %v1796 = vld [vmem:[%s1728 + $0x194] sm:$0xf]
    %v1797 = vld [vmem:[%s1728 + $0x198] sm:$0xff]
    %v1798 = vld [vmem:[%s1728 + $0x1a0] sm:$0xf]
    %v1799 = vld [vmem:[%s1728 + $0x1a4] sm:$0xff]
    %v1800 = vld [vmem:[%s1728 + $0x1ac] sm:$0xf]
    %v1801 = vld [vmem:[%s1728 + $0x1b0] sm:$0xff]
    %v1802 = vld [vmem:[%s1728 + $0x1b8] sm:$0xf]
    %v1803 = vld [vmem:[%s1728 + $0x1bc] sm:$0x33]
    %v1804 = vld [vmem:[%s1728 + $0x1c4] sm:$0x3]
    %v1881 = vunpack.c.l.b16 %v1729
    %v1882 = vunpack.c.h.b16 %v1729
    %v1883 = vunpack.c.l.b16 %v1730
    %v1884 = vunpack.c.l.b16 %v1731
    %v1885 = vunpack.c.h.b16 %v1731
    %v1886 = vunpack.c.l.b16 %v1732
    %v1887 = vunpack.c.l.b16 %v1733
    %v1888 = vunpack.c.h.b16 %v1733
    %v1889 = vunpack.c.l.b16 %v1734
    %v1890 = vunpack.c.l.b16 %v1735
    %v1891 = vunpack.c.h.b16 %v1735
    %v1892 = vunpack.c.l.b16 %v1736
    %v1893 = vunpack.c.l.b16 %v1737
    %v1894 = vunpack.c.h.b16 %v1737
    %v1895 = vunpack.c.l.b16 %v1738
    %v1896 = vunpack.c.l.b16 %v1739
    %v1897 = vunpack.c.h.b16 %v1739
    %v1898 = vunpack.c.l.b16 %v1740
    %v1899 = vunpack.c.l.b16 %v1741
    %v1900 = vunpack.c.h.b16 %v1741
    %v1901 = vunpack.c.l.b16 %v1742
    %v1902 = vunpack.c.l.b16 %v1743
    %v1903 = vunpack.c.h.b16 %v1743
    %v1904 = vunpack.c.l.b16 %v1744
    %v1905 = vunpack.c.l.b16 %v1745
    %v1906 = vunpack.c.h.b16 %v1745
    %v1907 = vunpack.c.l.b16 %v1746
    %v1908 = vunpack.c.l.b16 %v1747
    %v1909 = vunpack.c.h.b16 %v1747
    %v1910 = vunpack.c.l.b16 %v1748
    %v1911 = vunpack.c.l.b16 %v1749
    %v1912 = vunpack.c.h.b16 %v1749
    %v1913 = vunpack.c.l.b16 %v1750
    %v1914 = vunpack.c.l.b16 %v1751
    %v1915 = vunpack.c.h.b16 %v1751
    %v1916 = vunpack.c.l.b16 %v1752
    %v1917 = vunpack.c.l.b16 %v1753
    %v1918 = vunpack.c.h.b16 %v1753
    %v1919 = vunpack.c.l.b16 %v1754
    %v1920 = vunpack.c.l.b16 %v1755
    %v1921 = vunpack.c.h.b16 %v1755
    %v1922 = vunpack.c.l.b16 %v1756
    %v1923 = vunpack.c.l.b16 %v1757
    %v1924 = vunpack.c.h.b16 %v1757
    %v1925 = vunpack.c.l.b16 %v1758
    %v1926 = vunpack.c.l.b16 %v1759
    %v1927 = vunpack.c.h.b16 %v1759
    %v1928 = vunpack.c.l.b16 %v1760
    %v1929 = vunpack.c.l.b16 %v1761
    %v1930 = vunpack.c.h.b16 %v1761
    %v1931 = vunpack.c.l.b16 %v1762
    %v1932 = vunpack.c.l.b16 %v1763
    %v1933 = vunpack.c.h.b16 %v1763
    %v1934 = vunpack.c.l.b16 %v1764
    %v1935 = vunpack.c.l.b16 %v1765
    %v1936 = vunpack.c.h.b16 %v1765
    %v1937 = vunpack.c.l.b16 %v1766
    %v1938 = vunpack.c.l.b16 %v1767
    %v1939 = vunpack.c.h.b16 %v1767
    %v1940 = vunpack.c.l.b16 %v1768
    %v1941 = vunpack.c.l.b16 %v1769
    %v1942 = vunpack.c.h.b16 %v1769
    %v1943 = vunpack.c.l.b16 %v1770
    %v1944 = vunpack.c.l.b16 %v1771
    %v1945 = vunpack.c.h.b16 %v1771
    %v1946 = vunpack.c.l.b16 %v1772
    %v1947 = vunpack.c.l.b16 %v1773
    %v1948 = vunpack.c.h.b16 %v1773
    %v1949 = vunpack.c.l.b16 %v1774
    %v1950 = vunpack.c.l.b16 %v1775
    %v1951 = vunpack.c.h.b16 %v1775
    %v1952 = vunpack.c.l.b16 %v1776
    %v1953 = vunpack.c.l.b16 %v1777
    %v1954 = vunpack.c.h.b16 %v1777
    %v1955 = vunpack.c.l.b16 %v1778
    %v1956 = vunpack.c.l.b16 %v1779
    %v1957 = vunpack.c.h.b16 %v1779
    %v1958 = vunpack.c.l.b16 %v1780
    %v1959 = vunpack.c.l.b16 %v1781
    %v1960 = vunpack.c.h.b16 %v1781
    %v1961 = vunpack.c.l.b16 %v1782
    %v1962 = vunpack.c.l.b16 %v1783
    %v1963 = vunpack.c.h.b16 %v1783
    %v1964 = vunpack.c.l.b16 %v1784
    %v1965 = vunpack.c.l.b16 %v1785
    %v1966 = vunpack.c.h.b16 %v1785
    %v1967 = vunpack.c.l.b16 %v1786
    %v1968 = vunpack.c.l.b16 %v1787
    %v1969 = vunpack.c.h.b16 %v1787
    %v1970 = vunpack.c.l.b16 %v1788
    %v1971 = vunpack.c.l.b16 %v1789
    %v1972 = vunpack.c.h.b16 %v1789
    %v1973 = vunpack.c.l.b16 %v1790
    %v1974 = vunpack.c.l.b16 %v1791
    %v1975 = vunpack.c.h.b16 %v1791
    %v1976 = vunpack.c.l.b16 %v1792
    %v1977 = vunpack.c.l.b16 %v1793
    %v1978 = vunpack.c.h.b16 %v1793
    %v1979 = vunpack.c.l.b16 %v1794
    %v1980 = vunpack.c.l.b16 %v1795
    %v1981 = vunpack.c.h.b16 %v1795
    %v1982 = vunpack.c.l.b16 %v1796
    %v1983 = vunpack.c.l.b16 %v1797
    %v1984 = vunpack.c.h.b16 %v1797
    %v1985 = vunpack.c.l.b16 %v1798
    %v1986 = vunpack.c.l.b16 %v1799
    %v1987 = vunpack.c.h.b16 %v1799
    %v1988 = vunpack.c.l.b16 %v1800
    %v1989 = vunpack.c.l.b16 %v1801
    %v1990 = vunpack.c.h.b16 %v1801
    %v1991 = vunpack.c.l.b16 %v1802
    %v1992 = vunpack.c.l.b16 %v1803
    %v1993 = vunpack.c.h.b16 %v1803
    %v1994 = vunpack.c.l.b16 %v1804
    %v1995 = vpack.c.b16 %v1884, %v1881
    %v1996 = vpack.c.b16 %v1885, %v1882
    %v1997 = vpack.c.b16 %v1886, %v1883
    %v1998 = vpack.c.b16 %v1890, %v1887
    %v1999 = vpack.c.b16 %v1891, %v1888
    %v2000 = vpack.c.b16 %v1892, %v1889
    %v2001 = vpack.c.b16 %v1896, %v1893
    %v2002 = vpack.c.b16 %v1897, %v1894
    %v2003 = vpack.c.b16 %v1898, %v1895
    %v2004 = vpack.c.b16 %v1902, %v1899
    %v2005 = vpack.c.b16 %v1903, %v1900
    %v2006 = vpack.c.b16 %v1904, %v1901
    %v2007 = vpack.c.b16 %v1908, %v1905
    %v2008 = vpack.c.b16 %v1909, %v1906
    %v2009 = vpack.c.b16 %v1910, %v1907
    %v2010 = vpack.c.b16 %v1914, %v1911
    %v2011 = vpack.c.b16 %v1915, %v1912
    %v2012 = vpack.c.b16 %v1916, %v1913
    %v2013 = vpack.c.b16 %v1920, %v1917
    %v2014 = vpack.c.b16 %v1921, %v1918
    %v2015 = vpack.c.b16 %v1922, %v1919
    %v2016 = vpack.c.b16 %v1926, %v1923
    %v2017 = vpack.c.b16 %v1927, %v1924
    %v2018 = vpack.c.b16 %v1928, %v1925
    %v2019 = vpack.c.b16 %v1932, %v1929
    %v2020 = vpack.c.b16 %v1933, %v1930
    %v2021 = vpack.c.b16 %v1934, %v1931
    %v2022 = vpack.c.b16 %v1938, %v1935
    %v2023 = vpack.c.b16 %v1939, %v1936
    %v2024 = vpack.c.b16 %v1940, %v1937
    %v2025 = vpack.c.b16 %v1944, %v1941
    %v2026 = vpack.c.b16 %v1945, %v1942
    %v2027 = vpack.c.b16 %v1946, %v1943
    %v2028 = vpack.c.b16 %v1950, %v1947
    %v2029 = vpack.c.b16 %v1951, %v1948
    %v2030 = vpack.c.b16 %v1952, %v1949
    %v2031 = vpack.c.b16 %v1956, %v1953
    %v2032 = vpack.c.b16 %v1957, %v1954
    %v2033 = vpack.c.b16 %v1958, %v1955
    %v2034 = vpack.c.b16 %v1962, %v1959
    %v2035 = vpack.c.b16 %v1963, %v1960
    %v2036 = vpack.c.b16 %v1964, %v1961
    %v2037 = vpack.c.b16 %v1968, %v1965
    %v2038 = vpack.c.b16 %v1969, %v1966
    %v2039 = vpack.c.b16 %v1970, %v1967
    %v2040 = vpack.c.b16 %v1974, %v1971
    %v2041 = vpack.c.b16 %v1975, %v1972
    %v2042 = vpack.c.b16 %v1976, %v1973
    %v2043 = vpack.c.b16 %v1980, %v1977
    %v2044 = vpack.c.b16 %v1981, %v1978
    %v2045 = vpack.c.b16 %v1982, %v1979
    %v2046 = vpack.c.b16 %v1986, %v1983
    %v2047 = vpack.c.b16 %v1987, %v1984
    %v2048 = vpack.c.b16 %v1988, %v1985
    %v2049 = vpack.c.b16 %v1992, %v1989
    %v2050 = vpack.c.b16 %v1993, %v1990
    %v2051 = vpack.c.b16 %v1994, %v1991
    %v2107 = vsel %vm595, %v1727, 0
    %v2110 = vsel %vm599, %v2049, 0
    %v2113 = vsel %vm599, %v2050, 0
    %v2116 = vsel %vm599, %v2051, 0
    %2118 = vmatprep.subr.bf16.mxu0 %v2017
    %2119 = vmatpush1.bf16.msra.mxu0 %v2016
    %2120 = vmatprep.subr.bf16.mxu0 %v2014
    %2121 = vmatpush1.bf16.msra.mxu0 %v2013
    %2122 = vmatprep.subr.bf16.mxu0 %v2011
    %2123 = vmatpush1.bf16.msra.mxu0 %v2010
    %2124 = vmatprep.subr.bf16.mxu0 %v2008
    %2125 = vmatpush1.bf16.msra.mxu0 %v2007
    %2126 = vmatprep.subr.bf16.mxu0 %v2005
    %2127 = vmatpush1.bf16.msra.mxu0 %v2004
    %2128 = vmatprep.subr.bf16.mxu0 %v2002
    %2129 = vmatpush1.bf16.msra.mxu0 %v2001
    %2130 = vmatprep.subr.bf16.mxu0 %v1999
    %2131 = vmatpush1.bf16.msra.mxu0 %v1998
    %2132 = vmatprep.subr.bf16.mxu0 %v1996
    %2133 = vmatpush1.bf16.msra.mxu0 %v1995
    %2134 = vmatprep.subr.bf16.mxu0 %v2041
    %2135 = vmatpush2.bf16.msra.mxu0 %v2040
    %2136 = vmatprep.subr.bf16.mxu0 %v2038
    %2137 = vmatpush2.bf16.msra.mxu0 %v2037
    %2138 = vmatprep.subr.bf16.mxu0 %v2035
    %2139 = vmatpush2.bf16.msra.mxu0 %v2034
    %2140 = vmatprep.subr.bf16.mxu0 %v2032
    %2141 = vmatpush2.bf16.msra.mxu0 %v2031
    %2142 = vmatprep.subr.bf16.mxu0 %v2029
    %2143 = vmatpush2.bf16.msra.mxu0 %v2028
    %2144 = vmatprep.subr.bf16.mxu0 %v2026
    %2145 = vmatpush2.bf16.msra.mxu0 %v2025
    %2146 = vmatprep.subr.bf16.mxu0 %v2023
    %2147 = vmatpush2.bf16.msra.mxu0 %v2022
    %2148 = vmatprep.subr.bf16.mxu0 %v2020
    %2149 = vmatpush2.bf16.msra.mxu0 %v2019
    %2150 = vmatprep.mubr.bf16.mxu0 %v1726
    %2151 = vmatmul.mubr.bf16.gmra.mxu0 %v1725
    %v2152 = vpop.f32.mrf.mxu0
    %v2153 = vadd.f32 0.0, %v2152
    %v2154 = vpop.f32.mrf.mxu0
    %v2155 = vadd.f32 0.0, %v2154
    %v2156 = vpop.f32.mrf.mxu0
    %v2157 = vadd.f32 0.0, %v2156
    %v2158 = vpop.f32.mrf.mxu0
    %v2159 = vadd.f32 0.0, %v2158
    %2160 = vdwg.mxu0
    %2161 = vmatprep.subr.bf16.mxu0 0
    %2162 = vmatpush1.bf16.msra.mxu0 0
    %2163 = vmatprep.subr.bf16.mxu0 0
    %2164 = vmatpush1.bf16.msra.mxu0 0
    %2165 = vmatprep.subr.bf16.mxu0 0
    %2166 = vmatpush1.bf16.msra.mxu0 0
    %2167 = vmatprep.subr.bf16.mxu0 0
    %2168 = vmatpush1.bf16.msra.mxu0 0
    %2169 = vmatprep.subr.bf16.mxu0 0
    %2170 = vmatpush1.bf16.msra.mxu0 0
    %2171 = vmatprep.subr.bf16.mxu0 %v2113
    %2172 = vmatpush1.bf16.msra.mxu0 %v2110
    %2173 = vmatprep.subr.bf16.mxu0 %v2047
    %2174 = vmatpush1.bf16.msra.mxu0 %v2046
    %2175 = vmatprep.subr.bf16.mxu0 %v2044
    %2176 = vmatpush1.bf16.msra.mxu0 %v2043
    %2177 = vmatprep.subr.bf16.mxu0 0
    %2178 = vmatpush2.bf16.msra.mxu0 0
    %2179 = vmatprep.subr.bf16.mxu0 0
    %2180 = vmatpush2.bf16.msra.mxu0 0
    %2181 = vmatprep.subr.bf16.mxu0 0
    %2182 = vmatpush2.bf16.msra.mxu0 0
    %2183 = vmatprep.subr.bf16.mxu0 0
    %2184 = vmatpush2.bf16.msra.mxu0 0
    %2185 = vmatprep.subr.bf16.mxu0 0
    %2186 = vmatpush2.bf16.msra.mxu0 0
    %2187 = vmatprep.subr.bf16.mxu0 0
    %2188 = vmatpush2.bf16.msra.mxu0 0
    %2189 = vmatprep.subr.bf16.mxu0 0
    %2190 = vmatpush2.bf16.msra.mxu0 0
    %2191 = vmatprep.subr.bf16.mxu0 0
    %2192 = vmatpush2.bf16.msra.mxu0 0
    %2193 = vmatprep.mubr.bf16.mxu0 0
    %2194 = vmatmul.mubr.bf16.gmra.mxu0 %v2107
    %v2195 = vpop.f32.mrf.mxu0
    %v2196 = vadd.f32 %v2153, %v2195
    %v2197 = vpop.f32.mrf.mxu0
    %v2198 = vadd.f32 %v2155, %v2197
    %v2199 = vpop.f32.mrf.mxu0
    %v2200 = vadd.f32 %v2157, %v2199
    %v2201 = vpop.f32.mrf.mxu0
    %v2202 = vadd.f32 %v2159, %v2201
    %2203 = vdwg.mxu0
    %2204 = vmatprep.subr.bf16.mxu0 0
    %2205 = vmatpush1.bf16.msra.mxu0 %v2018
    %2206 = vmatprep.subr.bf16.mxu0 0
    %2207 = vmatpush1.bf16.msra.mxu0 %v2015
    %2208 = vmatprep.subr.bf16.mxu0 0
    %2209 = vmatpush1.bf16.msra.mxu0 %v2012
    %2210 = vmatprep.subr.bf16.mxu0 0
    %2211 = vmatpush1.bf16.msra.mxu0 %v2009
    %2212 = vmatprep.subr.bf16.mxu0 0
    %2213 = vmatpush1.bf16.msra.mxu0 %v2006
    %2214 = vmatprep.subr.bf16.mxu0 0
    %2215 = vmatpush1.bf16.msra.mxu0 %v2003
    %2216 = vmatprep.subr.bf16.mxu0 0
    %2217 = vmatpush1.bf16.msra.mxu0 %v2000
    %2218 = vmatprep.subr.bf16.mxu0 0
    %2219 = vmatpush1.bf16.msra.mxu0 %v1997
    %2220 = vmatprep.subr.bf16.mxu0 0
    %2221 = vmatpush2.bf16.msra.mxu0 %v2042
    %2222 = vmatprep.subr.bf16.mxu0 0
    %2223 = vmatpush2.bf16.msra.mxu0 %v2039
    %2224 = vmatprep.subr.bf16.mxu0 0
    %2225 = vmatpush2.bf16.msra.mxu0 %v2036
    %2226 = vmatprep.subr.bf16.mxu0 0
    %2227 = vmatpush2.bf16.msra.mxu0 %v2033
    %2228 = vmatprep.subr.bf16.mxu0 0
    %2229 = vmatpush2.bf16.msra.mxu0 %v2030
    %2230 = vmatprep.subr.bf16.mxu0 0
    %2231 = vmatpush2.bf16.msra.mxu0 %v2027
    %2232 = vmatprep.subr.bf16.mxu0 0
    %2233 = vmatpush2.bf16.msra.mxu0 %v2024
    %2234 = vmatprep.subr.bf16.mxu0 0
    %2235 = vmatpush2.bf16.msra.mxu0 %v2021
    %2236 = vmatprep.mubr.bf16.mxu0 %v1726
    %2237 = vmatmul.mubr.bf16.gmra.mxu0 %v1725
    %v2238 = vpop.f32.mrf.mxu0
    %v2239 = vadd.f32 0.0, %v2238
    %v2240 = vpop.f32.mrf.mxu0
    %v2241 = vpop.f32.mrf.mxu0
    %v2242 = vadd.f32 0.0, %v2241
    %v2243 = vpop.f32.mrf.mxu0
    %2244 = vdwg.mxu0
    %2245 = vmatprep.subr.bf16.mxu0 0
    %2246 = vmatpush1.bf16.msra.mxu0 0
    %2247 = vmatprep.subr.bf16.mxu0 0
    %2248 = vmatpush1.bf16.msra.mxu0 0
    %2249 = vmatprep.subr.bf16.mxu0 0
    %2250 = vmatpush1.bf16.msra.mxu0 0
    %2251 = vmatprep.subr.bf16.mxu0 0
    %2252 = vmatpush1.bf16.msra.mxu0 0
    %2253 = vmatprep.subr.bf16.mxu0 0
    %2254 = vmatpush1.bf16.msra.mxu0 0
    %2255 = vmatprep.subr.bf16.mxu0 0
    %2256 = vmatpush1.bf16.msra.mxu0 %v2116
    %2257 = vmatprep.subr.bf16.mxu0 0
    %2258 = vmatpush1.bf16.msra.mxu0 %v2048
    %2259 = vmatprep.subr.bf16.mxu0 0
    %2260 = vmatpush1.bf16.msra.mxu0 %v2045
    %2261 = vmatprep.subr.bf16.mxu0 0
    %2262 = vmatpush2.bf16.msra.mxu0 0
    %2263 = vmatprep.subr.bf16.mxu0 0
    %2264 = vmatpush2.bf16.msra.mxu0 0
    %2265 = vmatprep.subr.bf16.mxu0 0
    %2266 = vmatpush2.bf16.msra.mxu0 0
    %2267 = vmatprep.subr.bf16.mxu0 0
    %2268 = vmatpush2.bf16.msra.mxu0 0
    %2269 = vmatprep.subr.bf16.mxu0 0
    %2270 = vmatpush2.bf16.msra.mxu0 0
    %2271 = vmatprep.subr.bf16.mxu0 0
    %2272 = vmatpush2.bf16.msra.mxu0 0
    %2273 = vmatprep.subr.bf16.mxu0 0
    %2274 = vmatpush2.bf16.msra.mxu0 0
    %2275 = vmatprep.subr.bf16.mxu0 0
    %2276 = vmatpush2.bf16.msra.mxu0 0
    %2277 = vmatprep.mubr.bf16.mxu0 0
    %2278 = vmatmul.mubr.bf16.gmra.mxu0 %v2107
    %v2279 = vpop.f32.mrf.mxu0
    %v2280 = vadd.f32 %v2239, %v2279
    %v2281 = vpop.f32.mrf.mxu0
    %v2282 = vpop.f32.mrf.mxu0
    %v2283 = vadd.f32 %v2242, %v2282
    %v2284 = vpop.f32.mrf.mxu0
    %2285 = vdwg.mxu0
    %2288 = vrot.lane.b32.xlu0 %v2280, 83
    %v2289 = vpop.permute.xlu0 %2288
    %2290 = vrot.lane.b32.xlu0 %v2283, 83
    %v2291 = vpop.permute.xlu0 %2290
    %2294 = vxpose.xlu0.b32.start [1/16] %v2289, 128
    %2295 = vxpose.xlu0.b32.cont [2/16] %v2291, 128
    %2296 = vxpose.xlu0.b32.cont [3/16] 0.0, 128
    %2297 = vxpose.xlu0.b32.cont [4/16] 0.0, 128
    %2298 = vxpose.xlu0.b32.cont [5/16] 0.0, 128
    %2299 = vxpose.xlu0.b32.cont [6/16] 0.0, 128
    %2300 = vxpose.xlu0.b32.cont [7/16] 0.0, 128
    %2301 = vxpose.xlu0.b32.cont [8/16] 0.0, 128
    %2302 = vxpose.xlu0.b32.cont [9/16] 0.0, 128
    %2303 = vxpose.xlu0.b32.cont [10/16] 0.0, 128
    %2304 = vxpose.xlu0.b32.cont [11/16] 0.0, 128
    %2305 = vxpose.xlu0.b32.cont [12/16] 0.0, 128
    %2306 = vxpose.xlu0.b32.cont [13/16] 0.0, 128
    %2307 = vxpose.xlu0.b32.cont [14/16] 0.0, 128
    %2308 = vxpose.xlu0.b32.cont [15/16] 0.0, 128
    %2309 = vxpose.xlu0.b32.end [16/16] 0.0, 128
    %v2310 = vpop.trf.xlu0
    %v2311 = vpop.trf.xlu0
    %v2312 = vpop.trf.xlu0
    %v2313 = vpop.trf.xlu0
    %v2314 = vpop.trf.xlu0
    %v2315 = vpop.trf.xlu0
    %v2316 = vpop.trf.xlu0
    %v2317 = vpop.trf.xlu0
    %v2318 = vpop.trf.xlu0
    %v2319 = vpop.trf.xlu0
    %v2320 = vpop.trf.xlu0
    %v2321 = vpop.trf.xlu0
    %v2322 = vpop.trf.xlu0
    %v2323 = vpop.trf.xlu0
    %v2324 = vpop.trf.xlu0
    %v2325 = vpop.trf.xlu0
    %2326 = vset.pattern.permute.xlu0 44
    %2327 = vperm.xlu0 %2326, %v2280
    %v2328 = vpop.permute.xlu0 %2327
    %2330 = vset.pattern.permute.xlu0 44
    %2331 = vperm.xlu0 %2330, %v2283
    %v2332 = vpop.permute.xlu0 %2331
    %v2334 = vlaneseq
    %v2335 = vshrl.u32 %v2334, 7
    %v2336 = vsub.s32 0, %v2335
    %v2337 = vrot.slane %v2310, %v2336
    %v2338 = vadd.f32 %v2328, %v2337
    %v2339 = vadd.f32 %v2332, %v2337
    %vm2340 = vcmp.ge.f32.partialorder %v2338, 0.0
    %vm2341 = vcmp.ge.f32.partialorder %v2339, 0.0
    %v2342 = vmul.f32 %v2338, 0.2
    %v2343 = vmul.f32 %v2339, 0.2
    %v2344 = vsel %vm2340, %v2338, %v2342
    %v2345 = vsel %vm2341, %v2339, %v2343
    %v2346 = vadd.f32 %v2344, %v213
    %v2347 = vadd.f32 %v2345, %v214
    %v2348 = vsel %vm839, %v2346, -inf
    %2349 = vmax.xlane.f32.xlu0 %v2348
    %v2350 = vpop.xlane.xlu0 %2349
    %v2351 = vsel %vm839, %v2347, -inf
    %2352 = vmax.xlane.f32.xlu0 %v2351
    %v2353 = vpop.xlane.xlu0 %2352
    %v2354 = vsub.f32 %v2346, %v2350
    %v2355 = vsub.f32 %v2347, %v2353
    %v2356 = vmul.f32 %v2354, 1.442695
    %v2357 = vpow.pop %v2356
    %v2358 = vmul.f32 %v2355, 1.442695
    %v2359 = vpow.pop %v2358
    %v2360 = vsel %vm839, %v2357, 0.0
    %2361 = vadd.xlane.f32.xlu0 %v2360
    %v2362 = vpop.xlane.xlu0 %2361
    %v2363 = vsel %vm839, %v2359, 0.0
    %2364 = vadd.xlane.f32.xlu0 %v2363
    %v2365 = vpop.xlane.xlu0 %2364
    %v2366 = vrcp.pop %v2362
    %v2367 = vrcp.pop %v2365
    %v2368 = vmul.f32 %v2357, %v2366
    %v2369 = vmul.f32 %v2359, %v2367
    %v2370 = vpack.c.bf16 %v2369, %v2368
    %v2371 = vpack.c.bf16 %v2200, %v2196
    %v2372 = vpack.c.bf16 %v2202, %v2198
    %v2373 = vpack.c.bf16 %v2283, %v2280
    %v2375 = vsel %vm839, %v2370, 0
    %2377 = vmatprep.subr.bf16.mxu0 0
    %2378 = vmatpush1.bf16.msra.mxu0 0
    %2379 = vmatprep.subr.bf16.mxu0 0
    %2380 = vmatpush1.bf16.msra.mxu0 0
    %2381 = vmatprep.subr.bf16.mxu0 0
    %2382 = vmatpush1.bf16.msra.mxu0 0
    %2383 = vmatprep.subr.bf16.mxu0 0
    %2384 = vmatpush1.bf16.msra.mxu0 0
    %2385 = vmatprep.subr.bf16.mxu0 0
    %2386 = vmatpush1.bf16.msra.mxu0 0
    %2387 = vmatprep.subr.bf16.mxu0 0
    %2388 = vmatpush1.bf16.msra.mxu0 0
    %2389 = vmatprep.subr.bf16.mxu0 0
    %2390 = vmatpush1.bf16.msra.mxu0 0
    %2391 = vmatprep.subr.bf16.mxu0 %v2372
    %2392 = vmatpush1.bf16.msra.mxu0 %v2371
    %2393 = vmatprep.subr.bf16.mxu0 0
    %2394 = vmatpush2.bf16.msra.mxu0 0
    %2395 = vmatprep.subr.bf16.mxu0 0
    %2396 = vmatpush2.bf16.msra.mxu0 0
    %2397 = vmatprep.subr.bf16.mxu0 0
    %2398 = vmatpush2.bf16.msra.mxu0 0
    %2399 = vmatprep.subr.bf16.mxu0 0
    %2400 = vmatpush2.bf16.msra.mxu0 0
    %2401 = vmatprep.subr.bf16.mxu0 0
    %2402 = vmatpush2.bf16.msra.mxu0 0
    %2403 = vmatprep.subr.bf16.mxu0 0
    %2404 = vmatpush2.bf16.msra.mxu0 0
    %2405 = vmatprep.subr.bf16.mxu0 0
    %2406 = vmatpush2.bf16.msra.mxu0 0
    %2407 = vmatprep.subr.bf16.mxu0 0
    %2408 = vmatpush2.bf16.msra.mxu0 0
    %2409 = vmatprep.mubr.bf16.mxu0 0
    %2410 = vmatmul.mubr.bf16.gmra.mxu0 %v2375
    %v2411 = vpop.f32.mrf.mxu0
    %v2412 = vadd.f32 0.0, %v2411
    %v2413 = vpop.f32.mrf.mxu0
    %v2414 = vadd.f32 0.0, %v2413
    %v2415 = vpop.f32.mrf.mxu0
    %v2416 = vadd.f32 0.0, %v2415
    %v2417 = vpop.f32.mrf.mxu0
    %v2418 = vadd.f32 0.0, %v2417
    %2419 = vdwg.mxu0
    %2420 = vmatprep.subr.bf16.mxu0 0
    %2421 = vmatpush1.bf16.msra.mxu0 0
    %2422 = vmatprep.subr.bf16.mxu0 0
    %2423 = vmatpush1.bf16.msra.mxu0 0
    %2424 = vmatprep.subr.bf16.mxu0 0
    %2425 = vmatpush1.bf16.msra.mxu0 0
    %2426 = vmatprep.subr.bf16.mxu0 0
    %2427 = vmatpush1.bf16.msra.mxu0 0
    %2428 = vmatprep.subr.bf16.mxu0 0
    %2429 = vmatpush1.bf16.msra.mxu0 0
    %2430 = vmatprep.subr.bf16.mxu0 0
    %2431 = vmatpush1.bf16.msra.mxu0 0
    %2432 = vmatprep.subr.bf16.mxu0 0
    %2433 = vmatpush1.bf16.msra.mxu0 0
    %2434 = vmatprep.subr.bf16.mxu0 0
    %2435 = vmatpush1.bf16.msra.mxu0 %v2373
    %2436 = vmatprep.subr.bf16.mxu0 0
    %2437 = vmatpush2.bf16.msra.mxu0 0
    %2438 = vmatprep.subr.bf16.mxu0 0
    %2439 = vmatpush2.bf16.msra.mxu0 0
    %2440 = vmatprep.subr.bf16.mxu0 0
    %2441 = vmatpush2.bf16.msra.mxu0 0
    %2442 = vmatprep.subr.bf16.mxu0 0
    %2443 = vmatpush2.bf16.msra.mxu0 0
    %2444 = vmatprep.subr.bf16.mxu0 0
    %2445 = vmatpush2.bf16.msra.mxu0 0
    %2446 = vmatprep.subr.bf16.mxu0 0
    %2447 = vmatpush2.bf16.msra.mxu0 0
    %2448 = vmatprep.subr.bf16.mxu0 0
    %2449 = vmatpush2.bf16.msra.mxu0 0
    %2450 = vmatprep.subr.bf16.mxu0 0
    %2451 = vmatpush2.bf16.msra.mxu0 0
    %2452 = vmatprep.mubr.bf16.mxu0 0
    %2453 = vmatmul.mubr.bf16.gmra.mxu0 %v2375
    %v2454 = vpop.f32.mrf.mxu0
    %v2455 = vadd.f32 0.0, %v2454
    %v2456 = vpop.f32.mrf.mxu0
    %v2457 = vpop.f32.mrf.mxu0
    %v2458 = vadd.f32 0.0, %v2457
    %v2459 = vpop.f32.mrf.mxu0
    %2460 = vdwg.mxu0
    %vm2461 = vcmp.ge.f32.partialorder %v2412, 0.0
    %vm2462 = vcmp.ge.f32.partialorder %v2414, 0.0
    %vm2463 = vcmp.ge.f32.partialorder %v2455, 0.0
    %vm2464 = vcmp.ge.f32.partialorder %v2416, 0.0
    %vm2465 = vcmp.ge.f32.partialorder %v2418, 0.0
    %vm2466 = vcmp.ge.f32.partialorder %v2458, 0.0
    %v2467 = vmul.f32 %v2412, 0.2
    %v2468 = vmul.f32 %v2414, 0.2
    %v2469 = vmul.f32 %v2455, 0.2
    %v2470 = vmul.f32 %v2416, 0.2
    %v2471 = vmul.f32 %v2418, 0.2
    %v2472 = vmul.f32 %v2458, 0.2
    %v2473 = vsel %vm2461, %v2412, %v2467
    %v2474 = vsel %vm2462, %v2414, %v2468
    %v2475 = vsel %vm2463, %v2455, %v2469
    %v2476 = vsel %vm2464, %v2416, %v2470
    %v2477 = vsel %vm2465, %v2418, %v2471
    %v2478 = vsel %vm2466, %v2458, %v2472
    %v2479 = vpack.c.bf16 %v2476, %v2473
    %v2480 = vpack.c.bf16 %v2477, %v2474
    %v2481 = vpack.c.bf16 %v2478, %v2475
    %s2482 = scalar_lea.vmem %s4, 1368
    %v2483 = vld [vmem:[%s2482] sm:$0xff]
    %v2484 = vld [vmem:[%s2482 + $0x8] sm:$0xf]
    %v2485 = vld [vmem:[%s2482 + $0xc] sm:$0xff]
    %v2486 = vld [vmem:[%s2482 + $0x14] sm:$0xf]
    %v2487 = vld [vmem:[%s2482 + $0x18] sm:$0xff]
    %v2488 = vld [vmem:[%s2482 + $0x20] sm:$0xf]
    %v2489 = vld [vmem:[%s2482 + $0x24] sm:$0xff]
    %v2490 = vld [vmem:[%s2482 + $0x2c] sm:$0xf]
    %v2491 = vld [vmem:[%s2482 + $0x30] sm:$0xff]
    %v2492 = vld [vmem:[%s2482 + $0x38] sm:$0xf]
    %v2493 = vld [vmem:[%s2482 + $0x3c] sm:$0xff]
    %v2494 = vld [vmem:[%s2482 + $0x44] sm:$0xf]
    %v2495 = vld [vmem:[%s2482 + $0x48] sm:$0xff]
    %v2496 = vld [vmem:[%s2482 + $0x50] sm:$0xf]
    %v2497 = vld [vmem:[%s2482 + $0x54] sm:$0xff]
    %v2498 = vld [vmem:[%s2482 + $0x5c] sm:$0xf]
    %v2499 = vld [vmem:[%s2482 + $0x60] sm:$0xff]
    %v2500 = vld [vmem:[%s2482 + $0x68] sm:$0xf]
    %v2501 = vld [vmem:[%s2482 + $0x6c] sm:$0xff]
    %v2502 = vld [vmem:[%s2482 + $0x74] sm:$0xf]
    %v2503 = vld [vmem:[%s2482 + $0x78] sm:$0xff]
    %v2504 = vld [vmem:[%s2482 + $0x80] sm:$0xf]
    %v2505 = vld [vmem:[%s2482 + $0x84] sm:$0xff]
    %v2506 = vld [vmem:[%s2482 + $0x8c] sm:$0xf]
    %v2507 = vld [vmem:[%s2482 + $0x90] sm:$0xff]
    %v2508 = vld [vmem:[%s2482 + $0x98] sm:$0xf]
    %v2509 = vld [vmem:[%s2482 + $0x9c] sm:$0xff]
    %v2510 = vld [vmem:[%s2482 + $0xa4] sm:$0xf]
    %v2511 = vld [vmem:[%s2482 + $0xa8] sm:$0xff]
    %v2512 = vld [vmem:[%s2482 + $0xb0] sm:$0xf]
    %v2513 = vld [vmem:[%s2482 + $0xb4] sm:$0xff]
    %v2514 = vld [vmem:[%s2482 + $0xbc] sm:$0xf]
    %v2515 = vld [vmem:[%s2482 + $0xc0] sm:$0xff]
    %v2516 = vld [vmem:[%s2482 + $0xc8] sm:$0xf]
    %v2517 = vld [vmem:[%s2482 + $0xcc] sm:$0xff]
    %v2518 = vld [vmem:[%s2482 + $0xd4] sm:$0xf]
    %v2519 = vld [vmem:[%s2482 + $0xd8] sm:$0xff]
    %v2520 = vld [vmem:[%s2482 + $0xe0] sm:$0xf]
    %v2521 = vld [vmem:[%s2482 + $0xe4] sm:$0xff]
    %v2522 = vld [vmem:[%s2482 + $0xec] sm:$0xf]
    %v2523 = vld [vmem:[%s2482 + $0xf0] sm:$0xff]
    %v2524 = vld [vmem:[%s2482 + $0xf8] sm:$0xf]
    %v2525 = vld [vmem:[%s2482 + $0xfc] sm:$0xff]
    %v2526 = vld [vmem:[%s2482 + $0x104] sm:$0xf]
    %v2527 = vld [vmem:[%s2482 + $0x108] sm:$0xff]
    %v2528 = vld [vmem:[%s2482 + $0x110] sm:$0xf]
    %v2529 = vld [vmem:[%s2482 + $0x114] sm:$0xff]
    %v2530 = vld [vmem:[%s2482 + $0x11c] sm:$0xf]
    %v2531 = vld [vmem:[%s2482 + $0x120] sm:$0xff]
    %v2532 = vld [vmem:[%s2482 + $0x128] sm:$0xf]
    %v2533 = vld [vmem:[%s2482 + $0x12c] sm:$0xff]
    %v2534 = vld [vmem:[%s2482 + $0x134] sm:$0xf]
    %v2535 = vld [vmem:[%s2482 + $0x138] sm:$0xff]
    %v2536 = vld [vmem:[%s2482 + $0x140] sm:$0xf]
    %v2537 = vld [vmem:[%s2482 + $0x144] sm:$0xff]
    %v2538 = vld [vmem:[%s2482 + $0x14c] sm:$0xf]
    %v2539 = vld [vmem:[%s2482 + $0x150] sm:$0xff]
    %v2540 = vld [vmem:[%s2482 + $0x158] sm:$0xf]
    %v2541 = vld [vmem:[%s2482 + $0x15c] sm:$0xff]
    %v2542 = vld [vmem:[%s2482 + $0x164] sm:$0xf]
    %v2543 = vld [vmem:[%s2482 + $0x168] sm:$0xff]
    %v2544 = vld [vmem:[%s2482 + $0x170] sm:$0xf]
    %v2545 = vld [vmem:[%s2482 + $0x174] sm:$0xff]
    %v2546 = vld [vmem:[%s2482 + $0x17c] sm:$0xf]
    %v2547 = vld [vmem:[%s2482 + $0x180] sm:$0xff]
    %v2548 = vld [vmem:[%s2482 + $0x188] sm:$0xf]
    %v2549 = vld [vmem:[%s2482 + $0x18c] sm:$0xff]
    %v2550 = vld [vmem:[%s2482 + $0x194] sm:$0xf]
    %v2551 = vld [vmem:[%s2482 + $0x198] sm:$0xff]
    %v2552 = vld [vmem:[%s2482 + $0x1a0] sm:$0xf]
    %v2553 = vld [vmem:[%s2482 + $0x1a4] sm:$0xff]
    %v2554 = vld [vmem:[%s2482 + $0x1ac] sm:$0xf]
    %v2555 = vld [vmem:[%s2482 + $0x1b0] sm:$0xff]
    %v2556 = vld [vmem:[%s2482 + $0x1b8] sm:$0xf]
    %v2557 = vld [vmem:[%s2482 + $0x1bc] sm:$0x33]
    %v2558 = vld [vmem:[%s2482 + $0x1c4] sm:$0x3]
    %v2635 = vunpack.c.l.b16 %v2483
    %v2636 = vunpack.c.h.b16 %v2483
    %v2637 = vunpack.c.l.b16 %v2484
    %v2638 = vunpack.c.l.b16 %v2485
    %v2639 = vunpack.c.h.b16 %v2485
    %v2640 = vunpack.c.l.b16 %v2486
    %v2641 = vunpack.c.l.b16 %v2487
    %v2642 = vunpack.c.h.b16 %v2487
    %v2643 = vunpack.c.l.b16 %v2488
    %v2644 = vunpack.c.l.b16 %v2489
    %v2645 = vunpack.c.h.b16 %v2489
    %v2646 = vunpack.c.l.b16 %v2490
    %v2647 = vunpack.c.l.b16 %v2491
    %v2648 = vunpack.c.h.b16 %v2491
    %v2649 = vunpack.c.l.b16 %v2492
    %v2650 = vunpack.c.l.b16 %v2493
    %v2651 = vunpack.c.h.b16 %v2493
    %v2652 = vunpack.c.l.b16 %v2494
    %v2653 = vunpack.c.l.b16 %v2495
    %v2654 = vunpack.c.h.b16 %v2495
    %v2655 = vunpack.c.l.b16 %v2496
    %v2656 = vunpack.c.l.b16 %v2497
    %v2657 = vunpack.c.h.b16 %v2497
    %v2658 = vunpack.c.l.b16 %v2498
    %v2659 = vunpack.c.l.b16 %v2499
    %v2660 = vunpack.c.h.b16 %v2499
    %v2661 = vunpack.c.l.b16 %v2500
    %v2662 = vunpack.c.l.b16 %v2501
    %v2663 = vunpack.c.h.b16 %v2501
    %v2664 = vunpack.c.l.b16 %v2502
    %v2665 = vunpack.c.l.b16 %v2503
    %v2666 = vunpack.c.h.b16 %v2503
    %v2667 = vunpack.c.l.b16 %v2504
    %v2668 = vunpack.c.l.b16 %v2505
    %v2669 = vunpack.c.h.b16 %v2505
    %v2670 = vunpack.c.l.b16 %v2506
    %v2671 = vunpack.c.l.b16 %v2507
    %v2672 = vunpack.c.h.b16 %v2507
    %v2673 = vunpack.c.l.b16 %v2508
    %v2674 = vunpack.c.l.b16 %v2509
    %v2675 = vunpack.c.h.b16 %v2509
    %v2676 = vunpack.c.l.b16 %v2510
    %v2677 = vunpack.c.l.b16 %v2511
    %v2678 = vunpack.c.h.b16 %v2511
    %v2679 = vunpack.c.l.b16 %v2512
    %v2680 = vunpack.c.l.b16 %v2513
    %v2681 = vunpack.c.h.b16 %v2513
    %v2682 = vunpack.c.l.b16 %v2514
    %v2683 = vunpack.c.l.b16 %v2515
    %v2684 = vunpack.c.h.b16 %v2515
    %v2685 = vunpack.c.l.b16 %v2516
    %v2686 = vunpack.c.l.b16 %v2517
    %v2687 = vunpack.c.h.b16 %v2517
    %v2688 = vunpack.c.l.b16 %v2518
    %v2689 = vunpack.c.l.b16 %v2519
    %v2690 = vunpack.c.h.b16 %v2519
    %v2691 = vunpack.c.l.b16 %v2520
    %v2692 = vunpack.c.l.b16 %v2521
    %v2693 = vunpack.c.h.b16 %v2521
    %v2694 = vunpack.c.l.b16 %v2522
    %v2695 = vunpack.c.l.b16 %v2523
    %v2696 = vunpack.c.h.b16 %v2523
    %v2697 = vunpack.c.l.b16 %v2524
    %v2698 = vunpack.c.l.b16 %v2525
    %v2699 = vunpack.c.h.b16 %v2525
    %v2700 = vunpack.c.l.b16 %v2526
    %v2701 = vunpack.c.l.b16 %v2527
    %v2702 = vunpack.c.h.b16 %v2527
    %v2703 = vunpack.c.l.b16 %v2528
    %v2704 = vunpack.c.l.b16 %v2529
    %v2705 = vunpack.c.h.b16 %v2529
    %v2706 = vunpack.c.l.b16 %v2530
    %v2707 = vunpack.c.l.b16 %v2531
    %v2708 = vunpack.c.h.b16 %v2531
    %v2709 = vunpack.c.l.b16 %v2532
    %v2710 = vunpack.c.l.b16 %v2533
    %v2711 = vunpack.c.h.b16 %v2533
    %v2712 = vunpack.c.l.b16 %v2534
    %v2713 = vunpack.c.l.b16 %v2535
    %v2714 = vunpack.c.h.b16 %v2535
    %v2715 = vunpack.c.l.b16 %v2536
    %v2716 = vunpack.c.l.b16 %v2537
    %v2717 = vunpack.c.h.b16 %v2537
    %v2718 = vunpack.c.l.b16 %v2538
    %v2719 = vunpack.c.l.b16 %v2539
    %v2720 = vunpack.c.h.b16 %v2539
    %v2721 = vunpack.c.l.b16 %v2540
    %v2722 = vunpack.c.l.b16 %v2541
    %v2723 = vunpack.c.h.b16 %v2541
    %v2724 = vunpack.c.l.b16 %v2542
    %v2725 = vunpack.c.l.b16 %v2543
    %v2726 = vunpack.c.h.b16 %v2543
    %v2727 = vunpack.c.l.b16 %v2544
    %v2728 = vunpack.c.l.b16 %v2545
    %v2729 = vunpack.c.h.b16 %v2545
    %v2730 = vunpack.c.l.b16 %v2546
    %v2731 = vunpack.c.l.b16 %v2547
    %v2732 = vunpack.c.h.b16 %v2547
    %v2733 = vunpack.c.l.b16 %v2548
    %v2734 = vunpack.c.l.b16 %v2549
    %v2735 = vunpack.c.h.b16 %v2549
    %v2736 = vunpack.c.l.b16 %v2550
    %v2737 = vunpack.c.l.b16 %v2551
    %v2738 = vunpack.c.h.b16 %v2551
    %v2739 = vunpack.c.l.b16 %v2552
    %v2740 = vunpack.c.l.b16 %v2553
    %v2741 = vunpack.c.h.b16 %v2553
    %v2742 = vunpack.c.l.b16 %v2554
    %v2743 = vunpack.c.l.b16 %v2555
    %v2744 = vunpack.c.h.b16 %v2555
    %v2745 = vunpack.c.l.b16 %v2556
    %v2746 = vunpack.c.l.b16 %v2557
    %v2747 = vunpack.c.h.b16 %v2557
    %v2748 = vunpack.c.l.b16 %v2558
    %v2749 = vpack.c.b16 %v2638, %v2635
    %v2750 = vpack.c.b16 %v2639, %v2636
    %v2751 = vpack.c.b16 %v2640, %v2637
    %v2752 = vpack.c.b16 %v2644, %v2641
    %v2753 = vpack.c.b16 %v2645, %v2642
    %v2754 = vpack.c.b16 %v2646, %v2643
    %v2755 = vpack.c.b16 %v2650, %v2647
    %v2756 = vpack.c.b16 %v2651, %v2648
    %v2757 = vpack.c.b16 %v2652, %v2649
    %v2758 = vpack.c.b16 %v2656, %v2653
    %v2759 = vpack.c.b16 %v2657, %v2654
    %v2760 = vpack.c.b16 %v2658, %v2655
    %v2761 = vpack.c.b16 %v2662, %v2659
    %v2762 = vpack.c.b16 %v2663, %v2660
    %v2763 = vpack.c.b16 %v2664, %v2661
    %v2764 = vpack.c.b16 %v2668, %v2665
    %v2765 = vpack.c.b16 %v2669, %v2666
    %v2766 = vpack.c.b16 %v2670, %v2667
    %v2767 = vpack.c.b16 %v2674, %v2671
    %v2768 = vpack.c.b16 %v2675, %v2672
    %v2769 = vpack.c.b16 %v2676, %v2673
    %v2770 = vpack.c.b16 %v2680, %v2677
    %v2771 = vpack.c.b16 %v2681, %v2678
    %v2772 = vpack.c.b16 %v2682, %v2679
    %v2773 = vpack.c.b16 %v2686, %v2683
    %v2774 = vpack.c.b16 %v2687, %v2684
    %v2775 = vpack.c.b16 %v2688, %v2685
    %v2776 = vpack.c.b16 %v2692, %v2689
    %v2777 = vpack.c.b16 %v2693, %v2690
    %v2778 = vpack.c.b16 %v2694, %v2691
    %v2779 = vpack.c.b16 %v2698, %v2695
    %v2780 = vpack.c.b16 %v2699, %v2696
    %v2781 = vpack.c.b16 %v2700, %v2697
    %v2782 = vpack.c.b16 %v2704, %v2701
    %v2783 = vpack.c.b16 %v2705, %v2702
    %v2784 = vpack.c.b16 %v2706, %v2703
    %v2785 = vpack.c.b16 %v2710, %v2707
    %v2786 = vpack.c.b16 %v2711, %v2708
    %v2787 = vpack.c.b16 %v2712, %v2709
    %v2788 = vpack.c.b16 %v2716, %v2713
    %v2789 = vpack.c.b16 %v2717, %v2714
    %v2790 = vpack.c.b16 %v2718, %v2715
    %v2791 = vpack.c.b16 %v2722, %v2719
    %v2792 = vpack.c.b16 %v2723, %v2720
    %v2793 = vpack.c.b16 %v2724, %v2721
    %v2794 = vpack.c.b16 %v2728, %v2725
    %v2795 = vpack.c.b16 %v2729, %v2726
    %v2796 = vpack.c.b16 %v2730, %v2727
    %v2797 = vpack.c.b16 %v2734, %v2731
    %v2798 = vpack.c.b16 %v2735, %v2732
    %v2799 = vpack.c.b16 %v2736, %v2733
    %v2800 = vpack.c.b16 %v2740, %v2737
    %v2801 = vpack.c.b16 %v2741, %v2738
    %v2802 = vpack.c.b16 %v2742, %v2739
    %v2803 = vpack.c.b16 %v2746, %v2743
    %v2804 = vpack.c.b16 %v2747, %v2744
    %v2805 = vpack.c.b16 %v2748, %v2745
    %v2861 = vsel %vm595, %v2481, 0
    %v2864 = vsel %vm599, %v2803, 0
    %v2867 = vsel %vm599, %v2804, 0
    %v2870 = vsel %vm599, %v2805, 0
    %2872 = vmatprep.subr.bf16.mxu0 %v2771
    %2873 = vmatpush1.bf16.msra.mxu0 %v2770
    %2874 = vmatprep.subr.bf16.mxu0 %v2768
    %2875 = vmatpush1.bf16.msra.mxu0 %v2767
    %2876 = vmatprep.subr.bf16.mxu0 %v2765
    %2877 = vmatpush1.bf16.msra.mxu0 %v2764
    %2878 = vmatprep.subr.bf16.mxu0 %v2762
    %2879 = vmatpush1.bf16.msra.mxu0 %v2761
    %2880 = vmatprep.subr.bf16.mxu0 %v2759
    %2881 = vmatpush1.bf16.msra.mxu0 %v2758
    %2882 = vmatprep.subr.bf16.mxu0 %v2756
    %2883 = vmatpush1.bf16.msra.mxu0 %v2755
    %2884 = vmatprep.subr.bf16.mxu0 %v2753
    %2885 = vmatpush1.bf16.msra.mxu0 %v2752
    %2886 = vmatprep.subr.bf16.mxu0 %v2750
    %2887 = vmatpush1.bf16.msra.mxu0 %v2749
    %2888 = vmatprep.subr.bf16.mxu0 %v2795
    %2889 = vmatpush2.bf16.msra.mxu0 %v2794
    %2890 = vmatprep.subr.bf16.mxu0 %v2792
    %2891 = vmatpush2.bf16.msra.mxu0 %v2791
    %2892 = vmatprep.subr.bf16.mxu0 %v2789
    %2893 = vmatpush2.bf16.msra.mxu0 %v2788
    %2894 = vmatprep.subr.bf16.mxu0 %v2786
    %2895 = vmatpush2.bf16.msra.mxu0 %v2785
    %2896 = vmatprep.subr.bf16.mxu0 %v2783
    %2897 = vmatpush2.bf16.msra.mxu0 %v2782
    %2898 = vmatprep.subr.bf16.mxu0 %v2780
    %2899 = vmatpush2.bf16.msra.mxu0 %v2779
    %2900 = vmatprep.subr.bf16.mxu0 %v2777
    %2901 = vmatpush2.bf16.msra.mxu0 %v2776
    %2902 = vmatprep.subr.bf16.mxu0 %v2774
    %2903 = vmatpush2.bf16.msra.mxu0 %v2773
    %2904 = vmatprep.mubr.bf16.mxu0 %v2480
    %2905 = vmatmul.mubr.bf16.gmra.mxu0 %v2479
    %v2906 = vpop.f32.mrf.mxu0
    %v2907 = vadd.f32 0.0, %v2906
    %v2908 = vpop.f32.mrf.mxu0
    %v2909 = vadd.f32 0.0, %v2908
    %v2910 = vpop.f32.mrf.mxu0
    %v2911 = vadd.f32 0.0, %v2910
    %v2912 = vpop.f32.mrf.mxu0
    %v2913 = vadd.f32 0.0, %v2912
    %2914 = vdwg.mxu0
    %2915 = vmatprep.subr.bf16.mxu0 0
    %2916 = vmatpush1.bf16.msra.mxu0 0
    %2917 = vmatprep.subr.bf16.mxu0 0
    %2918 = vmatpush1.bf16.msra.mxu0 0
    %2919 = vmatprep.subr.bf16.mxu0 0
    %2920 = vmatpush1.bf16.msra.mxu0 0
    %2921 = vmatprep.subr.bf16.mxu0 0
    %2922 = vmatpush1.bf16.msra.mxu0 0
    %2923 = vmatprep.subr.bf16.mxu0 0
    %2924 = vmatpush1.bf16.msra.mxu0 0
    %2925 = vmatprep.subr.bf16.mxu0 %v2867
    %2926 = vmatpush1.bf16.msra.mxu0 %v2864
    %2927 = vmatprep.subr.bf16.mxu0 %v2801
    %2928 = vmatpush1.bf16.msra.mxu0 %v2800
    %2929 = vmatprep.subr.bf16.mxu0 %v2798
    %2930 = vmatpush1.bf16.msra.mxu0 %v2797
    %2931 = vmatprep.subr.bf16.mxu0 0
    %2932 = vmatpush2.bf16.msra.mxu0 0
    %2933 = vmatprep.subr.bf16.mxu0 0
    %2934 = vmatpush2.bf16.msra.mxu0 0
    %2935 = vmatprep.subr.bf16.mxu0 0
    %2936 = vmatpush2.bf16.msra.mxu0 0
    %2937 = vmatprep.subr.bf16.mxu0 0
    %2938 = vmatpush2.bf16.msra.mxu0 0
    %2939 = vmatprep.subr.bf16.mxu0 0
    %2940 = vmatpush2.bf16.msra.mxu0 0
    %2941 = vmatprep.subr.bf16.mxu0 0
    %2942 = vmatpush2.bf16.msra.mxu0 0
    %2943 = vmatprep.subr.bf16.mxu0 0
    %2944 = vmatpush2.bf16.msra.mxu0 0
    %2945 = vmatprep.subr.bf16.mxu0 0
    %2946 = vmatpush2.bf16.msra.mxu0 0
    %2947 = vmatprep.mubr.bf16.mxu0 0
    %2948 = vmatmul.mubr.bf16.gmra.mxu0 %v2861
    %v2949 = vpop.f32.mrf.mxu0
    %v2950 = vadd.f32 %v2907, %v2949
    %v2951 = vpop.f32.mrf.mxu0
    %v2952 = vadd.f32 %v2909, %v2951
    %v2953 = vpop.f32.mrf.mxu0
    %v2954 = vadd.f32 %v2911, %v2953
    %v2955 = vpop.f32.mrf.mxu0
    %v2956 = vadd.f32 %v2913, %v2955
    %2957 = vdwg.mxu0
    %2958 = vmatprep.subr.bf16.mxu0 0
    %2959 = vmatpush1.bf16.msra.mxu0 %v2772
    %2960 = vmatprep.subr.bf16.mxu0 0
    %2961 = vmatpush1.bf16.msra.mxu0 %v2769
    %2962 = vmatprep.subr.bf16.mxu0 0
    %2963 = vmatpush1.bf16.msra.mxu0 %v2766
    %2964 = vmatprep.subr.bf16.mxu0 0
    %2965 = vmatpush1.bf16.msra.mxu0 %v2763
    %2966 = vmatprep.subr.bf16.mxu0 0
    %2967 = vmatpush1.bf16.msra.mxu0 %v2760
    %2968 = vmatprep.subr.bf16.mxu0 0
    %2969 = vmatpush1.bf16.msra.mxu0 %v2757
    %2970 = vmatprep.subr.bf16.mxu0 0
    %2971 = vmatpush1.bf16.msra.mxu0 %v2754
    %2972 = vmatprep.subr.bf16.mxu0 0
    %2973 = vmatpush1.bf16.msra.mxu0 %v2751
    %2974 = vmatprep.subr.bf16.mxu0 0
    %2975 = vmatpush2.bf16.msra.mxu0 %v2796
    %2976 = vmatprep.subr.bf16.mxu0 0
    %2977 = vmatpush2.bf16.msra.mxu0 %v2793
    %2978 = vmatprep.subr.bf16.mxu0 0
    %2979 = vmatpush2.bf16.msra.mxu0 %v2790
    %2980 = vmatprep.subr.bf16.mxu0 0
    %2981 = vmatpush2.bf16.msra.mxu0 %v2787
    %2982 = vmatprep.subr.bf16.mxu0 0
    %2983 = vmatpush2.bf16.msra.mxu0 %v2784
    %2984 = vmatprep.subr.bf16.mxu0 0
    %2985 = vmatpush2.bf16.msra.mxu0 %v2781
    %2986 = vmatprep.subr.bf16.mxu0 0
    %2987 = vmatpush2.bf16.msra.mxu0 %v2778
    %2988 = vmatprep.subr.bf16.mxu0 0
    %2989 = vmatpush2.bf16.msra.mxu0 %v2775
    %2990 = vmatprep.mubr.bf16.mxu0 %v2480
    %2991 = vmatmul.mubr.bf16.gmra.mxu0 %v2479
    %v2992 = vpop.f32.mrf.mxu0
    %v2993 = vadd.f32 0.0, %v2992
    %v2994 = vpop.f32.mrf.mxu0
    %v2995 = vpop.f32.mrf.mxu0
    %v2996 = vadd.f32 0.0, %v2995
    %v2997 = vpop.f32.mrf.mxu0
    %2998 = vdwg.mxu0
    %2999 = vmatprep.subr.bf16.mxu0 0
    %3000 = vmatpush1.bf16.msra.mxu0 0
    %3001 = vmatprep.subr.bf16.mxu0 0
    %3002 = vmatpush1.bf16.msra.mxu0 0
    %3003 = vmatprep.subr.bf16.mxu0 0
    %3004 = vmatpush1.bf16.msra.mxu0 0
    %3005 = vmatprep.subr.bf16.mxu0 0
    %3006 = vmatpush1.bf16.msra.mxu0 0
    %3007 = vmatprep.subr.bf16.mxu0 0
    %3008 = vmatpush1.bf16.msra.mxu0 0
    %3009 = vmatprep.subr.bf16.mxu0 0
    %3010 = vmatpush1.bf16.msra.mxu0 %v2870
    %3011 = vmatprep.subr.bf16.mxu0 0
    %3012 = vmatpush1.bf16.msra.mxu0 %v2802
    %3013 = vmatprep.subr.bf16.mxu0 0
    %3014 = vmatpush1.bf16.msra.mxu0 %v2799
    %3015 = vmatprep.subr.bf16.mxu0 0
    %3016 = vmatpush2.bf16.msra.mxu0 0
    %3017 = vmatprep.subr.bf16.mxu0 0
    %3018 = vmatpush2.bf16.msra.mxu0 0
    %3019 = vmatprep.subr.bf16.mxu0 0
    %3020 = vmatpush2.bf16.msra.mxu0 0
    %3021 = vmatprep.subr.bf16.mxu0 0
    %3022 = vmatpush2.bf16.msra.mxu0 0
    %3023 = vmatprep.subr.bf16.mxu0 0
    %3024 = vmatpush2.bf16.msra.mxu0 0
    %3025 = vmatprep.subr.bf16.mxu0 0
    %3026 = vmatpush2.bf16.msra.mxu0 0
    %3027 = vmatprep.subr.bf16.mxu0 0
    %3028 = vmatpush2.bf16.msra.mxu0 0
    %3029 = vmatprep.subr.bf16.mxu0 0
    %3030 = vmatpush2.bf16.msra.mxu0 0
    %3031 = vmatprep.mubr.bf16.mxu0 0
    %3032 = vmatmul.mubr.bf16.gmra.mxu0 %v2861
    %v3033 = vpop.f32.mrf.mxu0
    %v3034 = vadd.f32 %v2993, %v3033
    %v3035 = vpop.f32.mrf.mxu0
    %v3036 = vpop.f32.mrf.mxu0
    %v3037 = vadd.f32 %v2996, %v3036
    %v3038 = vpop.f32.mrf.mxu0
    %3039 = vdwg.mxu0
    %3042 = vrot.lane.b32.xlu0 %v3034, 83
    %v3043 = vpop.permute.xlu0 %3042
    %3044 = vrot.lane.b32.xlu0 %v3037, 83
    %v3045 = vpop.permute.xlu0 %3044
    %3048 = vxpose.xlu0.b32.start [1/16] %v3043, 128
    %3049 = vxpose.xlu0.b32.cont [2/16] %v3045, 128
    %3050 = vxpose.xlu0.b32.cont [3/16] 0.0, 128
    %3051 = vxpose.xlu0.b32.cont [4/16] 0.0, 128
    %3052 = vxpose.xlu0.b32.cont [5/16] 0.0, 128
    %3053 = vxpose.xlu0.b32.cont [6/16] 0.0, 128
    %3054 = vxpose.xlu0.b32.cont [7/16] 0.0, 128
    %3055 = vxpose.xlu0.b32.cont [8/16] 0.0, 128
    %3056 = vxpose.xlu0.b32.cont [9/16] 0.0, 128
    %3057 = vxpose.xlu0.b32.cont [10/16] 0.0, 128
    %3058 = vxpose.xlu0.b32.cont [11/16] 0.0, 128
    %3059 = vxpose.xlu0.b32.cont [12/16] 0.0, 128
    %3060 = vxpose.xlu0.b32.cont [13/16] 0.0, 128
    %3061 = vxpose.xlu0.b32.cont [14/16] 0.0, 128
    %3062 = vxpose.xlu0.b32.cont [15/16] 0.0, 128
    %3063 = vxpose.xlu0.b32.end [16/16] 0.0, 128
    %v3064 = vpop.trf.xlu0
    %v3065 = vpop.trf.xlu0
    %v3066 = vpop.trf.xlu0
    %v3067 = vpop.trf.xlu0
    %v3068 = vpop.trf.xlu0
    %v3069 = vpop.trf.xlu0
    %v3070 = vpop.trf.xlu0
    %v3071 = vpop.trf.xlu0
    %v3072 = vpop.trf.xlu0
    %v3073 = vpop.trf.xlu0
    %v3074 = vpop.trf.xlu0
    %v3075 = vpop.trf.xlu0
    %v3076 = vpop.trf.xlu0
    %v3077 = vpop.trf.xlu0
    %v3078 = vpop.trf.xlu0
    %v3079 = vpop.trf.xlu0
    %3080 = vset.pattern.permute.xlu0 44
    %3081 = vperm.xlu0 %3080, %v3034
    %v3082 = vpop.permute.xlu0 %3081
    %3084 = vset.pattern.permute.xlu0 44
    %3085 = vperm.xlu0 %3084, %v3037
    %v3086 = vpop.permute.xlu0 %3085
    %v3088 = vlaneseq
    %v3089 = vshrl.u32 %v3088, 7
    %v3090 = vsub.s32 0, %v3089
    %v3091 = vrot.slane %v3064, %v3090
    %v3092 = vadd.f32 %v3082, %v3091
    %v3093 = vadd.f32 %v3086, %v3091
    %vm3094 = vcmp.ge.f32.partialorder %v3092, 0.0
    %vm3095 = vcmp.ge.f32.partialorder %v3093, 0.0
    %v3096 = vmul.f32 %v3092, 0.2
    %v3097 = vmul.f32 %v3093, 0.2
    %v3098 = vsel %vm3094, %v3092, %v3096
    %v3099 = vsel %vm3095, %v3093, %v3097
    %v3100 = vadd.f32 %v3098, %v213
    %v3101 = vadd.f32 %v3099, %v214
    %v3102 = vsel %vm839, %v3100, -inf
    %3103 = vmax.xlane.f32.xlu0 %v3102
    %v3104 = vpop.xlane.xlu0 %3103
    %v3105 = vsel %vm839, %v3101, -inf
    %3106 = vmax.xlane.f32.xlu0 %v3105
    %v3107 = vpop.xlane.xlu0 %3106
    %v3108 = vsub.f32 %v3100, %v3104
    %v3109 = vsub.f32 %v3101, %v3107
    %v3110 = vmul.f32 %v3108, 1.442695
    %v3111 = vpow.pop %v3110
    %v3112 = vmul.f32 %v3109, 1.442695
    %v3113 = vpow.pop %v3112
    %v3114 = vsel %vm839, %v3111, 0.0
    %3115 = vadd.xlane.f32.xlu0 %v3114
    %v3116 = vpop.xlane.xlu0 %3115
    %v3117 = vsel %vm839, %v3113, 0.0
    %3118 = vadd.xlane.f32.xlu0 %v3117
    %v3119 = vpop.xlane.xlu0 %3118
    %v3120 = vrcp.pop %v3116
    %v3121 = vrcp.pop %v3119
    %v3122 = vmul.f32 %v3111, %v3120
    %v3123 = vmul.f32 %v3113, %v3121
    %v3124 = vpack.c.bf16 %v3123, %v3122
    %v3125 = vpack.c.bf16 %v2954, %v2950
    %v3126 = vpack.c.bf16 %v2956, %v2952
    %v3127 = vpack.c.bf16 %v3037, %v3034
    %v3129 = vsel %vm839, %v3124, 0
    %3131 = vmatprep.subr.bf16.mxu0 0
    %3132 = vmatpush1.bf16.msra.mxu0 0
    %3133 = vmatprep.subr.bf16.mxu0 0
    %3134 = vmatpush1.bf16.msra.mxu0 0
    %3135 = vmatprep.subr.bf16.mxu0 0
    %3136 = vmatpush1.bf16.msra.mxu0 0
    %3137 = vmatprep.subr.bf16.mxu0 0
    %3138 = vmatpush1.bf16.msra.mxu0 0
    %3139 = vmatprep.subr.bf16.mxu0 0
    %3140 = vmatpush1.bf16.msra.mxu0 0
    %3141 = vmatprep.subr.bf16.mxu0 0
    %3142 = vmatpush1.bf16.msra.mxu0 0
    %3143 = vmatprep.subr.bf16.mxu0 0
    %3144 = vmatpush1.bf16.msra.mxu0 0
    %3145 = vmatprep.subr.bf16.mxu0 %v3126
    %3146 = vmatpush1.bf16.msra.mxu0 %v3125
    %3147 = vmatprep.subr.bf16.mxu0 0
    %3148 = vmatpush2.bf16.msra.mxu0 0
    %3149 = vmatprep.subr.bf16.mxu0 0
    %3150 = vmatpush2.bf16.msra.mxu0 0
    %3151 = vmatprep.subr.bf16.mxu0 0
    %3152 = vmatpush2.bf16.msra.mxu0 0
    %3153 = vmatprep.subr.bf16.mxu0 0
    %3154 = vmatpush2.bf16.msra.mxu0 0
    %3155 = vmatprep.subr.bf16.mxu0 0
    %3156 = vmatpush2.bf16.msra.mxu0 0
    %3157 = vmatprep.subr.bf16.mxu0 0
    %3158 = vmatpush2.bf16.msra.mxu0 0
    %3159 = vmatprep.subr.bf16.mxu0 0
    %3160 = vmatpush2.bf16.msra.mxu0 0
    %3161 = vmatprep.subr.bf16.mxu0 0
    %3162 = vmatpush2.bf16.msra.mxu0 0
    %3163 = vmatprep.mubr.bf16.mxu0 0
    %3164 = vmatmul.mubr.bf16.gmra.mxu0 %v3129
    %v3165 = vpop.f32.mrf.mxu0
    %v3166 = vadd.f32 0.0, %v3165
    %v3167 = vpop.f32.mrf.mxu0
    %v3168 = vadd.f32 0.0, %v3167
    %v3169 = vpop.f32.mrf.mxu0
    %v3170 = vadd.f32 0.0, %v3169
    %v3171 = vpop.f32.mrf.mxu0
    %v3172 = vadd.f32 0.0, %v3171
    %3173 = vdwg.mxu0
    %3174 = vmatprep.subr.bf16.mxu0 0
    %3175 = vmatpush1.bf16.msra.mxu0 0
    %3176 = vmatprep.subr.bf16.mxu0 0
    %3177 = vmatpush1.bf16.msra.mxu0 0
    %3178 = vmatprep.subr.bf16.mxu0 0
    %3179 = vmatpush1.bf16.msra.mxu0 0
    %3180 = vmatprep.subr.bf16.mxu0 0
    %3181 = vmatpush1.bf16.msra.mxu0 0
    %3182 = vmatprep.subr.bf16.mxu0 0
    %3183 = vmatpush1.bf16.msra.mxu0 0
    %3184 = vmatprep.subr.bf16.mxu0 0
    %3185 = vmatpush1.bf16.msra.mxu0 0
    %3186 = vmatprep.subr.bf16.mxu0 0
    %3187 = vmatpush1.bf16.msra.mxu0 0
    %3188 = vmatprep.subr.bf16.mxu0 0
    %3189 = vmatpush1.bf16.msra.mxu0 %v3127
    %3190 = vmatprep.subr.bf16.mxu0 0
    %3191 = vmatpush2.bf16.msra.mxu0 0
    %3192 = vmatprep.subr.bf16.mxu0 0
    %3193 = vmatpush2.bf16.msra.mxu0 0
    %3194 = vmatprep.subr.bf16.mxu0 0
    %3195 = vmatpush2.bf16.msra.mxu0 0
    %3196 = vmatprep.subr.bf16.mxu0 0
    %3197 = vmatpush2.bf16.msra.mxu0 0
    %3198 = vmatprep.subr.bf16.mxu0 0
    %3199 = vmatpush2.bf16.msra.mxu0 0
    %3200 = vmatprep.subr.bf16.mxu0 0
    %3201 = vmatpush2.bf16.msra.mxu0 0
    %3202 = vmatprep.subr.bf16.mxu0 0
    %3203 = vmatpush2.bf16.msra.mxu0 0
    %3204 = vmatprep.subr.bf16.mxu0 0
    %3205 = vmatpush2.bf16.msra.mxu0 0
    %3206 = vmatprep.mubr.bf16.mxu0 0
    %3207 = vmatmul.mubr.bf16.gmra.mxu0 %v3129
    %v3208 = vpop.f32.mrf.mxu0
    %v3209 = vadd.f32 0.0, %v3208
    %v3210 = vpop.f32.mrf.mxu0
    %v3211 = vpop.f32.mrf.mxu0
    %v3212 = vadd.f32 0.0, %v3211
    %v3213 = vpop.f32.mrf.mxu0
    %3214 = vdwg.mxu0
    %vm3215 = vcmp.ge.f32.partialorder %v3166, 0.0
    %vm3216 = vcmp.ge.f32.partialorder %v3168, 0.0
    %vm3217 = vcmp.ge.f32.partialorder %v3209, 0.0
    %vm3218 = vcmp.ge.f32.partialorder %v3170, 0.0
    %vm3219 = vcmp.ge.f32.partialorder %v3172, 0.0
    %vm3220 = vcmp.ge.f32.partialorder %v3212, 0.0
    %v3221 = vmul.f32 %v3166, 0.2
    %v3222 = vmul.f32 %v3168, 0.2
    %v3223 = vmul.f32 %v3209, 0.2
    %v3224 = vmul.f32 %v3170, 0.2
    %v3225 = vmul.f32 %v3172, 0.2
    %v3226 = vmul.f32 %v3212, 0.2
    %v3227 = vsel %vm3215, %v3166, %v3221
    %v3228 = vsel %vm3216, %v3168, %v3222
    %v3229 = vsel %vm3217, %v3209, %v3223
    %v3230 = vsel %vm3218, %v3170, %v3224
    %v3231 = vsel %vm3219, %v3172, %v3225
    %v3232 = vsel %vm3220, %v3212, %v3226
    %v3233 = vpack.c.bf16 %v3230, %v3227
    %v3234 = vpack.c.bf16 %v3231, %v3228
    %v3235 = vpack.c.bf16 %v3232, %v3229
    %v3236 = vld [vmem:[#allocation10] sm:$0xff]
    %v3237 = vld [vmem:[#allocation10 + $0x8] sm:$0xf]
    %v3238 = vld [vmem:[#allocation10 + $0xc] sm:$0xff]
    %v3239 = vld [vmem:[#allocation10 + $0x14] sm:$0xf]
    %v3240 = vld [vmem:[#allocation10 + $0x18] sm:$0xff]
    %v3241 = vld [vmem:[#allocation10 + $0x20] sm:$0xf]
    %v3242 = vld [vmem:[#allocation10 + $0x24] sm:$0xff]
    %v3243 = vld [vmem:[#allocation10 + $0x2c] sm:$0xf]
    %v3244 = vld [vmem:[#allocation10 + $0x30] sm:$0xff]
    %v3245 = vld [vmem:[#allocation10 + $0x38] sm:$0xf]
    %v3246 = vld [vmem:[#allocation10 + $0x3c] sm:$0xff]
    %v3247 = vld [vmem:[#allocation10 + $0x44] sm:$0xf]
    %v3248 = vld [vmem:[#allocation10 + $0x48] sm:$0xff]
    %v3249 = vld [vmem:[#allocation10 + $0x50] sm:$0xf]
    %v3250 = vld [vmem:[#allocation10 + $0x54] sm:$0xff]
    %v3251 = vld [vmem:[#allocation10 + $0x5c] sm:$0xf]
    %v3252 = vld [vmem:[#allocation10 + $0x60] sm:$0xff]
    %v3253 = vld [vmem:[#allocation10 + $0x68] sm:$0xf]
    %v3254 = vld [vmem:[#allocation10 + $0x6c] sm:$0xff]
    %v3255 = vld [vmem:[#allocation10 + $0x74] sm:$0xf]
    %v3256 = vld [vmem:[#allocation10 + $0x78] sm:$0xff]
    %v3257 = vld [vmem:[#allocation10 + $0x80] sm:$0xf]
    %v3258 = vld [vmem:[#allocation10 + $0x84] sm:$0xff]
    %v3259 = vld [vmem:[#allocation10 + $0x8c] sm:$0xf]
    %v3260 = vld [vmem:[#allocation10 + $0x90] sm:$0xff]
    %v3261 = vld [vmem:[#allocation10 + $0x98] sm:$0xf]
    %v3262 = vld [vmem:[#allocation10 + $0x9c] sm:$0xff]
    %v3263 = vld [vmem:[#allocation10 + $0xa4] sm:$0xf]
    %v3264 = vld [vmem:[#allocation10 + $0xa8] sm:$0xff]
    %v3265 = vld [vmem:[#allocation10 + $0xb0] sm:$0xf]
    %v3266 = vld [vmem:[#allocation10 + $0xb4] sm:$0xff]
    %v3267 = vld [vmem:[#allocation10 + $0xbc] sm:$0xf]
    %v3268 = vld [vmem:[#allocation10 + $0xc0] sm:$0xff]
    %v3269 = vld [vmem:[#allocation10 + $0xc8] sm:$0xf]
    %v3270 = vld [vmem:[#allocation10 + $0xcc] sm:$0xff]
    %v3271 = vld [vmem:[#allocation10 + $0xd4] sm:$0xf]
    %v3272 = vld [vmem:[#allocation10 + $0xd8] sm:$0xff]
    %v3273 = vld [vmem:[#allocation10 + $0xe0] sm:$0xf]
    %v3274 = vld [vmem:[#allocation10 + $0xe4] sm:$0xff]
    %v3275 = vld [vmem:[#allocation10 + $0xec] sm:$0xf]
    %v3276 = vld [vmem:[#allocation10 + $0xf0] sm:$0xff]
    %v3277 = vld [vmem:[#allocation10 + $0xf8] sm:$0xf]
    %v3278 = vld [vmem:[#allocation10 + $0xfc] sm:$0xff]
    %v3279 = vld [vmem:[#allocation10 + $0x104] sm:$0xf]
    %v3280 = vld [vmem:[#allocation10 + $0x108] sm:$0xff]
    %v3281 = vld [vmem:[#allocation10 + $0x110] sm:$0xf]
    %v3282 = vld [vmem:[#allocation10 + $0x114] sm:$0xff]
    %v3283 = vld [vmem:[#allocation10 + $0x11c] sm:$0xf]
    %v3284 = vld [vmem:[#allocation10 + $0x120] sm:$0xff]
    %v3285 = vld [vmem:[#allocation10 + $0x128] sm:$0xf]
    %v3286 = vld [vmem:[#allocation10 + $0x12c] sm:$0xff]
    %v3287 = vld [vmem:[#allocation10 + $0x134] sm:$0xf]
    %v3288 = vld [vmem:[#allocation10 + $0x138] sm:$0xff]
    %v3289 = vld [vmem:[#allocation10 + $0x140] sm:$0xf]
    %v3290 = vld [vmem:[#allocation10 + $0x144] sm:$0xff]
    %v3291 = vld [vmem:[#allocation10 + $0x14c] sm:$0xf]
    %v3292 = vld [vmem:[#allocation10 + $0x150] sm:$0xff]
    %v3293 = vld [vmem:[#allocation10 + $0x158] sm:$0xf]
    %v3294 = vld [vmem:[#allocation10 + $0x15c] sm:$0xff]
    %v3295 = vld [vmem:[#allocation10 + $0x164] sm:$0xf]
    %v3296 = vld [vmem:[#allocation10 + $0x168] sm:$0xff]
    %v3297 = vld [vmem:[#allocation10 + $0x170] sm:$0xf]
    %v3298 = vld [vmem:[#allocation10 + $0x174] sm:$0xff]
    %v3299 = vld [vmem:[#allocation10 + $0x17c] sm:$0xf]
    %v3300 = vld [vmem:[#allocation10 + $0x180] sm:$0xff]
    %v3301 = vld [vmem:[#allocation10 + $0x188] sm:$0xf]
    %v3302 = vld [vmem:[#allocation10 + $0x18c] sm:$0xff]
    %v3303 = vld [vmem:[#allocation10 + $0x194] sm:$0xf]
    %v3304 = vld [vmem:[#allocation10 + $0x198] sm:$0xff]
    %v3305 = vld [vmem:[#allocation10 + $0x1a0] sm:$0xf]
    %v3306 = vld [vmem:[#allocation10 + $0x1a4] sm:$0xff]
    %v3307 = vld [vmem:[#allocation10 + $0x1ac] sm:$0xf]
    %v3308 = vld [vmem:[#allocation10 + $0x1b0] sm:$0xff]
    %v3309 = vld [vmem:[#allocation10 + $0x1b8] sm:$0xf]
    %v3310 = vld [vmem:[#allocation10 + $0x1bc] sm:$0x33]
    %v3311 = vld [vmem:[#allocation10 + $0x1c4] sm:$0x3]
    %v3312 = vld [vmem:[#allocation11] sm:$0x7]
    %v3314 = vlaneseq
    %v3315 = vshrl.u32 %v3314, 7
    %v3316 = vsub.s32 0, %v3315
    %v3317 = vrot.slane %v3312, %v3316
    %v3318 = vlaneseq
    %v3319 = vshrl.u32 %v3318, 7
    %v3320 = vsub.s32 1, %v3319
    %v3321 = vrot.slane %v3312, %v3320
    %v3322 = vlaneseq
    %v3323 = vshrl.u32 %v3322, 7
    %v3324 = vsub.s32 2, %v3323
    %v3325 = vrot.slane %v3312, %v3324
    %v3405 = vunpack.c.l.b16 %v3236
    %v3406 = vunpack.c.h.b16 %v3236
    %v3407 = vunpack.c.l.b16 %v3237
    %v3408 = vunpack.c.l.b16 %v3238
    %v3409 = vunpack.c.h.b16 %v3238
    %v3410 = vunpack.c.l.b16 %v3239
    %v3411 = vunpack.c.l.b16 %v3240
    %v3412 = vunpack.c.h.b16 %v3240
    %v3413 = vunpack.c.l.b16 %v3241
    %v3414 = vunpack.c.l.b16 %v3242
    %v3415 = vunpack.c.h.b16 %v3242
    %v3416 = vunpack.c.l.b16 %v3243
    %v3417 = vunpack.c.l.b16 %v3244
    %v3418 = vunpack.c.h.b16 %v3244
    %v3419 = vunpack.c.l.b16 %v3245
    %v3420 = vunpack.c.l.b16 %v3246
    %v3421 = vunpack.c.h.b16 %v3246
    %v3422 = vunpack.c.l.b16 %v3247
    %v3423 = vunpack.c.l.b16 %v3248
    %v3424 = vunpack.c.h.b16 %v3248
    %v3425 = vunpack.c.l.b16 %v3249
    %v3426 = vunpack.c.l.b16 %v3250
    %v3427 = vunpack.c.h.b16 %v3250
    %v3428 = vunpack.c.l.b16 %v3251
    %v3429 = vunpack.c.l.b16 %v3252
    %v3430 = vunpack.c.h.b16 %v3252
    %v3431 = vunpack.c.l.b16 %v3253
    %v3432 = vunpack.c.l.b16 %v3254
    %v3433 = vunpack.c.h.b16 %v3254
    %v3434 = vunpack.c.l.b16 %v3255
    %v3435 = vunpack.c.l.b16 %v3256
    %v3436 = vunpack.c.h.b16 %v3256
    %v3437 = vunpack.c.l.b16 %v3257
    %v3438 = vunpack.c.l.b16 %v3258
    %v3439 = vunpack.c.h.b16 %v3258
    %v3440 = vunpack.c.l.b16 %v3259
    %v3441 = vunpack.c.l.b16 %v3260
    %v3442 = vunpack.c.h.b16 %v3260
    %v3443 = vunpack.c.l.b16 %v3261
    %v3444 = vunpack.c.l.b16 %v3262
    %v3445 = vunpack.c.h.b16 %v3262
    %v3446 = vunpack.c.l.b16 %v3263
    %v3447 = vunpack.c.l.b16 %v3264
    %v3448 = vunpack.c.h.b16 %v3264
    %v3449 = vunpack.c.l.b16 %v3265
    %v3450 = vunpack.c.l.b16 %v3266
    %v3451 = vunpack.c.h.b16 %v3266
    %v3452 = vunpack.c.l.b16 %v3267
    %v3453 = vunpack.c.l.b16 %v3268
    %v3454 = vunpack.c.h.b16 %v3268
    %v3455 = vunpack.c.l.b16 %v3269
    %v3456 = vunpack.c.l.b16 %v3270
    %v3457 = vunpack.c.h.b16 %v3270
    %v3458 = vunpack.c.l.b16 %v3271
    %v3459 = vunpack.c.l.b16 %v3272
    %v3460 = vunpack.c.h.b16 %v3272
    %v3461 = vunpack.c.l.b16 %v3273
    %v3462 = vunpack.c.l.b16 %v3274
    %v3463 = vunpack.c.h.b16 %v3274
    %v3464 = vunpack.c.l.b16 %v3275
    %v3465 = vunpack.c.l.b16 %v3276
    %v3466 = vunpack.c.h.b16 %v3276
    %v3467 = vunpack.c.l.b16 %v3277
    %v3468 = vunpack.c.l.b16 %v3278
    %v3469 = vunpack.c.h.b16 %v3278
    %v3470 = vunpack.c.l.b16 %v3279
    %v3471 = vunpack.c.l.b16 %v3280
    %v3472 = vunpack.c.h.b16 %v3280
    %v3473 = vunpack.c.l.b16 %v3281
    %v3474 = vunpack.c.l.b16 %v3282
    %v3475 = vunpack.c.h.b16 %v3282
    %v3476 = vunpack.c.l.b16 %v3283
    %v3477 = vunpack.c.l.b16 %v3284
    %v3478 = vunpack.c.h.b16 %v3284
    %v3479 = vunpack.c.l.b16 %v3285
    %v3480 = vunpack.c.l.b16 %v3286
    %v3481 = vunpack.c.h.b16 %v3286
    %v3482 = vunpack.c.l.b16 %v3287
    %v3483 = vunpack.c.l.b16 %v3288
    %v3484 = vunpack.c.h.b16 %v3288
    %v3485 = vunpack.c.l.b16 %v3289
    %v3486 = vunpack.c.l.b16 %v3290
    %v3487 = vunpack.c.h.b16 %v3290
    %v3488 = vunpack.c.l.b16 %v3291
    %v3489 = vunpack.c.l.b16 %v3292
    %v3490 = vunpack.c.h.b16 %v3292
    %v3491 = vunpack.c.l.b16 %v3293
    %v3492 = vunpack.c.l.b16 %v3294
    %v3493 = vunpack.c.h.b16 %v3294
    %v3494 = vunpack.c.l.b16 %v3295
    %v3495 = vunpack.c.l.b16 %v3296
    %v3496 = vunpack.c.h.b16 %v3296
    %v3497 = vunpack.c.l.b16 %v3297
    %v3498 = vunpack.c.l.b16 %v3298
    %v3499 = vunpack.c.h.b16 %v3298
    %v3500 = vunpack.c.l.b16 %v3299
    %v3501 = vunpack.c.l.b16 %v3300
    %v3502 = vunpack.c.h.b16 %v3300
    %v3503 = vunpack.c.l.b16 %v3301
    %v3504 = vunpack.c.l.b16 %v3302
    %v3505 = vunpack.c.h.b16 %v3302
    %v3506 = vunpack.c.l.b16 %v3303
    %v3507 = vunpack.c.l.b16 %v3304
    %v3508 = vunpack.c.h.b16 %v3304
    %v3509 = vunpack.c.l.b16 %v3305
    %v3510 = vunpack.c.l.b16 %v3306
    %v3511 = vunpack.c.h.b16 %v3306
    %v3512 = vunpack.c.l.b16 %v3307
    %v3513 = vunpack.c.l.b16 %v3308
    %v3514 = vunpack.c.h.b16 %v3308
    %v3515 = vunpack.c.l.b16 %v3309
    %v3516 = vunpack.c.l.b16 %v3310
    %v3517 = vunpack.c.h.b16 %v3310
    %v3518 = vunpack.c.l.b16 %v3311
    %v3519 = vpack.c.b16 %v3408, %v3405
    %v3520 = vpack.c.b16 %v3409, %v3406
    %v3521 = vpack.c.b16 %v3410, %v3407
    %v3522 = vpack.c.b16 %v3414, %v3411
    %v3523 = vpack.c.b16 %v3415, %v3412
    %v3524 = vpack.c.b16 %v3416, %v3413
    %v3525 = vpack.c.b16 %v3420, %v3417
    %v3526 = vpack.c.b16 %v3421, %v3418
    %v3527 = vpack.c.b16 %v3422, %v3419
    %v3528 = vpack.c.b16 %v3426, %v3423
    %v3529 = vpack.c.b16 %v3427, %v3424
    %v3530 = vpack.c.b16 %v3428, %v3425
    %v3531 = vpack.c.b16 %v3432, %v3429
    %v3532 = vpack.c.b16 %v3433, %v3430
    %v3533 = vpack.c.b16 %v3434, %v3431
    %v3534 = vpack.c.b16 %v3438, %v3435
    %v3535 = vpack.c.b16 %v3439, %v3436
    %v3536 = vpack.c.b16 %v3440, %v3437
    %v3537 = vpack.c.b16 %v3444, %v3441
    %v3538 = vpack.c.b16 %v3445, %v3442
    %v3539 = vpack.c.b16 %v3446, %v3443
    %v3540 = vpack.c.b16 %v3450, %v3447
    %v3541 = vpack.c.b16 %v3451, %v3448
    %v3542 = vpack.c.b16 %v3452, %v3449
    %v3543 = vpack.c.b16 %v3456, %v3453
    %v3544 = vpack.c.b16 %v3457, %v3454
    %v3545 = vpack.c.b16 %v3458, %v3455
    %v3546 = vpack.c.b16 %v3462, %v3459
    %v3547 = vpack.c.b16 %v3463, %v3460
    %v3548 = vpack.c.b16 %v3464, %v3461
    %v3549 = vpack.c.b16 %v3468, %v3465
    %v3550 = vpack.c.b16 %v3469, %v3466
    %v3551 = vpack.c.b16 %v3470, %v3467
    %v3552 = vpack.c.b16 %v3474, %v3471
    %v3553 = vpack.c.b16 %v3475, %v3472
    %v3554 = vpack.c.b16 %v3476, %v3473
    %v3555 = vpack.c.b16 %v3480, %v3477
    %v3556 = vpack.c.b16 %v3481, %v3478
    %v3557 = vpack.c.b16 %v3482, %v3479
    %v3558 = vpack.c.b16 %v3486, %v3483
    %v3559 = vpack.c.b16 %v3487, %v3484
    %v3560 = vpack.c.b16 %v3488, %v3485
    %v3561 = vpack.c.b16 %v3492, %v3489
    %v3562 = vpack.c.b16 %v3493, %v3490
    %v3563 = vpack.c.b16 %v3494, %v3491
    %v3564 = vpack.c.b16 %v3498, %v3495
    %v3565 = vpack.c.b16 %v3499, %v3496
    %v3566 = vpack.c.b16 %v3500, %v3497
    %v3567 = vpack.c.b16 %v3504, %v3501
    %v3568 = vpack.c.b16 %v3505, %v3502
    %v3569 = vpack.c.b16 %v3506, %v3503
    %v3570 = vpack.c.b16 %v3510, %v3507
    %v3571 = vpack.c.b16 %v3511, %v3508
    %v3572 = vpack.c.b16 %v3512, %v3509
    %v3573 = vpack.c.b16 %v3516, %v3513
    %v3574 = vpack.c.b16 %v3517, %v3514
    %v3575 = vpack.c.b16 %v3518, %v3515
    %v3631 = vsel %vm595, %v3235, 0
    %v3634 = vsel %vm599, %v3573, 0
    %v3637 = vsel %vm599, %v3574, 0
    %v3640 = vsel %vm599, %v3575, 0
    %3642 = vmatprep.subr.bf16.mxu0 %v3541
    %3643 = vmatpush1.bf16.msra.mxu0 %v3540
    %3644 = vmatprep.subr.bf16.mxu0 %v3538
    %3645 = vmatpush1.bf16.msra.mxu0 %v3537
    %3646 = vmatprep.subr.bf16.mxu0 %v3535
    %3647 = vmatpush1.bf16.msra.mxu0 %v3534
    %3648 = vmatprep.subr.bf16.mxu0 %v3532
    %3649 = vmatpush1.bf16.msra.mxu0 %v3531
    %3650 = vmatprep.subr.bf16.mxu0 %v3529
    %3651 = vmatpush1.bf16.msra.mxu0 %v3528
    %3652 = vmatprep.subr.bf16.mxu0 %v3526
    %3653 = vmatpush1.bf16.msra.mxu0 %v3525
    %3654 = vmatprep.subr.bf16.mxu0 %v3523
    %3655 = vmatpush1.bf16.msra.mxu0 %v3522
    %3656 = vmatprep.subr.bf16.mxu0 %v3520
    %3657 = vmatpush1.bf16.msra.mxu0 %v3519
    %3658 = vmatprep.subr.bf16.mxu0 %v3565
    %3659 = vmatpush2.bf16.msra.mxu0 %v3564
    %3660 = vmatprep.subr.bf16.mxu0 %v3562
    %3661 = vmatpush2.bf16.msra.mxu0 %v3561
    %3662 = vmatprep.subr.bf16.mxu0 %v3559
    %3663 = vmatpush2.bf16.msra.mxu0 %v3558
    %3664 = vmatprep.subr.bf16.mxu0 %v3556
    %3665 = vmatpush2.bf16.msra.mxu0 %v3555
    %3666 = vmatprep.subr.bf16.mxu0 %v3553
    %3667 = vmatpush2.bf16.msra.mxu0 %v3552
    %3668 = vmatprep.subr.bf16.mxu0 %v3550
    %3669 = vmatpush2.bf16.msra.mxu0 %v3549
    %3670 = vmatprep.subr.bf16.mxu0 %v3547
    %3671 = vmatpush2.bf16.msra.mxu0 %v3546
    %3672 = vmatprep.subr.bf16.mxu0 %v3544
    %3673 = vmatpush2.bf16.msra.mxu0 %v3543
    %3674 = vmatprep.mubr.bf16.mxu0 %v3234
    %3675 = vmatmul.mubr.bf16.gmra.mxu0 %v3233
    %v3676 = vpop.f32.mrf.mxu0
    %v3677 = vadd.f32 %v3317, %v3676
    %v3678 = vpop.f32.mrf.mxu0
    %v3679 = vadd.f32 %v3321, %v3678
    %v3680 = vpop.f32.mrf.mxu0
    %v3681 = vadd.f32 %v3317, %v3680
    %v3682 = vpop.f32.mrf.mxu0
    %v3683 = vadd.f32 %v3321, %v3682
    %3684 = vdwg.mxu0
    %3685 = vmatprep.subr.bf16.mxu0 0
    %3686 = vmatpush1.bf16.msra.mxu0 0
    %3687 = vmatprep.subr.bf16.mxu0 0
    %3688 = vmatpush1.bf16.msra.mxu0 0
    %3689 = vmatprep.subr.bf16.mxu0 0
    %3690 = vmatpush1.bf16.msra.mxu0 0
    %3691 = vmatprep.subr.bf16.mxu0 0
    %3692 = vmatpush1.bf16.msra.mxu0 0
    %3693 = vmatprep.subr.bf16.mxu0 0
    %3694 = vmatpush1.bf16.msra.mxu0 0
    %3695 = vmatprep.subr.bf16.mxu0 %v3637
    %3696 = vmatpush1.bf16.msra.mxu0 %v3634
    %3697 = vmatprep.subr.bf16.mxu0 %v3571
    %3698 = vmatpush1.bf16.msra.mxu0 %v3570
    %3699 = vmatprep.subr.bf16.mxu0 %v3568
    %3700 = vmatpush1.bf16.msra.mxu0 %v3567
    %3701 = vmatprep.subr.bf16.mxu0 0
    %3702 = vmatpush2.bf16.msra.mxu0 0
    %3703 = vmatprep.subr.bf16.mxu0 0
    %3704 = vmatpush2.bf16.msra.mxu0 0
    %3705 = vmatprep.subr.bf16.mxu0 0
    %3706 = vmatpush2.bf16.msra.mxu0 0
    %3707 = vmatprep.subr.bf16.mxu0 0
    %3708 = vmatpush2.bf16.msra.mxu0 0
    %3709 = vmatprep.subr.bf16.mxu0 0
    %3710 = vmatpush2.bf16.msra.mxu0 0
    %3711 = vmatprep.subr.bf16.mxu0 0
    %3712 = vmatpush2.bf16.msra.mxu0 0
    %3713 = vmatprep.subr.bf16.mxu0 0
    %3714 = vmatpush2.bf16.msra.mxu0 0
    %3715 = vmatprep.subr.bf16.mxu0 0
    %3716 = vmatpush2.bf16.msra.mxu0 0
    %3717 = vmatprep.mubr.bf16.mxu0 0
    %3718 = vmatmul.mubr.bf16.gmra.mxu0 %v3631
    %v3719 = vpop.f32.mrf.mxu0
    %v3720 = vadd.f32 %v3677, %v3719
    %v3721 = vpop.f32.mrf.mxu0
    %v3722 = vadd.f32 %v3679, %v3721
    %v3723 = vpop.f32.mrf.mxu0
    %v3724 = vadd.f32 %v3681, %v3723
    %v3725 = vpop.f32.mrf.mxu0
    %v3726 = vadd.f32 %v3683, %v3725
    %3727 = vdwg.mxu0
    %3728 = vmatprep.subr.bf16.mxu0 0
    %3729 = vmatpush1.bf16.msra.mxu0 %v3542
    %3730 = vmatprep.subr.bf16.mxu0 0
    %3731 = vmatpush1.bf16.msra.mxu0 %v3539
    %3732 = vmatprep.subr.bf16.mxu0 0
    %3733 = vmatpush1.bf16.msra.mxu0 %v3536
    %3734 = vmatprep.subr.bf16.mxu0 0
    %3735 = vmatpush1.bf16.msra.mxu0 %v3533
    %3736 = vmatprep.subr.bf16.mxu0 0
    %3737 = vmatpush1.bf16.msra.mxu0 %v3530
    %3738 = vmatprep.subr.bf16.mxu0 0
    %3739 = vmatpush1.bf16.msra.mxu0 %v3527
    %3740 = vmatprep.subr.bf16.mxu0 0
    %3741 = vmatpush1.bf16.msra.mxu0 %v3524
    %3742 = vmatprep.subr.bf16.mxu0 0
    %3743 = vmatpush1.bf16.msra.mxu0 %v3521
    %3744 = vmatprep.subr.bf16.mxu0 0
    %3745 = vmatpush2.bf16.msra.mxu0 %v3566
    %3746 = vmatprep.subr.bf16.mxu0 0
    %3747 = vmatpush2.bf16.msra.mxu0 %v3563
    %3748 = vmatprep.subr.bf16.mxu0 0
    %3749 = vmatpush2.bf16.msra.mxu0 %v3560
    %3750 = vmatprep.subr.bf16.mxu0 0
    %3751 = vmatpush2.bf16.msra.mxu0 %v3557
    %3752 = vmatprep.subr.bf16.mxu0 0
    %3753 = vmatpush2.bf16.msra.mxu0 %v3554
    %3754 = vmatprep.subr.bf16.mxu0 0
    %3755 = vmatpush2.bf16.msra.mxu0 %v3551
    %3756 = vmatprep.subr.bf16.mxu0 0
    %3757 = vmatpush2.bf16.msra.mxu0 %v3548
    %3758 = vmatprep.subr.bf16.mxu0 0
    %3759 = vmatpush2.bf16.msra.mxu0 %v3545
    %3760 = vmatprep.mubr.bf16.mxu0 %v3234
    %3761 = vmatmul.mubr.bf16.gmra.mxu0 %v3233
    %v3762 = vpop.f32.mrf.mxu0
    %v3763 = vadd.f32 %v3325, %v3762
    %v3764 = vpop.f32.mrf.mxu0
    %v3765 = vpop.f32.mrf.mxu0
    %v3766 = vadd.f32 %v3325, %v3765
    %v3767 = vpop.f32.mrf.mxu0
    %3768 = vdwg.mxu0
    %3769 = vmatprep.subr.bf16.mxu0 0
    %3770 = vmatpush1.bf16.msra.mxu0 0
    %3771 = vmatprep.subr.bf16.mxu0 0
    %3772 = vmatpush1.bf16.msra.mxu0 0
    %3773 = vmatprep.subr.bf16.mxu0 0
    %3774 = vmatpush1.bf16.msra.mxu0 0
    %3775 = vmatprep.subr.bf16.mxu0 0
    %3776 = vmatpush1.bf16.msra.mxu0 0
    %3777 = vmatprep.subr.bf16.mxu0 0
    %3778 = vmatpush1.bf16.msra.mxu0 0
    %3779 = vmatprep.subr.bf16.mxu0 0
    %3780 = vmatpush1.bf16.msra.mxu0 %v3640
    %3781 = vmatprep.subr.bf16.mxu0 0
    %3782 = vmatpush1.bf16.msra.mxu0 %v3572
    %3783 = vmatprep.subr.bf16.mxu0 0
    %3784 = vmatpush1.bf16.msra.mxu0 %v3569
    %3785 = vmatprep.subr.bf16.mxu0 0
    %3786 = vmatpush2.bf16.msra.mxu0 0
    %3787 = vmatprep.subr.bf16.mxu0 0
    %3788 = vmatpush2.bf16.msra.mxu0 0
    %3789 = vmatprep.subr.bf16.mxu0 0
    %3790 = vmatpush2.bf16.msra.mxu0 0
    %3791 = vmatprep.subr.bf16.mxu0 0
    %3792 = vmatpush2.bf16.msra.mxu0 0
    %3793 = vmatprep.subr.bf16.mxu0 0
    %3794 = vmatpush2.bf16.msra.mxu0 0
    %3795 = vmatprep.subr.bf16.mxu0 0
    %3796 = vmatpush2.bf16.msra.mxu0 0
    %3797 = vmatprep.subr.bf16.mxu0 0
    %3798 = vmatpush2.bf16.msra.mxu0 0
    %3799 = vmatprep.subr.bf16.mxu0 0
    %3800 = vmatpush2.bf16.msra.mxu0 0
    %3801 = vmatprep.mubr.bf16.mxu0 0
    %3802 = vmatmul.mubr.bf16.gmra.mxu0 %v3631
    %v3803 = vpop.f32.mrf.mxu0
    %v3804 = vadd.f32 %v3763, %v3803
    %v3805 = vpop.f32.mrf.mxu0
    %v3806 = vpop.f32.mrf.mxu0
    %v3807 = vadd.f32 %v3766, %v3806
    %v3808 = vpop.f32.mrf.mxu0
    %3809 = vdwg.mxu0
    %v3810 = vadd.f32 %v3720, %v3722
    %v3811 = vsel %vm595, %v3804, 0.0
    %v3812 = vadd.f32 %v3810, %v3811
    %3813 = vadd.xlane.f32.xlu0 %v3812
    %v3814 = vpop.xlane.xlu0 %3813
    %v3815 = vadd.f32 %v3724, %v3726
    %v3816 = vsel %vm595, %v3807, 0.0
    %v3817 = vadd.f32 %v3815, %v3816
    %3818 = vadd.xlane.f32.xlu0 %v3817
    %v3819 = vpop.xlane.xlu0 %3818
    %v3820 = vrcp.pop 300.0
    %v3821 = vmul.f32 %v3814, %v3820
    %v3822 = vmul.f32 %v3819, %v3820
    %v3823 = vsub.f32 %v3720, %v3821
    %v3824 = vsub.f32 %v3722, %v3821
    %v3825 = vsub.f32 %v3804, %v3821
    %v3826 = vsub.f32 %v3724, %v3822
    %v3827 = vsub.f32 %v3726, %v3822
    %v3828 = vsub.f32 %v3807, %v3822
    %v3829 = vmul.f32 %v3823, %v3823
    %v3830 = vmul.f32 %v3824, %v3824
    %v3831 = vmul.f32 %v3825, %v3825
    %v3832 = vmul.f32 %v3826, %v3826
    %v3833 = vmul.f32 %v3827, %v3827
    %v3834 = vmul.f32 %v3828, %v3828
    %v3835 = vadd.f32 %v3829, %v3830
    %v3836 = vsel %vm595, %v3831, 0.0
    %v3837 = vadd.f32 %v3835, %v3836
    %3838 = vadd.xlane.f32.xlu0 %v3837
    %v3839 = vpop.xlane.xlu0 %3838
    %v3840 = vadd.f32 %v3832, %v3833
    %v3841 = vsel %vm595, %v3834, 0.0
    %v3842 = vadd.f32 %v3840, %v3841
    %3843 = vadd.xlane.f32.xlu0 %v3842
    %v3844 = vpop.xlane.xlu0 %3843
    %v3845 = vmul.f32 %v3839, %v3820
    %v3846 = vmul.f32 %v3844, %v3820
    %v3847 = vadd.f32 %v3845, 1e-05
    %v3848 = vadd.f32 %v3846, 1e-05
    %v3849 = vrsqrt.pop %v3847
    %v3850 = vrsqrt.pop %v3848
    %v3851 = vmul.f32 %v3823, %v3849
    %v3852 = vmul.f32 %v3824, %v3849
    %v3853 = vmul.f32 %v3825, %v3849
    %v3854 = vmul.f32 %v3826, %v3850
    %v3855 = vmul.f32 %v3827, %v3850
    %v3856 = vmul.f32 %v3828, %v3850
    %v3857 = vld [vmem:[#allocation13] sm:$0x7]
    %v3859 = vlaneseq
    %v3860 = vshrl.u32 %v3859, 7
    %v3861 = vsub.s32 0, %v3860
    %v3862 = vrot.slane %v3857, %v3861
    %v3863 = vlaneseq
    %v3864 = vshrl.u32 %v3863, 7
    %v3865 = vsub.s32 1, %v3864
    %v3866 = vrot.slane %v3857, %v3865
    %v3867 = vlaneseq
    %v3868 = vshrl.u32 %v3867, 7
    %v3869 = vsub.s32 2, %v3868
    %v3870 = vrot.slane %v3857, %v3869
    %v3874 = vmul.f32 %v3851, %v3862
    %v3875 = vmul.f32 %v3852, %v3866
    %v3876 = vmul.f32 %v3853, %v3870
    %v3877 = vmul.f32 %v3854, %v3862
    %v3878 = vmul.f32 %v3855, %v3866
    %v3879 = vmul.f32 %v3856, %v3870
    %v3880 = vld [vmem:[#allocation14] sm:$0x7]
    %v3882 = vlaneseq
    %v3883 = vshrl.u32 %v3882, 7
    %v3884 = vsub.s32 0, %v3883
    %v3885 = vrot.slane %v3880, %v3884
    %v3886 = vlaneseq
    %v3887 = vshrl.u32 %v3886, 7
    %v3888 = vsub.s32 1, %v3887
    %v3889 = vrot.slane %v3880, %v3888
    %v3890 = vlaneseq
    %v3891 = vshrl.u32 %v3890, 7
    %v3892 = vsub.s32 2, %v3891
    %v3893 = vrot.slane %v3880, %v3892
    %v3897 = vadd.f32 %v3874, %v3885
    %v3898 = vadd.f32 %v3875, %v3889
    %v3899 = vadd.f32 %v3876, %v3893
    %v3900 = vadd.f32 %v3877, %v3885
    %v3901 = vadd.f32 %v3878, %v3889
    %v3902 = vadd.f32 %v3879, %v3893
    %v3903 = vpack.c.bf16 %v3900, %v3897
    %v3904 = vpack.c.bf16 %v3901, %v3898
    %v3905 = vpack.c.bf16 %v3902, %v3899
    %v3906 = vld [vmem:[%s9] sm:$0xff]
    %v3907 = vld [vmem:[%s9 + $0x8] sm:$0xff]
    %v3908 = vld [vmem:[%s9 + $0x10] sm:$0xff]
    %v3909 = vld [vmem:[%s9 + $0x18] sm:$0xff]
    %v3910 = vld [vmem:[%s9 + $0x20] sm:$0xff]
    %v3911 = vld [vmem:[%s9 + $0x28] sm:$0xff]
    %v3912 = vld [vmem:[%s9 + $0x30] sm:$0xff]
    %v3913 = vld [vmem:[%s9 + $0x38] sm:$0xff]
    %v3914 = vld [vmem:[%s9 + $0x40] sm:$0xff]
    %v3915 = vld [vmem:[%s9 + $0x48] sm:$0xff]
    %v3916 = vld [vmem:[%s9 + $0x50] sm:$0xff]
    %v3917 = vld [vmem:[%s9 + $0x58] sm:$0xff]
    %v3918 = vld [vmem:[%s9 + $0x60] sm:$0xff]
    %v3919 = vld [vmem:[%s9 + $0x68] sm:$0xff]
    %v3920 = vld [vmem:[%s9 + $0x70] sm:$0xff]
    %v3921 = vld [vmem:[%s9 + $0x78] sm:$0xff]
    %v3922 = vld [vmem:[%s9 + $0x80] sm:$0xff]
    %v3923 = vld [vmem:[%s9 + $0x88] sm:$0xff]
    %v3924 = vld [vmem:[%s9 + $0x90] sm:$0xff]
    %v3925 = vld [vmem:[%s9 + $0x98] sm:$0xff]
    %v3926 = vld [vmem:[%s9 + $0xa0] sm:$0xff]
    %v3927 = vld [vmem:[%s9 + $0xa8] sm:$0xff]
    %v3928 = vld [vmem:[%s9 + $0xb0] sm:$0xff]
    %v3929 = vld [vmem:[%s9 + $0xb8] sm:$0xff]
    %v3930 = vld [vmem:[%s9 + $0xc0] sm:$0xff]
    %v3931 = vld [vmem:[%s9 + $0xc8] sm:$0xff]
    %v3932 = vld [vmem:[%s9 + $0xd0] sm:$0xff]
    %v3933 = vld [vmem:[%s9 + $0xd8] sm:$0xff]
    %v3934 = vld [vmem:[%s9 + $0xe0] sm:$0xff]
    %v3935 = vld [vmem:[%s9 + $0xe8] sm:$0xff]
    %v3936 = vld [vmem:[%s9 + $0xf0] sm:$0xff]
    %v3937 = vld [vmem:[%s9 + $0xf8] sm:$0xff]
    %v3938 = vld [vmem:[%s9 + $0x100] sm:$0xff]
    %v3939 = vld [vmem:[%s9 + $0x108] sm:$0xff]
    %v3940 = vld [vmem:[%s9 + $0x110] sm:$0xff]
    %v3941 = vld [vmem:[%s9 + $0x118] sm:$0xff]
    %v3942 = vld [vmem:[%s9 + $0x120] sm:$0xff]
    %v3943 = vld [vmem:[%s9 + $0x128] sm:$0xff]
    %v3944 = vld [vmem:[%s9 + $0x130] sm:$0xff]
    %v3945 = vld [vmem:[%s9 + $0x138] sm:$0xff]
    %v3946 = vld [vmem:[%s9 + $0x140] sm:$0xff]
    %v3947 = vld [vmem:[%s9 + $0x148] sm:$0xff]
    %v3948 = vld [vmem:[%s9 + $0x150] sm:$0xff]
    %v3949 = vld [vmem:[%s9 + $0x158] sm:$0xff]
    %v3950 = vld [vmem:[%s9 + $0x160] sm:$0xff]
    %v3951 = vld [vmem:[%s9 + $0x168] sm:$0xff]
    %v3952 = vld [vmem:[%s9 + $0x170] sm:$0xff]
    %v3953 = vld [vmem:[%s9 + $0x178] sm:$0xff]
    %v3954 = vld [vmem:[%s9 + $0x180] sm:$0xff]
    %v3955 = vld [vmem:[%s9 + $0x188] sm:$0xff]
    %v3956 = vld [vmem:[%s9 + $0x190] sm:$0xff]
    %v3957 = vld [vmem:[%s9 + $0x198] sm:$0xff]
    %v3958 = vld [vmem:[%s9 + $0x1a0] sm:$0xff]
    %v3959 = vld [vmem:[%s9 + $0x1a8] sm:$0xff]
    %v3960 = vld [vmem:[%s9 + $0x1b0] sm:$0xff]
    %v3961 = vld [vmem:[%s9 + $0x1b8] sm:$0xff]
    %v3962 = vld [vmem:[%s9 + $0x1c0] sm:$0xff]
    %v3963 = vld [vmem:[%s9 + $0x1c8] sm:$0xff]
    %v3964 = vld [vmem:[%s9 + $0x1d0] sm:$0xff]
    %v3965 = vld [vmem:[%s9 + $0x1d8] sm:$0xff]
    %v3966 = vld [vmem:[%s9 + $0x1e0] sm:$0xff]
    %v3967 = vld [vmem:[%s9 + $0x1e8] sm:$0xff]
    %v3968 = vld [vmem:[%s9 + $0x1f0] sm:$0xff]
    %v3969 = vld [vmem:[%s9 + $0x1f8] sm:$0xff]
    %v3970 = vld [vmem:[%s9 + $0x200] sm:$0xff]
    %v3971 = vld [vmem:[%s9 + $0x208] sm:$0xff]
    %v3972 = vld [vmem:[%s9 + $0x210] sm:$0xff]
    %v3973 = vld [vmem:[%s9 + $0x218] sm:$0xff]
    %v3974 = vld [vmem:[%s9 + $0x220] sm:$0xff]
    %v3975 = vld [vmem:[%s9 + $0x228] sm:$0xff]
    %v3976 = vld [vmem:[%s9 + $0x230] sm:$0xff]
    %v3977 = vld [vmem:[%s9 + $0x238] sm:$0xff]
    %v3978 = vld [vmem:[%s9 + $0x240] sm:$0xff]
    %v3979 = vld [vmem:[%s9 + $0x248] sm:$0xff]
    %v3980 = vld [vmem:[%s9 + $0x250] sm:$0xff]
    %v3981 = vld [vmem:[%s9 + $0x258] sm:$0xff]
    %v3982 = vld [vmem:[%s9 + $0x260] sm:$0xff]
    %v3983 = vld [vmem:[%s9 + $0x268] sm:$0xff]
    %v3984 = vld [vmem:[%s9 + $0x270] sm:$0xff]
    %v3985 = vld [vmem:[%s9 + $0x278] sm:$0xff]
    %v3986 = vld [vmem:[%s9 + $0x280] sm:$0xff]
    %v3987 = vld [vmem:[%s9 + $0x288] sm:$0xff]
    %v3988 = vld [vmem:[%s9 + $0x290] sm:$0xff]
    %v3989 = vld [vmem:[%s9 + $0x298] sm:$0xff]
    %v3990 = vld [vmem:[%s9 + $0x2a0] sm:$0xff]
    %v3991 = vld [vmem:[%s9 + $0x2a8] sm:$0xff]
    %v3992 = vld [vmem:[%s9 + $0x2b0] sm:$0xff]
    %v3993 = vld [vmem:[%s9 + $0x2b8] sm:$0xff]
    %v3994 = vld [vmem:[%s9 + $0x2c0] sm:$0xff]
    %v3995 = vld [vmem:[%s9 + $0x2c8] sm:$0xff]
    %v3996 = vld [vmem:[%s9 + $0x2d0] sm:$0xff]
    %v3997 = vld [vmem:[%s9 + $0x2d8] sm:$0xff]
    %v3998 = vld [vmem:[%s9 + $0x2e0] sm:$0xff]
    %v3999 = vld [vmem:[%s9 + $0x2e8] sm:$0xff]
    %v4000 = vld [vmem:[%s9 + $0x2f0] sm:$0xff]
    %v4001 = vld [vmem:[%s9 + $0x2f8] sm:$0xff]
    %v4002 = vld [vmem:[%s9 + $0x300] sm:$0xff]
    %v4003 = vld [vmem:[%s9 + $0x308] sm:$0xff]
    %v4004 = vld [vmem:[%s9 + $0x310] sm:$0xff]
    %v4005 = vld [vmem:[%s9 + $0x318] sm:$0xff]
    %v4006 = vld [vmem:[%s9 + $0x320] sm:$0xff]
    %v4007 = vld [vmem:[%s9 + $0x328] sm:$0xff]
    %v4008 = vld [vmem:[%s9 + $0x330] sm:$0xff]
    %v4009 = vld [vmem:[%s9 + $0x338] sm:$0xff]
    %v4010 = vld [vmem:[%s9 + $0x340] sm:$0xff]
    %v4011 = vld [vmem:[%s9 + $0x348] sm:$0xff]
    %v4012 = vld [vmem:[%s9 + $0x350] sm:$0xff]
    %v4013 = vld [vmem:[%s9 + $0x358] sm:$0xff]
    %v4014 = vld [vmem:[%s9 + $0x360] sm:$0xff]
    %v4015 = vld [vmem:[%s9 + $0x368] sm:$0xff]
    %v4016 = vld [vmem:[%s9 + $0x370] sm:$0xff]
    %v4017 = vld [vmem:[%s9 + $0x378] sm:$0xff]
    %v4018 = vld [vmem:[%s9 + $0x380] sm:$0xff]
    %v4019 = vld [vmem:[%s9 + $0x388] sm:$0xff]
    %v4020 = vld [vmem:[%s9 + $0x390] sm:$0xff]
    %v4021 = vld [vmem:[%s9 + $0x398] sm:$0xff]
    %v4022 = vld [vmem:[%s9 + $0x3a0] sm:$0xff]
    %v4023 = vld [vmem:[%s9 + $0x3a8] sm:$0xff]
    %v4024 = vld [vmem:[%s9 + $0x3b0] sm:$0xff]
    %v4025 = vld [vmem:[%s9 + $0x3b8] sm:$0xff]
    %v4026 = vld [vmem:[%s9 + $0x3c0] sm:$0xff]
    %v4027 = vld [vmem:[%s9 + $0x3c8] sm:$0xff]
    %v4028 = vld [vmem:[%s9 + $0x3d0] sm:$0xff]
    %v4029 = vld [vmem:[%s9 + $0x3d8] sm:$0xff]
    %v4030 = vld [vmem:[%s9 + $0x3e0] sm:$0xff]
    %v4031 = vld [vmem:[%s9 + $0x3e8] sm:$0xff]
    %v4032 = vld [vmem:[%s9 + $0x3f0] sm:$0xff]
    %v4033 = vld [vmem:[%s9 + $0x3f8] sm:$0xff]
    %v4034 = vld [vmem:[%s9 + $0x400] sm:$0xff]
    %v4035 = vld [vmem:[%s9 + $0x408] sm:$0xff]
    %v4036 = vld [vmem:[%s9 + $0x410] sm:$0xff]
    %v4037 = vld [vmem:[%s9 + $0x418] sm:$0xff]
    %v4038 = vld [vmem:[%s9 + $0x420] sm:$0xff]
    %v4039 = vld [vmem:[%s9 + $0x428] sm:$0xff]
    %v4040 = vld [vmem:[%s9 + $0x430] sm:$0xff]
    %v4041 = vld [vmem:[%s9 + $0x438] sm:$0xff]
    %v4042 = vld [vmem:[%s9 + $0x440] sm:$0xff]
    %v4043 = vld [vmem:[%s9 + $0x448] sm:$0xff]
    %v4044 = vld [vmem:[%s9 + $0x450] sm:$0xff]
    %v4045 = vld [vmem:[%s9 + $0x458] sm:$0xff]
    %v4046 = vld [vmem:[%s9 + $0x460] sm:$0xff]
    %v4047 = vld [vmem:[%s9 + $0x468] sm:$0xff]
    %v4048 = vld [vmem:[%s9 + $0x470] sm:$0xff]
    %v4049 = vld [vmem:[%s9 + $0x478] sm:$0xff]
    %v4050 = vld [vmem:[%s9 + $0x480] sm:$0xff]
    %v4051 = vld [vmem:[%s9 + $0x488] sm:$0xff]
    %v4052 = vld [vmem:[%s9 + $0x490] sm:$0xff]
    %v4053 = vld [vmem:[%s9 + $0x498] sm:$0xff]
    %v4054 = vld [vmem:[%s9 + $0x4a0] sm:$0xff]
    %v4055 = vld [vmem:[%s9 + $0x4a8] sm:$0xff]
    %v4056 = vld [vmem:[%s9 + $0x4b0] sm:$0xff]
    %v4057 = vld [vmem:[%s9 + $0x4b8] sm:$0xff]
    %v4058 = vld [vmem:[%s9 + $0x4c0] sm:$0xff]
    %v4059 = vld [vmem:[%s9 + $0x4c8] sm:$0xff]
    %v4060 = vld [vmem:[%s9 + $0x4d0] sm:$0xff]
    %v4061 = vld [vmem:[%s9 + $0x4d8] sm:$0xff]
    %v4062 = vld [vmem:[%s9 + $0x4e0] sm:$0xff]
    %v4063 = vld [vmem:[%s9 + $0x4e8] sm:$0xff]
    %v4064 = vld [vmem:[%s9 + $0x4f0] sm:$0xff]
    %v4065 = vld [vmem:[%s9 + $0x4f8] sm:$0xff]
    %v4066 = vld [vmem:[%s9 + $0x500] sm:$0xff]
    %v4067 = vld [vmem:[%s9 + $0x508] sm:$0xff]
    %v4068 = vld [vmem:[%s9 + $0x510] sm:$0xff]
    %v4069 = vld [vmem:[%s9 + $0x518] sm:$0xff]
    %v4070 = vld [vmem:[%s9 + $0x520] sm:$0xff]
    %v4071 = vld [vmem:[%s9 + $0x528] sm:$0xff]
    %v4072 = vld [vmem:[%s9 + $0x530] sm:$0xff]
    %v4073 = vld [vmem:[%s9 + $0x538] sm:$0xff]
    %v4074 = vld [vmem:[%s9 + $0x540] sm:$0xff]
    %v4075 = vld [vmem:[%s9 + $0x548] sm:$0xff]
    %v4076 = vld [vmem:[%s9 + $0x550] sm:$0xff]
    %v4077 = vld [vmem:[%s9 + $0x558] sm:$0xff]
    %v4078 = vld [vmem:[%s9 + $0x560] sm:$0xff]
    %v4079 = vld [vmem:[%s9 + $0x568] sm:$0xff]
    %v4080 = vld [vmem:[%s9 + $0x570] sm:$0xff]
    %v4081 = vld [vmem:[%s9 + $0x578] sm:$0xff]
    %v4082 = vld [vmem:[%s9 + $0x580] sm:$0xff]
    %v4083 = vld [vmem:[%s9 + $0x588] sm:$0xff]
    %v4084 = vld [vmem:[%s9 + $0x590] sm:$0xff]
    %v4085 = vld [vmem:[%s9 + $0x598] sm:$0xff]
    %v4086 = vld [vmem:[%s9 + $0x5a0] sm:$0xff]
    %v4087 = vld [vmem:[%s9 + $0x5a8] sm:$0xff]
    %v4088 = vld [vmem:[%s9 + $0x5b0] sm:$0xff]
    %v4089 = vld [vmem:[%s9 + $0x5b8] sm:$0xff]
    %v4090 = vld [vmem:[%s9 + $0x5c0] sm:$0xff]
    %v4091 = vld [vmem:[%s9 + $0x5c8] sm:$0x33]
    %v4092 = vld [vmem:[%s9 + $0x5d0] sm:$0x33]
    %v4093 = vld [vmem:[%s9 + $0x5d8] sm:$0x33]
    %v4094 = vld [vmem:[%s9 + $0x5e0] sm:$0x33]
    %v4095 = vld [vmem:[%s9 + $0x5e8] sm:$0x33]
    %v4286 = vunpack.c.l.b16 %v3906
    %v4287 = vunpack.c.h.b16 %v3906
    %v4288 = vunpack.c.l.b16 %v3907
    %v4289 = vunpack.c.h.b16 %v3907
    %v4290 = vunpack.c.l.b16 %v3908
    %v4291 = vunpack.c.h.b16 %v3908
    %v4292 = vunpack.c.l.b16 %v3909
    %v4293 = vunpack.c.h.b16 %v3909
    %v4294 = vunpack.c.l.b16 %v3910
    %v4295 = vunpack.c.h.b16 %v3910
    %v4296 = vunpack.c.l.b16 %v3911
    %v4297 = vunpack.c.h.b16 %v3911
    %v4298 = vunpack.c.l.b16 %v3912
    %v4299 = vunpack.c.h.b16 %v3912
    %v4300 = vunpack.c.l.b16 %v3913
    %v4301 = vunpack.c.h.b16 %v3913
    %v4302 = vunpack.c.l.b16 %v3914
    %v4303 = vunpack.c.h.b16 %v3914
    %v4304 = vunpack.c.l.b16 %v3915
    %v4305 = vunpack.c.h.b16 %v3915
    %v4306 = vunpack.c.l.b16 %v3916
    %v4307 = vunpack.c.h.b16 %v3916
    %v4308 = vunpack.c.l.b16 %v3917
    %v4309 = vunpack.c.h.b16 %v3917
    %v4310 = vunpack.c.l.b16 %v3918
    %v4311 = vunpack.c.h.b16 %v3918
    %v4312 = vunpack.c.l.b16 %v3919
    %v4313 = vunpack.c.h.b16 %v3919
    %v4314 = vunpack.c.l.b16 %v3920
    %v4315 = vunpack.c.h.b16 %v3920
    %v4316 = vunpack.c.l.b16 %v3921
    %v4317 = vunpack.c.h.b16 %v3921
    %v4318 = vunpack.c.l.b16 %v3922
    %v4319 = vunpack.c.h.b16 %v3922
    %v4320 = vunpack.c.l.b16 %v3923
    %v4321 = vunpack.c.h.b16 %v3923
    %v4322 = vunpack.c.l.b16 %v3924
    %v4323 = vunpack.c.h.b16 %v3924
    %v4324 = vunpack.c.l.b16 %v3925
    %v4325 = vunpack.c.h.b16 %v3925
    %v4326 = vunpack.c.l.b16 %v3926
    %v4327 = vunpack.c.h.b16 %v3926
    %v4328 = vunpack.c.l.b16 %v3927
    %v4329 = vunpack.c.h.b16 %v3927
    %v4330 = vunpack.c.l.b16 %v3928
    %v4331 = vunpack.c.h.b16 %v3928
    %v4332 = vunpack.c.l.b16 %v3929
    %v4333 = vunpack.c.h.b16 %v3929
    %v4334 = vunpack.c.l.b16 %v3930
    %v4335 = vunpack.c.h.b16 %v3930
    %v4336 = vunpack.c.l.b16 %v3931
    %v4337 = vunpack.c.h.b16 %v3931
    %v4338 = vunpack.c.l.b16 %v3932
    %v4339 = vunpack.c.h.b16 %v3932
    %v4340 = vunpack.c.l.b16 %v3933
    %v4341 = vunpack.c.h.b16 %v3933
    %v4342 = vunpack.c.l.b16 %v3934
    %v4343 = vunpack.c.h.b16 %v3934
    %v4344 = vunpack.c.l.b16 %v3935
    %v4345 = vunpack.c.h.b16 %v3935
    %v4346 = vunpack.c.l.b16 %v3936
    %v4347 = vunpack.c.h.b16 %v3936
    %v4348 = vunpack.c.l.b16 %v3937
    %v4349 = vunpack.c.h.b16 %v3937
    %v4350 = vunpack.c.l.b16 %v3938
    %v4351 = vunpack.c.h.b16 %v3938
    %v4352 = vunpack.c.l.b16 %v3939
    %v4353 = vunpack.c.h.b16 %v3939
    %v4354 = vunpack.c.l.b16 %v3940
    %v4355 = vunpack.c.h.b16 %v3940
    %v4356 = vunpack.c.l.b16 %v3941
    %v4357 = vunpack.c.h.b16 %v3941
    %v4358 = vunpack.c.l.b16 %v3942
    %v4359 = vunpack.c.h.b16 %v3942
    %v4360 = vunpack.c.l.b16 %v3943
    %v4361 = vunpack.c.h.b16 %v3943
    %v4362 = vunpack.c.l.b16 %v3944
    %v4363 = vunpack.c.h.b16 %v3944
    %v4364 = vunpack.c.l.b16 %v3945
    %v4365 = vunpack.c.h.b16 %v3945
    %v4366 = vunpack.c.l.b16 %v3946
    %v4367 = vunpack.c.h.b16 %v3946
    %v4368 = vunpack.c.l.b16 %v3947
    %v4369 = vunpack.c.h.b16 %v3947
    %v4370 = vunpack.c.l.b16 %v3948
    %v4371 = vunpack.c.h.b16 %v3948
    %v4372 = vunpack.c.l.b16 %v3949
    %v4373 = vunpack.c.h.b16 %v3949
    %v4374 = vunpack.c.l.b16 %v3950
    %v4375 = vunpack.c.h.b16 %v3950
    %v4376 = vunpack.c.l.b16 %v3951
    %v4377 = vunpack.c.h.b16 %v3951
    %v4378 = vunpack.c.l.b16 %v3952
    %v4379 = vunpack.c.h.b16 %v3952
    %v4380 = vunpack.c.l.b16 %v3953
    %v4381 = vunpack.c.h.b16 %v3953
    %v4382 = vunpack.c.l.b16 %v3954
    %v4383 = vunpack.c.h.b16 %v3954
    %v4384 = vunpack.c.l.b16 %v3955
    %v4385 = vunpack.c.h.b16 %v3955
    %v4386 = vunpack.c.l.b16 %v3956
    %v4387 = vunpack.c.h.b16 %v3956
    %v4388 = vunpack.c.l.b16 %v3957
    %v4389 = vunpack.c.h.b16 %v3957
    %v4390 = vunpack.c.l.b16 %v3958
    %v4391 = vunpack.c.h.b16 %v3958
    %v4392 = vunpack.c.l.b16 %v3959
    %v4393 = vunpack.c.h.b16 %v3959
    %v4394 = vunpack.c.l.b16 %v3960
    %v4395 = vunpack.c.h.b16 %v3960
    %v4396 = vunpack.c.l.b16 %v3961
    %v4397 = vunpack.c.h.b16 %v3961
    %v4398 = vunpack.c.l.b16 %v3962
    %v4399 = vunpack.c.h.b16 %v3962
    %v4400 = vunpack.c.l.b16 %v3963
    %v4401 = vunpack.c.h.b16 %v3963
    %v4402 = vunpack.c.l.b16 %v3964
    %v4403 = vunpack.c.h.b16 %v3964
    %v4404 = vunpack.c.l.b16 %v3965
    %v4405 = vunpack.c.h.b16 %v3965
    %v4406 = vunpack.c.l.b16 %v3966
    %v4407 = vunpack.c.h.b16 %v3966
    %v4408 = vunpack.c.l.b16 %v3967
    %v4409 = vunpack.c.h.b16 %v3967
    %v4410 = vunpack.c.l.b16 %v3968
    %v4411 = vunpack.c.h.b16 %v3968
    %v4412 = vunpack.c.l.b16 %v3969
    %v4413 = vunpack.c.h.b16 %v3969
    %v4414 = vunpack.c.l.b16 %v3970
    %v4415 = vunpack.c.h.b16 %v3970
    %v4416 = vunpack.c.l.b16 %v3971
    %v4417 = vunpack.c.h.b16 %v3971
    %v4418 = vunpack.c.l.b16 %v3972
    %v4419 = vunpack.c.h.b16 %v3972
    %v4420 = vunpack.c.l.b16 %v3973
    %v4421 = vunpack.c.h.b16 %v3973
    %v4422 = vunpack.c.l.b16 %v3974
    %v4423 = vunpack.c.h.b16 %v3974
    %v4424 = vunpack.c.l.b16 %v3975
    %v4425 = vunpack.c.h.b16 %v3975
    %v4426 = vunpack.c.l.b16 %v3976
    %v4427 = vunpack.c.h.b16 %v3976
    %v4428 = vunpack.c.l.b16 %v3977
    %v4429 = vunpack.c.h.b16 %v3977
    %v4430 = vunpack.c.l.b16 %v3978
    %v4431 = vunpack.c.h.b16 %v3978
    %v4432 = vunpack.c.l.b16 %v3979
    %v4433 = vunpack.c.h.b16 %v3979
    %v4434 = vunpack.c.l.b16 %v3980
    %v4435 = vunpack.c.h.b16 %v3980
    %v4436 = vunpack.c.l.b16 %v3981
    %v4437 = vunpack.c.h.b16 %v3981
    %v4438 = vunpack.c.l.b16 %v3982
    %v4439 = vunpack.c.h.b16 %v3982
    %v4440 = vunpack.c.l.b16 %v3983
    %v4441 = vunpack.c.h.b16 %v3983
    %v4442 = vunpack.c.l.b16 %v3984
    %v4443 = vunpack.c.h.b16 %v3984
    %v4444 = vunpack.c.l.b16 %v3985
    %v4445 = vunpack.c.h.b16 %v3985
    %v4446 = vunpack.c.l.b16 %v3986
    %v4447 = vunpack.c.h.b16 %v3986
    %v4448 = vunpack.c.l.b16 %v3987
    %v4449 = vunpack.c.h.b16 %v3987
    %v4450 = vunpack.c.l.b16 %v3988
    %v4451 = vunpack.c.h.b16 %v3988
    %v4452 = vunpack.c.l.b16 %v3989
    %v4453 = vunpack.c.h.b16 %v3989
    %v4454 = vunpack.c.l.b16 %v3990
    %v4455 = vunpack.c.h.b16 %v3990
    %v4456 = vunpack.c.l.b16 %v3991
    %v4457 = vunpack.c.h.b16 %v3991
    %v4458 = vunpack.c.l.b16 %v3992
    %v4459 = vunpack.c.h.b16 %v3992
    %v4460 = vunpack.c.l.b16 %v3993
    %v4461 = vunpack.c.h.b16 %v3993
    %v4462 = vunpack.c.l.b16 %v3994
    %v4463 = vunpack.c.h.b16 %v3994
    %v4464 = vunpack.c.l.b16 %v3995
    %v4465 = vunpack.c.h.b16 %v3995
    %v4466 = vunpack.c.l.b16 %v3996
    %v4467 = vunpack.c.h.b16 %v3996
    %v4468 = vunpack.c.l.b16 %v3997
    %v4469 = vunpack.c.h.b16 %v3997
    %v4470 = vunpack.c.l.b16 %v3998
    %v4471 = vunpack.c.h.b16 %v3998
    %v4472 = vunpack.c.l.b16 %v3999
    %v4473 = vunpack.c.h.b16 %v3999
    %v4474 = vunpack.c.l.b16 %v4000
    %v4475 = vunpack.c.h.b16 %v4000
    %v4476 = vunpack.c.l.b16 %v4001
    %v4477 = vunpack.c.h.b16 %v4001
    %v4478 = vunpack.c.l.b16 %v4002
    %v4479 = vunpack.c.h.b16 %v4002
    %v4480 = vunpack.c.l.b16 %v4003
    %v4481 = vunpack.c.h.b16 %v4003
    %v4482 = vunpack.c.l.b16 %v4004
    %v4483 = vunpack.c.h.b16 %v4004
    %v4484 = vunpack.c.l.b16 %v4005
    %v4485 = vunpack.c.h.b16 %v4005
    %v4486 = vunpack.c.l.b16 %v4006
    %v4487 = vunpack.c.h.b16 %v4006
    %v4488 = vunpack.c.l.b16 %v4007
    %v4489 = vunpack.c.h.b16 %v4007
    %v4490 = vunpack.c.l.b16 %v4008
    %v4491 = vunpack.c.h.b16 %v4008
    %v4492 = vunpack.c.l.b16 %v4009
    %v4493 = vunpack.c.h.b16 %v4009
    %v4494 = vunpack.c.l.b16 %v4010
    %v4495 = vunpack.c.h.b16 %v4010
    %v4496 = vunpack.c.l.b16 %v4011
    %v4497 = vunpack.c.h.b16 %v4011
    %v4498 = vunpack.c.l.b16 %v4012
    %v4499 = vunpack.c.h.b16 %v4012
    %v4500 = vunpack.c.l.b16 %v4013
    %v4501 = vunpack.c.h.b16 %v4013
    %v4502 = vunpack.c.l.b16 %v4014
    %v4503 = vunpack.c.h.b16 %v4014
    %v4504 = vunpack.c.l.b16 %v4015
    %v4505 = vunpack.c.h.b16 %v4015
    %v4506 = vunpack.c.l.b16 %v4016
    %v4507 = vunpack.c.h.b16 %v4016
    %v4508 = vunpack.c.l.b16 %v4017
    %v4509 = vunpack.c.h.b16 %v4017
    %v4510 = vunpack.c.l.b16 %v4018
    %v4511 = vunpack.c.h.b16 %v4018
    %v4512 = vunpack.c.l.b16 %v4019
    %v4513 = vunpack.c.h.b16 %v4019
    %v4514 = vunpack.c.l.b16 %v4020
    %v4515 = vunpack.c.h.b16 %v4020
    %v4516 = vunpack.c.l.b16 %v4021
    %v4517 = vunpack.c.h.b16 %v4021
    %v4518 = vunpack.c.l.b16 %v4022
    %v4519 = vunpack.c.h.b16 %v4022
    %v4520 = vunpack.c.l.b16 %v4023
    %v4521 = vunpack.c.h.b16 %v4023
    %v4522 = vunpack.c.l.b16 %v4024
    %v4523 = vunpack.c.h.b16 %v4024
    %v4524 = vunpack.c.l.b16 %v4025
    %v4525 = vunpack.c.h.b16 %v4025
    %v4526 = vunpack.c.l.b16 %v4026
    %v4527 = vunpack.c.h.b16 %v4026
    %v4528 = vunpack.c.l.b16 %v4027
    %v4529 = vunpack.c.h.b16 %v4027
    %v4530 = vunpack.c.l.b16 %v4028
    %v4531 = vunpack.c.h.b16 %v4028
    %v4532 = vunpack.c.l.b16 %v4029
    %v4533 = vunpack.c.h.b16 %v4029
    %v4534 = vunpack.c.l.b16 %v4030
    %v4535 = vunpack.c.h.b16 %v4030
    %v4536 = vunpack.c.l.b16 %v4031
    %v4537 = vunpack.c.h.b16 %v4031
    %v4538 = vunpack.c.l.b16 %v4032
    %v4539 = vunpack.c.h.b16 %v4032
    %v4540 = vunpack.c.l.b16 %v4033
    %v4541 = vunpack.c.h.b16 %v4033
    %v4542 = vunpack.c.l.b16 %v4034
    %v4543 = vunpack.c.h.b16 %v4034
    %v4544 = vunpack.c.l.b16 %v4035
    %v4545 = vunpack.c.h.b16 %v4035
    %v4546 = vunpack.c.l.b16 %v4036
    %v4547 = vunpack.c.h.b16 %v4036
    %v4548 = vunpack.c.l.b16 %v4037
    %v4549 = vunpack.c.h.b16 %v4037
    %v4550 = vunpack.c.l.b16 %v4038
    %v4551 = vunpack.c.h.b16 %v4038
    %v4552 = vunpack.c.l.b16 %v4039
    %v4553 = vunpack.c.h.b16 %v4039
    %v4554 = vunpack.c.l.b16 %v4040
    %v4555 = vunpack.c.h.b16 %v4040
    %v4556 = vunpack.c.l.b16 %v4041
    %v4557 = vunpack.c.h.b16 %v4041
    %v4558 = vunpack.c.l.b16 %v4042
    %v4559 = vunpack.c.h.b16 %v4042
    %v4560 = vunpack.c.l.b16 %v4043
    %v4561 = vunpack.c.h.b16 %v4043
    %v4562 = vunpack.c.l.b16 %v4044
    %v4563 = vunpack.c.h.b16 %v4044
    %v4564 = vunpack.c.l.b16 %v4045
    %v4565 = vunpack.c.h.b16 %v4045
    %v4566 = vunpack.c.l.b16 %v4046
    %v4567 = vunpack.c.h.b16 %v4046
    %v4568 = vunpack.c.l.b16 %v4047
    %v4569 = vunpack.c.h.b16 %v4047
    %v4570 = vunpack.c.l.b16 %v4048
    %v4571 = vunpack.c.h.b16 %v4048
    %v4572 = vunpack.c.l.b16 %v4049
    %v4573 = vunpack.c.h.b16 %v4049
    %v4574 = vunpack.c.l.b16 %v4050
    %v4575 = vunpack.c.h.b16 %v4050
    %v4576 = vunpack.c.l.b16 %v4051
    %v4577 = vunpack.c.h.b16 %v4051
    %v4578 = vunpack.c.l.b16 %v4052
    %v4579 = vunpack.c.h.b16 %v4052
    %v4580 = vunpack.c.l.b16 %v4053
    %v4581 = vunpack.c.h.b16 %v4053
    %v4582 = vunpack.c.l.b16 %v4054
    %v4583 = vunpack.c.h.b16 %v4054
    %v4584 = vunpack.c.l.b16 %v4055
    %v4585 = vunpack.c.h.b16 %v4055
    %v4586 = vunpack.c.l.b16 %v4056
    %v4587 = vunpack.c.h.b16 %v4056
    %v4588 = vunpack.c.l.b16 %v4057
    %v4589 = vunpack.c.h.b16 %v4057
    %v4590 = vunpack.c.l.b16 %v4058
    %v4591 = vunpack.c.h.b16 %v4058
    %v4592 = vunpack.c.l.b16 %v4059
    %v4593 = vunpack.c.h.b16 %v4059
    %v4594 = vunpack.c.l.b16 %v4060
    %v4595 = vunpack.c.h.b16 %v4060
    %v4596 = vunpack.c.l.b16 %v4061
    %v4597 = vunpack.c.h.b16 %v4061
    %v4598 = vunpack.c.l.b16 %v4062
    %v4599 = vunpack.c.h.b16 %v4062
    %v4600 = vunpack.c.l.b16 %v4063
    %v4601 = vunpack.c.h.b16 %v4063
    %v4602 = vunpack.c.l.b16 %v4064
    %v4603 = vunpack.c.h.b16 %v4064
    %v4604 = vunpack.c.l.b16 %v4065
    %v4605 = vunpack.c.h.b16 %v4065
    %v4606 = vunpack.c.l.b16 %v4066
    %v4607 = vunpack.c.h.b16 %v4066
    %v4608 = vunpack.c.l.b16 %v4067
    %v4609 = vunpack.c.h.b16 %v4067
    %v4610 = vunpack.c.l.b16 %v4068
    %v4611 = vunpack.c.h.b16 %v4068
    %v4612 = vunpack.c.l.b16 %v4069
    %v4613 = vunpack.c.h.b16 %v4069
    %v4614 = vunpack.c.l.b16 %v4070
    %v4615 = vunpack.c.h.b16 %v4070
    %v4616 = vunpack.c.l.b16 %v4071
    %v4617 = vunpack.c.h.b16 %v4071
    %v4618 = vunpack.c.l.b16 %v4072
    %v4619 = vunpack.c.h.b16 %v4072
    %v4620 = vunpack.c.l.b16 %v4073
    %v4621 = vunpack.c.h.b16 %v4073
    %v4622 = vunpack.c.l.b16 %v4074
    %v4623 = vunpack.c.h.b16 %v4074
    %v4624 = vunpack.c.l.b16 %v4075
    %v4625 = vunpack.c.h.b16 %v4075
    %v4626 = vunpack.c.l.b16 %v4076
    %v4627 = vunpack.c.h.b16 %v4076
    %v4628 = vunpack.c.l.b16 %v4077
    %v4629 = vunpack.c.h.b16 %v4077
    %v4630 = vunpack.c.l.b16 %v4078
    %v4631 = vunpack.c.h.b16 %v4078
    %v4632 = vunpack.c.l.b16 %v4079
    %v4633 = vunpack.c.h.b16 %v4079
    %v4634 = vunpack.c.l.b16 %v4080
    %v4635 = vunpack.c.h.b16 %v4080
    %v4636 = vunpack.c.l.b16 %v4081
    %v4637 = vunpack.c.h.b16 %v4081
    %v4638 = vunpack.c.l.b16 %v4082
    %v4639 = vunpack.c.h.b16 %v4082
    %v4640 = vunpack.c.l.b16 %v4083
    %v4641 = vunpack.c.h.b16 %v4083
    %v4642 = vunpack.c.l.b16 %v4084
    %v4643 = vunpack.c.h.b16 %v4084
    %v4644 = vunpack.c.l.b16 %v4085
    %v4645 = vunpack.c.h.b16 %v4085
    %v4646 = vunpack.c.l.b16 %v4086
    %v4647 = vunpack.c.h.b16 %v4086
    %v4648 = vunpack.c.l.b16 %v4087
    %v4649 = vunpack.c.h.b16 %v4087
    %v4650 = vunpack.c.l.b16 %v4088
    %v4651 = vunpack.c.h.b16 %v4088
    %v4652 = vunpack.c.l.b16 %v4089
    %v4653 = vunpack.c.h.b16 %v4089
    %v4654 = vunpack.c.l.b16 %v4090
    %v4655 = vunpack.c.h.b16 %v4090
    %v4656 = vunpack.c.l.b16 %v4091
    %v4657 = vunpack.c.h.b16 %v4091
    %v4658 = vunpack.c.l.b16 %v4092
    %v4659 = vunpack.c.h.b16 %v4092
    %v4660 = vunpack.c.l.b16 %v4093
    %v4661 = vunpack.c.h.b16 %v4093
    %v4662 = vunpack.c.l.b16 %v4094
    %v4663 = vunpack.c.h.b16 %v4094
    %v4664 = vunpack.c.l.b16 %v4095
    %v4665 = vunpack.c.h.b16 %v4095
    %v4666 = vpack.c.b16 %v4296, %v4286
    %v4667 = vpack.c.b16 %v4297, %v4287
    %v4668 = vpack.c.b16 %v4298, %v4288
    %v4669 = vpack.c.b16 %v4299, %v4289
    %v4670 = vpack.c.b16 %v4300, %v4290
    %v4671 = vpack.c.b16 %v4301, %v4291
    %v4672 = vpack.c.b16 %v4302, %v4292
    %v4673 = vpack.c.b16 %v4303, %v4293
    %v4674 = vpack.c.b16 %v4304, %v4294
    %v4675 = vpack.c.b16 %v4305, %v4295
    %v4676 = vpack.c.b16 %v4316, %v4306
    %v4677 = vpack.c.b16 %v4317, %v4307
    %v4678 = vpack.c.b16 %v4318, %v4308
    %v4679 = vpack.c.b16 %v4319, %v4309
    %v4680 = vpack.c.b16 %v4320, %v4310
    %v4681 = vpack.c.b16 %v4321, %v4311
    %v4682 = vpack.c.b16 %v4322, %v4312
    %v4683 = vpack.c.b16 %v4323, %v4313
    %v4684 = vpack.c.b16 %v4324, %v4314
    %v4685 = vpack.c.b16 %v4325, %v4315
    %v4686 = vpack.c.b16 %v4336, %v4326
    %v4687 = vpack.c.b16 %v4337, %v4327
    %v4688 = vpack.c.b16 %v4338, %v4328
    %v4689 = vpack.c.b16 %v4339, %v4329
    %v4690 = vpack.c.b16 %v4340, %v4330
    %v4691 = vpack.c.b16 %v4341, %v4331
    %v4692 = vpack.c.b16 %v4342, %v4332
    %v4693 = vpack.c.b16 %v4343, %v4333
    %v4694 = vpack.c.b16 %v4344, %v4334
    %v4695 = vpack.c.b16 %v4345, %v4335
    %v4696 = vpack.c.b16 %v4356, %v4346
    %v4697 = vpack.c.b16 %v4357, %v4347
    %v4698 = vpack.c.b16 %v4358, %v4348
    %v4699 = vpack.c.b16 %v4359, %v4349
    %v4700 = vpack.c.b16 %v4360, %v4350
    %v4701 = vpack.c.b16 %v4361, %v4351
    %v4702 = vpack.c.b16 %v4362, %v4352
    %v4703 = vpack.c.b16 %v4363, %v4353
    %v4704 = vpack.c.b16 %v4364, %v4354
    %v4705 = vpack.c.b16 %v4365, %v4355
    %v4706 = vpack.c.b16 %v4376, %v4366
    %v4707 = vpack.c.b16 %v4377, %v4367
    %v4708 = vpack.c.b16 %v4378, %v4368
    %v4709 = vpack.c.b16 %v4379, %v4369
    %v4710 = vpack.c.b16 %v4380, %v4370
    %v4711 = vpack.c.b16 %v4381, %v4371
    %v4712 = vpack.c.b16 %v4382, %v4372
    %v4713 = vpack.c.b16 %v4383, %v4373
    %v4714 = vpack.c.b16 %v4384, %v4374
    %v4715 = vpack.c.b16 %v4385, %v4375
    %v4716 = vpack.c.b16 %v4396, %v4386
    %v4717 = vpack.c.b16 %v4397, %v4387
    %v4718 = vpack.c.b16 %v4398, %v4388
    %v4719 = vpack.c.b16 %v4399, %v4389
    %v4720 = vpack.c.b16 %v4400, %v4390
    %v4721 = vpack.c.b16 %v4401, %v4391
    %v4722 = vpack.c.b16 %v4402, %v4392
    %v4723 = vpack.c.b16 %v4403, %v4393
    %v4724 = vpack.c.b16 %v4404, %v4394
    %v4725 = vpack.c.b16 %v4405, %v4395
    %v4726 = vpack.c.b16 %v4416, %v4406
    %v4727 = vpack.c.b16 %v4417, %v4407
    %v4728 = vpack.c.b16 %v4418, %v4408
    %v4729 = vpack.c.b16 %v4419, %v4409
    %v4730 = vpack.c.b16 %v4420, %v4410
    %v4731 = vpack.c.b16 %v4421, %v4411
    %v4732 = vpack.c.b16 %v4422, %v4412
    %v4733 = vpack.c.b16 %v4423, %v4413
    %v4734 = vpack.c.b16 %v4424, %v4414
    %v4735 = vpack.c.b16 %v4425, %v4415
    %v4736 = vpack.c.b16 %v4436, %v4426
    %v4737 = vpack.c.b16 %v4437, %v4427
    %v4738 = vpack.c.b16 %v4438, %v4428
    %v4739 = vpack.c.b16 %v4439, %v4429
    %v4740 = vpack.c.b16 %v4440, %v4430
    %v4741 = vpack.c.b16 %v4441, %v4431
    %v4742 = vpack.c.b16 %v4442, %v4432
    %v4743 = vpack.c.b16 %v4443, %v4433
    %v4744 = vpack.c.b16 %v4444, %v4434
    %v4745 = vpack.c.b16 %v4445, %v4435
    %v4746 = vpack.c.b16 %v4456, %v4446
    %v4747 = vpack.c.b16 %v4457, %v4447
    %v4748 = vpack.c.b16 %v4458, %v4448
    %v4749 = vpack.c.b16 %v4459, %v4449
    %v4750 = vpack.c.b16 %v4460, %v4450
    %v4751 = vpack.c.b16 %v4461, %v4451
    %v4752 = vpack.c.b16 %v4462, %v4452
    %v4753 = vpack.c.b16 %v4463, %v4453
    %v4754 = vpack.c.b16 %v4464, %v4454
    %v4755 = vpack.c.b16 %v4465, %v4455
    %v4756 = vpack.c.b16 %v4476, %v4466
    %v4757 = vpack.c.b16 %v4477, %v4467
    %v4758 = vpack.c.b16 %v4478, %v4468
    %v4759 = vpack.c.b16 %v4479, %v4469
    %v4760 = vpack.c.b16 %v4480, %v4470
    %v4761 = vpack.c.b16 %v4481, %v4471
    %v4762 = vpack.c.b16 %v4482, %v4472
    %v4763 = vpack.c.b16 %v4483, %v4473
    %v4764 = vpack.c.b16 %v4484, %v4474
    %v4765 = vpack.c.b16 %v4485, %v4475
    %v4766 = vpack.c.b16 %v4496, %v4486
    %v4767 = vpack.c.b16 %v4497, %v4487
    %v4768 = vpack.c.b16 %v4498, %v4488
    %v4769 = vpack.c.b16 %v4499, %v4489
    %v4770 = vpack.c.b16 %v4500, %v4490
    %v4771 = vpack.c.b16 %v4501, %v4491
    %v4772 = vpack.c.b16 %v4502, %v4492
    %v4773 = vpack.c.b16 %v4503, %v4493
    %v4774 = vpack.c.b16 %v4504, %v4494
    %v4775 = vpack.c.b16 %v4505, %v4495
    %v4776 = vpack.c.b16 %v4516, %v4506
    %v4777 = vpack.c.b16 %v4517, %v4507
    %v4778 = vpack.c.b16 %v4518, %v4508
    %v4779 = vpack.c.b16 %v4519, %v4509
    %v4780 = vpack.c.b16 %v4520, %v4510
    %v4781 = vpack.c.b16 %v4521, %v4511
    %v4782 = vpack.c.b16 %v4522, %v4512
    %v4783 = vpack.c.b16 %v4523, %v4513
    %v4784 = vpack.c.b16 %v4524, %v4514
    %v4785 = vpack.c.b16 %v4525, %v4515
    %v4786 = vpack.c.b16 %v4536, %v4526
    %v4787 = vpack.c.b16 %v4537, %v4527
    %v4788 = vpack.c.b16 %v4538, %v4528
    %v4789 = vpack.c.b16 %v4539, %v4529
    %v4790 = vpack.c.b16 %v4540, %v4530
    %v4791 = vpack.c.b16 %v4541, %v4531
    %v4792 = vpack.c.b16 %v4542, %v4532
    %v4793 = vpack.c.b16 %v4543, %v4533
    %v4794 = vpack.c.b16 %v4544, %v4534
    %v4795 = vpack.c.b16 %v4545, %v4535
    %v4796 = vpack.c.b16 %v4556, %v4546
    %v4797 = vpack.c.b16 %v4557, %v4547
    %v4798 = vpack.c.b16 %v4558, %v4548
    %v4799 = vpack.c.b16 %v4559, %v4549
    %v4800 = vpack.c.b16 %v4560, %v4550
    %v4801 = vpack.c.b16 %v4561, %v4551
    %v4802 = vpack.c.b16 %v4562, %v4552
    %v4803 = vpack.c.b16 %v4563, %v4553
    %v4804 = vpack.c.b16 %v4564, %v4554
    %v4805 = vpack.c.b16 %v4565, %v4555
    %v4806 = vpack.c.b16 %v4576, %v4566
    %v4807 = vpack.c.b16 %v4577, %v4567
    %v4808 = vpack.c.b16 %v4578, %v4568
    %v4809 = vpack.c.b16 %v4579, %v4569
    %v4810 = vpack.c.b16 %v4580, %v4570
    %v4811 = vpack.c.b16 %v4581, %v4571
    %v4812 = vpack.c.b16 %v4582, %v4572
    %v4813 = vpack.c.b16 %v4583, %v4573
    %v4814 = vpack.c.b16 %v4584, %v4574
    %v4815 = vpack.c.b16 %v4585, %v4575
    %v4816 = vpack.c.b16 %v4596, %v4586
    %v4817 = vpack.c.b16 %v4597, %v4587
    %v4818 = vpack.c.b16 %v4598, %v4588
    %v4819 = vpack.c.b16 %v4599, %v4589
    %v4820 = vpack.c.b16 %v4600, %v4590
    %v4821 = vpack.c.b16 %v4601, %v4591
    %v4822 = vpack.c.b16 %v4602, %v4592
    %v4823 = vpack.c.b16 %v4603, %v4593
    %v4824 = vpack.c.b16 %v4604, %v4594
    %v4825 = vpack.c.b16 %v4605, %v4595
    %v4826 = vpack.c.b16 %v4616, %v4606
    %v4827 = vpack.c.b16 %v4617, %v4607
    %v4828 = vpack.c.b16 %v4618, %v4608
    %v4829 = vpack.c.b16 %v4619, %v4609
    %v4830 = vpack.c.b16 %v4620, %v4610
    %v4831 = vpack.c.b16 %v4621, %v4611
    %v4832 = vpack.c.b16 %v4622, %v4612
    %v4833 = vpack.c.b16 %v4623, %v4613
    %v4834 = vpack.c.b16 %v4624, %v4614
    %v4835 = vpack.c.b16 %v4625, %v4615
    %v4836 = vpack.c.b16 %v4636, %v4626
    %v4837 = vpack.c.b16 %v4637, %v4627
    %v4838 = vpack.c.b16 %v4638, %v4628
    %v4839 = vpack.c.b16 %v4639, %v4629
    %v4840 = vpack.c.b16 %v4640, %v4630
    %v4841 = vpack.c.b16 %v4641, %v4631
    %v4842 = vpack.c.b16 %v4642, %v4632
    %v4843 = vpack.c.b16 %v4643, %v4633
    %v4844 = vpack.c.b16 %v4644, %v4634
    %v4845 = vpack.c.b16 %v4645, %v4635
    %v4846 = vpack.c.b16 %v4656, %v4646
    %v4847 = vpack.c.b16 %v4657, %v4647
    %v4848 = vpack.c.b16 %v4658, %v4648
    %v4849 = vpack.c.b16 %v4659, %v4649
    %v4850 = vpack.c.b16 %v4660, %v4650
    %v4851 = vpack.c.b16 %v4661, %v4651
    %v4852 = vpack.c.b16 %v4662, %v4652
    %v4853 = vpack.c.b16 %v4663, %v4653
    %v4854 = vpack.c.b16 %v4664, %v4654
    %v4855 = vpack.c.b16 %v4665, %v4655
    %v5037 = vsel %vm595, %v3905, 0
    %v5040 = vsel %vm599, %v4846, 0
    %v5043 = vsel %vm599, %v4847, 0
    %v5046 = vsel %vm599, %v4848, 0
    %v5049 = vsel %vm599, %v4849, 0
    %v5052 = vsel %vm599, %v4850, 0
    %v5055 = vsel %vm599, %v4851, 0
    %v5058 = vsel %vm599, %v4852, 0
    %v5061 = vsel %vm599, %v4853, 0
    %v5064 = vsel %vm599, %v4854, 0
    %v5067 = vsel %vm599, %v4855, 0
    %5069 = vmatprep.subr.bf16.mxu0 %v4737
    %5070 = vmatpush1.bf16.msra.mxu0 %v4736
    %5071 = vmatprep.subr.bf16.mxu0 %v4727
    %5072 = vmatpush1.bf16.msra.mxu0 %v4726
    %5073 = vmatprep.subr.bf16.mxu0 %v4717
    %5074 = vmatpush1.bf16.msra.mxu0 %v4716
    %5075 = vmatprep.subr.bf16.mxu0 %v4707
    %5076 = vmatpush1.bf16.msra.mxu0 %v4706
    %5077 = vmatprep.subr.bf16.mxu0 %v4697
    %5078 = vmatpush1.bf16.msra.mxu0 %v4696
    %5079 = vmatprep.subr.bf16.mxu0 %v4687
    %5080 = vmatpush1.bf16.msra.mxu0 %v4686
    %5081 = vmatprep.subr.bf16.mxu0 %v4677
    %5082 = vmatpush1.bf16.msra.mxu0 %v4676
    %5083 = vmatprep.subr.bf16.mxu0 %v4667
    %5084 = vmatpush1.bf16.msra.mxu0 %v4666
    %5085 = vmatprep.subr.bf16.mxu0 %v4817
    %5086 = vmatpush2.bf16.msra.mxu0 %v4816
    %5087 = vmatprep.subr.bf16.mxu0 %v4807
    %5088 = vmatpush2.bf16.msra.mxu0 %v4806
    %5089 = vmatprep.subr.bf16.mxu0 %v4797
    %5090 = vmatpush2.bf16.msra.mxu0 %v4796
    %5091 = vmatprep.subr.bf16.mxu0 %v4787
    %5092 = vmatpush2.bf16.msra.mxu0 %v4786
    %5093 = vmatprep.subr.bf16.mxu0 %v4777
    %5094 = vmatpush2.bf16.msra.mxu0 %v4776
    %5095 = vmatprep.subr.bf16.mxu0 %v4767
    %5096 = vmatpush2.bf16.msra.mxu0 %v4766
    %5097 = vmatprep.subr.bf16.mxu0 %v4757
    %5098 = vmatpush2.bf16.msra.mxu0 %v4756
    %5099 = vmatprep.subr.bf16.mxu0 %v4747
    %5100 = vmatpush2.bf16.msra.mxu0 %v4746
    %5101 = vmatprep.mubr.bf16.mxu0 %v3904
    %5102 = vmatmul.mubr.bf16.gmra.mxu0 %v3903
    %v5103 = vpop.f32.mrf.mxu0
    %v5104 = vadd.f32 0.0, %v5103
    %v5105 = vpop.f32.mrf.mxu0
    %v5106 = vadd.f32 0.0, %v5105
    %v5107 = vpop.f32.mrf.mxu0
    %v5108 = vadd.f32 0.0, %v5107
    %v5109 = vpop.f32.mrf.mxu0
    %v5110 = vadd.f32 0.0, %v5109
    %5111 = vdwg.mxu0
    %5112 = vmatprep.subr.bf16.mxu0 0
    %5113 = vmatpush1.bf16.msra.mxu0 0
    %5114 = vmatprep.subr.bf16.mxu0 0
    %5115 = vmatpush1.bf16.msra.mxu0 0
    %5116 = vmatprep.subr.bf16.mxu0 0
    %5117 = vmatpush1.bf16.msra.mxu0 0
    %5118 = vmatprep.subr.bf16.mxu0 0
    %5119 = vmatpush1.bf16.msra.mxu0 0
    %5120 = vmatprep.subr.bf16.mxu0 0
    %5121 = vmatpush1.bf16.msra.mxu0 0
    %5122 = vmatprep.subr.bf16.mxu0 %v5043
    %5123 = vmatpush1.bf16.msra.mxu0 %v5040
    %5124 = vmatprep.subr.bf16.mxu0 %v4837
    %5125 = vmatpush1.bf16.msra.mxu0 %v4836
    %5126 = vmatprep.subr.bf16.mxu0 %v4827
    %5127 = vmatpush1.bf16.msra.mxu0 %v4826
    %5128 = vmatprep.subr.bf16.mxu0 0
    %5129 = vmatpush2.bf16.msra.mxu0 0
    %5130 = vmatprep.subr.bf16.mxu0 0
    %5131 = vmatpush2.bf16.msra.mxu0 0
    %5132 = vmatprep.subr.bf16.mxu0 0
    %5133 = vmatpush2.bf16.msra.mxu0 0
    %5134 = vmatprep.subr.bf16.mxu0 0
    %5135 = vmatpush2.bf16.msra.mxu0 0
    %5136 = vmatprep.subr.bf16.mxu0 0
    %5137 = vmatpush2.bf16.msra.mxu0 0
    %5138 = vmatprep.subr.bf16.mxu0 0
    %5139 = vmatpush2.bf16.msra.mxu0 0
    %5140 = vmatprep.subr.bf16.mxu0 0
    %5141 = vmatpush2.bf16.msra.mxu0 0
    %5142 = vmatprep.subr.bf16.mxu0 0
    %5143 = vmatpush2.bf16.msra.mxu0 0
    %5144 = vmatprep.mubr.bf16.mxu0 0
    %5145 = vmatmul.mubr.bf16.gmra.mxu0 %v5037
    %v5146 = vpop.f32.mrf.mxu0
    %v5147 = vadd.f32 %v5104, %v5146
    %v5148 = vpop.f32.mrf.mxu0
    %v5149 = vadd.f32 %v5106, %v5148
    %v5150 = vpop.f32.mrf.mxu0
    %v5151 = vadd.f32 %v5108, %v5150
    %v5152 = vpop.f32.mrf.mxu0
    %v5153 = vadd.f32 %v5110, %v5152
    %5154 = vdwg.mxu0
    %5155 = vmatprep.subr.bf16.mxu0 %v4739
    %5156 = vmatpush1.bf16.msra.mxu0 %v4738
    %5157 = vmatprep.subr.bf16.mxu0 %v4729
    %5158 = vmatpush1.bf16.msra.mxu0 %v4728
    %5159 = vmatprep.subr.bf16.mxu0 %v4719
    %5160 = vmatpush1.bf16.msra.mxu0 %v4718
    %5161 = vmatprep.subr.bf16.mxu0 %v4709
    %5162 = vmatpush1.bf16.msra.mxu0 %v4708
    %5163 = vmatprep.subr.bf16.mxu0 %v4699
    %5164 = vmatpush1.bf16.msra.mxu0 %v4698
    %5165 = vmatprep.subr.bf16.mxu0 %v4689
    %5166 = vmatpush1.bf16.msra.mxu0 %v4688
    %5167 = vmatprep.subr.bf16.mxu0 %v4679
    %5168 = vmatpush1.bf16.msra.mxu0 %v4678
    %5169 = vmatprep.subr.bf16.mxu0 %v4669
    %5170 = vmatpush1.bf16.msra.mxu0 %v4668
    %5171 = vmatprep.subr.bf16.mxu0 %v4819
    %5172 = vmatpush2.bf16.msra.mxu0 %v4818
    %5173 = vmatprep.subr.bf16.mxu0 %v4809
    %5174 = vmatpush2.bf16.msra.mxu0 %v4808
    %5175 = vmatprep.subr.bf16.mxu0 %v4799
    %5176 = vmatpush2.bf16.msra.mxu0 %v4798
    %5177 = vmatprep.subr.bf16.mxu0 %v4789
    %5178 = vmatpush2.bf16.msra.mxu0 %v4788
    %5179 = vmatprep.subr.bf16.mxu0 %v4779
    %5180 = vmatpush2.bf16.msra.mxu0 %v4778
    %5181 = vmatprep.subr.bf16.mxu0 %v4769
    %5182 = vmatpush2.bf16.msra.mxu0 %v4768
    %5183 = vmatprep.subr.bf16.mxu0 %v4759
    %5184 = vmatpush2.bf16.msra.mxu0 %v4758
    %5185 = vmatprep.subr.bf16.mxu0 %v4749
    %5186 = vmatpush2.bf16.msra.mxu0 %v4748
    %5187 = vmatprep.mubr.bf16.mxu0 %v3904
    %5188 = vmatmul.mubr.bf16.gmra.mxu0 %v3903
    %v5189 = vpop.f32.mrf.mxu0
    %v5190 = vadd.f32 0.0, %v5189
    %v5191 = vpop.f32.mrf.mxu0
    %v5192 = vadd.f32 0.0, %v5191
    %v5193 = vpop.f32.mrf.mxu0
    %v5194 = vadd.f32 0.0, %v5193
    %v5195 = vpop.f32.mrf.mxu0
    %v5196 = vadd.f32 0.0, %v5195
    %5197 = vdwg.mxu0
    %5198 = vmatprep.subr.bf16.mxu0 0
    %5199 = vmatpush1.bf16.msra.mxu0 0
    %5200 = vmatprep.subr.bf16.mxu0 0
    %5201 = vmatpush1.bf16.msra.mxu0 0
    %5202 = vmatprep.subr.bf16.mxu0 0
    %5203 = vmatpush1.bf16.msra.mxu0 0
    %5204 = vmatprep.subr.bf16.mxu0 0
    %5205 = vmatpush1.bf16.msra.mxu0 0
    %5206 = vmatprep.subr.bf16.mxu0 0
    %5207 = vmatpush1.bf16.msra.mxu0 0
    %5208 = vmatprep.subr.bf16.mxu0 %v5049
    %5209 = vmatpush1.bf16.msra.mxu0 %v5046
    %5210 = vmatprep.subr.bf16.mxu0 %v4839
    %5211 = vmatpush1.bf16.msra.mxu0 %v4838
    %5212 = vmatprep.subr.bf16.mxu0 %v4829
    %5213 = vmatpush1.bf16.msra.mxu0 %v4828
    %5214 = vmatprep.subr.bf16.mxu0 0
    %5215 = vmatpush2.bf16.msra.mxu0 0
    %5216 = vmatprep.subr.bf16.mxu0 0
    %5217 = vmatpush2.bf16.msra.mxu0 0
    %5218 = vmatprep.subr.bf16.mxu0 0
    %5219 = vmatpush2.bf16.msra.mxu0 0
    %5220 = vmatprep.subr.bf16.mxu0 0
    %5221 = vmatpush2.bf16.msra.mxu0 0
    %5222 = vmatprep.subr.bf16.mxu0 0
    %5223 = vmatpush2.bf16.msra.mxu0 0
    %5224 = vmatprep.subr.bf16.mxu0 0
    %5225 = vmatpush2.bf16.msra.mxu0 0
    %5226 = vmatprep.subr.bf16.mxu0 0
    %5227 = vmatpush2.bf16.msra.mxu0 0
    %5228 = vmatprep.subr.bf16.mxu0 0
    %5229 = vmatpush2.bf16.msra.mxu0 0
    %5230 = vmatprep.mubr.bf16.mxu0 0
    %5231 = vmatmul.mubr.bf16.gmra.mxu0 %v5037
    %v5232 = vpop.f32.mrf.mxu0
    %v5233 = vadd.f32 %v5190, %v5232
    %v5234 = vpop.f32.mrf.mxu0
    %v5235 = vadd.f32 %v5192, %v5234
    %v5236 = vpop.f32.mrf.mxu0
    %v5237 = vadd.f32 %v5194, %v5236
    %v5238 = vpop.f32.mrf.mxu0
    %v5239 = vadd.f32 %v5196, %v5238
    %5240 = vdwg.mxu0
    %5241 = vmatprep.subr.bf16.mxu0 %v4741
    %5242 = vmatpush1.bf16.msra.mxu0 %v4740
    %5243 = vmatprep.subr.bf16.mxu0 %v4731
    %5244 = vmatpush1.bf16.msra.mxu0 %v4730
    %5245 = vmatprep.subr.bf16.mxu0 %v4721
    %5246 = vmatpush1.bf16.msra.mxu0 %v4720
    %5247 = vmatprep.subr.bf16.mxu0 %v4711
    %5248 = vmatpush1.bf16.msra.mxu0 %v4710
    %5249 = vmatprep.subr.bf16.mxu0 %v4701
    %5250 = vmatpush1.bf16.msra.mxu0 %v4700
    %5251 = vmatprep.subr.bf16.mxu0 %v4691
    %5252 = vmatpush1.bf16.msra.mxu0 %v4690
    %5253 = vmatprep.subr.bf16.mxu0 %v4681
    %5254 = vmatpush1.bf16.msra.mxu0 %v4680
    %5255 = vmatprep.subr.bf16.mxu0 %v4671
    %5256 = vmatpush1.bf16.msra.mxu0 %v4670
    %5257 = vmatprep.subr.bf16.mxu0 %v4821
    %5258 = vmatpush2.bf16.msra.mxu0 %v4820
    %5259 = vmatprep.subr.bf16.mxu0 %v4811
    %5260 = vmatpush2.bf16.msra.mxu0 %v4810
    %5261 = vmatprep.subr.bf16.mxu0 %v4801
    %5262 = vmatpush2.bf16.msra.mxu0 %v4800
    %5263 = vmatprep.subr.bf16.mxu0 %v4791
    %5264 = vmatpush2.bf16.msra.mxu0 %v4790
    %5265 = vmatprep.subr.bf16.mxu0 %v4781
    %5266 = vmatpush2.bf16.msra.mxu0 %v4780
    %5267 = vmatprep.subr.bf16.mxu0 %v4771
    %5268 = vmatpush2.bf16.msra.mxu0 %v4770
    %5269 = vmatprep.subr.bf16.mxu0 %v4761
    %5270 = vmatpush2.bf16.msra.mxu0 %v4760
    %5271 = vmatprep.subr.bf16.mxu0 %v4751
    %5272 = vmatpush2.bf16.msra.mxu0 %v4750
    %5273 = vmatprep.mubr.bf16.mxu0 %v3904
    %5274 = vmatmul.mubr.bf16.gmra.mxu0 %v3903
    %v5275 = vpop.f32.mrf.mxu0
    %v5276 = vadd.f32 0.0, %v5275
    %v5277 = vpop.f32.mrf.mxu0
    %v5278 = vadd.f32 0.0, %v5277
    %v5279 = vpop.f32.mrf.mxu0
    %v5280 = vadd.f32 0.0, %v5279
    %v5281 = vpop.f32.mrf.mxu0
    %v5282 = vadd.f32 0.0, %v5281
    %5283 = vdwg.mxu0
    %5284 = vmatprep.subr.bf16.mxu0 0
    %5285 = vmatpush1.bf16.msra.mxu0 0
    %5286 = vmatprep.subr.bf16.mxu0 0
    %5287 = vmatpush1.bf16.msra.mxu0 0
    %5288 = vmatprep.subr.bf16.mxu0 0
    %5289 = vmatpush1.bf16.msra.mxu0 0
    %5290 = vmatprep.subr.bf16.mxu0 0
    %5291 = vmatpush1.bf16.msra.mxu0 0
    %5292 = vmatprep.subr.bf16.mxu0 0
    %5293 = vmatpush1.bf16.msra.mxu0 0
    %5294 = vmatprep.subr.bf16.mxu0 %v5055
    %5295 = vmatpush1.bf16.msra.mxu0 %v5052
    %5296 = vmatprep.subr.bf16.mxu0 %v4841
    %5297 = vmatpush1.bf16.msra.mxu0 %v4840
    %5298 = vmatprep.subr.bf16.mxu0 %v4831
    %5299 = vmatpush1.bf16.msra.mxu0 %v4830
    %5300 = vmatprep.subr.bf16.mxu0 0
    %5301 = vmatpush2.bf16.msra.mxu0 0
    %5302 = vmatprep.subr.bf16.mxu0 0
    %5303 = vmatpush2.bf16.msra.mxu0 0
    %5304 = vmatprep.subr.bf16.mxu0 0
    %5305 = vmatpush2.bf16.msra.mxu0 0
    %5306 = vmatprep.subr.bf16.mxu0 0
    %5307 = vmatpush2.bf16.msra.mxu0 0
    %5308 = vmatprep.subr.bf16.mxu0 0
    %5309 = vmatpush2.bf16.msra.mxu0 0
    %5310 = vmatprep.subr.bf16.mxu0 0
    %5311 = vmatpush2.bf16.msra.mxu0 0
    %5312 = vmatprep.subr.bf16.mxu0 0
    %5313 = vmatpush2.bf16.msra.mxu0 0
    %5314 = vmatprep.subr.bf16.mxu0 0
    %5315 = vmatpush2.bf16.msra.mxu0 0
    %5316 = vmatprep.mubr.bf16.mxu0 0
    %5317 = vmatmul.mubr.bf16.gmra.mxu0 %v5037
    %v5318 = vpop.f32.mrf.mxu0
    %v5319 = vadd.f32 %v5276, %v5318
    %v5320 = vpop.f32.mrf.mxu0
    %v5321 = vadd.f32 %v5278, %v5320
    %v5322 = vpop.f32.mrf.mxu0
    %v5323 = vadd.f32 %v5280, %v5322
    %v5324 = vpop.f32.mrf.mxu0
    %v5325 = vadd.f32 %v5282, %v5324
    %5326 = vdwg.mxu0
    %5327 = vmatprep.subr.bf16.mxu0 %v4743
    %5328 = vmatpush1.bf16.msra.mxu0 %v4742
    %5329 = vmatprep.subr.bf16.mxu0 %v4733
    %5330 = vmatpush1.bf16.msra.mxu0 %v4732
    %5331 = vmatprep.subr.bf16.mxu0 %v4723
    %5332 = vmatpush1.bf16.msra.mxu0 %v4722
    %5333 = vmatprep.subr.bf16.mxu0 %v4713
    %5334 = vmatpush1.bf16.msra.mxu0 %v4712
    %5335 = vmatprep.subr.bf16.mxu0 %v4703
    %5336 = vmatpush1.bf16.msra.mxu0 %v4702
    %5337 = vmatprep.subr.bf16.mxu0 %v4693
    %5338 = vmatpush1.bf16.msra.mxu0 %v4692
    %5339 = vmatprep.subr.bf16.mxu0 %v4683
    %5340 = vmatpush1.bf16.msra.mxu0 %v4682
    %5341 = vmatprep.subr.bf16.mxu0 %v4673
    %5342 = vmatpush1.bf16.msra.mxu0 %v4672
    %5343 = vmatprep.subr.bf16.mxu0 %v4823
    %5344 = vmatpush2.bf16.msra.mxu0 %v4822
    %5345 = vmatprep.subr.bf16.mxu0 %v4813
    %5346 = vmatpush2.bf16.msra.mxu0 %v4812
    %5347 = vmatprep.subr.bf16.mxu0 %v4803
    %5348 = vmatpush2.bf16.msra.mxu0 %v4802
    %5349 = vmatprep.subr.bf16.mxu0 %v4793
    %5350 = vmatpush2.bf16.msra.mxu0 %v4792
    %5351 = vmatprep.subr.bf16.mxu0 %v4783
    %5352 = vmatpush2.bf16.msra.mxu0 %v4782
    %5353 = vmatprep.subr.bf16.mxu0 %v4773
    %5354 = vmatpush2.bf16.msra.mxu0 %v4772
    %5355 = vmatprep.subr.bf16.mxu0 %v4763
    %5356 = vmatpush2.bf16.msra.mxu0 %v4762
    %5357 = vmatprep.subr.bf16.mxu0 %v4753
    %5358 = vmatpush2.bf16.msra.mxu0 %v4752
    %5359 = vmatprep.mubr.bf16.mxu0 %v3904
    %5360 = vmatmul.mubr.bf16.gmra.mxu0 %v3903
    %v5361 = vpop.f32.mrf.mxu0
    %v5362 = vadd.f32 0.0, %v5361
    %v5363 = vpop.f32.mrf.mxu0
    %v5364 = vadd.f32 0.0, %v5363
    %v5365 = vpop.f32.mrf.mxu0
    %v5366 = vadd.f32 0.0, %v5365
    %v5367 = vpop.f32.mrf.mxu0
    %v5368 = vadd.f32 0.0, %v5367
    %5369 = vdwg.mxu0
    %5370 = vmatprep.subr.bf16.mxu0 0
    %5371 = vmatpush1.bf16.msra.mxu0 0
    %5372 = vmatprep.subr.bf16.mxu0 0
    %5373 = vmatpush1.bf16.msra.mxu0 0
    %5374 = vmatprep.subr.bf16.mxu0 0
    %5375 = vmatpush1.bf16.msra.mxu0 0
    %5376 = vmatprep.subr.bf16.mxu0 0
    %5377 = vmatpush1.bf16.msra.mxu0 0
    %5378 = vmatprep.subr.bf16.mxu0 0
    %5379 = vmatpush1.bf16.msra.mxu0 0
    %5380 = vmatprep.subr.bf16.mxu0 %v5061
    %5381 = vmatpush1.bf16.msra.mxu0 %v5058
    %5382 = vmatprep.subr.bf16.mxu0 %v4843
    %5383 = vmatpush1.bf16.msra.mxu0 %v4842
    %5384 = vmatprep.subr.bf16.mxu0 %v4833
    %5385 = vmatpush1.bf16.msra.mxu0 %v4832
    %5386 = vmatprep.subr.bf16.mxu0 0
    %5387 = vmatpush2.bf16.msra.mxu0 0
    %5388 = vmatprep.subr.bf16.mxu0 0
    %5389 = vmatpush2.bf16.msra.mxu0 0
    %5390 = vmatprep.subr.bf16.mxu0 0
    %5391 = vmatpush2.bf16.msra.mxu0 0
    %5392 = vmatprep.subr.bf16.mxu0 0
    %5393 = vmatpush2.bf16.msra.mxu0 0
    %5394 = vmatprep.subr.bf16.mxu0 0
    %5395 = vmatpush2.bf16.msra.mxu0 0
    %5396 = vmatprep.subr.bf16.mxu0 0
    %5397 = vmatpush2.bf16.msra.mxu0 0
    %5398 = vmatprep.subr.bf16.mxu0 0
    %5399 = vmatpush2.bf16.msra.mxu0 0
    %5400 = vmatprep.subr.bf16.mxu0 0
    %5401 = vmatpush2.bf16.msra.mxu0 0
    %5402 = vmatprep.mubr.bf16.mxu0 0
    %5403 = vmatmul.mubr.bf16.gmra.mxu0 %v5037
    %v5404 = vpop.f32.mrf.mxu0
    %v5405 = vadd.f32 %v5362, %v5404
    %v5406 = vpop.f32.mrf.mxu0
    %v5407 = vadd.f32 %v5364, %v5406
    %v5408 = vpop.f32.mrf.mxu0
    %v5409 = vadd.f32 %v5366, %v5408
    %v5410 = vpop.f32.mrf.mxu0
    %v5411 = vadd.f32 %v5368, %v5410
    %5412 = vdwg.mxu0
    %5413 = vmatprep.subr.bf16.mxu0 %v4745
    %5414 = vmatpush1.bf16.msra.mxu0 %v4744
    %5415 = vmatprep.subr.bf16.mxu0 %v4735
    %5416 = vmatpush1.bf16.msra.mxu0 %v4734
    %5417 = vmatprep.subr.bf16.mxu0 %v4725
    %5418 = vmatpush1.bf16.msra.mxu0 %v4724
    %5419 = vmatprep.subr.bf16.mxu0 %v4715
    %5420 = vmatpush1.bf16.msra.mxu0 %v4714
    %5421 = vmatprep.subr.bf16.mxu0 %v4705
    %5422 = vmatpush1.bf16.msra.mxu0 %v4704
    %5423 = vmatprep.subr.bf16.mxu0 %v4695
    %5424 = vmatpush1.bf16.msra.mxu0 %v4694
    %5425 = vmatprep.subr.bf16.mxu0 %v4685
    %5426 = vmatpush1.bf16.msra.mxu0 %v4684
    %5427 = vmatprep.subr.bf16.mxu0 %v4675
    %5428 = vmatpush1.bf16.msra.mxu0 %v4674
    %5429 = vmatprep.subr.bf16.mxu0 %v4825
    %5430 = vmatpush2.bf16.msra.mxu0 %v4824
    %5431 = vmatprep.subr.bf16.mxu0 %v4815
    %5432 = vmatpush2.bf16.msra.mxu0 %v4814
    %5433 = vmatprep.subr.bf16.mxu0 %v4805
    %5434 = vmatpush2.bf16.msra.mxu0 %v4804
    %5435 = vmatprep.subr.bf16.mxu0 %v4795
    %5436 = vmatpush2.bf16.msra.mxu0 %v4794
    %5437 = vmatprep.subr.bf16.mxu0 %v4785
    %5438 = vmatpush2.bf16.msra.mxu0 %v4784
    %5439 = vmatprep.subr.bf16.mxu0 %v4775
    %5440 = vmatpush2.bf16.msra.mxu0 %v4774
    %5441 = vmatprep.subr.bf16.mxu0 %v4765
    %5442 = vmatpush2.bf16.msra.mxu0 %v4764
    %5443 = vmatprep.subr.bf16.mxu0 %v4755
    %5444 = vmatpush2.bf16.msra.mxu0 %v4754
    %5445 = vmatprep.mubr.bf16.mxu0 %v3904
    %5446 = vmatmul.mubr.bf16.gmra.mxu0 %v3903
    %v5447 = vpop.f32.mrf.mxu0
    %v5448 = vadd.f32 0.0, %v5447
    %v5449 = vpop.f32.mrf.mxu0
    %v5450 = vadd.f32 0.0, %v5449
    %v5451 = vpop.f32.mrf.mxu0
    %v5452 = vadd.f32 0.0, %v5451
    %v5453 = vpop.f32.mrf.mxu0
    %v5454 = vadd.f32 0.0, %v5453
    %5455 = vdwg.mxu0
    %5456 = vmatprep.subr.bf16.mxu0 0
    %5457 = vmatpush1.bf16.msra.mxu0 0
    %5458 = vmatprep.subr.bf16.mxu0 0
    %5459 = vmatpush1.bf16.msra.mxu0 0
    %5460 = vmatprep.subr.bf16.mxu0 0
    %5461 = vmatpush1.bf16.msra.mxu0 0
    %5462 = vmatprep.subr.bf16.mxu0 0
    %5463 = vmatpush1.bf16.msra.mxu0 0
    %5464 = vmatprep.subr.bf16.mxu0 0
    %5465 = vmatpush1.bf16.msra.mxu0 0
    %5466 = vmatprep.subr.bf16.mxu0 %v5067
    %5467 = vmatpush1.bf16.msra.mxu0 %v5064
    %5468 = vmatprep.subr.bf16.mxu0 %v4845
    %5469 = vmatpush1.bf16.msra.mxu0 %v4844
    %5470 = vmatprep.subr.bf16.mxu0 %v4835
    %5471 = vmatpush1.bf16.msra.mxu0 %v4834
    %5472 = vmatprep.subr.bf16.mxu0 0
    %5473 = vmatpush2.bf16.msra.mxu0 0
    %5474 = vmatprep.subr.bf16.mxu0 0
    %5475 = vmatpush2.bf16.msra.mxu0 0
    %5476 = vmatprep.subr.bf16.mxu0 0
    %5477 = vmatpush2.bf16.msra.mxu0 0
    %5478 = vmatprep.subr.bf16.mxu0 0
    %5479 = vmatpush2.bf16.msra.mxu0 0
    %5480 = vmatprep.subr.bf16.mxu0 0
    %5481 = vmatpush2.bf16.msra.mxu0 0
    %5482 = vmatprep.subr.bf16.mxu0 0
    %5483 = vmatpush2.bf16.msra.mxu0 0
    %5484 = vmatprep.subr.bf16.mxu0 0
    %5485 = vmatpush2.bf16.msra.mxu0 0
    %5486 = vmatprep.subr.bf16.mxu0 0
    %5487 = vmatpush2.bf16.msra.mxu0 0
    %5488 = vmatprep.mubr.bf16.mxu0 0
    %5489 = vmatmul.mubr.bf16.gmra.mxu0 %v5037
    %v5490 = vpop.f32.mrf.mxu0
    %v5491 = vadd.f32 %v5448, %v5490
    %v5492 = vpop.f32.mrf.mxu0
    %v5493 = vadd.f32 %v5450, %v5492
    %v5494 = vpop.f32.mrf.mxu0
    %v5495 = vadd.f32 %v5452, %v5494
    %v5496 = vpop.f32.mrf.mxu0
    %v5497 = vadd.f32 %v5454, %v5496
    %5498 = vdwg.mxu0
    %v5499 = vld [vmem:[#allocation7] sm:$0x3f]
    %v5501 = vlaneseq
    %v5502 = vshrl.u32 %v5501, 7
    %v5503 = vsub.s32 0, %v5502
    %v5504 = vrot.slane %v5499, %v5503
    %v5505 = vlaneseq
    %v5506 = vshrl.u32 %v5505, 7
    %v5507 = vsub.s32 2, %v5506
    %v5508 = vrot.slane %v5499, %v5507
    %v5509 = vlaneseq
    %v5510 = vshrl.u32 %v5509, 7
    %v5511 = vsub.s32 4, %v5510
    %v5512 = vrot.slane %v5499, %v5511
    %v5516 = vlaneseq
    %v5517 = vshrl.u32 %v5516, 7
    %v5518 = vsub.s32 0, %v5517
    %v5519 = vrot.slane %v5504, %v5518
    %v5520 = vlaneseq
    %v5521 = vshrl.u32 %v5520, 7
    %v5522 = vsub.s32 0, %v5521
    %v5523 = vrot.slane %v5508, %v5522
    %v5524 = vlaneseq
    %v5525 = vshrl.u32 %v5524, 7
    %v5526 = vsub.s32 0, %v5525
    %v5527 = vrot.slane %v5512, %v5526
    %v5528 = vmul.f32 %v3897, %v5519
    %v5529 = vmul.f32 %v3898, %v5523
    %v5530 = vmul.f32 %v3899, %v5527
    %v5531 = vlaneseq
    %v5532 = vshrl.u32 %v5531, 7
    %v5533 = vsub.s32 1, %v5532
    %v5534 = vrot.slane %v5499, %v5533
    %v5535 = vlaneseq
    %v5536 = vshrl.u32 %v5535, 7
    %v5537 = vsub.s32 3, %v5536
    %v5538 = vrot.slane %v5499, %v5537
    %v5539 = vlaneseq
    %v5540 = vshrl.u32 %v5539, 7
    %v5541 = vsub.s32 5, %v5540
    %v5542 = vrot.slane %v5499, %v5541
    %v5546 = vlaneseq
    %v5547 = vshrl.u32 %v5546, 7
    %v5548 = vsub.s32 1, %v5547
    %v5549 = vrot.slane %v5534, %v5548
    %v5550 = vlaneseq
    %v5551 = vshrl.u32 %v5550, 7
    %v5552 = vsub.s32 1, %v5551
    %v5553 = vrot.slane %v5538, %v5552
    %v5554 = vlaneseq
    %v5555 = vshrl.u32 %v5554, 7
    %v5556 = vsub.s32 1, %v5555
    %v5557 = vrot.slane %v5542, %v5556
    %v5558 = vmul.f32 %v3897, %v5549
    %v5559 = vmul.f32 %v3898, %v5553
    %v5560 = vmul.f32 %v3899, %v5557
    %v5561 = vmul.f32 %v3900, %v5519
    %v5562 = vmul.f32 %v3901, %v5523
    %v5563 = vmul.f32 %v3902, %v5527
    %v5564 = vmul.f32 %v3900, %v5549
    %v5565 = vmul.f32 %v3901, %v5553
    %v5566 = vmul.f32 %v3902, %v5557
    %v5567 = vpack.c.bf16 %v5558, %v5528
    %v5568 = vpack.c.bf16 %v5559, %v5529
    %v5569 = vpack.c.bf16 %v5560, %v5530
    %v5570 = vpack.c.bf16 %v5564, %v5561
    %v5571 = vpack.c.bf16 %v5565, %v5562
    %v5572 = vpack.c.bf16 %v5566, %v5563
    %v5573 = vld [vmem:[%s10] sm:$0xff]
    %v5574 = vld [vmem:[%s10 + $0x8] sm:$0xff]
    %v5575 = vld [vmem:[%s10 + $0x10] sm:$0xff]
    %v5576 = vld [vmem:[%s10 + $0x18] sm:$0xff]
    %v5577 = vld [vmem:[%s10 + $0x20] sm:$0xff]
    %v5578 = vld [vmem:[%s10 + $0x28] sm:$0xff]
    %v5579 = vld [vmem:[%s10 + $0x30] sm:$0xff]
    %v5580 = vld [vmem:[%s10 + $0x38] sm:$0xff]
    %v5581 = vld [vmem:[%s10 + $0x40] sm:$0xff]
    %v5582 = vld [vmem:[%s10 + $0x48] sm:$0xff]
    %v5583 = vld [vmem:[%s10 + $0x50] sm:$0xff]
    %v5584 = vld [vmem:[%s10 + $0x58] sm:$0xff]
    %v5585 = vld [vmem:[%s10 + $0x60] sm:$0xff]
    %v5586 = vld [vmem:[%s10 + $0x68] sm:$0xff]
    %v5587 = vld [vmem:[%s10 + $0x70] sm:$0xff]
    %v5588 = vld [vmem:[%s10 + $0x78] sm:$0xff]
    %v5589 = vld [vmem:[%s10 + $0x80] sm:$0xff]
    %v5590 = vld [vmem:[%s10 + $0x88] sm:$0xff]
    %v5591 = vld [vmem:[%s10 + $0x90] sm:$0xff]
    %v5592 = vld [vmem:[%s10 + $0x98] sm:$0xff]
    %v5593 = vld [vmem:[%s10 + $0xa0] sm:$0xff]
    %v5594 = vld [vmem:[%s10 + $0xa8] sm:$0xff]
    %v5595 = vld [vmem:[%s10 + $0xb0] sm:$0xff]
    %v5596 = vld [vmem:[%s10 + $0xb8] sm:$0xff]
    %v5597 = vld [vmem:[%s10 + $0xc0] sm:$0xff]
    %v5598 = vld [vmem:[%s10 + $0xc8] sm:$0xff]
    %v5599 = vld [vmem:[%s10 + $0xd0] sm:$0xff]
    %v5600 = vld [vmem:[%s10 + $0xd8] sm:$0xff]
    %v5601 = vld [vmem:[%s10 + $0xe0] sm:$0xff]
    %v5602 = vld [vmem:[%s10 + $0xe8] sm:$0xff]
    %v5603 = vld [vmem:[%s10 + $0xf0] sm:$0xff]
    %v5604 = vld [vmem:[%s10 + $0xf8] sm:$0xff]
    %v5605 = vld [vmem:[%s10 + $0x100] sm:$0xff]
    %v5606 = vld [vmem:[%s10 + $0x108] sm:$0xff]
    %v5607 = vld [vmem:[%s10 + $0x110] sm:$0xff]
    %v5608 = vld [vmem:[%s10 + $0x118] sm:$0xff]
    %v5609 = vld [vmem:[%s10 + $0x120] sm:$0xff]
    %v5610 = vld [vmem:[%s10 + $0x128] sm:$0xff]
    %v5611 = vld [vmem:[%s10 + $0x130] sm:$0xff]
    %v5612 = vld [vmem:[%s10 + $0x138] sm:$0xff]
    %v5613 = vld [vmem:[%s10 + $0x140] sm:$0xff]
    %v5614 = vld [vmem:[%s10 + $0x148] sm:$0xff]
    %v5615 = vld [vmem:[%s10 + $0x150] sm:$0xff]
    %v5616 = vld [vmem:[%s10 + $0x158] sm:$0xff]
    %v5617 = vld [vmem:[%s10 + $0x160] sm:$0xff]
    %v5618 = vld [vmem:[%s10 + $0x168] sm:$0xff]
    %v5619 = vld [vmem:[%s10 + $0x170] sm:$0xff]
    %v5620 = vld [vmem:[%s10 + $0x178] sm:$0xff]
    %v5621 = vld [vmem:[%s10 + $0x180] sm:$0xff]
    %v5622 = vld [vmem:[%s10 + $0x188] sm:$0xff]
    %v5623 = vld [vmem:[%s10 + $0x190] sm:$0xff]
    %v5624 = vld [vmem:[%s10 + $0x198] sm:$0xff]
    %v5625 = vld [vmem:[%s10 + $0x1a0] sm:$0xff]
    %v5626 = vld [vmem:[%s10 + $0x1a8] sm:$0xff]
    %v5627 = vld [vmem:[%s10 + $0x1b0] sm:$0xff]
    %v5628 = vld [vmem:[%s10 + $0x1b8] sm:$0xff]
    %v5629 = vld [vmem:[%s10 + $0x1c0] sm:$0xff]
    %v5630 = vld [vmem:[%s10 + $0x1c8] sm:$0xff]
    %v5631 = vld [vmem:[%s10 + $0x1d0] sm:$0xff]
    %v5632 = vld [vmem:[%s10 + $0x1d8] sm:$0xff]
    %v5633 = vld [vmem:[%s10 + $0x1e0] sm:$0xff]
    %v5634 = vld [vmem:[%s10 + $0x1e8] sm:$0xff]
    %v5635 = vld [vmem:[%s10 + $0x1f0] sm:$0xff]
    %v5636 = vld [vmem:[%s10 + $0x1f8] sm:$0xff]
    %v5637 = vld [vmem:[%s10 + $0x200] sm:$0xff]
    %v5638 = vld [vmem:[%s10 + $0x208] sm:$0xff]
    %v5639 = vld [vmem:[%s10 + $0x210] sm:$0xff]
    %v5640 = vld [vmem:[%s10 + $0x218] sm:$0xff]
    %v5641 = vld [vmem:[%s10 + $0x220] sm:$0xff]
    %v5642 = vld [vmem:[%s10 + $0x228] sm:$0xff]
    %v5643 = vld [vmem:[%s10 + $0x230] sm:$0xff]
    %v5644 = vld [vmem:[%s10 + $0x238] sm:$0xff]
    %v5645 = vld [vmem:[%s10 + $0x240] sm:$0xff]
    %v5646 = vld [vmem:[%s10 + $0x248] sm:$0xff]
    %v5647 = vld [vmem:[%s10 + $0x250] sm:$0xff]
    %v5648 = vld [vmem:[%s10 + $0x258] sm:$0xff]
    %v5649 = vld [vmem:[%s10 + $0x260] sm:$0xff]
    %v5650 = vld [vmem:[%s10 + $0x268] sm:$0xff]
    %v5651 = vld [vmem:[%s10 + $0x270] sm:$0xff]
    %v5652 = vld [vmem:[%s10 + $0x278] sm:$0xff]
    %v5653 = vld [vmem:[%s10 + $0x280] sm:$0xff]
    %v5654 = vld [vmem:[%s10 + $0x288] sm:$0xff]
    %v5655 = vld [vmem:[%s10 + $0x290] sm:$0xff]
    %v5656 = vld [vmem:[%s10 + $0x298] sm:$0xff]
    %v5657 = vld [vmem:[%s10 + $0x2a0] sm:$0xff]
    %v5658 = vld [vmem:[%s10 + $0x2a8] sm:$0xff]
    %v5659 = vld [vmem:[%s10 + $0x2b0] sm:$0xff]
    %v5660 = vld [vmem:[%s10 + $0x2b8] sm:$0xff]
    %v5661 = vld [vmem:[%s10 + $0x2c0] sm:$0xff]
    %v5662 = vld [vmem:[%s10 + $0x2c8] sm:$0xff]
    %v5663 = vld [vmem:[%s10 + $0x2d0] sm:$0xff]
    %v5664 = vld [vmem:[%s10 + $0x2d8] sm:$0xff]
    %v5665 = vld [vmem:[%s10 + $0x2e0] sm:$0xff]
    %v5666 = vld [vmem:[%s10 + $0x2e8] sm:$0xff]
    %v5667 = vld [vmem:[%s10 + $0x2f0] sm:$0xff]
    %v5668 = vld [vmem:[%s10 + $0x2f8] sm:$0xff]
    %v5669 = vld [vmem:[%s10 + $0x300] sm:$0xff]
    %v5670 = vld [vmem:[%s10 + $0x308] sm:$0xff]
    %v5671 = vld [vmem:[%s10 + $0x310] sm:$0xff]
    %v5672 = vld [vmem:[%s10 + $0x318] sm:$0xff]
    %v5673 = vld [vmem:[%s10 + $0x320] sm:$0xff]
    %v5674 = vld [vmem:[%s10 + $0x328] sm:$0xff]
    %v5675 = vld [vmem:[%s10 + $0x330] sm:$0xff]
    %v5676 = vld [vmem:[%s10 + $0x338] sm:$0xff]
    %v5677 = vld [vmem:[%s10 + $0x340] sm:$0xff]
    %v5678 = vld [vmem:[%s10 + $0x348] sm:$0xff]
    %v5679 = vld [vmem:[%s10 + $0x350] sm:$0xff]
    %v5680 = vld [vmem:[%s10 + $0x358] sm:$0xff]
    %v5681 = vld [vmem:[%s10 + $0x360] sm:$0xff]
    %v5682 = vld [vmem:[%s10 + $0x368] sm:$0xff]
    %v5683 = vld [vmem:[%s10 + $0x370] sm:$0xff]
    %v5684 = vld [vmem:[%s10 + $0x378] sm:$0xff]
    %v5685 = vld [vmem:[%s10 + $0x380] sm:$0xff]
    %v5686 = vld [vmem:[%s10 + $0x388] sm:$0xff]
    %v5687 = vld [vmem:[%s10 + $0x390] sm:$0xff]
    %v5688 = vld [vmem:[%s10 + $0x398] sm:$0xff]
    %v5689 = vld [vmem:[%s10 + $0x3a0] sm:$0xff]
    %v5690 = vld [vmem:[%s10 + $0x3a8] sm:$0xff]
    %v5691 = vld [vmem:[%s10 + $0x3b0] sm:$0xff]
    %v5692 = vld [vmem:[%s10 + $0x3b8] sm:$0xff]
    %v5693 = vld [vmem:[%s10 + $0x3c0] sm:$0xff]
    %v5694 = vld [vmem:[%s10 + $0x3c8] sm:$0xff]
    %v5695 = vld [vmem:[%s10 + $0x3d0] sm:$0xff]
    %v5696 = vld [vmem:[%s10 + $0x3d8] sm:$0xff]
    %v5697 = vld [vmem:[%s10 + $0x3e0] sm:$0xff]
    %v5698 = vld [vmem:[%s10 + $0x3e8] sm:$0xff]
    %v5699 = vld [vmem:[%s10 + $0x3f0] sm:$0xff]
    %v5700 = vld [vmem:[%s10 + $0x3f8] sm:$0xff]
    %v5701 = vld [vmem:[%s10 + $0x400] sm:$0xff]
    %v5702 = vld [vmem:[%s10 + $0x408] sm:$0xff]
    %v5703 = vld [vmem:[%s10 + $0x410] sm:$0xff]
    %v5704 = vld [vmem:[%s10 + $0x418] sm:$0xff]
    %v5705 = vld [vmem:[%s10 + $0x420] sm:$0xff]
    %v5706 = vld [vmem:[%s10 + $0x428] sm:$0xff]
    %v5707 = vld [vmem:[%s10 + $0x430] sm:$0xff]
    %v5708 = vld [vmem:[%s10 + $0x438] sm:$0xff]
    %v5709 = vld [vmem:[%s10 + $0x440] sm:$0xff]
    %v5710 = vld [vmem:[%s10 + $0x448] sm:$0xff]
    %v5711 = vld [vmem:[%s10 + $0x450] sm:$0xff]
    %v5712 = vld [vmem:[%s10 + $0x458] sm:$0xff]
    %v5713 = vld [vmem:[%s10 + $0x460] sm:$0xff]
    %v5714 = vld [vmem:[%s10 + $0x468] sm:$0xff]
    %v5715 = vld [vmem:[%s10 + $0x470] sm:$0xff]
    %v5716 = vld [vmem:[%s10 + $0x478] sm:$0xff]
    %v5717 = vld [vmem:[%s10 + $0x480] sm:$0xff]
    %v5718 = vld [vmem:[%s10 + $0x488] sm:$0xff]
    %v5719 = vld [vmem:[%s10 + $0x490] sm:$0xff]
    %v5720 = vld [vmem:[%s10 + $0x498] sm:$0xff]
    %v5721 = vld [vmem:[%s10 + $0x4a0] sm:$0xff]
    %v5722 = vld [vmem:[%s10 + $0x4a8] sm:$0xff]
    %v5723 = vld [vmem:[%s10 + $0x4b0] sm:$0xff]
    %v5724 = vld [vmem:[%s10 + $0x4b8] sm:$0xff]
    %v5725 = vld [vmem:[%s10 + $0x4c0] sm:$0xff]
    %v5726 = vld [vmem:[%s10 + $0x4c8] sm:$0xff]
    %v5727 = vld [vmem:[%s10 + $0x4d0] sm:$0xff]
    %v5728 = vld [vmem:[%s10 + $0x4d8] sm:$0xff]
    %v5729 = vld [vmem:[%s10 + $0x4e0] sm:$0xff]
    %v5730 = vld [vmem:[%s10 + $0x4e8] sm:$0xff]
    %v5731 = vld [vmem:[%s10 + $0x4f0] sm:$0xff]
    %v5732 = vld [vmem:[%s10 + $0x4f8] sm:$0xff]
    %v5733 = vld [vmem:[%s10 + $0x500] sm:$0xff]
    %v5734 = vld [vmem:[%s10 + $0x508] sm:$0xff]
    %v5735 = vld [vmem:[%s10 + $0x510] sm:$0xff]
    %v5736 = vld [vmem:[%s10 + $0x518] sm:$0xff]
    %v5737 = vld [vmem:[%s10 + $0x520] sm:$0xff]
    %v5738 = vld [vmem:[%s10 + $0x528] sm:$0xff]
    %v5739 = vld [vmem:[%s10 + $0x530] sm:$0xff]
    %v5740 = vld [vmem:[%s10 + $0x538] sm:$0xff]
    %v5741 = vld [vmem:[%s10 + $0x540] sm:$0xff]
    %v5742 = vld [vmem:[%s10 + $0x548] sm:$0xff]
    %v5743 = vld [vmem:[%s10 + $0x550] sm:$0xff]
    %v5744 = vld [vmem:[%s10 + $0x558] sm:$0xff]
    %v5745 = vld [vmem:[%s10 + $0x560] sm:$0xff]
    %v5746 = vld [vmem:[%s10 + $0x568] sm:$0xff]
    %v5747 = vld [vmem:[%s10 + $0x570] sm:$0xff]
    %v5748 = vld [vmem:[%s10 + $0x578] sm:$0xff]
    %v5749 = vld [vmem:[%s10 + $0x580] sm:$0xff]
    %v5750 = vld [vmem:[%s10 + $0x588] sm:$0xff]
    %v5751 = vld [vmem:[%s10 + $0x590] sm:$0xff]
    %v5752 = vld [vmem:[%s10 + $0x598] sm:$0xff]
    %v5753 = vld [vmem:[%s10 + $0x5a0] sm:$0xff]
    %v5754 = vld [vmem:[%s10 + $0x5a8] sm:$0xff]
    %v5755 = vld [vmem:[%s10 + $0x5b0] sm:$0xff]
    %v5756 = vld [vmem:[%s10 + $0x5b8] sm:$0xff]
    %v5757 = vld [vmem:[%s10 + $0x5c0] sm:$0xff]
    %v5758 = vld [vmem:[%s10 + $0x5c8] sm:$0x33]
    %v5759 = vld [vmem:[%s10 + $0x5d0] sm:$0x33]
    %v5760 = vld [vmem:[%s10 + $0x5d8] sm:$0x33]
    %v5761 = vld [vmem:[%s10 + $0x5e0] sm:$0x33]
    %v5762 = vld [vmem:[%s10 + $0x5e8] sm:$0x33]
    %v5953 = vunpack.c.l.b16 %v5573
    %v5954 = vunpack.c.h.b16 %v5573
    %v5955 = vunpack.c.l.b16 %v5574
    %v5956 = vunpack.c.h.b16 %v5574
    %v5957 = vunpack.c.l.b16 %v5575
    %v5958 = vunpack.c.h.b16 %v5575
    %v5959 = vunpack.c.l.b16 %v5576
    %v5960 = vunpack.c.h.b16 %v5576
    %v5961 = vunpack.c.l.b16 %v5577
    %v5962 = vunpack.c.h.b16 %v5577
    %v5963 = vunpack.c.l.b16 %v5578
    %v5964 = vunpack.c.h.b16 %v5578
    %v5965 = vunpack.c.l.b16 %v5579
    %v5966 = vunpack.c.h.b16 %v5579
    %v5967 = vunpack.c.l.b16 %v5580
    %v5968 = vunpack.c.h.b16 %v5580
    %v5969 = vunpack.c.l.b16 %v5581
    %v5970 = vunpack.c.h.b16 %v5581
    %v5971 = vunpack.c.l.b16 %v5582
    %v5972 = vunpack.c.h.b16 %v5582
    %v5973 = vunpack.c.l.b16 %v5583
    %v5974 = vunpack.c.h.b16 %v5583
    %v5975 = vunpack.c.l.b16 %v5584
    %v5976 = vunpack.c.h.b16 %v5584
    %v5977 = vunpack.c.l.b16 %v5585
    %v5978 = vunpack.c.h.b16 %v5585
    %v5979 = vunpack.c.l.b16 %v5586
    %v5980 = vunpack.c.h.b16 %v5586
    %v5981 = vunpack.c.l.b16 %v5587
    %v5982 = vunpack.c.h.b16 %v5587
    %v5983 = vunpack.c.l.b16 %v5588
    %v5984 = vunpack.c.h.b16 %v5588
    %v5985 = vunpack.c.l.b16 %v5589
    %v5986 = vunpack.c.h.b16 %v5589
    %v5987 = vunpack.c.l.b16 %v5590
    %v5988 = vunpack.c.h.b16 %v5590
    %v5989 = vunpack.c.l.b16 %v5591
    %v5990 = vunpack.c.h.b16 %v5591
    %v5991 = vunpack.c.l.b16 %v5592
    %v5992 = vunpack.c.h.b16 %v5592
    %v5993 = vunpack.c.l.b16 %v5593
    %v5994 = vunpack.c.h.b16 %v5593
    %v5995 = vunpack.c.l.b16 %v5594
    %v5996 = vunpack.c.h.b16 %v5594
    %v5997 = vunpack.c.l.b16 %v5595
    %v5998 = vunpack.c.h.b16 %v5595
    %v5999 = vunpack.c.l.b16 %v5596
    %v6000 = vunpack.c.h.b16 %v5596
    %v6001 = vunpack.c.l.b16 %v5597
    %v6002 = vunpack.c.h.b16 %v5597
    %v6003 = vunpack.c.l.b16 %v5598
    %v6004 = vunpack.c.h.b16 %v5598
    %v6005 = vunpack.c.l.b16 %v5599
    %v6006 = vunpack.c.h.b16 %v5599
    %v6007 = vunpack.c.l.b16 %v5600
    %v6008 = vunpack.c.h.b16 %v5600
    %v6009 = vunpack.c.l.b16 %v5601
    %v6010 = vunpack.c.h.b16 %v5601
    %v6011 = vunpack.c.l.b16 %v5602
    %v6012 = vunpack.c.h.b16 %v5602
    %v6013 = vunpack.c.l.b16 %v5603
    %v6014 = vunpack.c.h.b16 %v5603
    %v6015 = vunpack.c.l.b16 %v5604
    %v6016 = vunpack.c.h.b16 %v5604
    %v6017 = vunpack.c.l.b16 %v5605
    %v6018 = vunpack.c.h.b16 %v5605
    %v6019 = vunpack.c.l.b16 %v5606
    %v6020 = vunpack.c.h.b16 %v5606
    %v6021 = vunpack.c.l.b16 %v5607
    %v6022 = vunpack.c.h.b16 %v5607
    %v6023 = vunpack.c.l.b16 %v5608
    %v6024 = vunpack.c.h.b16 %v5608
    %v6025 = vunpack.c.l.b16 %v5609
    %v6026 = vunpack.c.h.b16 %v5609
    %v6027 = vunpack.c.l.b16 %v5610
    %v6028 = vunpack.c.h.b16 %v5610
    %v6029 = vunpack.c.l.b16 %v5611
    %v6030 = vunpack.c.h.b16 %v5611
    %v6031 = vunpack.c.l.b16 %v5612
    %v6032 = vunpack.c.h.b16 %v5612
    %v6033 = vunpack.c.l.b16 %v5613
    %v6034 = vunpack.c.h.b16 %v5613
    %v6035 = vunpack.c.l.b16 %v5614
    %v6036 = vunpack.c.h.b16 %v5614
    %v6037 = vunpack.c.l.b16 %v5615
    %v6038 = vunpack.c.h.b16 %v5615
    %v6039 = vunpack.c.l.b16 %v5616
    %v6040 = vunpack.c.h.b16 %v5616
    %v6041 = vunpack.c.l.b16 %v5617
    %v6042 = vunpack.c.h.b16 %v5617
    %v6043 = vunpack.c.l.b16 %v5618
    %v6044 = vunpack.c.h.b16 %v5618
    %v6045 = vunpack.c.l.b16 %v5619
    %v6046 = vunpack.c.h.b16 %v5619
    %v6047 = vunpack.c.l.b16 %v5620
    %v6048 = vunpack.c.h.b16 %v5620
    %v6049 = vunpack.c.l.b16 %v5621
    %v6050 = vunpack.c.h.b16 %v5621
    %v6051 = vunpack.c.l.b16 %v5622
    %v6052 = vunpack.c.h.b16 %v5622
    %v6053 = vunpack.c.l.b16 %v5623
    %v6054 = vunpack.c.h.b16 %v5623
    %v6055 = vunpack.c.l.b16 %v5624
    %v6056 = vunpack.c.h.b16 %v5624
    %v6057 = vunpack.c.l.b16 %v5625
    %v6058 = vunpack.c.h.b16 %v5625
    %v6059 = vunpack.c.l.b16 %v5626
    %v6060 = vunpack.c.h.b16 %v5626
    %v6061 = vunpack.c.l.b16 %v5627
    %v6062 = vunpack.c.h.b16 %v5627
    %v6063 = vunpack.c.l.b16 %v5628
    %v6064 = vunpack.c.h.b16 %v5628
    %v6065 = vunpack.c.l.b16 %v5629
    %v6066 = vunpack.c.h.b16 %v5629
    %v6067 = vunpack.c.l.b16 %v5630
    %v6068 = vunpack.c.h.b16 %v5630
    %v6069 = vunpack.c.l.b16 %v5631
    %v6070 = vunpack.c.h.b16 %v5631
    %v6071 = vunpack.c.l.b16 %v5632
    %v6072 = vunpack.c.h.b16 %v5632
    %v6073 = vunpack.c.l.b16 %v5633
    %v6074 = vunpack.c.h.b16 %v5633
    %v6075 = vunpack.c.l.b16 %v5634
    %v6076 = vunpack.c.h.b16 %v5634
    %v6077 = vunpack.c.l.b16 %v5635
    %v6078 = vunpack.c.h.b16 %v5635
    %v6079 = vunpack.c.l.b16 %v5636
    %v6080 = vunpack.c.h.b16 %v5636
    %v6081 = vunpack.c.l.b16 %v5637
    %v6082 = vunpack.c.h.b16 %v5637
    %v6083 = vunpack.c.l.b16 %v5638
    %v6084 = vunpack.c.h.b16 %v5638
    %v6085 = vunpack.c.l.b16 %v5639
    %v6086 = vunpack.c.h.b16 %v5639
    %v6087 = vunpack.c.l.b16 %v5640
    %v6088 = vunpack.c.h.b16 %v5640
    %v6089 = vunpack.c.l.b16 %v5641
    %v6090 = vunpack.c.h.b16 %v5641
    %v6091 = vunpack.c.l.b16 %v5642
    %v6092 = vunpack.c.h.b16 %v5642
    %v6093 = vunpack.c.l.b16 %v5643
    %v6094 = vunpack.c.h.b16 %v5643
    %v6095 = vunpack.c.l.b16 %v5644
    %v6096 = vunpack.c.h.b16 %v5644
    %v6097 = vunpack.c.l.b16 %v5645
    %v6098 = vunpack.c.h.b16 %v5645
    %v6099 = vunpack.c.l.b16 %v5646
    %v6100 = vunpack.c.h.b16 %v5646
    %v6101 = vunpack.c.l.b16 %v5647
    %v6102 = vunpack.c.h.b16 %v5647
    %v6103 = vunpack.c.l.b16 %v5648
    %v6104 = vunpack.c.h.b16 %v5648
    %v6105 = vunpack.c.l.b16 %v5649
    %v6106 = vunpack.c.h.b16 %v5649
    %v6107 = vunpack.c.l.b16 %v5650
    %v6108 = vunpack.c.h.b16 %v5650
    %v6109 = vunpack.c.l.b16 %v5651
    %v6110 = vunpack.c.h.b16 %v5651
    %v6111 = vunpack.c.l.b16 %v5652
    %v6112 = vunpack.c.h.b16 %v5652
    %v6113 = vunpack.c.l.b16 %v5653
    %v6114 = vunpack.c.h.b16 %v5653
    %v6115 = vunpack.c.l.b16 %v5654
    %v6116 = vunpack.c.h.b16 %v5654
    %v6117 = vunpack.c.l.b16 %v5655
    %v6118 = vunpack.c.h.b16 %v5655
    %v6119 = vunpack.c.l.b16 %v5656
    %v6120 = vunpack.c.h.b16 %v5656
    %v6121 = vunpack.c.l.b16 %v5657
    %v6122 = vunpack.c.h.b16 %v5657
    %v6123 = vunpack.c.l.b16 %v5658
    %v6124 = vunpack.c.h.b16 %v5658
    %v6125 = vunpack.c.l.b16 %v5659
    %v6126 = vunpack.c.h.b16 %v5659
    %v6127 = vunpack.c.l.b16 %v5660
    %v6128 = vunpack.c.h.b16 %v5660
    %v6129 = vunpack.c.l.b16 %v5661
    %v6130 = vunpack.c.h.b16 %v5661
    %v6131 = vunpack.c.l.b16 %v5662
    %v6132 = vunpack.c.h.b16 %v5662
    %v6133 = vunpack.c.l.b16 %v5663
    %v6134 = vunpack.c.h.b16 %v5663
    %v6135 = vunpack.c.l.b16 %v5664
    %v6136 = vunpack.c.h.b16 %v5664
    %v6137 = vunpack.c.l.b16 %v5665
    %v6138 = vunpack.c.h.b16 %v5665
    %v6139 = vunpack.c.l.b16 %v5666
    %v6140 = vunpack.c.h.b16 %v5666
    %v6141 = vunpack.c.l.b16 %v5667
    %v6142 = vunpack.c.h.b16 %v5667
    %v6143 = vunpack.c.l.b16 %v5668
    %v6144 = vunpack.c.h.b16 %v5668
    %v6145 = vunpack.c.l.b16 %v5669
    %v6146 = vunpack.c.h.b16 %v5669
    %v6147 = vunpack.c.l.b16 %v5670
    %v6148 = vunpack.c.h.b16 %v5670
    %v6149 = vunpack.c.l.b16 %v5671
    %v6150 = vunpack.c.h.b16 %v5671
    %v6151 = vunpack.c.l.b16 %v5672
    %v6152 = vunpack.c.h.b16 %v5672
    %v6153 = vunpack.c.l.b16 %v5673
    %v6154 = vunpack.c.h.b16 %v5673
    %v6155 = vunpack.c.l.b16 %v5674
    %v6156 = vunpack.c.h.b16 %v5674
    %v6157 = vunpack.c.l.b16 %v5675
    %v6158 = vunpack.c.h.b16 %v5675
    %v6159 = vunpack.c.l.b16 %v5676
    %v6160 = vunpack.c.h.b16 %v5676
    %v6161 = vunpack.c.l.b16 %v5677
    %v6162 = vunpack.c.h.b16 %v5677
    %v6163 = vunpack.c.l.b16 %v5678
    %v6164 = vunpack.c.h.b16 %v5678
    %v6165 = vunpack.c.l.b16 %v5679
    %v6166 = vunpack.c.h.b16 %v5679
    %v6167 = vunpack.c.l.b16 %v5680
    %v6168 = vunpack.c.h.b16 %v5680
    %v6169 = vunpack.c.l.b16 %v5681
    %v6170 = vunpack.c.h.b16 %v5681
    %v6171 = vunpack.c.l.b16 %v5682
    %v6172 = vunpack.c.h.b16 %v5682
    %v6173 = vunpack.c.l.b16 %v5683
    %v6174 = vunpack.c.h.b16 %v5683
    %v6175 = vunpack.c.l.b16 %v5684
    %v6176 = vunpack.c.h.b16 %v5684
    %v6177 = vunpack.c.l.b16 %v5685
    %v6178 = vunpack.c.h.b16 %v5685
    %v6179 = vunpack.c.l.b16 %v5686
    %v6180 = vunpack.c.h.b16 %v5686
    %v6181 = vunpack.c.l.b16 %v5687
    %v6182 = vunpack.c.h.b16 %v5687
    %v6183 = vunpack.c.l.b16 %v5688
    %v6184 = vunpack.c.h.b16 %v5688
    %v6185 = vunpack.c.l.b16 %v5689
    %v6186 = vunpack.c.h.b16 %v5689
    %v6187 = vunpack.c.l.b16 %v5690
    %v6188 = vunpack.c.h.b16 %v5690
    %v6189 = vunpack.c.l.b16 %v5691
    %v6190 = vunpack.c.h.b16 %v5691
    %v6191 = vunpack.c.l.b16 %v5692
    %v6192 = vunpack.c.h.b16 %v5692
    %v6193 = vunpack.c.l.b16 %v5693
    %v6194 = vunpack.c.h.b16 %v5693
    %v6195 = vunpack.c.l.b16 %v5694
    %v6196 = vunpack.c.h.b16 %v5694
    %v6197 = vunpack.c.l.b16 %v5695
    %v6198 = vunpack.c.h.b16 %v5695
    %v6199 = vunpack.c.l.b16 %v5696
    %v6200 = vunpack.c.h.b16 %v5696
    %v6201 = vunpack.c.l.b16 %v5697
    %v6202 = vunpack.c.h.b16 %v5697
    %v6203 = vunpack.c.l.b16 %v5698
    %v6204 = vunpack.c.h.b16 %v5698
    %v6205 = vunpack.c.l.b16 %v5699
    %v6206 = vunpack.c.h.b16 %v5699
    %v6207 = vunpack.c.l.b16 %v5700
    %v6208 = vunpack.c.h.b16 %v5700
    %v6209 = vunpack.c.l.b16 %v5701
    %v6210 = vunpack.c.h.b16 %v5701
    %v6211 = vunpack.c.l.b16 %v5702
    %v6212 = vunpack.c.h.b16 %v5702
    %v6213 = vunpack.c.l.b16 %v5703
    %v6214 = vunpack.c.h.b16 %v5703
    %v6215 = vunpack.c.l.b16 %v5704
    %v6216 = vunpack.c.h.b16 %v5704
    %v6217 = vunpack.c.l.b16 %v5705
    %v6218 = vunpack.c.h.b16 %v5705
    %v6219 = vunpack.c.l.b16 %v5706
    %v6220 = vunpack.c.h.b16 %v5706
    %v6221 = vunpack.c.l.b16 %v5707
    %v6222 = vunpack.c.h.b16 %v5707
    %v6223 = vunpack.c.l.b16 %v5708
    %v6224 = vunpack.c.h.b16 %v5708
    %v6225 = vunpack.c.l.b16 %v5709
    %v6226 = vunpack.c.h.b16 %v5709
    %v6227 = vunpack.c.l.b16 %v5710
    %v6228 = vunpack.c.h.b16 %v5710
    %v6229 = vunpack.c.l.b16 %v5711
    %v6230 = vunpack.c.h.b16 %v5711
    %v6231 = vunpack.c.l.b16 %v5712
    %v6232 = vunpack.c.h.b16 %v5712
    %v6233 = vunpack.c.l.b16 %v5713
    %v6234 = vunpack.c.h.b16 %v5713
    %v6235 = vunpack.c.l.b16 %v5714
    %v6236 = vunpack.c.h.b16 %v5714
    %v6237 = vunpack.c.l.b16 %v5715
    %v6238 = vunpack.c.h.b16 %v5715
    %v6239 = vunpack.c.l.b16 %v5716
    %v6240 = vunpack.c.h.b16 %v5716
    %v6241 = vunpack.c.l.b16 %v5717
    %v6242 = vunpack.c.h.b16 %v5717
    %v6243 = vunpack.c.l.b16 %v5718
    %v6244 = vunpack.c.h.b16 %v5718
    %v6245 = vunpack.c.l.b16 %v5719
    %v6246 = vunpack.c.h.b16 %v5719
    %v6247 = vunpack.c.l.b16 %v5720
    %v6248 = vunpack.c.h.b16 %v5720
    %v6249 = vunpack.c.l.b16 %v5721
    %v6250 = vunpack.c.h.b16 %v5721
    %v6251 = vunpack.c.l.b16 %v5722
    %v6252 = vunpack.c.h.b16 %v5722
    %v6253 = vunpack.c.l.b16 %v5723
    %v6254 = vunpack.c.h.b16 %v5723
    %v6255 = vunpack.c.l.b16 %v5724
    %v6256 = vunpack.c.h.b16 %v5724
    %v6257 = vunpack.c.l.b16 %v5725
    %v6258 = vunpack.c.h.b16 %v5725
    %v6259 = vunpack.c.l.b16 %v5726
    %v6260 = vunpack.c.h.b16 %v5726
    %v6261 = vunpack.c.l.b16 %v5727
    %v6262 = vunpack.c.h.b16 %v5727
    %v6263 = vunpack.c.l.b16 %v5728
    %v6264 = vunpack.c.h.b16 %v5728
    %v6265 = vunpack.c.l.b16 %v5729
    %v6266 = vunpack.c.h.b16 %v5729
    %v6267 = vunpack.c.l.b16 %v5730
    %v6268 = vunpack.c.h.b16 %v5730
    %v6269 = vunpack.c.l.b16 %v5731
    %v6270 = vunpack.c.h.b16 %v5731
    %v6271 = vunpack.c.l.b16 %v5732
    %v6272 = vunpack.c.h.b16 %v5732
    %v6273 = vunpack.c.l.b16 %v5733
    %v6274 = vunpack.c.h.b16 %v5733
    %v6275 = vunpack.c.l.b16 %v5734
    %v6276 = vunpack.c.h.b16 %v5734
    %v6277 = vunpack.c.l.b16 %v5735
    %v6278 = vunpack.c.h.b16 %v5735
    %v6279 = vunpack.c.l.b16 %v5736
    %v6280 = vunpack.c.h.b16 %v5736
    %v6281 = vunpack.c.l.b16 %v5737
    %v6282 = vunpack.c.h.b16 %v5737
    %v6283 = vunpack.c.l.b16 %v5738
    %v6284 = vunpack.c.h.b16 %v5738
    %v6285 = vunpack.c.l.b16 %v5739
    %v6286 = vunpack.c.h.b16 %v5739
    %v6287 = vunpack.c.l.b16 %v5740
    %v6288 = vunpack.c.h.b16 %v5740
    %v6289 = vunpack.c.l.b16 %v5741
    %v6290 = vunpack.c.h.b16 %v5741
    %v6291 = vunpack.c.l.b16 %v5742
    %v6292 = vunpack.c.h.b16 %v5742
    %v6293 = vunpack.c.l.b16 %v5743
    %v6294 = vunpack.c.h.b16 %v5743
    %v6295 = vunpack.c.l.b16 %v5744
    %v6296 = vunpack.c.h.b16 %v5744
    %v6297 = vunpack.c.l.b16 %v5745
    %v6298 = vunpack.c.h.b16 %v5745
    %v6299 = vunpack.c.l.b16 %v5746
    %v6300 = vunpack.c.h.b16 %v5746
    %v6301 = vunpack.c.l.b16 %v5747
    %v6302 = vunpack.c.h.b16 %v5747
    %v6303 = vunpack.c.l.b16 %v5748
    %v6304 = vunpack.c.h.b16 %v5748
    %v6305 = vunpack.c.l.b16 %v5749
    %v6306 = vunpack.c.h.b16 %v5749
    %v6307 = vunpack.c.l.b16 %v5750
    %v6308 = vunpack.c.h.b16 %v5750
    %v6309 = vunpack.c.l.b16 %v5751
    %v6310 = vunpack.c.h.b16 %v5751
    %v6311 = vunpack.c.l.b16 %v5752
    %v6312 = vunpack.c.h.b16 %v5752
    %v6313 = vunpack.c.l.b16 %v5753
    %v6314 = vunpack.c.h.b16 %v5753
    %v6315 = vunpack.c.l.b16 %v5754
    %v6316 = vunpack.c.h.b16 %v5754
    %v6317 = vunpack.c.l.b16 %v5755
    %v6318 = vunpack.c.h.b16 %v5755
    %v6319 = vunpack.c.l.b16 %v5756
    %v6320 = vunpack.c.h.b16 %v5756
    %v6321 = vunpack.c.l.b16 %v5757
    %v6322 = vunpack.c.h.b16 %v5757
    %v6323 = vunpack.c.l.b16 %v5758
    %v6324 = vunpack.c.h.b16 %v5758
    %v6325 = vunpack.c.l.b16 %v5759
    %v6326 = vunpack.c.h.b16 %v5759
    %v6327 = vunpack.c.l.b16 %v5760
    %v6328 = vunpack.c.h.b16 %v5760
    %v6329 = vunpack.c.l.b16 %v5761
    %v6330 = vunpack.c.h.b16 %v5761
    %v6331 = vunpack.c.l.b16 %v5762
    %v6332 = vunpack.c.h.b16 %v5762
    %v6333 = vpack.c.b16 %v5963, %v5953
    %v6334 = vpack.c.b16 %v5964, %v5954
    %v6335 = vpack.c.b16 %v5965, %v5955
    %v6336 = vpack.c.b16 %v5966, %v5956
    %v6337 = vpack.c.b16 %v5967, %v5957
    %v6338 = vpack.c.b16 %v5968, %v5958
    %v6339 = vpack.c.b16 %v5969, %v5959
    %v6340 = vpack.c.b16 %v5970, %v5960
    %v6341 = vpack.c.b16 %v5971, %v5961
    %v6342 = vpack.c.b16 %v5972, %v5962
    %v6343 = vpack.c.b16 %v5983, %v5973
    %v6344 = vpack.c.b16 %v5984, %v5974
    %v6345 = vpack.c.b16 %v5985, %v5975
    %v6346 = vpack.c.b16 %v5986, %v5976
    %v6347 = vpack.c.b16 %v5987, %v5977
    %v6348 = vpack.c.b16 %v5988, %v5978
    %v6349 = vpack.c.b16 %v5989, %v5979
    %v6350 = vpack.c.b16 %v5990, %v5980
    %v6351 = vpack.c.b16 %v5991, %v5981
    %v6352 = vpack.c.b16 %v5992, %v5982
    %v6353 = vpack.c.b16 %v6003, %v5993
    %v6354 = vpack.c.b16 %v6004, %v5994
    %v6355 = vpack.c.b16 %v6005, %v5995
    %v6356 = vpack.c.b16 %v6006, %v5996
    %v6357 = vpack.c.b16 %v6007, %v5997
    %v6358 = vpack.c.b16 %v6008, %v5998
    %v6359 = vpack.c.b16 %v6009, %v5999
    %v6360 = vpack.c.b16 %v6010, %v6000
    %v6361 = vpack.c.b16 %v6011, %v6001
    %v6362 = vpack.c.b16 %v6012, %v6002
    %v6363 = vpack.c.b16 %v6023, %v6013
    %v6364 = vpack.c.b16 %v6024, %v6014
    %v6365 = vpack.c.b16 %v6025, %v6015
    %v6366 = vpack.c.b16 %v6026, %v6016
    %v6367 = vpack.c.b16 %v6027, %v6017
    %v6368 = vpack.c.b16 %v6028, %v6018
    %v6369 = vpack.c.b16 %v6029, %v6019
    %v6370 = vpack.c.b16 %v6030, %v6020
    %v6371 = vpack.c.b16 %v6031, %v6021
    %v6372 = vpack.c.b16 %v6032, %v6022
    %v6373 = vpack.c.b16 %v6043, %v6033
    %v6374 = vpack.c.b16 %v6044, %v6034
    %v6375 = vpack.c.b16 %v6045, %v6035
    %v6376 = vpack.c.b16 %v6046, %v6036
    %v6377 = vpack.c.b16 %v6047, %v6037
    %v6378 = vpack.c.b16 %v6048, %v6038
    %v6379 = vpack.c.b16 %v6049, %v6039
    %v6380 = vpack.c.b16 %v6050, %v6040
    %v6381 = vpack.c.b16 %v6051, %v6041
    %v6382 = vpack.c.b16 %v6052, %v6042
    %v6383 = vpack.c.b16 %v6063, %v6053
    %v6384 = vpack.c.b16 %v6064, %v6054
    %v6385 = vpack.c.b16 %v6065, %v6055
    %v6386 = vpack.c.b16 %v6066, %v6056
    %v6387 = vpack.c.b16 %v6067, %v6057
    %v6388 = vpack.c.b16 %v6068, %v6058
    %v6389 = vpack.c.b16 %v6069, %v6059
    %v6390 = vpack.c.b16 %v6070, %v6060
    %v6391 = vpack.c.b16 %v6071, %v6061
    %v6392 = vpack.c.b16 %v6072, %v6062
    %v6393 = vpack.c.b16 %v6083, %v6073
    %v6394 = vpack.c.b16 %v6084, %v6074
    %v6395 = vpack.c.b16 %v6085, %v6075
    %v6396 = vpack.c.b16 %v6086, %v6076
    %v6397 = vpack.c.b16 %v6087, %v6077
    %v6398 = vpack.c.b16 %v6088, %v6078
    %v6399 = vpack.c.b16 %v6089, %v6079
    %v6400 = vpack.c.b16 %v6090, %v6080
    %v6401 = vpack.c.b16 %v6091, %v6081
    %v6402 = vpack.c.b16 %v6092, %v6082
    %v6403 = vpack.c.b16 %v6103, %v6093
    %v6404 = vpack.c.b16 %v6104, %v6094
    %v6405 = vpack.c.b16 %v6105, %v6095
    %v6406 = vpack.c.b16 %v6106, %v6096
    %v6407 = vpack.c.b16 %v6107, %v6097
    %v6408 = vpack.c.b16 %v6108, %v6098
    %v6409 = vpack.c.b16 %v6109, %v6099
    %v6410 = vpack.c.b16 %v6110, %v6100
    %v6411 = vpack.c.b16 %v6111, %v6101
    %v6412 = vpack.c.b16 %v6112, %v6102
    %v6413 = vpack.c.b16 %v6123, %v6113
    %v6414 = vpack.c.b16 %v6124, %v6114
    %v6415 = vpack.c.b16 %v6125, %v6115
    %v6416 = vpack.c.b16 %v6126, %v6116
    %v6417 = vpack.c.b16 %v6127, %v6117
    %v6418 = vpack.c.b16 %v6128, %v6118
    %v6419 = vpack.c.b16 %v6129, %v6119
    %v6420 = vpack.c.b16 %v6130, %v6120
    %v6421 = vpack.c.b16 %v6131, %v6121
    %v6422 = vpack.c.b16 %v6132, %v6122
    %v6423 = vpack.c.b16 %v6143, %v6133
    %v6424 = vpack.c.b16 %v6144, %v6134
    %v6425 = vpack.c.b16 %v6145, %v6135
    %v6426 = vpack.c.b16 %v6146, %v6136
    %v6427 = vpack.c.b16 %v6147, %v6137
    %v6428 = vpack.c.b16 %v6148, %v6138
    %v6429 = vpack.c.b16 %v6149, %v6139
    %v6430 = vpack.c.b16 %v6150, %v6140
    %v6431 = vpack.c.b16 %v6151, %v6141
    %v6432 = vpack.c.b16 %v6152, %v6142
    %v6433 = vpack.c.b16 %v6163, %v6153
    %v6434 = vpack.c.b16 %v6164, %v6154
    %v6435 = vpack.c.b16 %v6165, %v6155
    %v6436 = vpack.c.b16 %v6166, %v6156
    %v6437 = vpack.c.b16 %v6167, %v6157
    %v6438 = vpack.c.b16 %v6168, %v6158
    %v6439 = vpack.c.b16 %v6169, %v6159
    %v6440 = vpack.c.b16 %v6170, %v6160
    %v6441 = vpack.c.b16 %v6171, %v6161
    %v6442 = vpack.c.b16 %v6172, %v6162
    %v6443 = vpack.c.b16 %v6183, %v6173
    %v6444 = vpack.c.b16 %v6184, %v6174
    %v6445 = vpack.c.b16 %v6185, %v6175
    %v6446 = vpack.c.b16 %v6186, %v6176
    %v6447 = vpack.c.b16 %v6187, %v6177
    %v6448 = vpack.c.b16 %v6188, %v6178
    %v6449 = vpack.c.b16 %v6189, %v6179
    %v6450 = vpack.c.b16 %v6190, %v6180
    %v6451 = vpack.c.b16 %v6191, %v6181
    %v6452 = vpack.c.b16 %v6192, %v6182
    %v6453 = vpack.c.b16 %v6203, %v6193
    %v6454 = vpack.c.b16 %v6204, %v6194
    %v6455 = vpack.c.b16 %v6205, %v6195
    %v6456 = vpack.c.b16 %v6206, %v6196
    %v6457 = vpack.c.b16 %v6207, %v6197
    %v6458 = vpack.c.b16 %v6208, %v6198
    %v6459 = vpack.c.b16 %v6209, %v6199
    %v6460 = vpack.c.b16 %v6210, %v6200
    %v6461 = vpack.c.b16 %v6211, %v6201
    %v6462 = vpack.c.b16 %v6212, %v6202
    %v6463 = vpack.c.b16 %v6223, %v6213
    %v6464 = vpack.c.b16 %v6224, %v6214
    %v6465 = vpack.c.b16 %v6225, %v6215
    %v6466 = vpack.c.b16 %v6226, %v6216
    %v6467 = vpack.c.b16 %v6227, %v6217
    %v6468 = vpack.c.b16 %v6228, %v6218
    %v6469 = vpack.c.b16 %v6229, %v6219
    %v6470 = vpack.c.b16 %v6230, %v6220
    %v6471 = vpack.c.b16 %v6231, %v6221
    %v6472 = vpack.c.b16 %v6232, %v6222
    %v6473 = vpack.c.b16 %v6243, %v6233
    %v6474 = vpack.c.b16 %v6244, %v6234
    %v6475 = vpack.c.b16 %v6245, %v6235
    %v6476 = vpack.c.b16 %v6246, %v6236
    %v6477 = vpack.c.b16 %v6247, %v6237
    %v6478 = vpack.c.b16 %v6248, %v6238
    %v6479 = vpack.c.b16 %v6249, %v6239
    %v6480 = vpack.c.b16 %v6250, %v6240
    %v6481 = vpack.c.b16 %v6251, %v6241
    %v6482 = vpack.c.b16 %v6252, %v6242
    %v6483 = vpack.c.b16 %v6263, %v6253
    %v6484 = vpack.c.b16 %v6264, %v6254
    %v6485 = vpack.c.b16 %v6265, %v6255
    %v6486 = vpack.c.b16 %v6266, %v6256
    %v6487 = vpack.c.b16 %v6267, %v6257
    %v6488 = vpack.c.b16 %v6268, %v6258
    %v6489 = vpack.c.b16 %v6269, %v6259
    %v6490 = vpack.c.b16 %v6270, %v6260
    %v6491 = vpack.c.b16 %v6271, %v6261
    %v6492 = vpack.c.b16 %v6272, %v6262
    %v6493 = vpack.c.b16 %v6283, %v6273
    %v6494 = vpack.c.b16 %v6284, %v6274
    %v6495 = vpack.c.b16 %v6285, %v6275
    %v6496 = vpack.c.b16 %v6286, %v6276
    %v6497 = vpack.c.b16 %v6287, %v6277
    %v6498 = vpack.c.b16 %v6288, %v6278
    %v6499 = vpack.c.b16 %v6289, %v6279
    %v6500 = vpack.c.b16 %v6290, %v6280
    %v6501 = vpack.c.b16 %v6291, %v6281
    %v6502 = vpack.c.b16 %v6292, %v6282
    %v6503 = vpack.c.b16 %v6303, %v6293
    %v6504 = vpack.c.b16 %v6304, %v6294
    %v6505 = vpack.c.b16 %v6305, %v6295
    %v6506 = vpack.c.b16 %v6306, %v6296
    %v6507 = vpack.c.b16 %v6307, %v6297
    %v6508 = vpack.c.b16 %v6308, %v6298
    %v6509 = vpack.c.b16 %v6309, %v6299
    %v6510 = vpack.c.b16 %v6310, %v6300
    %v6511 = vpack.c.b16 %v6311, %v6301
    %v6512 = vpack.c.b16 %v6312, %v6302
    %v6513 = vpack.c.b16 %v6323, %v6313
    %v6514 = vpack.c.b16 %v6324, %v6314
    %v6515 = vpack.c.b16 %v6325, %v6315
    %v6516 = vpack.c.b16 %v6326, %v6316
    %v6517 = vpack.c.b16 %v6327, %v6317
    %v6518 = vpack.c.b16 %v6328, %v6318
    %v6519 = vpack.c.b16 %v6329, %v6319
    %v6520 = vpack.c.b16 %v6330, %v6320
    %v6521 = vpack.c.b16 %v6331, %v6321
    %v6522 = vpack.c.b16 %v6332, %v6322
    %v6704 = vsel %vm595, %v5569, 0
    %v6707 = vsel %vm595, %v5572, 0
    %v6710 = vsel %vm599, %v6513, 0
    %v6713 = vsel %vm599, %v6514, 0
    %v6716 = vsel %vm599, %v6515, 0
    %v6719 = vsel %vm599, %v6516, 0
    %v6722 = vsel %vm599, %v6517, 0
    %v6725 = vsel %vm599, %v6518, 0
    %v6728 = vsel %vm599, %v6519, 0
    %v6731 = vsel %vm599, %v6520, 0
    %v6734 = vsel %vm599, %v6521, 0
    %v6737 = vsel %vm599, %v6522, 0
    %6739 = vmatprep.subr.bf16.mxu0 %v6404
    %6740 = vmatpush1.bf16.msra.mxu0 %v6403
    %6741 = vmatprep.subr.bf16.mxu0 %v6394
    %6742 = vmatpush1.bf16.msra.mxu0 %v6393
    %6743 = vmatprep.subr.bf16.mxu0 %v6384
    %6744 = vmatpush1.bf16.msra.mxu0 %v6383
    %6745 = vmatprep.subr.bf16.mxu0 %v6374
    %6746 = vmatpush1.bf16.msra.mxu0 %v6373
    %6747 = vmatprep.subr.bf16.mxu0 %v6364
    %6748 = vmatpush1.bf16.msra.mxu0 %v6363
    %6749 = vmatprep.subr.bf16.mxu0 %v6354
    %6750 = vmatpush1.bf16.msra.mxu0 %v6353
    %6751 = vmatprep.subr.bf16.mxu0 %v6344
    %6752 = vmatpush1.bf16.msra.mxu0 %v6343
    %6753 = vmatprep.subr.bf16.mxu0 %v6334
    %6754 = vmatpush1.bf16.msra.mxu0 %v6333
    %6755 = vmatprep.subr.bf16.mxu0 %v6484
    %6756 = vmatpush2.bf16.msra.mxu0 %v6483
    %6757 = vmatprep.subr.bf16.mxu0 %v6474
    %6758 = vmatpush2.bf16.msra.mxu0 %v6473
    %6759 = vmatprep.subr.bf16.mxu0 %v6464
    %6760 = vmatpush2.bf16.msra.mxu0 %v6463
    %6761 = vmatprep.subr.bf16.mxu0 %v6454
    %6762 = vmatpush2.bf16.msra.mxu0 %v6453
    %6763 = vmatprep.subr.bf16.mxu0 %v6444
    %6764 = vmatpush2.bf16.msra.mxu0 %v6443
    %6765 = vmatprep.subr.bf16.mxu0 %v6434
    %6766 = vmatpush2.bf16.msra.mxu0 %v6433
    %6767 = vmatprep.subr.bf16.mxu0 %v6424
    %6768 = vmatpush2.bf16.msra.mxu0 %v6423
    %6769 = vmatprep.subr.bf16.mxu0 %v6414
    %6770 = vmatpush2.bf16.msra.mxu0 %v6413
    %6771 = vmatprep.mubr.bf16.mxu0 %v5568
    %6772 = vmatmul.mubr.bf16.gmra.mxu0 %v5567
    %v6773 = vpop.f32.mrf.mxu0
    %v6774 = vadd.f32 0.0, %v6773
    %v6775 = vpop.f32.mrf.mxu0
    %v6776 = vadd.f32 0.0, %v6775
    %v6777 = vpop.f32.mrf.mxu0
    %v6778 = vadd.f32 0.0, %v6777
    %v6779 = vpop.f32.mrf.mxu0
    %v6780 = vadd.f32 0.0, %v6779
    %6781 = vmatprep.mubr.bf16.mxu0 %v5571
    %6782 = vmatmul.mubr.bf16.gmra.mxu0 %v5570
    %v6783 = vpop.f32.mrf.mxu0
    %v6784 = vadd.f32 0.0, %v6783
    %v6785 = vpop.f32.mrf.mxu0
    %v6786 = vadd.f32 0.0, %v6785
    %v6787 = vpop.f32.mrf.mxu0
    %v6788 = vadd.f32 0.0, %v6787
    %v6789 = vpop.f32.mrf.mxu0
    %v6790 = vadd.f32 0.0, %v6789
    %6791 = vdwg.mxu0
    %6792 = vmatprep.subr.bf16.mxu0 0
    %6793 = vmatpush1.bf16.msra.mxu0 0
    %6794 = vmatprep.subr.bf16.mxu0 0
    %6795 = vmatpush1.bf16.msra.mxu0 0
    %6796 = vmatprep.subr.bf16.mxu0 0
    %6797 = vmatpush1.bf16.msra.mxu0 0
    %6798 = vmatprep.subr.bf16.mxu0 0
    %6799 = vmatpush1.bf16.msra.mxu0 0
    %6800 = vmatprep.subr.bf16.mxu0 0
    %6801 = vmatpush1.bf16.msra.mxu0 0
    %6802 = vmatprep.subr.bf16.mxu0 %v6713
    %6803 = vmatpush1.bf16.msra.mxu0 %v6710
    %6804 = vmatprep.subr.bf16.mxu0 %v6504
    %6805 = vmatpush1.bf16.msra.mxu0 %v6503
    %6806 = vmatprep.subr.bf16.mxu0 %v6494
    %6807 = vmatpush1.bf16.msra.mxu0 %v6493
    %6808 = vmatprep.subr.bf16.mxu0 0
    %6809 = vmatpush2.bf16.msra.mxu0 0
    %6810 = vmatprep.subr.bf16.mxu0 0
    %6811 = vmatpush2.bf16.msra.mxu0 0
    %6812 = vmatprep.subr.bf16.mxu0 0
    %6813 = vmatpush2.bf16.msra.mxu0 0
    %6814 = vmatprep.subr.bf16.mxu0 0
    %6815 = vmatpush2.bf16.msra.mxu0 0
    %6816 = vmatprep.subr.bf16.mxu0 0
    %6817 = vmatpush2.bf16.msra.mxu0 0
    %6818 = vmatprep.subr.bf16.mxu0 0
    %6819 = vmatpush2.bf16.msra.mxu0 0
    %6820 = vmatprep.subr.bf16.mxu0 0
    %6821 = vmatpush2.bf16.msra.mxu0 0
    %6822 = vmatprep.subr.bf16.mxu0 0
    %6823 = vmatpush2.bf16.msra.mxu0 0
    %6824 = vmatprep.mubr.bf16.mxu0 0
    %6825 = vmatmul.mubr.bf16.gmra.mxu0 %v6704
    %v6826 = vpop.f32.mrf.mxu0
    %v6827 = vadd.f32 %v6774, %v6826
    %v6828 = vpop.f32.mrf.mxu0
    %v6829 = vadd.f32 %v6776, %v6828
    %v6830 = vpop.f32.mrf.mxu0
    %v6831 = vadd.f32 %v6778, %v6830
    %v6832 = vpop.f32.mrf.mxu0
    %v6833 = vadd.f32 %v6780, %v6832
    %6834 = vmatprep.mubr.bf16.mxu0 0
    %6835 = vmatmul.mubr.bf16.gmra.mxu0 %v6707
    %v6836 = vpop.f32.mrf.mxu0
    %v6837 = vadd.f32 %v6784, %v6836
    %v6838 = vpop.f32.mrf.mxu0
    %v6839 = vadd.f32 %v6786, %v6838
    %v6840 = vpop.f32.mrf.mxu0
    %v6841 = vadd.f32 %v6788, %v6840
    %v6842 = vpop.f32.mrf.mxu0
    %v6843 = vadd.f32 %v6790, %v6842
    %6844 = vdwg.mxu0
    %6845 = vmatprep.subr.bf16.mxu0 %v6406
    %6846 = vmatpush1.bf16.msra.mxu0 %v6405
    %6847 = vmatprep.subr.bf16.mxu0 %v6396
    %6848 = vmatpush1.bf16.msra.mxu0 %v6395
    %6849 = vmatprep.subr.bf16.mxu0 %v6386
    %6850 = vmatpush1.bf16.msra.mxu0 %v6385
    %6851 = vmatprep.subr.bf16.mxu0 %v6376
    %6852 = vmatpush1.bf16.msra.mxu0 %v6375
    %6853 = vmatprep.subr.bf16.mxu0 %v6366
    %6854 = vmatpush1.bf16.msra.mxu0 %v6365
    %6855 = vmatprep.subr.bf16.mxu0 %v6356
    %6856 = vmatpush1.bf16.msra.mxu0 %v6355
    %6857 = vmatprep.subr.bf16.mxu0 %v6346
    %6858 = vmatpush1.bf16.msra.mxu0 %v6345
    %6859 = vmatprep.subr.bf16.mxu0 %v6336
    %6860 = vmatpush1.bf16.msra.mxu0 %v6335
    %6861 = vmatprep.subr.bf16.mxu0 %v6486
    %6862 = vmatpush2.bf16.msra.mxu0 %v6485
    %6863 = vmatprep.subr.bf16.mxu0 %v6476
    %6864 = vmatpush2.bf16.msra.mxu0 %v6475
    %6865 = vmatprep.subr.bf16.mxu0 %v6466
    %6866 = vmatpush2.bf16.msra.mxu0 %v6465
    %6867 = vmatprep.subr.bf16.mxu0 %v6456
    %6868 = vmatpush2.bf16.msra.mxu0 %v6455
    %6869 = vmatprep.subr.bf16.mxu0 %v6446
    %6870 = vmatpush2.bf16.msra.mxu0 %v6445
    %6871 = vmatprep.subr.bf16.mxu0 %v6436
    %6872 = vmatpush2.bf16.msra.mxu0 %v6435
    %6873 = vmatprep.subr.bf16.mxu0 %v6426
    %6874 = vmatpush2.bf16.msra.mxu0 %v6425
    %6875 = vmatprep.subr.bf16.mxu0 %v6416
    %6876 = vmatpush2.bf16.msra.mxu0 %v6415
    %6877 = vmatprep.mubr.bf16.mxu0 %v5568
    %6878 = vmatmul.mubr.bf16.gmra.mxu0 %v5567
    %v6879 = vpop.f32.mrf.mxu0
    %v6880 = vadd.f32 0.0, %v6879
    %v6881 = vpop.f32.mrf.mxu0
    %v6882 = vadd.f32 0.0, %v6881
    %v6883 = vpop.f32.mrf.mxu0
    %v6884 = vadd.f32 0.0, %v6883
    %v6885 = vpop.f32.mrf.mxu0
    %v6886 = vadd.f32 0.0, %v6885
    %6887 = vmatprep.mubr.bf16.mxu0 %v5571
    %6888 = vmatmul.mubr.bf16.gmra.mxu0 %v5570
    %v6889 = vpop.f32.mrf.mxu0
    %v6890 = vadd.f32 0.0, %v6889
    %v6891 = vpop.f32.mrf.mxu0
    %v6892 = vadd.f32 0.0, %v6891
    %v6893 = vpop.f32.mrf.mxu0
    %v6894 = vadd.f32 0.0, %v6893
    %v6895 = vpop.f32.mrf.mxu0
    %v6896 = vadd.f32 0.0, %v6895
    %6897 = vdwg.mxu0
    %6898 = vmatprep.subr.bf16.mxu0 0
    %6899 = vmatpush1.bf16.msra.mxu0 0
    %6900 = vmatprep.subr.bf16.mxu0 0
    %6901 = vmatpush1.bf16.msra.mxu0 0
    %6902 = vmatprep.subr.bf16.mxu0 0
    %6903 = vmatpush1.bf16.msra.mxu0 0
    %6904 = vmatprep.subr.bf16.mxu0 0
    %6905 = vmatpush1.bf16.msra.mxu0 0
    %6906 = vmatprep.subr.bf16.mxu0 0
    %6907 = vmatpush1.bf16.msra.mxu0 0
    %6908 = vmatprep.subr.bf16.mxu0 %v6719
    %6909 = vmatpush1.bf16.msra.mxu0 %v6716
    %6910 = vmatprep.subr.bf16.mxu0 %v6506
    %6911 = vmatpush1.bf16.msra.mxu0 %v6505
    %6912 = vmatprep.subr.bf16.mxu0 %v6496
    %6913 = vmatpush1.bf16.msra.mxu0 %v6495
    %6914 = vmatprep.subr.bf16.mxu0 0
    %6915 = vmatpush2.bf16.msra.mxu0 0
    %6916 = vmatprep.subr.bf16.mxu0 0
    %6917 = vmatpush2.bf16.msra.mxu0 0
    %6918 = vmatprep.subr.bf16.mxu0 0
    %6919 = vmatpush2.bf16.msra.mxu0 0
    %6920 = vmatprep.subr.bf16.mxu0 0
    %6921 = vmatpush2.bf16.msra.mxu0 0
    %6922 = vmatprep.subr.bf16.mxu0 0
    %6923 = vmatpush2.bf16.msra.mxu0 0
    %6924 = vmatprep.subr.bf16.mxu0 0
    %6925 = vmatpush2.bf16.msra.mxu0 0
    %6926 = vmatprep.subr.bf16.mxu0 0
    %6927 = vmatpush2.bf16.msra.mxu0 0
    %6928 = vmatprep.subr.bf16.mxu0 0
    %6929 = vmatpush2.bf16.msra.mxu0 0
    %6930 = vmatprep.mubr.bf16.mxu0 0
    %6931 = vmatmul.mubr.bf16.gmra.mxu0 %v6704
    %v6932 = vpop.f32.mrf.mxu0
    %v6933 = vadd.f32 %v6880, %v6932
    %v6934 = vpop.f32.mrf.mxu0
    %v6935 = vadd.f32 %v6882, %v6934
    %v6936 = vpop.f32.mrf.mxu0
    %v6937 = vadd.f32 %v6884, %v6936
    %v6938 = vpop.f32.mrf.mxu0
    %v6939 = vadd.f32 %v6886, %v6938
    %6940 = vmatprep.mubr.bf16.mxu0 0
    %6941 = vmatmul.mubr.bf16.gmra.mxu0 %v6707
    %v6942 = vpop.f32.mrf.mxu0
    %v6943 = vadd.f32 %v6890, %v6942
    %v6944 = vpop.f32.mrf.mxu0
    %v6945 = vadd.f32 %v6892, %v6944
    %v6946 = vpop.f32.mrf.mxu0
    %v6947 = vadd.f32 %v6894, %v6946
    %v6948 = vpop.f32.mrf.mxu0
    %v6949 = vadd.f32 %v6896, %v6948
    %6950 = vdwg.mxu0
    %6951 = vmatprep.subr.bf16.mxu0 %v6408
    %6952 = vmatpush1.bf16.msra.mxu0 %v6407
    %6953 = vmatprep.subr.bf16.mxu0 %v6398
    %6954 = vmatpush1.bf16.msra.mxu0 %v6397
    %6955 = vmatprep.subr.bf16.mxu0 %v6388
    %6956 = vmatpush1.bf16.msra.mxu0 %v6387
    %6957 = vmatprep.subr.bf16.mxu0 %v6378
    %6958 = vmatpush1.bf16.msra.mxu0 %v6377
    %6959 = vmatprep.subr.bf16.mxu0 %v6368
    %6960 = vmatpush1.bf16.msra.mxu0 %v6367
    %6961 = vmatprep.subr.bf16.mxu0 %v6358
    %6962 = vmatpush1.bf16.msra.mxu0 %v6357
    %6963 = vmatprep.subr.bf16.mxu0 %v6348
    %6964 = vmatpush1.bf16.msra.mxu0 %v6347
    %6965 = vmatprep.subr.bf16.mxu0 %v6338
    %6966 = vmatpush1.bf16.msra.mxu0 %v6337
    %6967 = vmatprep.subr.bf16.mxu0 %v6488
    %6968 = vmatpush2.bf16.msra.mxu0 %v6487
    %6969 = vmatprep.subr.bf16.mxu0 %v6478
    %6970 = vmatpush2.bf16.msra.mxu0 %v6477
    %6971 = vmatprep.subr.bf16.mxu0 %v6468
    %6972 = vmatpush2.bf16.msra.mxu0 %v6467
    %6973 = vmatprep.subr.bf16.mxu0 %v6458
    %6974 = vmatpush2.bf16.msra.mxu0 %v6457
    %6975 = vmatprep.subr.bf16.mxu0 %v6448
    %6976 = vmatpush2.bf16.msra.mxu0 %v6447
    %6977 = vmatprep.subr.bf16.mxu0 %v6438
    %6978 = vmatpush2.bf16.msra.mxu0 %v6437
    %6979 = vmatprep.subr.bf16.mxu0 %v6428
    %6980 = vmatpush2.bf16.msra.mxu0 %v6427
    %6981 = vmatprep.subr.bf16.mxu0 %v6418
    %6982 = vmatpush2.bf16.msra.mxu0 %v6417
    %6983 = vmatprep.mubr.bf16.mxu0 %v5568
    %6984 = vmatmul.mubr.bf16.gmra.mxu0 %v5567
    %v6985 = vpop.f32.mrf.mxu0
    %v6986 = vadd.f32 0.0, %v6985
    %v6987 = vpop.f32.mrf.mxu0
    %v6988 = vadd.f32 0.0, %v6987
    %v6989 = vpop.f32.mrf.mxu0
    %v6990 = vadd.f32 0.0, %v6989
    %v6991 = vpop.f32.mrf.mxu0
    %v6992 = vadd.f32 0.0, %v6991
    %6993 = vmatprep.mubr.bf16.mxu0 %v5571
    %6994 = vmatmul.mubr.bf16.gmra.mxu0 %v5570
    %v6995 = vpop.f32.mrf.mxu0
    %v6996 = vadd.f32 0.0, %v6995
    %v6997 = vpop.f32.mrf.mxu0
    %v6998 = vadd.f32 0.0, %v6997
    %v6999 = vpop.f32.mrf.mxu0
    %v7000 = vadd.f32 0.0, %v6999
    %v7001 = vpop.f32.mrf.mxu0
    %v7002 = vadd.f32 0.0, %v7001
    %7003 = vdwg.mxu0
    %7004 = vmatprep.subr.bf16.mxu0 0
    %7005 = vmatpush1.bf16.msra.mxu0 0
    %7006 = vmatprep.subr.bf16.mxu0 0
    %7007 = vmatpush1.bf16.msra.mxu0 0
    %7008 = vmatprep.subr.bf16.mxu0 0
    %7009 = vmatpush1.bf16.msra.mxu0 0
    %7010 = vmatprep.subr.bf16.mxu0 0
    %7011 = vmatpush1.bf16.msra.mxu0 0
    %7012 = vmatprep.subr.bf16.mxu0 0
    %7013 = vmatpush1.bf16.msra.mxu0 0
    %7014 = vmatprep.subr.bf16.mxu0 %v6725
    %7015 = vmatpush1.bf16.msra.mxu0 %v6722
    %7016 = vmatprep.subr.bf16.mxu0 %v6508
    %7017 = vmatpush1.bf16.msra.mxu0 %v6507
    %7018 = vmatprep.subr.bf16.mxu0 %v6498
    %7019 = vmatpush1.bf16.msra.mxu0 %v6497
    %7020 = vmatprep.subr.bf16.mxu0 0
    %7021 = vmatpush2.bf16.msra.mxu0 0
    %7022 = vmatprep.subr.bf16.mxu0 0
    %7023 = vmatpush2.bf16.msra.mxu0 0
    %7024 = vmatprep.subr.bf16.mxu0 0
    %7025 = vmatpush2.bf16.msra.mxu0 0
    %7026 = vmatprep.subr.bf16.mxu0 0
    %7027 = vmatpush2.bf16.msra.mxu0 0
    %7028 = vmatprep.subr.bf16.mxu0 0
    %7029 = vmatpush2.bf16.msra.mxu0 0
    %7030 = vmatprep.subr.bf16.mxu0 0
    %7031 = vmatpush2.bf16.msra.mxu0 0
    %7032 = vmatprep.subr.bf16.mxu0 0
    %7033 = vmatpush2.bf16.msra.mxu0 0
    %7034 = vmatprep.subr.bf16.mxu0 0
    %7035 = vmatpush2.bf16.msra.mxu0 0
    %7036 = vmatprep.mubr.bf16.mxu0 0
    %7037 = vmatmul.mubr.bf16.gmra.mxu0 %v6704
    %v7038 = vpop.f32.mrf.mxu0
    %v7039 = vadd.f32 %v6986, %v7038
    %v7040 = vpop.f32.mrf.mxu0
    %v7041 = vadd.f32 %v6988, %v7040
    %v7042 = vpop.f32.mrf.mxu0
    %v7043 = vadd.f32 %v6990, %v7042
    %v7044 = vpop.f32.mrf.mxu0
    %v7045 = vadd.f32 %v6992, %v7044
    %7046 = vmatprep.mubr.bf16.mxu0 0
    %7047 = vmatmul.mubr.bf16.gmra.mxu0 %v6707
    %v7048 = vpop.f32.mrf.mxu0
    %v7049 = vadd.f32 %v6996, %v7048
    %v7050 = vpop.f32.mrf.mxu0
    %v7051 = vadd.f32 %v6998, %v7050
    %v7052 = vpop.f32.mrf.mxu0
    %v7053 = vadd.f32 %v7000, %v7052
    %v7054 = vpop.f32.mrf.mxu0
    %v7055 = vadd.f32 %v7002, %v7054
    %7056 = vdwg.mxu0
    %7057 = vmatprep.subr.bf16.mxu0 %v6410
    %7058 = vmatpush1.bf16.msra.mxu0 %v6409
    %7059 = vmatprep.subr.bf16.mxu0 %v6400
    %7060 = vmatpush1.bf16.msra.mxu0 %v6399
    %7061 = vmatprep.subr.bf16.mxu0 %v6390
    %7062 = vmatpush1.bf16.msra.mxu0 %v6389
    %7063 = vmatprep.subr.bf16.mxu0 %v6380
    %7064 = vmatpush1.bf16.msra.mxu0 %v6379
    %7065 = vmatprep.subr.bf16.mxu0 %v6370
    %7066 = vmatpush1.bf16.msra.mxu0 %v6369
    %7067 = vmatprep.subr.bf16.mxu0 %v6360
    %7068 = vmatpush1.bf16.msra.mxu0 %v6359
    %7069 = vmatprep.subr.bf16.mxu0 %v6350
    %7070 = vmatpush1.bf16.msra.mxu0 %v6349
    %7071 = vmatprep.subr.bf16.mxu0 %v6340
    %7072 = vmatpush1.bf16.msra.mxu0 %v6339
    %7073 = vmatprep.subr.bf16.mxu0 %v6490
    %7074 = vmatpush2.bf16.msra.mxu0 %v6489
    %7075 = vmatprep.subr.bf16.mxu0 %v6480
    %7076 = vmatpush2.bf16.msra.mxu0 %v6479
    %7077 = vmatprep.subr.bf16.mxu0 %v6470
    %7078 = vmatpush2.bf16.msra.mxu0 %v6469
    %7079 = vmatprep.subr.bf16.mxu0 %v6460
    %7080 = vmatpush2.bf16.msra.mxu0 %v6459
    %7081 = vmatprep.subr.bf16.mxu0 %v6450
    %7082 = vmatpush2.bf16.msra.mxu0 %v6449
    %7083 = vmatprep.subr.bf16.mxu0 %v6440
    %7084 = vmatpush2.bf16.msra.mxu0 %v6439
    %7085 = vmatprep.subr.bf16.mxu0 %v6430
    %7086 = vmatpush2.bf16.msra.mxu0 %v6429
    %7087 = vmatprep.subr.bf16.mxu0 %v6420
    %7088 = vmatpush2.bf16.msra.mxu0 %v6419
    %7089 = vmatprep.mubr.bf16.mxu0 %v5568
    %7090 = vmatmul.mubr.bf16.gmra.mxu0 %v5567
    %v7091 = vpop.f32.mrf.mxu0
    %v7092 = vadd.f32 0.0, %v7091
    %v7093 = vpop.f32.mrf.mxu0
    %v7094 = vadd.f32 0.0, %v7093
    %v7095 = vpop.f32.mrf.mxu0
    %v7096 = vadd.f32 0.0, %v7095
    %v7097 = vpop.f32.mrf.mxu0
    %v7098 = vadd.f32 0.0, %v7097
    %7099 = vmatprep.mubr.bf16.mxu0 %v5571
    %7100 = vmatmul.mubr.bf16.gmra.mxu0 %v5570
    %v7101 = vpop.f32.mrf.mxu0
    %v7102 = vadd.f32 0.0, %v7101
    %v7103 = vpop.f32.mrf.mxu0
    %v7104 = vadd.f32 0.0, %v7103
    %v7105 = vpop.f32.mrf.mxu0
    %v7106 = vadd.f32 0.0, %v7105
    %v7107 = vpop.f32.mrf.mxu0
    %v7108 = vadd.f32 0.0, %v7107
    %7109 = vdwg.mxu0
    %7110 = vmatprep.subr.bf16.mxu0 0
    %7111 = vmatpush1.bf16.msra.mxu0 0
    %7112 = vmatprep.subr.bf16.mxu0 0
    %7113 = vmatpush1.bf16.msra.mxu0 0
    %7114 = vmatprep.subr.bf16.mxu0 0
    %7115 = vmatpush1.bf16.msra.mxu0 0
    %7116 = vmatprep.subr.bf16.mxu0 0
    %7117 = vmatpush1.bf16.msra.mxu0 0
    %7118 = vmatprep.subr.bf16.mxu0 0
    %7119 = vmatpush1.bf16.msra.mxu0 0
    %7120 = vmatprep.subr.bf16.mxu0 %v6731
    %7121 = vmatpush1.bf16.msra.mxu0 %v6728
    %7122 = vmatprep.subr.bf16.mxu0 %v6510
    %7123 = vmatpush1.bf16.msra.mxu0 %v6509
    %7124 = vmatprep.subr.bf16.mxu0 %v6500
    %7125 = vmatpush1.bf16.msra.mxu0 %v6499
    %7126 = vmatprep.subr.bf16.mxu0 0
    %7127 = vmatpush2.bf16.msra.mxu0 0
    %7128 = vmatprep.subr.bf16.mxu0 0
    %7129 = vmatpush2.bf16.msra.mxu0 0
    %7130 = vmatprep.subr.bf16.mxu0 0
    %7131 = vmatpush2.bf16.msra.mxu0 0
    %7132 = vmatprep.subr.bf16.mxu0 0
    %7133 = vmatpush2.bf16.msra.mxu0 0
    %7134 = vmatprep.subr.bf16.mxu0 0
    %7135 = vmatpush2.bf16.msra.mxu0 0
    %7136 = vmatprep.subr.bf16.mxu0 0
    %7137 = vmatpush2.bf16.msra.mxu0 0
    %7138 = vmatprep.subr.bf16.mxu0 0
    %7139 = vmatpush2.bf16.msra.mxu0 0
    %7140 = vmatprep.subr.bf16.mxu0 0
    %7141 = vmatpush2.bf16.msra.mxu0 0
    %7142 = vmatprep.mubr.bf16.mxu0 0
    %7143 = vmatmul.mubr.bf16.gmra.mxu0 %v6704
    %v7144 = vpop.f32.mrf.mxu0
    %v7145 = vadd.f32 %v7092, %v7144
    %v7146 = vpop.f32.mrf.mxu0
    %v7147 = vadd.f32 %v7094, %v7146
    %v7148 = vpop.f32.mrf.mxu0
    %v7149 = vadd.f32 %v7096, %v7148
    %v7150 = vpop.f32.mrf.mxu0
    %v7151 = vadd.f32 %v7098, %v7150
    %7152 = vmatprep.mubr.bf16.mxu0 0
    %7153 = vmatmul.mubr.bf16.gmra.mxu0 %v6707
    %v7154 = vpop.f32.mrf.mxu0
    %v7155 = vadd.f32 %v7102, %v7154
    %v7156 = vpop.f32.mrf.mxu0
    %v7157 = vadd.f32 %v7104, %v7156
    %v7158 = vpop.f32.mrf.mxu0
    %v7159 = vadd.f32 %v7106, %v7158
    %v7160 = vpop.f32.mrf.mxu0
    %v7161 = vadd.f32 %v7108, %v7160
    %7162 = vdwg.mxu0
    %7163 = vmatprep.subr.bf16.mxu0 %v6412
    %7164 = vmatpush1.bf16.msra.mxu0 %v6411
    %7165 = vmatprep.subr.bf16.mxu0 %v6402
    %7166 = vmatpush1.bf16.msra.mxu0 %v6401
    %7167 = vmatprep.subr.bf16.mxu0 %v6392
    %7168 = vmatpush1.bf16.msra.mxu0 %v6391
    %7169 = vmatprep.subr.bf16.mxu0 %v6382
    %7170 = vmatpush1.bf16.msra.mxu0 %v6381
    %7171 = vmatprep.subr.bf16.mxu0 %v6372
    %7172 = vmatpush1.bf16.msra.mxu0 %v6371
    %7173 = vmatprep.subr.bf16.mxu0 %v6362
    %7174 = vmatpush1.bf16.msra.mxu0 %v6361
    %7175 = vmatprep.subr.bf16.mxu0 %v6352
    %7176 = vmatpush1.bf16.msra.mxu0 %v6351
    %7177 = vmatprep.subr.bf16.mxu0 %v6342
    %7178 = vmatpush1.bf16.msra.mxu0 %v6341
    %7179 = vmatprep.subr.bf16.mxu0 %v6492
    %7180 = vmatpush2.bf16.msra.mxu0 %v6491
    %7181 = vmatprep.subr.bf16.mxu0 %v6482
    %7182 = vmatpush2.bf16.msra.mxu0 %v6481
    %7183 = vmatprep.subr.bf16.mxu0 %v6472
    %7184 = vmatpush2.bf16.msra.mxu0 %v6471
    %7185 = vmatprep.subr.bf16.mxu0 %v6462
    %7186 = vmatpush2.bf16.msra.mxu0 %v6461
    %7187 = vmatprep.subr.bf16.mxu0 %v6452
    %7188 = vmatpush2.bf16.msra.mxu0 %v6451
    %7189 = vmatprep.subr.bf16.mxu0 %v6442
    %7190 = vmatpush2.bf16.msra.mxu0 %v6441
    %7191 = vmatprep.subr.bf16.mxu0 %v6432
    %7192 = vmatpush2.bf16.msra.mxu0 %v6431
    %7193 = vmatprep.subr.bf16.mxu0 %v6422
    %7194 = vmatpush2.bf16.msra.mxu0 %v6421
    %7195 = vmatprep.mubr.bf16.mxu0 %v5568
    %7196 = vmatmul.mubr.bf16.gmra.mxu0 %v5567
    %v7197 = vpop.f32.mrf.mxu0
    %v7198 = vadd.f32 0.0, %v7197
    %v7199 = vpop.f32.mrf.mxu0
    %v7200 = vadd.f32 0.0, %v7199
    %v7201 = vpop.f32.mrf.mxu0
    %v7202 = vadd.f32 0.0, %v7201
    %v7203 = vpop.f32.mrf.mxu0
    %v7204 = vadd.f32 0.0, %v7203
    %7205 = vmatprep.mubr.bf16.mxu0 %v5571
    %7206 = vmatmul.mubr.bf16.gmra.mxu0 %v5570
    %v7207 = vpop.f32.mrf.mxu0
    %v7208 = vadd.f32 0.0, %v7207
    %v7209 = vpop.f32.mrf.mxu0
    %v7210 = vadd.f32 0.0, %v7209
    %v7211 = vpop.f32.mrf.mxu0
    %v7212 = vadd.f32 0.0, %v7211
    %v7213 = vpop.f32.mrf.mxu0
    %v7214 = vadd.f32 0.0, %v7213
    %7215 = vdwg.mxu0
    %7216 = vmatprep.subr.bf16.mxu0 0
    %7217 = vmatpush1.bf16.msra.mxu0 0
    %7218 = vmatprep.subr.bf16.mxu0 0
    %7219 = vmatpush1.bf16.msra.mxu0 0
    %7220 = vmatprep.subr.bf16.mxu0 0
    %7221 = vmatpush1.bf16.msra.mxu0 0
    %7222 = vmatprep.subr.bf16.mxu0 0
    %7223 = vmatpush1.bf16.msra.mxu0 0
    %7224 = vmatprep.subr.bf16.mxu0 0
    %7225 = vmatpush1.bf16.msra.mxu0 0
    %7226 = vmatprep.subr.bf16.mxu0 %v6737
    %7227 = vmatpush1.bf16.msra.mxu0 %v6734
    %7228 = vmatprep.subr.bf16.mxu0 %v6512
    %7229 = vmatpush1.bf16.msra.mxu0 %v6511
    %7230 = vmatprep.subr.bf16.mxu0 %v6502
    %7231 = vmatpush1.bf16.msra.mxu0 %v6501
    %7232 = vmatprep.subr.bf16.mxu0 0
    %7233 = vmatpush2.bf16.msra.mxu0 0
    %7234 = vmatprep.subr.bf16.mxu0 0
    %7235 = vmatpush2.bf16.msra.mxu0 0
    %7236 = vmatprep.subr.bf16.mxu0 0
    %7237 = vmatpush2.bf16.msra.mxu0 0
    %7238 = vmatprep.subr.bf16.mxu0 0
    %7239 = vmatpush2.bf16.msra.mxu0 0
    %7240 = vmatprep.subr.bf16.mxu0 0
    %7241 = vmatpush2.bf16.msra.mxu0 0
    %7242 = vmatprep.subr.bf16.mxu0 0
    %7243 = vmatpush2.bf16.msra.mxu0 0
    %7244 = vmatprep.subr.bf16.mxu0 0
    %7245 = vmatpush2.bf16.msra.mxu0 0
    %7246 = vmatprep.subr.bf16.mxu0 0
    %7247 = vmatpush2.bf16.msra.mxu0 0
    %7248 = vmatprep.mubr.bf16.mxu0 0
    %7249 = vmatmul.mubr.bf16.gmra.mxu0 %v6704
    %v7250 = vpop.f32.mrf.mxu0
    %v7251 = vadd.f32 %v7198, %v7250
    %v7252 = vpop.f32.mrf.mxu0
    %v7253 = vadd.f32 %v7200, %v7252
    %v7254 = vpop.f32.mrf.mxu0
    %v7255 = vadd.f32 %v7202, %v7254
    %v7256 = vpop.f32.mrf.mxu0
    %v7257 = vadd.f32 %v7204, %v7256
    %7258 = vmatprep.mubr.bf16.mxu0 0
    %7259 = vmatmul.mubr.bf16.gmra.mxu0 %v6707
    %v7260 = vpop.f32.mrf.mxu0
    %v7261 = vadd.f32 %v7208, %v7260
    %v7262 = vpop.f32.mrf.mxu0
    %v7263 = vadd.f32 %v7210, %v7262
    %v7264 = vpop.f32.mrf.mxu0
    %v7265 = vadd.f32 %v7212, %v7264
    %v7266 = vpop.f32.mrf.mxu0
    %v7267 = vadd.f32 %v7214, %v7266
    %7268 = vdwg.mxu0
    %v7269 = vld [vmem:[#allocation8] ss:$2 sm:$0xff]
    %s7270 = scalar_lea.vmem [#allocation8], 16
    %v7271 = vld [vmem:[%s7270] ss:$2 sm:$0x3]
    %v7274 = vlaneseq
    %v7275 = vshrl.u32 %v7274, 7
    %v7276 = vsub.s32 0, %v7275
    %v7277 = vrot.slane %v7269, %v7276
    %v7278 = vlaneseq
    %v7279 = vshrl.u32 %v7278, 7
    %v7280 = vsub.s32 1, %v7279
    %v7281 = vrot.slane %v7269, %v7280
    %v7282 = vlaneseq
    %v7283 = vshrl.u32 %v7282, 7
    %v7284 = vsub.s32 2, %v7283
    %v7285 = vrot.slane %v7269, %v7284
    %v7286 = vlaneseq
    %v7287 = vshrl.u32 %v7286, 7
    %v7288 = vsub.s32 3, %v7287
    %v7289 = vrot.slane %v7269, %v7288
    %v7290 = vlaneseq
    %v7291 = vshrl.u32 %v7290, 7
    %v7292 = vsub.s32 4, %v7291
    %v7293 = vrot.slane %v7269, %v7292
    %v7294 = vlaneseq
    %v7295 = vshrl.u32 %v7294, 7
    %v7296 = vsub.s32 5, %v7295
    %v7297 = vrot.slane %v7269, %v7296
    %v7298 = vlaneseq
    %v7299 = vshrl.u32 %v7298, 7
    %v7300 = vsub.s32 6, %v7299
    %v7301 = vrot.slane %v7269, %v7300
    %v7302 = vlaneseq
    %v7303 = vshrl.u32 %v7302, 7
    %v7304 = vsub.s32 7, %v7303
    %v7305 = vrot.slane %v7269, %v7304
    %v7306 = vlaneseq
    %v7307 = vshrl.u32 %v7306, 7
    %v7308 = vsub.s32 0, %v7307
    %v7309 = vrot.slane %v7271, %v7308
    %v7310 = vlaneseq
    %v7311 = vshrl.u32 %v7310, 7
    %v7312 = vsub.s32 1, %v7311
    %v7313 = vrot.slane %v7271, %v7312
    %s7324 = scalar_lea.vmem [#allocation8], 1
    %v7325 = vld [vmem:[%s7324] ss:$2 sm:$0xff]
    %s7326 = scalar_lea.vmem [#allocation8], 17
    %v7327 = vld [vmem:[%s7326] ss:$2 sm:$0x3]
    %v7330 = vlaneseq
    %v7331 = vshrl.u32 %v7330, 7
    %v7332 = vsub.s32 0, %v7331
    %v7333 = vrot.slane %v7325, %v7332
    %v7334 = vlaneseq
    %v7335 = vshrl.u32 %v7334, 7
    %v7336 = vsub.s32 1, %v7335
    %v7337 = vrot.slane %v7325, %v7336
    %v7338 = vlaneseq
    %v7339 = vshrl.u32 %v7338, 7
    %v7340 = vsub.s32 2, %v7339
    %v7341 = vrot.slane %v7325, %v7340
    %v7342 = vlaneseq
    %v7343 = vshrl.u32 %v7342, 7
    %v7344 = vsub.s32 3, %v7343
    %v7345 = vrot.slane %v7325, %v7344
    %v7346 = vlaneseq
    %v7347 = vshrl.u32 %v7346, 7
    %v7348 = vsub.s32 4, %v7347
    %v7349 = vrot.slane %v7325, %v7348
    %v7350 = vlaneseq
    %v7351 = vshrl.u32 %v7350, 7
    %v7352 = vsub.s32 5, %v7351
    %v7353 = vrot.slane %v7325, %v7352
    %v7354 = vlaneseq
    %v7355 = vshrl.u32 %v7354, 7
    %v7356 = vsub.s32 6, %v7355
    %v7357 = vrot.slane %v7325, %v7356
    %v7358 = vlaneseq
    %v7359 = vshrl.u32 %v7358, 7
    %v7360 = vsub.s32 7, %v7359
    %v7361 = vrot.slane %v7325, %v7360
    %v7362 = vlaneseq
    %v7363 = vshrl.u32 %v7362, 7
    %v7364 = vsub.s32 0, %v7363
    %v7365 = vrot.slane %v7327, %v7364
    %v7366 = vlaneseq
    %v7367 = vshrl.u32 %v7366, 7
    %v7368 = vsub.s32 1, %v7367
    %v7369 = vrot.slane %v7327, %v7368
    %v7380 = vadd.f32 %v5147, %v7277
    %v7381 = vadd.f32 %v5149, %v7281
    %v7382 = vadd.f32 %v5233, %v7285
    %v7383 = vadd.f32 %v5235, %v7289
    %v7384 = vadd.f32 %v5319, %v7293
    %v7385 = vadd.f32 %v5321, %v7297
    %v7386 = vadd.f32 %v5405, %v7301
    %v7387 = vadd.f32 %v5407, %v7305
    %v7388 = vadd.f32 %v5491, %v7309
    %v7389 = vadd.f32 %v5493, %v7313
    %v7390 = vadd.f32 %v5147, %v7333
    %v7391 = vadd.f32 %v5149, %v7337
    %v7392 = vadd.f32 %v5233, %v7341
    %v7393 = vadd.f32 %v5235, %v7345
    %v7394 = vadd.f32 %v5319, %v7349
    %v7395 = vadd.f32 %v5321, %v7353
    %v7396 = vadd.f32 %v5405, %v7357
    %v7397 = vadd.f32 %v5407, %v7361
    %v7398 = vadd.f32 %v5491, %v7365
    %v7399 = vadd.f32 %v5493, %v7369
    %v7400 = vadd.f32 %v5151, %v7277
    %v7401 = vadd.f32 %v5153, %v7281
    %v7402 = vadd.f32 %v5237, %v7285
    %v7403 = vadd.f32 %v5239, %v7289
    %v7404 = vadd.f32 %v5323, %v7293
    %v7405 = vadd.f32 %v5325, %v7297
    %v7406 = vadd.f32 %v5409, %v7301
    %v7407 = vadd.f32 %v5411, %v7305
    %v7408 = vadd.f32 %v5495, %v7309
    %v7409 = vadd.f32 %v5497, %v7313
    %v7410 = vadd.f32 %v5151, %v7333
    %v7411 = vadd.f32 %v5153, %v7337
    %v7412 = vadd.f32 %v5237, %v7341
    %v7413 = vadd.f32 %v5239, %v7345
    %v7414 = vadd.f32 %v5323, %v7349
    %v7415 = vadd.f32 %v5325, %v7353
    %v7416 = vadd.f32 %v5409, %v7357
    %v7417 = vadd.f32 %v5411, %v7361
    %v7418 = vadd.f32 %v5495, %v7365
    %v7419 = vadd.f32 %v5497, %v7369
    %v7420 = vadd.f32 %v7380, %v6827
    %v7421 = vadd.f32 %v7381, %v6829
    %v7422 = vadd.f32 %v7382, %v6933
    %v7423 = vadd.f32 %v7383, %v6935
    %v7424 = vadd.f32 %v7384, %v7039
    %v7425 = vadd.f32 %v7385, %v7041
    %v7426 = vadd.f32 %v7386, %v7145
    %v7427 = vadd.f32 %v7387, %v7147
    %v7428 = vadd.f32 %v7388, %v7251
    %v7429 = vadd.f32 %v7389, %v7253
    %v7430 = vadd.f32 %v7390, %v6831
    %v7431 = vadd.f32 %v7391, %v6833
    %v7432 = vadd.f32 %v7392, %v6937
    %v7433 = vadd.f32 %v7393, %v6939
    %v7434 = vadd.f32 %v7394, %v7043
    %v7435 = vadd.f32 %v7395, %v7045
    %v7436 = vadd.f32 %v7396, %v7149
    %v7437 = vadd.f32 %v7397, %v7151
    %v7438 = vadd.f32 %v7398, %v7255
    %v7439 = vadd.f32 %v7399, %v7257
    %v7440 = vadd.f32 %v7400, %v6837
    %v7441 = vadd.f32 %v7401, %v6839
    %v7442 = vadd.f32 %v7402, %v6943
    %v7443 = vadd.f32 %v7403, %v6945
    %v7444 = vadd.f32 %v7404, %v7049
    %v7445 = vadd.f32 %v7405, %v7051
    %v7446 = vadd.f32 %v7406, %v7155
    %v7447 = vadd.f32 %v7407, %v7157
    %v7448 = vadd.f32 %v7408, %v7261
    %v7449 = vadd.f32 %v7409, %v7263
    %v7450 = vadd.f32 %v7410, %v6841
    %v7451 = vadd.f32 %v7411, %v6843
    %v7452 = vadd.f32 %v7412, %v6947
    %v7453 = vadd.f32 %v7413, %v6949
    %v7454 = vadd.f32 %v7414, %v7053
    %v7455 = vadd.f32 %v7415, %v7055
    %v7456 = vadd.f32 %v7416, %v7159
    %v7457 = vadd.f32 %v7417, %v7161
    %v7458 = vadd.f32 %v7418, %v7265
    %v7459 = vadd.f32 %v7419, %v7267
    %v7460 = vld [vmem:[#allocation16] sm:$0xff]
    %v7461 = vld [vmem:[#allocation16 + $0x8] sm:$0x3]
    %v7464 = vlaneseq
    %v7465 = vshrl.u32 %v7464, 7
    %v7466 = vsub.s32 0, %v7465
    %v7467 = vrot.slane %v7460, %v7466
    %v7468 = vlaneseq
    %v7469 = vshrl.u32 %v7468, 7
    %v7470 = vsub.s32 1, %v7469
    %v7471 = vrot.slane %v7460, %v7470
    %v7472 = vlaneseq
    %v7473 = vshrl.u32 %v7472, 7
    %v7474 = vsub.s32 2, %v7473
    %v7475 = vrot.slane %v7460, %v7474
    %v7476 = vlaneseq
    %v7477 = vshrl.u32 %v7476, 7
    %v7478 = vsub.s32 3, %v7477
    %v7479 = vrot.slane %v7460, %v7478
    %v7480 = vlaneseq
    %v7481 = vshrl.u32 %v7480, 7
    %v7482 = vsub.s32 4, %v7481
    %v7483 = vrot.slane %v7460, %v7482
    %v7484 = vlaneseq
    %v7485 = vshrl.u32 %v7484, 7
    %v7486 = vsub.s32 5, %v7485
    %v7487 = vrot.slane %v7460, %v7486
    %v7488 = vlaneseq
    %v7489 = vshrl.u32 %v7488, 7
    %v7490 = vsub.s32 6, %v7489
    %v7491 = vrot.slane %v7460, %v7490
    %v7492 = vlaneseq
    %v7493 = vshrl.u32 %v7492, 7
    %v7494 = vsub.s32 7, %v7493
    %v7495 = vrot.slane %v7460, %v7494
    %v7496 = vlaneseq
    %v7497 = vshrl.u32 %v7496, 7
    %v7498 = vsub.s32 0, %v7497
    %v7499 = vrot.slane %v7461, %v7498
    %v7500 = vlaneseq
    %v7501 = vshrl.u32 %v7500, 7
    %v7502 = vsub.s32 1, %v7501
    %v7503 = vrot.slane %v7461, %v7502
    %v7514 = vadd.f32 %v7420, %v7467
    %v7515 = vadd.f32 %v7421, %v7471
    %v7516 = vadd.f32 %v7422, %v7475
    %v7517 = vadd.f32 %v7423, %v7479
    %v7518 = vadd.f32 %v7424, %v7483
    %v7519 = vadd.f32 %v7425, %v7487
    %v7520 = vadd.f32 %v7426, %v7491
    %v7521 = vadd.f32 %v7427, %v7495
    %v7522 = vadd.f32 %v7428, %v7499
    %v7523 = vadd.f32 %v7429, %v7503
    %v7524 = vadd.f32 %v7430, %v7467
    %v7525 = vadd.f32 %v7431, %v7471
    %v7526 = vadd.f32 %v7432, %v7475
    %v7527 = vadd.f32 %v7433, %v7479
    %v7528 = vadd.f32 %v7434, %v7483
    %v7529 = vadd.f32 %v7435, %v7487
    %v7530 = vadd.f32 %v7436, %v7491
    %v7531 = vadd.f32 %v7437, %v7495
    %v7532 = vadd.f32 %v7438, %v7499
    %v7533 = vadd.f32 %v7439, %v7503
    %v7534 = vadd.f32 %v7440, %v7467
    %v7535 = vadd.f32 %v7441, %v7471
    %v7536 = vadd.f32 %v7442, %v7475
    %v7537 = vadd.f32 %v7443, %v7479
    %v7538 = vadd.f32 %v7444, %v7483
    %v7539 = vadd.f32 %v7445, %v7487
    %v7540 = vadd.f32 %v7446, %v7491
    %v7541 = vadd.f32 %v7447, %v7495
    %v7542 = vadd.f32 %v7448, %v7499
    %v7543 = vadd.f32 %v7449, %v7503
    %v7544 = vadd.f32 %v7450, %v7467
    %v7545 = vadd.f32 %v7451, %v7471
    %v7546 = vadd.f32 %v7452, %v7475
    %v7547 = vadd.f32 %v7453, %v7479
    %v7548 = vadd.f32 %v7454, %v7483
    %v7549 = vadd.f32 %v7455, %v7487
    %v7550 = vadd.f32 %v7456, %v7491
    %v7551 = vadd.f32 %v7457, %v7495
    %v7552 = vadd.f32 %v7458, %v7499
    %v7553 = vadd.f32 %v7459, %v7503
    %v7554 = vtanh.pop %v7514
    %v7555 = vtanh.pop %v7515
    %v7556 = vtanh.pop %v7516
    %v7557 = vtanh.pop %v7517
    %v7558 = vtanh.pop %v7518
    %v7559 = vtanh.pop %v7519
    %v7560 = vtanh.pop %v7520
    %v7561 = vtanh.pop %v7521
    %v7562 = vtanh.pop %v7522
    %v7563 = vtanh.pop %v7523
    %v7564 = vtanh.pop %v7524
    %v7565 = vtanh.pop %v7525
    %v7566 = vtanh.pop %v7526
    %v7567 = vtanh.pop %v7527
    %v7568 = vtanh.pop %v7528
    %v7569 = vtanh.pop %v7529
    %v7570 = vtanh.pop %v7530
    %v7571 = vtanh.pop %v7531
    %v7572 = vtanh.pop %v7532
    %v7573 = vtanh.pop %v7533
    %v7574 = vtanh.pop %v7534
    %v7575 = vtanh.pop %v7535
    %v7576 = vtanh.pop %v7536
    %v7577 = vtanh.pop %v7537
    %v7578 = vtanh.pop %v7538
    %v7579 = vtanh.pop %v7539
    %v7580 = vtanh.pop %v7540
    %v7581 = vtanh.pop %v7541
    %v7582 = vtanh.pop %v7542
    %v7583 = vtanh.pop %v7543
    %v7584 = vtanh.pop %v7544
    %v7585 = vtanh.pop %v7545
    %v7586 = vtanh.pop %v7546
    %v7587 = vtanh.pop %v7547
    %v7588 = vtanh.pop %v7548
    %v7589 = vtanh.pop %v7549
    %v7590 = vtanh.pop %v7550
    %v7591 = vtanh.pop %v7551
    %v7592 = vtanh.pop %v7552
    %v7593 = vtanh.pop %v7553
    %v7594 = vrot.slane %v7554, 4
    %v7595 = vmax.f32 %v7554, %v7594
    %v7596 = vrot.slane %v7595, 2
    %v7597 = vmax.f32 %v7595, %v7596
    %v7598 = vrot.slane %v7597, 1
    %v7599 = vmax.f32 %v7597, %v7598
    %v7600 = vrot.slane %v7555, 4
    %v7601 = vmax.f32 %v7555, %v7600
    %v7602 = vrot.slane %v7601, 2
    %v7603 = vmax.f32 %v7601, %v7602
    %v7604 = vrot.slane %v7603, 1
    %v7605 = vmax.f32 %v7603, %v7604
    %v7606 = vrot.slane %v7556, 4
    %v7607 = vmax.f32 %v7556, %v7606
    %v7608 = vrot.slane %v7607, 2
    %v7609 = vmax.f32 %v7607, %v7608
    %v7610 = vrot.slane %v7609, 1
    %v7611 = vmax.f32 %v7609, %v7610
    %v7612 = vrot.slane %v7557, 4
    %v7613 = vmax.f32 %v7557, %v7612
    %v7614 = vrot.slane %v7613, 2
    %v7615 = vmax.f32 %v7613, %v7614
    %v7616 = vrot.slane %v7615, 1
    %v7617 = vmax.f32 %v7615, %v7616
    %v7618 = vrot.slane %v7558, 4
    %v7619 = vmax.f32 %v7558, %v7618
    %v7620 = vrot.slane %v7619, 2
    %v7621 = vmax.f32 %v7619, %v7620
    %v7622 = vrot.slane %v7621, 1
    %v7623 = vmax.f32 %v7621, %v7622
    %v7624 = vrot.slane %v7559, 4
    %v7625 = vmax.f32 %v7559, %v7624
    %v7626 = vrot.slane %v7625, 2
    %v7627 = vmax.f32 %v7625, %v7626
    %v7628 = vrot.slane %v7627, 1
    %v7629 = vmax.f32 %v7627, %v7628
    %v7630 = vrot.slane %v7560, 4
    %v7631 = vmax.f32 %v7560, %v7630
    %v7632 = vrot.slane %v7631, 2
    %v7633 = vmax.f32 %v7631, %v7632
    %v7634 = vrot.slane %v7633, 1
    %v7635 = vmax.f32 %v7633, %v7634
    %v7636 = vrot.slane %v7561, 4
    %v7637 = vmax.f32 %v7561, %v7636
    %v7638 = vrot.slane %v7637, 2
    %v7639 = vmax.f32 %v7637, %v7638
    %v7640 = vrot.slane %v7639, 1
    %v7641 = vmax.f32 %v7639, %v7640
    %v7642 = vrot.slane %v7562, 4
    %v7643 = vmax.f32 %v7562, %v7642
    %v7644 = vrot.slane %v7643, 2
    %v7645 = vmax.f32 %v7643, %v7644
    %v7646 = vrot.slane %v7645, 1
    %v7647 = vmax.f32 %v7645, %v7646
    %vm7648 = vcmask 392192
    %v7649 = vsel %vm7648, %v7563, -inf
    %v7650 = vrot.slane %v7649, 4
    %v7651 = vmax.f32 %v7649, %v7650
    %v7652 = vrot.slane %v7651, 2
    %v7653 = vmax.f32 %v7651, %v7652
    %v7654 = vrot.slane %v7653, 1
    %v7655 = vmax.f32 %v7653, %v7654
    %v7656 = vrot.slane %v7564, 4
    %v7657 = vmax.f32 %v7564, %v7656
    %v7658 = vrot.slane %v7657, 2
    %v7659 = vmax.f32 %v7657, %v7658
    %v7660 = vrot.slane %v7659, 1
    %v7661 = vmax.f32 %v7659, %v7660
    %v7662 = vrot.slane %v7565, 4
    %v7663 = vmax.f32 %v7565, %v7662
    %v7664 = vrot.slane %v7663, 2
    %v7665 = vmax.f32 %v7663, %v7664
    %v7666 = vrot.slane %v7665, 1
    %v7667 = vmax.f32 %v7665, %v7666
    %v7668 = vrot.slane %v7566, 4
    %v7669 = vmax.f32 %v7566, %v7668
    %v7670 = vrot.slane %v7669, 2
    %v7671 = vmax.f32 %v7669, %v7670
    %v7672 = vrot.slane %v7671, 1
    %v7673 = vmax.f32 %v7671, %v7672
    %v7674 = vrot.slane %v7567, 4
    %v7675 = vmax.f32 %v7567, %v7674
    %v7676 = vrot.slane %v7675, 2
    %v7677 = vmax.f32 %v7675, %v7676
    %v7678 = vrot.slane %v7677, 1
    %v7679 = vmax.f32 %v7677, %v7678
    %v7680 = vrot.slane %v7568, 4
    %v7681 = vmax.f32 %v7568, %v7680
    %v7682 = vrot.slane %v7681, 2
    %v7683 = vmax.f32 %v7681, %v7682
    %v7684 = vrot.slane %v7683, 1
    %v7685 = vmax.f32 %v7683, %v7684
    %v7686 = vrot.slane %v7569, 4
    %v7687 = vmax.f32 %v7569, %v7686
    %v7688 = vrot.slane %v7687, 2
    %v7689 = vmax.f32 %v7687, %v7688
    %v7690 = vrot.slane %v7689, 1
    %v7691 = vmax.f32 %v7689, %v7690
    %v7692 = vrot.slane %v7570, 4
    %v7693 = vmax.f32 %v7570, %v7692
    %v7694 = vrot.slane %v7693, 2
    %v7695 = vmax.f32 %v7693, %v7694
    %v7696 = vrot.slane %v7695, 1
    %v7697 = vmax.f32 %v7695, %v7696
    %v7698 = vrot.slane %v7571, 4
    %v7699 = vmax.f32 %v7571, %v7698
    %v7700 = vrot.slane %v7699, 2
    %v7701 = vmax.f32 %v7699, %v7700
    %v7702 = vrot.slane %v7701, 1
    %v7703 = vmax.f32 %v7701, %v7702
    %v7704 = vrot.slane %v7572, 4
    %v7705 = vmax.f32 %v7572, %v7704
    %v7706 = vrot.slane %v7705, 2
    %v7707 = vmax.f32 %v7705, %v7706
    %v7708 = vrot.slane %v7707, 1
    %v7709 = vmax.f32 %v7707, %v7708
    %v7710 = vsel %vm7648, %v7573, -inf
    %v7711 = vrot.slane %v7710, 4
    %v7712 = vmax.f32 %v7710, %v7711
    %v7713 = vrot.slane %v7712, 2
    %v7714 = vmax.f32 %v7712, %v7713
    %v7715 = vrot.slane %v7714, 1
    %v7716 = vmax.f32 %v7714, %v7715
    %v7717 = vrot.slane %v7574, 4
    %v7718 = vmax.f32 %v7574, %v7717
    %v7719 = vrot.slane %v7718, 2
    %v7720 = vmax.f32 %v7718, %v7719
    %v7721 = vrot.slane %v7720, 1
    %v7722 = vmax.f32 %v7720, %v7721
    %v7723 = vrot.slane %v7575, 4
    %v7724 = vmax.f32 %v7575, %v7723
    %v7725 = vrot.slane %v7724, 2
    %v7726 = vmax.f32 %v7724, %v7725
    %v7727 = vrot.slane %v7726, 1
    %v7728 = vmax.f32 %v7726, %v7727
    %v7729 = vrot.slane %v7576, 4
    %v7730 = vmax.f32 %v7576, %v7729
    %v7731 = vrot.slane %v7730, 2
    %v7732 = vmax.f32 %v7730, %v7731
    %v7733 = vrot.slane %v7732, 1
    %v7734 = vmax.f32 %v7732, %v7733
    %v7735 = vrot.slane %v7577, 4
    %v7736 = vmax.f32 %v7577, %v7735
    %v7737 = vrot.slane %v7736, 2
    %v7738 = vmax.f32 %v7736, %v7737
    %v7739 = vrot.slane %v7738, 1
    %v7740 = vmax.f32 %v7738, %v7739
    %v7741 = vrot.slane %v7578, 4
    %v7742 = vmax.f32 %v7578, %v7741
    %v7743 = vrot.slane %v7742, 2
    %v7744 = vmax.f32 %v7742, %v7743
    %v7745 = vrot.slane %v7744, 1
    %v7746 = vmax.f32 %v7744, %v7745
    %v7747 = vrot.slane %v7579, 4
    %v7748 = vmax.f32 %v7579, %v7747
    %v7749 = vrot.slane %v7748, 2
    %v7750 = vmax.f32 %v7748, %v7749
    %v7751 = vrot.slane %v7750, 1
    %v7752 = vmax.f32 %v7750, %v7751
    %v7753 = vrot.slane %v7580, 4
    %v7754 = vmax.f32 %v7580, %v7753
    %v7755 = vrot.slane %v7754, 2
    %v7756 = vmax.f32 %v7754, %v7755
    %v7757 = vrot.slane %v7756, 1
    %v7758 = vmax.f32 %v7756, %v7757
    %v7759 = vrot.slane %v7581, 4
    %v7760 = vmax.f32 %v7581, %v7759
    %v7761 = vrot.slane %v7760, 2
    %v7762 = vmax.f32 %v7760, %v7761
    %v7763 = vrot.slane %v7762, 1
    %v7764 = vmax.f32 %v7762, %v7763
    %v7765 = vrot.slane %v7582, 4
    %v7766 = vmax.f32 %v7582, %v7765
    %v7767 = vrot.slane %v7766, 2
    %v7768 = vmax.f32 %v7766, %v7767
    %v7769 = vrot.slane %v7768, 1
    %v7770 = vmax.f32 %v7768, %v7769
    %v7771 = vsel %vm7648, %v7583, -inf
    %v7772 = vrot.slane %v7771, 4
    %v7773 = vmax.f32 %v7771, %v7772
    %v7774 = vrot.slane %v7773, 2
    %v7775 = vmax.f32 %v7773, %v7774
    %v7776 = vrot.slane %v7775, 1
    %v7777 = vmax.f32 %v7775, %v7776
    %v7778 = vrot.slane %v7584, 4
    %v7779 = vmax.f32 %v7584, %v7778
    %v7780 = vrot.slane %v7779, 2
    %v7781 = vmax.f32 %v7779, %v7780
    %v7782 = vrot.slane %v7781, 1
    %v7783 = vmax.f32 %v7781, %v7782
    %v7784 = vrot.slane %v7585, 4
    %v7785 = vmax.f32 %v7585, %v7784
    %v7786 = vrot.slane %v7785, 2
    %v7787 = vmax.f32 %v7785, %v7786
    %v7788 = vrot.slane %v7787, 1
    %v7789 = vmax.f32 %v7787, %v7788
    %v7790 = vrot.slane %v7586, 4
    %v7791 = vmax.f32 %v7586, %v7790
    %v7792 = vrot.slane %v7791, 2
    %v7793 = vmax.f32 %v7791, %v7792
    %v7794 = vrot.slane %v7793, 1
    %v7795 = vmax.f32 %v7793, %v7794
    %v7796 = vrot.slane %v7587, 4
    %v7797 = vmax.f32 %v7587, %v7796
    %v7798 = vrot.slane %v7797, 2
    %v7799 = vmax.f32 %v7797, %v7798
    %v7800 = vrot.slane %v7799, 1
    %v7801 = vmax.f32 %v7799, %v7800
    %v7802 = vrot.slane %v7588, 4
    %v7803 = vmax.f32 %v7588, %v7802
    %v7804 = vrot.slane %v7803, 2
    %v7805 = vmax.f32 %v7803, %v7804
    %v7806 = vrot.slane %v7805, 1
    %v7807 = vmax.f32 %v7805, %v7806
    %v7808 = vrot.slane %v7589, 4
    %v7809 = vmax.f32 %v7589, %v7808
    %v7810 = vrot.slane %v7809, 2
    %v7811 = vmax.f32 %v7809, %v7810
    %v7812 = vrot.slane %v7811, 1
    %v7813 = vmax.f32 %v7811, %v7812
    %v7814 = vrot.slane %v7590, 4
    %v7815 = vmax.f32 %v7590, %v7814
    %v7816 = vrot.slane %v7815, 2
    %v7817 = vmax.f32 %v7815, %v7816
    %v7818 = vrot.slane %v7817, 1
    %v7819 = vmax.f32 %v7817, %v7818
    %v7820 = vrot.slane %v7591, 4
    %v7821 = vmax.f32 %v7591, %v7820
    %v7822 = vrot.slane %v7821, 2
    %v7823 = vmax.f32 %v7821, %v7822
    %v7824 = vrot.slane %v7823, 1
    %v7825 = vmax.f32 %v7823, %v7824
    %v7826 = vrot.slane %v7592, 4
    %v7827 = vmax.f32 %v7592, %v7826
    %v7828 = vrot.slane %v7827, 2
    %v7829 = vmax.f32 %v7827, %v7828
    %v7830 = vrot.slane %v7829, 1
    %v7831 = vmax.f32 %v7829, %v7830
    %v7832 = vsel %vm7648, %v7593, -inf
    %v7833 = vrot.slane %v7832, 4
    %v7834 = vmax.f32 %v7832, %v7833
    %v7835 = vrot.slane %v7834, 2
    %v7836 = vmax.f32 %v7834, %v7835
    %v7837 = vrot.slane %v7836, 1
    %v7838 = vmax.f32 %v7836, %v7837
    %v7839 = vpack.c.bf16 %v7599, %v7599
    %v7840 = vpack.c.bf16 %v7605, %v7605
    %v7841 = vpack.c.bf16 %v7611, %v7611
    %v7842 = vpack.c.bf16 %v7617, %v7617
    %v7843 = vpack.c.bf16 %v7623, %v7623
    %v7844 = vpack.c.bf16 %v7629, %v7629
    %v7845 = vpack.c.bf16 %v7635, %v7635
    %v7846 = vpack.c.bf16 %v7641, %v7641
    %v7847 = vpack.c.bf16 %v7647, %v7647
    %v7848 = vpack.c.bf16 %v7655, %v7655
    %v7849 = vpack.c.bf16 %v7661, %v7661
    %v7850 = vpack.c.bf16 %v7667, %v7667
    %v7851 = vpack.c.bf16 %v7673, %v7673
    %v7852 = vpack.c.bf16 %v7679, %v7679
    %v7853 = vpack.c.bf16 %v7685, %v7685
    %v7854 = vpack.c.bf16 %v7691, %v7691
    %v7855 = vpack.c.bf16 %v7697, %v7697
    %v7856 = vpack.c.bf16 %v7703, %v7703
    %v7857 = vpack.c.bf16 %v7709, %v7709
    %v7858 = vpack.c.bf16 %v7716, %v7716
    %v7859 = vpack.c.bf16 %v7722, %v7722
    %v7860 = vpack.c.bf16 %v7728, %v7728
    %v7861 = vpack.c.bf16 %v7734, %v7734
    %v7862 = vpack.c.bf16 %v7740, %v7740
    %v7863 = vpack.c.bf16 %v7746, %v7746
    %v7864 = vpack.c.bf16 %v7752, %v7752
    %v7865 = vpack.c.bf16 %v7758, %v7758
    %v7866 = vpack.c.bf16 %v7764, %v7764
    %v7867 = vpack.c.bf16 %v7770, %v7770
    %v7868 = vpack.c.bf16 %v7777, %v7777
    %v7869 = vpack.c.bf16 %v7783, %v7783
    %v7870 = vpack.c.bf16 %v7789, %v7789
    %v7871 = vpack.c.bf16 %v7795, %v7795
    %v7872 = vpack.c.bf16 %v7801, %v7801
    %v7873 = vpack.c.bf16 %v7807, %v7807
    %v7874 = vpack.c.bf16 %v7813, %v7813
    %v7875 = vpack.c.bf16 %v7819, %v7819
    %v7876 = vpack.c.bf16 %v7825, %v7825
    %v7877 = vpack.c.bf16 %v7831, %v7831
    %v7878 = vpack.c.bf16 %v7838, %v7838
    %v7879 = vld [vmem:[#allocation17] sm:$0xff]
    %v7880 = vld [vmem:[#allocation17 + $0x8] sm:$0xff]
    %v7881 = vld [vmem:[#allocation17 + $0x10] sm:$0xff]
    %v7882 = vld [vmem:[#allocation17 + $0x18] sm:$0xff]
    %v7883 = vld [vmem:[#allocation17 + $0x20] sm:$0xff]
    %v7884 = vld [vmem:[#allocation17 + $0x28] sm:$0xff]
    %v7885 = vld [vmem:[#allocation17 + $0x30] sm:$0xff]
    %v7886 = vld [vmem:[#allocation17 + $0x38] sm:$0xff]
    %v7887 = vld [vmem:[#allocation17 + $0x40] sm:$0xff]
    %v7888 = vld [vmem:[#allocation17 + $0x48] sm:$0xff]
    %v7889 = vld [vmem:[#allocation17 + $0x50] sm:$0xff]
    %v7890 = vld [vmem:[#allocation17 + $0x58] sm:$0xff]
    %v7891 = vld [vmem:[#allocation17 + $0x60] sm:$0xff]
    %v7892 = vld [vmem:[#allocation17 + $0x68] sm:$0xff]
    %v7893 = vld [vmem:[#allocation17 + $0x70] sm:$0xff]
    %v7894 = vld [vmem:[#allocation17 + $0x78] sm:$0xff]
    %v7895 = vld [vmem:[#allocation17 + $0x80] sm:$0xff]
    %v7896 = vld [vmem:[#allocation17 + $0x88] sm:$0xff]
    %v7897 = vld [vmem:[#allocation17 + $0x90] sm:$0xff]
    %v7898 = vld [vmem:[#allocation17 + $0x98] sm:$0xff]
    %v7899 = vld [vmem:[#allocation17 + $0xa0] sm:$0xff]
    %v7900 = vld [vmem:[#allocation17 + $0xa8] sm:$0xff]
    %v7901 = vld [vmem:[#allocation17 + $0xb0] sm:$0xff]
    %v7902 = vld [vmem:[#allocation17 + $0xb8] sm:$0xff]
    %v7903 = vld [vmem:[#allocation17 + $0xc0] sm:$0xff]
    %v7904 = vld [vmem:[#allocation17 + $0xc8] sm:$0xff]
    %v7905 = vld [vmem:[#allocation17 + $0xd0] sm:$0xff]
    %v7906 = vld [vmem:[#allocation17 + $0xd8] sm:$0xff]
    %v7907 = vld [vmem:[#allocation17 + $0xe0] sm:$0xff]
    %v7908 = vld [vmem:[#allocation17 + $0xe8] sm:$0xff]
    %v7909 = vld [vmem:[#allocation17 + $0xf0] sm:$0xff]
    %v7910 = vld [vmem:[#allocation17 + $0xf8] sm:$0xff]
    %v7911 = vld [vmem:[#allocation17 + $0x100] sm:$0xff]
    %v7912 = vld [vmem:[#allocation17 + $0x108] sm:$0xff]
    %v7913 = vld [vmem:[#allocation17 + $0x110] sm:$0xff]
    %v7914 = vld [vmem:[#allocation17 + $0x118] sm:$0xff]
    %v7915 = vld [vmem:[#allocation17 + $0x120] sm:$0xff]
    %v7916 = vld [vmem:[#allocation17 + $0x128] sm:$0xff]
    %v7917 = vld [vmem:[#allocation17 + $0x130] sm:$0xff]
    %v7918 = vld [vmem:[#allocation17 + $0x138] sm:$0xff]
    %v7919 = vld [vmem:[#allocation17 + $0x140] sm:$0xff]
    %v7920 = vld [vmem:[#allocation17 + $0x148] sm:$0xff]
    %v7921 = vld [vmem:[#allocation17 + $0x150] sm:$0xff]
    %v7922 = vld [vmem:[#allocation17 + $0x158] sm:$0xff]
    %v7923 = vld [vmem:[#allocation17 + $0x160] sm:$0xff]
    %v7924 = vld [vmem:[#allocation17 + $0x168] sm:$0xff]
    %v7925 = vld [vmem:[#allocation17 + $0x170] sm:$0xff]
    %v7926 = vld [vmem:[#allocation17 + $0x178] sm:$0xff]
    %v7927 = vld [vmem:[#allocation17 + $0x180] sm:$0xff]
    %v7928 = vld [vmem:[#allocation17 + $0x188] sm:$0xff]
    %v7929 = vld [vmem:[#allocation17 + $0x190] sm:$0xff]
    %v7930 = vld [vmem:[#allocation17 + $0x198] sm:$0xff]
    %v7931 = vld [vmem:[#allocation17 + $0x1a0] sm:$0xff]
    %v7932 = vld [vmem:[#allocation17 + $0x1a8] sm:$0xff]
    %v7933 = vld [vmem:[#allocation17 + $0x1b0] sm:$0xff]
    %v7934 = vld [vmem:[#allocation17 + $0x1b8] sm:$0xff]
    %v7935 = vld [vmem:[#allocation17 + $0x1c0] sm:$0xff]
    %v7936 = vld [vmem:[#allocation17 + $0x1c8] sm:$0xff]
    %v7937 = vld [vmem:[#allocation17 + $0x1d0] sm:$0xff]
    %v7938 = vld [vmem:[#allocation17 + $0x1d8] sm:$0xff]
    %v7939 = vld [vmem:[#allocation17 + $0x1e0] sm:$0xff]
    %v7940 = vld [vmem:[#allocation17 + $0x1e8] sm:$0xff]
    %v7941 = vld [vmem:[#allocation17 + $0x1f0] sm:$0xff]
    %v7942 = vld [vmem:[#allocation17 + $0x1f8] sm:$0xff]
    %v7943 = vld [vmem:[#allocation17 + $0x200] sm:$0xff]
    %v7944 = vld [vmem:[#allocation17 + $0x208] sm:$0xff]
    %v7945 = vld [vmem:[#allocation17 + $0x210] sm:$0xff]
    %v7946 = vld [vmem:[#allocation17 + $0x218] sm:$0xff]
    %v7947 = vld [vmem:[#allocation17 + $0x220] sm:$0xff]
    %v7948 = vld [vmem:[#allocation17 + $0x228] sm:$0xff]
    %v7949 = vld [vmem:[#allocation17 + $0x230] sm:$0xff]
    %v7950 = vld [vmem:[#allocation17 + $0x238] sm:$0xff]
    %v7951 = vld [vmem:[#allocation17 + $0x240] sm:$0xff]
    %v7952 = vld [vmem:[#allocation17 + $0x248] sm:$0xff]
    %v7953 = vld [vmem:[#allocation17 + $0x250] sm:$0xff]
    %v7954 = vld [vmem:[#allocation17 + $0x258] sm:$0xff]
    %v7955 = vld [vmem:[#allocation17 + $0x260] sm:$0xff]
    %v7956 = vld [vmem:[#allocation17 + $0x268] sm:$0xff]
    %v7957 = vld [vmem:[#allocation17 + $0x270] sm:$0xff]
    %v7958 = vld [vmem:[#allocation17 + $0x278] sm:$0xff]
    %v7959 = vld [vmem:[#allocation17 + $0x280] sm:$0xff]
    %v7960 = vld [vmem:[#allocation17 + $0x288] sm:$0xff]
    %v7961 = vld [vmem:[#allocation17 + $0x290] sm:$0xff]
    %v7962 = vld [vmem:[#allocation17 + $0x298] sm:$0xff]
    %v7963 = vld [vmem:[#allocation17 + $0x2a0] sm:$0xff]
    %v7964 = vld [vmem:[#allocation17 + $0x2a8] sm:$0xff]
    %v7965 = vld [vmem:[#allocation17 + $0x2b0] sm:$0xff]
    %v7966 = vld [vmem:[#allocation17 + $0x2b8] sm:$0xff]
    %v7967 = vld [vmem:[#allocation17 + $0x2c0] sm:$0xff]
    %v7968 = vld [vmem:[#allocation17 + $0x2c8] sm:$0xff]
    %v7969 = vld [vmem:[#allocation17 + $0x2d0] sm:$0xff]
    %v7970 = vld [vmem:[#allocation17 + $0x2d8] sm:$0xff]
    %v7971 = vld [vmem:[#allocation17 + $0x2e0] sm:$0xff]
    %v7972 = vld [vmem:[#allocation17 + $0x2e8] sm:$0xff]
    %v7973 = vld [vmem:[#allocation17 + $0x2f0] sm:$0xff]
    %v7974 = vld [vmem:[#allocation17 + $0x2f8] sm:$0xff]
    %v7975 = vld [vmem:[#allocation17 + $0x300] sm:$0xff]
    %v7976 = vld [vmem:[#allocation17 + $0x308] sm:$0xff]
    %v7977 = vld [vmem:[#allocation17 + $0x310] sm:$0xff]
    %v7978 = vld [vmem:[#allocation17 + $0x318] sm:$0xff]
    %v7979 = vld [vmem:[#allocation17 + $0x320] sm:$0xff]
    %v7980 = vld [vmem:[#allocation17 + $0x328] sm:$0xff]
    %v7981 = vld [vmem:[#allocation17 + $0x330] sm:$0xff]
    %v7982 = vld [vmem:[#allocation17 + $0x338] sm:$0xff]
    %v7983 = vld [vmem:[#allocation17 + $0x340] sm:$0xff]
    %v7984 = vld [vmem:[#allocation17 + $0x348] sm:$0xff]
    %v7985 = vld [vmem:[#allocation17 + $0x350] sm:$0xff]
    %v7986 = vld [vmem:[#allocation17 + $0x358] sm:$0xff]
    %v7987 = vld [vmem:[#allocation17 + $0x360] sm:$0xff]
    %v7988 = vld [vmem:[#allocation17 + $0x368] sm:$0xff]
    %v7989 = vld [vmem:[#allocation17 + $0x370] sm:$0xff]
    %v7990 = vld [vmem:[#allocation17 + $0x378] sm:$0xff]
    %v7991 = vld [vmem:[#allocation17 + $0x380] sm:$0xff]
    %v7992 = vld [vmem:[#allocation17 + $0x388] sm:$0xff]
    %v7993 = vld [vmem:[#allocation17 + $0x390] sm:$0xff]
    %v7994 = vld [vmem:[#allocation17 + $0x398] sm:$0xff]
    %v7995 = vld [vmem:[#allocation17 + $0x3a0] sm:$0xff]
    %v7996 = vld [vmem:[#allocation17 + $0x3a8] sm:$0xff]
    %v7997 = vld [vmem:[#allocation17 + $0x3b0] sm:$0xff]
    %v7998 = vld [vmem:[#allocation17 + $0x3b8] sm:$0xff]
    %v7999 = vld [vmem:[#allocation17 + $0x3c0] sm:$0xff]
    %v8000 = vld [vmem:[#allocation17 + $0x3c8] sm:$0xff]
    %v8001 = vld [vmem:[#allocation17 + $0x3d0] sm:$0xff]
    %v8002 = vld [vmem:[#allocation17 + $0x3d8] sm:$0xff]
    %v8003 = vld [vmem:[#allocation17 + $0x3e0] sm:$0xff]
    %v8004 = vld [vmem:[#allocation17 + $0x3e8] sm:$0xff]
    %v8005 = vld [vmem:[#allocation17 + $0x3f0] sm:$0xff]
    %v8006 = vld [vmem:[#allocation17 + $0x3f8] sm:$0xff]
    %v8007 = vld [vmem:[#allocation17 + $0x400] sm:$0xff]
    %v8008 = vld [vmem:[#allocation17 + $0x408] sm:$0xff]
    %v8009 = vld [vmem:[#allocation17 + $0x410] sm:$0xff]
    %v8010 = vld [vmem:[#allocation17 + $0x418] sm:$0xff]
    %v8011 = vld [vmem:[#allocation17 + $0x420] sm:$0xff]
    %v8012 = vld [vmem:[#allocation17 + $0x428] sm:$0xff]
    %v8013 = vld [vmem:[#allocation17 + $0x430] sm:$0xff]
    %v8014 = vld [vmem:[#allocation17 + $0x438] sm:$0xff]
    %v8015 = vld [vmem:[#allocation17 + $0x440] sm:$0xff]
    %v8016 = vld [vmem:[#allocation17 + $0x448] sm:$0xff]
    %v8017 = vld [vmem:[#allocation17 + $0x450] sm:$0xff]
    %v8018 = vld [vmem:[#allocation17 + $0x458] sm:$0xff]
    %v8019 = vld [vmem:[#allocation17 + $0x460] sm:$0xff]
    %v8020 = vld [vmem:[#allocation17 + $0x468] sm:$0xff]
    %v8021 = vld [vmem:[#allocation17 + $0x470] sm:$0xff]
    %v8022 = vld [vmem:[#allocation17 + $0x478] sm:$0xff]
    %v8023 = vld [vmem:[#allocation17 + $0x480] sm:$0xff]
    %v8024 = vld [vmem:[#allocation17 + $0x488] sm:$0xff]
    %v8025 = vld [vmem:[#allocation17 + $0x490] sm:$0xff]
    %v8026 = vld [vmem:[#allocation17 + $0x498] sm:$0xff]
    %v8027 = vld [vmem:[#allocation17 + $0x4a0] sm:$0xff]
    %v8028 = vld [vmem:[#allocation17 + $0x4a8] sm:$0xff]
    %v8029 = vld [vmem:[#allocation17 + $0x4b0] sm:$0xff]
    %v8030 = vld [vmem:[#allocation17 + $0x4b8] sm:$0xff]
    %v8031 = vld [vmem:[#allocation17 + $0x4c0] sm:$0xff]
    %v8032 = vld [vmem:[#allocation17 + $0x4c8] sm:$0xff]
    %v8033 = vld [vmem:[#allocation17 + $0x4d0] sm:$0xff]
    %v8034 = vld [vmem:[#allocation17 + $0x4d8] sm:$0xff]
    %v8035 = vld [vmem:[#allocation17 + $0x4e0] sm:$0xff]
    %v8036 = vld [vmem:[#allocation17 + $0x4e8] sm:$0xff]
    %v8037 = vld [vmem:[#allocation17 + $0x4f0] sm:$0xff]
    %v8038 = vld [vmem:[#allocation17 + $0x4f8] sm:$0xff]
    %v8039 = vld [vmem:[#allocation17 + $0x500] sm:$0xff]
    %v8040 = vld [vmem:[#allocation17 + $0x508] sm:$0xff]
    %v8041 = vld [vmem:[#allocation17 + $0x510] sm:$0xff]
    %v8042 = vld [vmem:[#allocation17 + $0x518] sm:$0xff]
    %v8043 = vld [vmem:[#allocation17 + $0x520] sm:$0xff]
    %v8044 = vld [vmem:[#allocation17 + $0x528] sm:$0xff]
    %v8045 = vld [vmem:[#allocation17 + $0x530] sm:$0xff]
    %v8046 = vld [vmem:[#allocation17 + $0x538] sm:$0xff]
    %v8047 = vld [vmem:[#allocation17 + $0x540] sm:$0xff]
    %v8048 = vld [vmem:[#allocation17 + $0x548] sm:$0xff]
    %v8049 = vld [vmem:[#allocation17 + $0x550] sm:$0xff]
    %v8050 = vld [vmem:[#allocation17 + $0x558] sm:$0xff]
    %v8051 = vld [vmem:[#allocation17 + $0x560] sm:$0xff]
    %v8052 = vld [vmem:[#allocation17 + $0x568] sm:$0xff]
    %v8053 = vld [vmem:[#allocation17 + $0x570] sm:$0xff]
    %v8054 = vld [vmem:[#allocation17 + $0x578] sm:$0xff]
    %v8055 = vld [vmem:[#allocation17 + $0x580] sm:$0xff]
    %v8056 = vld [vmem:[#allocation17 + $0x588] sm:$0xff]
    %v8057 = vld [vmem:[#allocation17 + $0x590] sm:$0xff]
    %v8058 = vld [vmem:[#allocation17 + $0x598] sm:$0xff]
    %v8059 = vld [vmem:[#allocation17 + $0x5a0] sm:$0xff]
    %v8060 = vld [vmem:[#allocation17 + $0x5a8] sm:$0xff]
    %v8061 = vld [vmem:[#allocation17 + $0x5b0] sm:$0xff]
    %v8062 = vld [vmem:[#allocation17 + $0x5b8] sm:$0xff]
    %v8063 = vld [vmem:[#allocation17 + $0x5c0] sm:$0xff]
    %v8064 = vld [vmem:[#allocation17 + $0x5c8] sm:$0xff]
    %v8065 = vld [vmem:[#allocation17 + $0x5d0] sm:$0xff]
    %v8066 = vld [vmem:[#allocation17 + $0x5d8] sm:$0xff]
    %v8067 = vld [vmem:[#allocation17 + $0x5e0] sm:$0xff]
    %v8068 = vld [vmem:[#allocation17 + $0x5e8] sm:$0xff]
    %v8069 = vld [vmem:[#allocation17 + $0x5f0] sm:$0xff]
    %v8070 = vld [vmem:[#allocation17 + $0x5f8] sm:$0xff]
    %v8071 = vld [vmem:[#allocation17 + $0x600] sm:$0xff]
    %v8072 = vld [vmem:[#allocation17 + $0x608] sm:$0xff]
    %v8073 = vld [vmem:[#allocation17 + $0x610] sm:$0xff]
    %v8074 = vld [vmem:[#allocation17 + $0x618] sm:$0xff]
    %v8075 = vld [vmem:[#allocation17 + $0x620] sm:$0xff]
    %v8076 = vld [vmem:[#allocation17 + $0x628] sm:$0xff]
    %v8077 = vld [vmem:[#allocation17 + $0x630] sm:$0xff]
    %v8078 = vld [vmem:[#allocation17 + $0x638] sm:$0xff]
    %v8079 = vld [vmem:[#allocation17 + $0x640] sm:$0xff]
    %v8080 = vld [vmem:[#allocation17 + $0x648] sm:$0xff]
    %v8081 = vld [vmem:[#allocation17 + $0x650] sm:$0xff]
    %v8082 = vld [vmem:[#allocation17 + $0x658] sm:$0xff]
    %v8083 = vld [vmem:[#allocation17 + $0x660] sm:$0xff]
    %v8084 = vld [vmem:[#allocation17 + $0x668] sm:$0xff]
    %v8085 = vld [vmem:[#allocation17 + $0x670] sm:$0xff]
    %v8086 = vld [vmem:[#allocation17 + $0x678] sm:$0xff]
    %v8087 = vld [vmem:[#allocation17 + $0x680] sm:$0xff]
    %v8088 = vld [vmem:[#allocation17 + $0x688] sm:$0xff]
    %v8089 = vld [vmem:[#allocation17 + $0x690] sm:$0xff]
    %v8090 = vld [vmem:[#allocation17 + $0x698] sm:$0xff]
    %v8091 = vld [vmem:[#allocation17 + $0x6a0] sm:$0xff]
    %v8092 = vld [vmem:[#allocation17 + $0x6a8] sm:$0xff]
    %v8093 = vld [vmem:[#allocation17 + $0x6b0] sm:$0xff]
    %v8094 = vld [vmem:[#allocation17 + $0x6b8] sm:$0xff]
    %v8095 = vld [vmem:[#allocation17 + $0x6c0] sm:$0xff]
    %v8096 = vld [vmem:[#allocation17 + $0x6c8] sm:$0xff]
    %v8097 = vld [vmem:[#allocation17 + $0x6d0] sm:$0xff]
    %v8098 = vld [vmem:[#allocation17 + $0x6d8] sm:$0xff]
    %v8099 = vld [vmem:[#allocation17 + $0x6e0] sm:$0xff]
    %v8100 = vld [vmem:[#allocation17 + $0x6e8] sm:$0xff]
    %v8101 = vld [vmem:[#allocation17 + $0x6f0] sm:$0xff]
    %v8102 = vld [vmem:[#allocation17 + $0x6f8] sm:$0xff]
    %v8103 = vld [vmem:[#allocation17 + $0x700] sm:$0xff]
    %v8104 = vld [vmem:[#allocation17 + $0x708] sm:$0xff]
    %v8105 = vld [vmem:[#allocation17 + $0x710] sm:$0xff]
    %v8106 = vld [vmem:[#allocation17 + $0x718] sm:$0xff]
    %v8107 = vld [vmem:[#allocation17 + $0x720] sm:$0xff]
    %v8108 = vld [vmem:[#allocation17 + $0x728] sm:$0xff]
    %v8109 = vld [vmem:[#allocation17 + $0x730] sm:$0xff]
    %v8110 = vld [vmem:[#allocation17 + $0x738] sm:$0xff]
    %v8111 = vld [vmem:[#allocation17 + $0x740] sm:$0xff]
    %v8112 = vld [vmem:[#allocation17 + $0x748] sm:$0xff]
    %v8113 = vld [vmem:[#allocation17 + $0x750] sm:$0xff]
    %v8114 = vld [vmem:[#allocation17 + $0x758] sm:$0xff]
    %v8115 = vld [vmem:[#allocation17 + $0x760] sm:$0xff]
    %v8116 = vld [vmem:[#allocation17 + $0x768] sm:$0xff]
    %v8117 = vld [vmem:[#allocation17 + $0x770] sm:$0xff]
    %v8118 = vld [vmem:[#allocation17 + $0x778] sm:$0xff]
    %v8119 = vld [vmem:[#allocation17 + $0x780] sm:$0xff]
    %v8120 = vld [vmem:[#allocation17 + $0x788] sm:$0xff]
    %v8121 = vld [vmem:[#allocation17 + $0x790] sm:$0xff]
    %v8122 = vld [vmem:[#allocation17 + $0x798] sm:$0xff]
    %v8123 = vld [vmem:[#allocation17 + $0x7a0] sm:$0xff]
    %v8124 = vld [vmem:[#allocation17 + $0x7a8] sm:$0xff]
    %v8125 = vld [vmem:[#allocation17 + $0x7b0] sm:$0xff]
    %v8126 = vld [vmem:[#allocation17 + $0x7b8] sm:$0xff]
    %v8127 = vld [vmem:[#allocation17 + $0x7c0] sm:$0xff]
    %v8128 = vld [vmem:[#allocation17 + $0x7c8] sm:$0xff]
    %v8129 = vld [vmem:[#allocation17 + $0x7d0] sm:$0xff]
    %v8130 = vld [vmem:[#allocation17 + $0x7d8] sm:$0xff]
    %v8131 = vld [vmem:[#allocation17 + $0x7e0] sm:$0xff]
    %v8132 = vld [vmem:[#allocation17 + $0x7e8] sm:$0xff]
    %v8133 = vld [vmem:[#allocation17 + $0x7f0] sm:$0xff]
    %v8134 = vld [vmem:[#allocation17 + $0x7f8] sm:$0xff]
    %v8135 = vld [vmem:[#allocation17 + $0x800] sm:$0xff]
    %v8136 = vld [vmem:[#allocation17 + $0x808] sm:$0xff]
    %v8137 = vld [vmem:[#allocation17 + $0x810] sm:$0xff]
    %v8138 = vld [vmem:[#allocation17 + $0x818] sm:$0xff]
    %v8139 = vld [vmem:[#allocation17 + $0x820] sm:$0xff]
    %v8140 = vld [vmem:[#allocation17 + $0x828] sm:$0xff]
    %v8141 = vld [vmem:[#allocation17 + $0x830] sm:$0xff]
    %v8142 = vld [vmem:[#allocation17 + $0x838] sm:$0xff]
    %v8143 = vld [vmem:[#allocation17 + $0x840] sm:$0xff]
    %v8144 = vld [vmem:[#allocation17 + $0x848] sm:$0xff]
    %v8145 = vld [vmem:[#allocation17 + $0x850] sm:$0xff]
    %v8146 = vld [vmem:[#allocation17 + $0x858] sm:$0xff]
    %v8147 = vld [vmem:[#allocation17 + $0x860] sm:$0xff]
    %v8148 = vld [vmem:[#allocation17 + $0x868] sm:$0xff]
    %v8149 = vld [vmem:[#allocation17 + $0x870] sm:$0xff]
    %v8150 = vld [vmem:[#allocation17 + $0x878] sm:$0xff]
    %v8151 = vld [vmem:[#allocation17 + $0x880] sm:$0xff]
    %v8152 = vld [vmem:[#allocation17 + $0x888] sm:$0xff]
    %v8153 = vld [vmem:[#allocation17 + $0x890] sm:$0xff]
    %v8154 = vld [vmem:[#allocation17 + $0x898] sm:$0xff]
    %v8155 = vld [vmem:[#allocation17 + $0x8a0] sm:$0xff]
    %v8156 = vld [vmem:[#allocation17 + $0x8a8] sm:$0xff]
    %v8157 = vld [vmem:[#allocation17 + $0x8b0] sm:$0xff]
    %v8158 = vld [vmem:[#allocation17 + $0x8b8] sm:$0xff]
    %v8159 = vld [vmem:[#allocation17 + $0x8c0] sm:$0xff]
    %v8160 = vld [vmem:[#allocation17 + $0x8c8] sm:$0xff]
    %v8161 = vld [vmem:[#allocation17 + $0x8d0] sm:$0xff]
    %v8162 = vld [vmem:[#allocation17 + $0x8d8] sm:$0xff]
    %v8163 = vld [vmem:[#allocation17 + $0x8e0] sm:$0xff]
    %v8164 = vld [vmem:[#allocation17 + $0x8e8] sm:$0xff]
    %v8165 = vld [vmem:[#allocation17 + $0x8f0] sm:$0xff]
    %v8166 = vld [vmem:[#allocation17 + $0x8f8] sm:$0xff]
    %v8167 = vld [vmem:[#allocation17 + $0x900] sm:$0xff]
    %v8168 = vld [vmem:[#allocation17 + $0x908] sm:$0xff]
    %v8169 = vld [vmem:[#allocation17 + $0x910] sm:$0xff]
    %v8170 = vld [vmem:[#allocation17 + $0x918] sm:$0xff]
    %v8171 = vld [vmem:[#allocation17 + $0x920] sm:$0xff]
    %v8172 = vld [vmem:[#allocation17 + $0x928] sm:$0xff]
    %v8173 = vld [vmem:[#allocation17 + $0x930] sm:$0xff]
    %v8174 = vld [vmem:[#allocation17 + $0x938] sm:$0xff]
    %v8175 = vld [vmem:[#allocation17 + $0x940] sm:$0xff]
    %v8176 = vld [vmem:[#allocation17 + $0x948] sm:$0xff]
    %v8177 = vld [vmem:[#allocation17 + $0x950] sm:$0xff]
    %v8178 = vld [vmem:[#allocation17 + $0x958] sm:$0xff]
    %v8179 = vld [vmem:[#allocation17 + $0x960] sm:$0xff]
    %v8180 = vld [vmem:[#allocation17 + $0x968] sm:$0xff]
    %v8181 = vld [vmem:[#allocation17 + $0x970] sm:$0xff]
    %v8182 = vld [vmem:[#allocation17 + $0x978] sm:$0xff]
    %v8183 = vld [vmem:[#allocation17 + $0x980] sm:$0xff]
    %v8184 = vld [vmem:[#allocation17 + $0x988] sm:$0xff]
    %v8185 = vld [vmem:[#allocation17 + $0x990] sm:$0xff]
    %v8186 = vld [vmem:[#allocation17 + $0x998] sm:$0xff]
    %v8187 = vld [vmem:[#allocation17 + $0x9a0] sm:$0xff]
    %v8188 = vld [vmem:[#allocation17 + $0x9a8] sm:$0xff]
    %v8189 = vld [vmem:[#allocation17 + $0x9b0] sm:$0xff]
    %v8190 = vld [vmem:[#allocation17 + $0x9b8] sm:$0xff]
    %v8191 = vld [vmem:[#allocation17 + $0x9c0] sm:$0xff]
    %v8192 = vld [vmem:[#allocation17 + $0x9c8] sm:$0xff]
    %v8193 = vld [vmem:[#allocation17 + $0x9d0] sm:$0xff]
    %v8194 = vld [vmem:[#allocation17 + $0x9d8] sm:$0xff]
    %v8195 = vld [vmem:[#allocation17 + $0x9e0] sm:$0xff]
    %v8196 = vld [vmem:[#allocation17 + $0x9e8] sm:$0xff]
    %v8197 = vld [vmem:[#allocation17 + $0x9f0] sm:$0xff]
    %v8198 = vld [vmem:[#allocation17 + $0x9f8] sm:$0xff]
    %v8199 = vld [vmem:[#allocation17 + $0xa00] sm:$0xff]
    %v8200 = vld [vmem:[#allocation17 + $0xa08] sm:$0xff]
    %v8201 = vld [vmem:[#allocation17 + $0xa10] sm:$0xff]
    %v8202 = vld [vmem:[#allocation17 + $0xa18] sm:$0xff]
    %v8203 = vld [vmem:[#allocation17 + $0xa20] sm:$0xff]
    %v8204 = vld [vmem:[#allocation17 + $0xa28] sm:$0xff]
    %v8205 = vld [vmem:[#allocation17 + $0xa30] sm:$0xff]
    %v8206 = vld [vmem:[#allocation17 + $0xa38] sm:$0xff]
    %v8207 = vld [vmem:[#allocation17 + $0xa40] sm:$0xff]
    %v8208 = vld [vmem:[#allocation17 + $0xa48] sm:$0xff]
    %v8209 = vld [vmem:[#allocation17 + $0xa50] sm:$0xff]
    %v8210 = vld [vmem:[#allocation17 + $0xa58] sm:$0xff]
    %v8211 = vld [vmem:[#allocation17 + $0xa60] sm:$0xff]
    %v8212 = vld [vmem:[#allocation17 + $0xa68] sm:$0xff]
    %v8213 = vld [vmem:[#allocation17 + $0xa70] sm:$0xff]
    %v8214 = vld [vmem:[#allocation17 + $0xa78] sm:$0xff]
    %v8215 = vld [vmem:[#allocation17 + $0xa80] sm:$0xff]
    %v8216 = vld [vmem:[#allocation17 + $0xa88] sm:$0xff]
    %v8217 = vld [vmem:[#allocation17 + $0xa90] sm:$0xff]
    %v8218 = vld [vmem:[#allocation17 + $0xa98] sm:$0xff]
    %v8219 = vld [vmem:[#allocation17 + $0xaa0] sm:$0xff]
    %v8220 = vld [vmem:[#allocation17 + $0xaa8] sm:$0xff]
    %v8221 = vld [vmem:[#allocation17 + $0xab0] sm:$0xff]
    %v8222 = vld [vmem:[#allocation17 + $0xab8] sm:$0xff]
    %v8223 = vld [vmem:[#allocation17 + $0xac0] sm:$0xff]
    %v8224 = vld [vmem:[#allocation17 + $0xac8] sm:$0xff]
    %v8225 = vld [vmem:[#allocation17 + $0xad0] sm:$0xff]
    %v8226 = vld [vmem:[#allocation17 + $0xad8] sm:$0xff]
    %v8227 = vld [vmem:[#allocation17 + $0xae0] sm:$0xff]
    %v8228 = vld [vmem:[#allocation17 + $0xae8] sm:$0xff]
    %v8229 = vld [vmem:[#allocation17 + $0xaf0] sm:$0xff]
    %v8230 = vld [vmem:[#allocation17 + $0xaf8] sm:$0xff]
    %v8231 = vld [vmem:[#allocation17 + $0xb00] sm:$0xff]
    %v8232 = vld [vmem:[#allocation17 + $0xb08] sm:$0xff]
    %v8233 = vld [vmem:[#allocation17 + $0xb10] sm:$0xff]
    %v8234 = vld [vmem:[#allocation17 + $0xb18] sm:$0xff]
    %v8235 = vld [vmem:[#allocation17 + $0xb20] sm:$0xff]
    %v8236 = vld [vmem:[#allocation17 + $0xb28] sm:$0xff]
    %v8237 = vld [vmem:[#allocation17 + $0xb30] sm:$0xff]
    %v8238 = vld [vmem:[#allocation17 + $0xb38] sm:$0xff]
    %v8239 = vld [vmem:[#allocation17 + $0xb40] sm:$0xff]
    %v8240 = vld [vmem:[#allocation17 + $0xb48] sm:$0xff]
    %v8241 = vld [vmem:[#allocation17 + $0xb50] sm:$0xff]
    %v8242 = vld [vmem:[#allocation17 + $0xb58] sm:$0xff]
    %v8243 = vld [vmem:[#allocation17 + $0xb60] sm:$0xff]
    %v8244 = vld [vmem:[#allocation17 + $0xb68] sm:$0xff]
    %v8245 = vld [vmem:[#allocation17 + $0xb70] sm:$0xff]
    %v8246 = vld [vmem:[#allocation17 + $0xb78] sm:$0xff]
    %v8247 = vld [vmem:[#allocation17 + $0xb80] sm:$0xff]
    %v8248 = vld [vmem:[#allocation17 + $0xb88] sm:$0xff]
    %v8249 = vld [vmem:[#allocation17 + $0xb90] sm:$0xff]
    %v8250 = vld [vmem:[#allocation17 + $0xb98] sm:$0xff]
    %v8251 = vld [vmem:[#allocation17 + $0xba0] sm:$0xff]
    %v8252 = vld [vmem:[#allocation17 + $0xba8] sm:$0xff]
    %v8253 = vld [vmem:[#allocation17 + $0xbb0] sm:$0xff]
    %v8254 = vld [vmem:[#allocation17 + $0xbb8] sm:$0xff]
    %v8255 = vld [vmem:[#allocation17 + $0xbc0] sm:$0xff]
    %v8256 = vld [vmem:[#allocation17 + $0xbc8] sm:$0xff]
    %v8257 = vld [vmem:[#allocation17 + $0xbd0] sm:$0xff]
    %v8258 = vld [vmem:[#allocation17 + $0xbd8] sm:$0xff]
    %v8259 = vld [vmem:[#allocation17 + $0xbe0] sm:$0xff]
    %v8260 = vld [vmem:[#allocation17 + $0xbe8] sm:$0xff]
    %v8261 = vld [vmem:[#allocation17 + $0xbf0] sm:$0xff]
    %v8262 = vld [vmem:[#allocation17 + $0xbf8] sm:$0xff]
    %v8263 = vld [vmem:[#allocation17 + $0xc00] sm:$0xff]
    %v8264 = vld [vmem:[#allocation17 + $0xc08] sm:$0xff]
    %v8265 = vld [vmem:[#allocation17 + $0xc10] sm:$0xff]
    %v8266 = vld [vmem:[#allocation17 + $0xc18] sm:$0xff]
    %v8267 = vld [vmem:[#allocation17 + $0xc20] sm:$0xff]
    %v8268 = vld [vmem:[#allocation17 + $0xc28] sm:$0xff]
    %v8269 = vld [vmem:[#allocation17 + $0xc30] sm:$0xff]
    %v8270 = vld [vmem:[#allocation17 + $0xc38] sm:$0xff]
    %v8271 = vld [vmem:[#allocation17 + $0xc40] sm:$0xff]
    %v8272 = vld [vmem:[#allocation17 + $0xc48] sm:$0xff]
    %v8273 = vld [vmem:[#allocation17 + $0xc50] sm:$0xff]
    %v8274 = vld [vmem:[#allocation17 + $0xc58] sm:$0xff]
    %v8275 = vld [vmem:[#allocation17 + $0xc60] sm:$0xff]
    %v8276 = vld [vmem:[#allocation17 + $0xc68] sm:$0xff]
    %v8277 = vld [vmem:[#allocation17 + $0xc70] sm:$0xff]
    %v8278 = vld [vmem:[#allocation17 + $0xc78] sm:$0xff]
    %v8279 = vld [vmem:[#allocation17 + $0xc80] sm:$0xff]
    %v8280 = vld [vmem:[#allocation17 + $0xc88] sm:$0xff]
    %v8281 = vld [vmem:[#allocation17 + $0xc90] sm:$0xff]
    %v8282 = vld [vmem:[#allocation17 + $0xc98] sm:$0xff]
    %v8283 = vld [vmem:[#allocation17 + $0xca0] sm:$0xff]
    %v8284 = vld [vmem:[#allocation17 + $0xca8] sm:$0xff]
    %v8285 = vld [vmem:[#allocation17 + $0xcb0] sm:$0xff]
    %v8286 = vld [vmem:[#allocation17 + $0xcb8] sm:$0xff]
    %v8287 = vld [vmem:[#allocation17 + $0xcc0] sm:$0xff]
    %v8288 = vld [vmem:[#allocation17 + $0xcc8] sm:$0xff]
    %v8289 = vld [vmem:[#allocation17 + $0xcd0] sm:$0xff]
    %v8290 = vld [vmem:[#allocation17 + $0xcd8] sm:$0xff]
    %v8291 = vld [vmem:[#allocation17 + $0xce0] sm:$0xff]
    %v8292 = vld [vmem:[#allocation17 + $0xce8] sm:$0xff]
    %v8293 = vld [vmem:[#allocation17 + $0xcf0] sm:$0xff]
    %v8294 = vld [vmem:[#allocation17 + $0xcf8] sm:$0xff]
    %v8295 = vld [vmem:[#allocation17 + $0xd00] sm:$0xff]
    %v8296 = vld [vmem:[#allocation17 + $0xd08] sm:$0xff]
    %v8297 = vld [vmem:[#allocation17 + $0xd10] sm:$0xff]
    %v8298 = vld [vmem:[#allocation17 + $0xd18] sm:$0xff]
    %v8299 = vld [vmem:[#allocation17 + $0xd20] sm:$0xff]
    %v8300 = vld [vmem:[#allocation17 + $0xd28] sm:$0xff]
    %v8301 = vld [vmem:[#allocation17 + $0xd30] sm:$0xff]
    %v8302 = vld [vmem:[#allocation17 + $0xd38] sm:$0xff]
    %v8303 = vld [vmem:[#allocation17 + $0xd40] sm:$0xff]
    %v8304 = vld [vmem:[#allocation17 + $0xd48] sm:$0xff]
    %v8305 = vld [vmem:[#allocation17 + $0xd50] sm:$0xff]
    %v8306 = vld [vmem:[#allocation17 + $0xd58] sm:$0xff]
    %v8307 = vld [vmem:[#allocation17 + $0xd60] sm:$0xff]
    %v8308 = vld [vmem:[#allocation17 + $0xd68] sm:$0xff]
    %v8309 = vld [vmem:[#allocation17 + $0xd70] sm:$0xff]
    %v8310 = vld [vmem:[#allocation17 + $0xd78] sm:$0xff]
    %v8311 = vld [vmem:[#allocation17 + $0xd80] sm:$0xff]
    %v8312 = vld [vmem:[#allocation17 + $0xd88] sm:$0xff]
    %v8313 = vld [vmem:[#allocation17 + $0xd90] sm:$0xff]
    %v8314 = vld [vmem:[#allocation17 + $0xd98] sm:$0xff]
    %v8315 = vld [vmem:[#allocation17 + $0xda0] sm:$0xff]
    %v8316 = vld [vmem:[#allocation17 + $0xda8] sm:$0xff]
    %v8317 = vld [vmem:[#allocation17 + $0xdb0] sm:$0xff]
    %v8318 = vld [vmem:[#allocation17 + $0xdb8] sm:$0xff]
    %v8319 = vld [vmem:[#allocation17 + $0xdc0] sm:$0xff]
    %v8320 = vld [vmem:[#allocation17 + $0xdc8] sm:$0xff]
    %v8321 = vld [vmem:[#allocation17 + $0xdd0] sm:$0xff]
    %v8322 = vld [vmem:[#allocation17 + $0xdd8] sm:$0xff]
    %v8323 = vld [vmem:[#allocation17 + $0xde0] sm:$0xff]
    %v8324 = vld [vmem:[#allocation17 + $0xde8] sm:$0xff]
    %v8325 = vld [vmem:[#allocation17 + $0xdf0] sm:$0xff]
    %v8326 = vld [vmem:[#allocation17 + $0xdf8] sm:$0xff]
    %v8327 = vld [vmem:[#allocation17 + $0xe00] sm:$0xff]
    %v8328 = vld [vmem:[#allocation17 + $0xe08] sm:$0xff]
    %v8329 = vld [vmem:[#allocation17 + $0xe10] sm:$0xff]
    %v8330 = vld [vmem:[#allocation17 + $0xe18] sm:$0xff]
    %v8331 = vld [vmem:[#allocation17 + $0xe20] sm:$0xff]
    %v8332 = vld [vmem:[#allocation17 + $0xe28] sm:$0xff]
    %v8333 = vld [vmem:[#allocation17 + $0xe30] sm:$0xff]
    %v8334 = vld [vmem:[#allocation17 + $0xe38] sm:$0xff]
    %v8335 = vld [vmem:[#allocation17 + $0xe40] sm:$0xff]
    %v8336 = vld [vmem:[#allocation17 + $0xe48] sm:$0xff]
    %v8337 = vld [vmem:[#allocation17 + $0xe50] sm:$0xff]
    %v8338 = vld [vmem:[#allocation17 + $0xe58] sm:$0xff]
    %v8339 = vld [vmem:[#allocation17 + $0xe60] sm:$0xff]
    %v8340 = vld [vmem:[#allocation17 + $0xe68] sm:$0xff]
    %v8341 = vld [vmem:[#allocation17 + $0xe70] sm:$0xff]
    %v8342 = vld [vmem:[#allocation17 + $0xe78] sm:$0xff]
    %v8343 = vld [vmem:[#allocation17 + $0xe80] sm:$0xff]
    %v8344 = vld [vmem:[#allocation17 + $0xe88] sm:$0xff]
    %v8345 = vld [vmem:[#allocation17 + $0xe90] sm:$0xff]
    %v8346 = vld [vmem:[#allocation17 + $0xe98] sm:$0xff]
    %v8347 = vld [vmem:[#allocation17 + $0xea0] sm:$0xff]
    %v8348 = vld [vmem:[#allocation17 + $0xea8] sm:$0xff]
    %v8349 = vld [vmem:[#allocation17 + $0xeb0] sm:$0xff]
    %v8350 = vld [vmem:[#allocation17 + $0xeb8] sm:$0xff]
    %v8351 = vld [vmem:[#allocation17 + $0xec0] sm:$0xff]
    %v8352 = vld [vmem:[#allocation17 + $0xec8] sm:$0xff]
    %v8353 = vld [vmem:[#allocation17 + $0xed0] sm:$0xff]
    %v8354 = vld [vmem:[#allocation17 + $0xed8] sm:$0xff]
    %v8355 = vld [vmem:[#allocation17 + $0xee0] sm:$0xff]
    %v8356 = vld [vmem:[#allocation17 + $0xee8] sm:$0xff]
    %v8357 = vld [vmem:[#allocation17 + $0xef0] sm:$0xff]
    %v8358 = vld [vmem:[#allocation17 + $0xef8] sm:$0xff]
    %v8359 = vld [vmem:[#allocation17 + $0xf00] sm:$0xff]
    %v8360 = vld [vmem:[#allocation17 + $0xf08] sm:$0xff]
    %v8361 = vld [vmem:[#allocation17 + $0xf10] sm:$0xff]
    %v8362 = vld [vmem:[#allocation17 + $0xf18] sm:$0xff]
    %v8363 = vld [vmem:[#allocation17 + $0xf20] sm:$0xff]
    %v8364 = vld [vmem:[#allocation17 + $0xf28] sm:$0xff]
    %v8365 = vld [vmem:[#allocation17 + $0xf30] sm:$0xff]
    %v8366 = vld [vmem:[#allocation17 + $0xf38] sm:$0xff]
    %v8367 = vld [vmem:[#allocation17 + $0xf40] sm:$0xff]
    %v8368 = vld [vmem:[#allocation17 + $0xf48] sm:$0xff]
    %v8369 = vld [vmem:[#allocation17 + $0xf50] sm:$0xff]
    %v8370 = vld [vmem:[#allocation17 + $0xf58] sm:$0xff]
    %v8371 = vld [vmem:[#allocation17 + $0xf60] sm:$0xff]
    %v8372 = vld [vmem:[#allocation17 + $0xf68] sm:$0xff]
    %v8373 = vld [vmem:[#allocation17 + $0xf70] sm:$0xff]
    %v8374 = vld [vmem:[#allocation17 + $0xf78] sm:$0xff]
    %v8375 = vld [vmem:[#allocation17 + $0xf80] sm:$0xff]
    %v8376 = vld [vmem:[#allocation17 + $0xf88] sm:$0xff]
    %v8377 = vld [vmem:[#allocation17 + $0xf90] sm:$0xff]
    %v8378 = vld [vmem:[#allocation17 + $0xf98] sm:$0xff]
    %v8379 = vld [vmem:[#allocation17 + $0xfa0] sm:$0xff]
    %v8380 = vld [vmem:[#allocation17 + $0xfa8] sm:$0xff]
    %v8381 = vld [vmem:[#allocation17 + $0xfb0] sm:$0xff]
    %v8382 = vld [vmem:[#allocation17 + $0xfb8] sm:$0xff]
    %v8383 = vld [vmem:[#allocation17 + $0xfc0] sm:$0xff]
    %v8384 = vld [vmem:[#allocation17 + $0xfc8] sm:$0xff]
    %v8385 = vld [vmem:[#allocation17 + $0xfd0] sm:$0xff]
    %v8386 = vld [vmem:[#allocation17 + $0xfd8] sm:$0xff]
    %v8387 = vld [vmem:[#allocation17 + $0xfe0] sm:$0xff]
    %v8388 = vld [vmem:[#allocation17 + $0xfe8] sm:$0xff]
    %v8389 = vld [vmem:[#allocation17 + $0xff0] sm:$0xff]
    %v8390 = vld [vmem:[#allocation17 + $0xff8] sm:$0xff]
    %v8391 = vld [vmem:[#allocation17 + $0x1000] sm:$0xff]
    %v8392 = vld [vmem:[#allocation17 + $0x1008] sm:$0xff]
    %v8393 = vld [vmem:[#allocation17 + $0x1010] sm:$0xff]
    %v8394 = vld [vmem:[#allocation17 + $0x1018] sm:$0xff]
    %v8395 = vld [vmem:[#allocation17 + $0x1020] sm:$0xff]
    %v8396 = vld [vmem:[#allocation17 + $0x1028] sm:$0xff]
    %v8397 = vld [vmem:[#allocation17 + $0x1030] sm:$0xff]
    %v8398 = vld [vmem:[#allocation17 + $0x1038] sm:$0xff]
    %v8399 = vld [vmem:[#allocation17 + $0x1040] sm:$0xff]
    %v8400 = vld [vmem:[#allocation17 + $0x1048] sm:$0xff]
    %v8401 = vld [vmem:[#allocation17 + $0x1050] sm:$0xff]
    %v8402 = vld [vmem:[#allocation17 + $0x1058] sm:$0xff]
    %v8403 = vld [vmem:[#allocation17 + $0x1060] sm:$0xff]
    %v8404 = vld [vmem:[#allocation17 + $0x1068] sm:$0xff]
    %v8405 = vld [vmem:[#allocation17 + $0x1070] sm:$0xff]
    %v8406 = vld [vmem:[#allocation17 + $0x1078] sm:$0xff]
    %v8407 = vld [vmem:[#allocation17 + $0x1080] sm:$0xff]
    %v8408 = vld [vmem:[#allocation17 + $0x1088] sm:$0xff]
    %v8409 = vld [vmem:[#allocation17 + $0x1090] sm:$0xff]
    %v8410 = vld [vmem:[#allocation17 + $0x1098] sm:$0xff]
    %v8411 = vld [vmem:[#allocation17 + $0x10a0] sm:$0xff]
    %v8412 = vld [vmem:[#allocation17 + $0x10a8] sm:$0xff]
    %v8413 = vld [vmem:[#allocation17 + $0x10b0] sm:$0xff]
    %v8414 = vld [vmem:[#allocation17 + $0x10b8] sm:$0xff]
    %v8415 = vld [vmem:[#allocation17 + $0x10c0] sm:$0xff]
    %v8416 = vld [vmem:[#allocation17 + $0x10c8] sm:$0xff]
    %v8417 = vld [vmem:[#allocation17 + $0x10d0] sm:$0xff]
    %v8418 = vld [vmem:[#allocation17 + $0x10d8] sm:$0xff]
    %v8419 = vld [vmem:[#allocation17 + $0x10e0] sm:$0xff]
    %v8420 = vld [vmem:[#allocation17 + $0x10e8] sm:$0xff]
    %v8421 = vld [vmem:[#allocation17 + $0x10f0] sm:$0xff]
    %v8422 = vld [vmem:[#allocation17 + $0x10f8] sm:$0xff]
    %v8423 = vld [vmem:[#allocation17 + $0x1100] sm:$0xff]
    %v8424 = vld [vmem:[#allocation17 + $0x1108] sm:$0xff]
    %v8425 = vld [vmem:[#allocation17 + $0x1110] sm:$0xff]
    %v8426 = vld [vmem:[#allocation17 + $0x1118] sm:$0xff]
    %v8427 = vld [vmem:[#allocation17 + $0x1120] sm:$0xff]
    %v8428 = vld [vmem:[#allocation17 + $0x1128] sm:$0xff]
    %v8429 = vld [vmem:[#allocation17 + $0x1130] sm:$0xff]
    %v8430 = vld [vmem:[#allocation17 + $0x1138] sm:$0xff]
    %v8431 = vld [vmem:[#allocation17 + $0x1140] sm:$0xff]
    %v8432 = vld [vmem:[#allocation17 + $0x1148] sm:$0xff]
    %v8433 = vld [vmem:[#allocation17 + $0x1150] sm:$0xff]
    %v8434 = vld [vmem:[#allocation17 + $0x1158] sm:$0xff]
    %v8435 = vld [vmem:[#allocation17 + $0x1160] sm:$0xff]
    %v8436 = vld [vmem:[#allocation17 + $0x1168] sm:$0xff]
    %v8437 = vld [vmem:[#allocation17 + $0x1170] sm:$0xff]
    %v8438 = vld [vmem:[#allocation17 + $0x1178] sm:$0xff]
    %v8439 = vld [vmem:[#allocation17 + $0x1180] sm:$0xff]
    %v8440 = vld [vmem:[#allocation17 + $0x1188] sm:$0xff]
    %v8441 = vld [vmem:[#allocation17 + $0x1190] sm:$0xff]
    %v8442 = vld [vmem:[#allocation17 + $0x1198] sm:$0xff]
    %v8443 = vld [vmem:[#allocation17 + $0x11a0] sm:$0xff]
    %v8444 = vld [vmem:[#allocation17 + $0x11a8] sm:$0xff]
    %v8445 = vld [vmem:[#allocation17 + $0x11b0] sm:$0xff]
    %v8446 = vld [vmem:[#allocation17 + $0x11b8] sm:$0xff]
    %v8447 = vld [vmem:[#allocation17 + $0x11c0] sm:$0xff]
    %v8448 = vld [vmem:[#allocation17 + $0x11c8] sm:$0xff]
    %v8449 = vld [vmem:[#allocation17 + $0x11d0] sm:$0xff]
    %v8450 = vld [vmem:[#allocation17 + $0x11d8] sm:$0xff]
    %v8451 = vld [vmem:[#allocation17 + $0x11e0] sm:$0xff]
    %v8452 = vld [vmem:[#allocation17 + $0x11e8] sm:$0xff]
    %v8453 = vld [vmem:[#allocation17 + $0x11f0] sm:$0xff]
    %v8454 = vld [vmem:[#allocation17 + $0x11f8] sm:$0xff]
    %v8455 = vld [vmem:[#allocation17 + $0x1200] sm:$0xff]
    %v8456 = vld [vmem:[#allocation17 + $0x1208] sm:$0xff]
    %v8457 = vld [vmem:[#allocation17 + $0x1210] sm:$0xff]
    %v8458 = vld [vmem:[#allocation17 + $0x1218] sm:$0xff]
    %v8459 = vld [vmem:[#allocation17 + $0x1220] sm:$0xff]
    %v8460 = vld [vmem:[#allocation17 + $0x1228] sm:$0xff]
    %v8461 = vld [vmem:[#allocation17 + $0x1230] sm:$0xff]
    %v8462 = vld [vmem:[#allocation17 + $0x1238] sm:$0xff]
    %v8463 = vld [vmem:[#allocation17 + $0x1240] sm:$0xff]
    %v8464 = vld [vmem:[#allocation17 + $0x1248] sm:$0xff]
    %v8465 = vld [vmem:[#allocation17 + $0x1250] sm:$0xff]
    %v8466 = vld [vmem:[#allocation17 + $0x1258] sm:$0xff]
    %v8467 = vld [vmem:[#allocation17 + $0x1260] sm:$0xff]
    %v8468 = vld [vmem:[#allocation17 + $0x1268] sm:$0xff]
    %v8469 = vld [vmem:[#allocation17 + $0x1270] sm:$0xff]
    %v8470 = vld [vmem:[#allocation17 + $0x1278] sm:$0xff]
    %v8471 = vld [vmem:[#allocation17 + $0x1280] sm:$0xff]
    %v8472 = vld [vmem:[#allocation17 + $0x1288] sm:$0xff]
    %v8473 = vld [vmem:[#allocation17 + $0x1290] sm:$0xff]
    %v8474 = vld [vmem:[#allocation17 + $0x1298] sm:$0xff]
    %v8475 = vld [vmem:[#allocation17 + $0x12a0] sm:$0xff]
    %v8476 = vld [vmem:[#allocation17 + $0x12a8] sm:$0xff]
    %v8477 = vld [vmem:[#allocation17 + $0x12b0] sm:$0xff]
    %v8478 = vld [vmem:[#allocation17 + $0x12b8] sm:$0xff]
    %v8479 = vld [vmem:[#allocation19] sm:$0xff]
    %v8481 = vlaneseq
    %v8482 = vshrl.u32 %v8481, 7
    %v8483 = vsub.s32 0, %v8482
    %v8484 = vrot.slane %v8479, %v8483
    %v8485 = vlaneseq
    %v8486 = vshrl.u32 %v8485, 7
    %v8487 = vsub.s32 1, %v8486
    %v8488 = vrot.slane %v8479, %v8487
    %v8489 = vlaneseq
    %v8490 = vshrl.u32 %v8489, 7
    %v8491 = vsub.s32 2, %v8490
    %v8492 = vrot.slane %v8479, %v8491
    %v8493 = vlaneseq
    %v8494 = vshrl.u32 %v8493, 7
    %v8495 = vsub.s32 3, %v8494
    %v8496 = vrot.slane %v8479, %v8495
    %v8497 = vlaneseq
    %v8498 = vshrl.u32 %v8497, 7
    %v8499 = vsub.s32 4, %v8498
    %v8500 = vrot.slane %v8479, %v8499
    %v8501 = vlaneseq
    %v8502 = vshrl.u32 %v8501, 7
    %v8503 = vsub.s32 5, %v8502
    %v8504 = vrot.slane %v8479, %v8503
    %v8505 = vlaneseq
    %v8506 = vshrl.u32 %v8505, 7
    %v8507 = vsub.s32 6, %v8506
    %v8508 = vrot.slane %v8479, %v8507
    %v8509 = vlaneseq
    %v8510 = vshrl.u32 %v8509, 7
    %v8511 = vsub.s32 7, %v8510
    %v8512 = vrot.slane %v8479, %v8511
    %v8561 = vunpack.c.l.b16 %v7839
    %v8562 = vunpack.c.l.b16 %v7840
    %v8563 = vunpack.c.l.b16 %v7841
    %v8564 = vunpack.c.l.b16 %v7842
    %v8565 = vunpack.c.l.b16 %v7843
    %v8566 = vunpack.c.l.b16 %v7844
    %v8567 = vunpack.c.l.b16 %v7845
    %v8568 = vunpack.c.l.b16 %v7846
    %v8569 = vunpack.c.l.b16 %v7847
    %v8570 = vunpack.c.l.b16 %v7848
    %v8571 = vunpack.c.l.b16 %v7849
    %v8572 = vunpack.c.l.b16 %v7850
    %v8573 = vunpack.c.l.b16 %v7851
    %v8574 = vunpack.c.l.b16 %v7852
    %v8575 = vunpack.c.l.b16 %v7853
    %v8576 = vunpack.c.l.b16 %v7854
    %v8577 = vunpack.c.l.b16 %v7855
    %v8578 = vunpack.c.l.b16 %v7856
    %v8579 = vunpack.c.l.b16 %v7857
    %v8580 = vunpack.c.l.b16 %v7858
    %v8581 = vunpack.c.l.b16 %v7859
    %v8582 = vunpack.c.l.b16 %v7860
    %v8583 = vunpack.c.l.b16 %v7861
    %v8584 = vunpack.c.l.b16 %v7862
    %v8585 = vunpack.c.l.b16 %v7863
    %v8586 = vunpack.c.l.b16 %v7864
    %v8587 = vunpack.c.l.b16 %v7865
    %v8588 = vunpack.c.l.b16 %v7866
    %v8589 = vunpack.c.l.b16 %v7867
    %v8590 = vunpack.c.l.b16 %v7868
    %v8591 = vunpack.c.l.b16 %v7869
    %v8592 = vunpack.c.l.b16 %v7870
    %v8593 = vunpack.c.l.b16 %v7871
    %v8594 = vunpack.c.l.b16 %v7872
    %v8595 = vunpack.c.l.b16 %v7873
    %v8596 = vunpack.c.l.b16 %v7874
    %v8597 = vunpack.c.l.b16 %v7875
    %v8598 = vunpack.c.l.b16 %v7876
    %v8599 = vunpack.c.l.b16 %v7877
    %v8600 = vunpack.c.l.b16 %v7878
    %vm8601 = vcmask 1041409
    %v8602 = vsel %vm8601, %v8571, %v8561
    %vm8603 = vcmask 1042434
    %v8604 = vsel %vm8603, %v8581, %v8602
    %vm8605 = vcmask 1043459
    %v8606 = vsel %vm8605, %v8591, %v8604
    %v8607 = vsel %vm8601, %v8572, %v8562
    %v8608 = vsel %vm8603, %v8582, %v8607
    %v8609 = vsel %vm8605, %v8592, %v8608
    %v8610 = vsel %vm8601, %v8573, %v8563
    %v8611 = vsel %vm8603, %v8583, %v8610
    %v8612 = vsel %vm8605, %v8593, %v8611
    %v8613 = vsel %vm8601, %v8574, %v8564
    %v8614 = vsel %vm8603, %v8584, %v8613
    %v8615 = vsel %vm8605, %v8594, %v8614
    %v8616 = vsel %vm8601, %v8575, %v8565
    %v8617 = vsel %vm8603, %v8585, %v8616
    %v8618 = vsel %vm8605, %v8595, %v8617
    %v8619 = vsel %vm8601, %v8576, %v8566
    %v8620 = vsel %vm8603, %v8586, %v8619
    %v8621 = vsel %vm8605, %v8596, %v8620
    %v8622 = vsel %vm8601, %v8577, %v8567
    %v8623 = vsel %vm8603, %v8587, %v8622
    %v8624 = vsel %vm8605, %v8597, %v8623
    %v8625 = vsel %vm8601, %v8578, %v8568
    %v8626 = vsel %vm8603, %v8588, %v8625
    %v8627 = vsel %vm8605, %v8598, %v8626
    %v8628 = vsel %vm8601, %v8579, %v8569
    %v8629 = vsel %vm8603, %v8589, %v8628
    %v8630 = vsel %vm8605, %v8599, %v8629
    %v8631 = vsel %vm8601, %v8580, %v8570
    %v8632 = vsel %vm8603, %v8590, %v8631
    %v8633 = vsel %vm8605, %v8600, %v8632
    %v8634 = vpack.c.b16 %v8606, %v8606
    %v8635 = vpack.c.b16 %v8609, %v8609
    %v8636 = vpack.c.b16 %v8612, %v8612
    %v8637 = vpack.c.b16 %v8615, %v8615
    %v8638 = vpack.c.b16 %v8618, %v8618
    %v8639 = vpack.c.b16 %v8621, %v8621
    %v8640 = vpack.c.b16 %v8624, %v8624
    %v8641 = vpack.c.b16 %v8627, %v8627
    %v8642 = vpack.c.b16 %v8630, %v8630
    %v8643 = vpack.c.b16 %v8633, %v8633
    %v9253 = vunpack.c.l.b16 %v7879
    %v9254 = vunpack.c.h.b16 %v7879
    %v9255 = vunpack.c.l.b16 %v7880
    %v9256 = vunpack.c.h.b16 %v7880
    %v9257 = vunpack.c.l.b16 %v7881
    %v9258 = vunpack.c.h.b16 %v7881
    %v9259 = vunpack.c.l.b16 %v7882
    %v9260 = vunpack.c.h.b16 %v7882
    %v9261 = vunpack.c.l.b16 %v7883
    %v9262 = vunpack.c.h.b16 %v7883
    %v9263 = vunpack.c.l.b16 %v7884
    %v9264 = vunpack.c.h.b16 %v7884
    %v9265 = vunpack.c.l.b16 %v7885
    %v9266 = vunpack.c.h.b16 %v7885
    %v9267 = vunpack.c.l.b16 %v7886
    %v9268 = vunpack.c.h.b16 %v7886
    %v9269 = vunpack.c.l.b16 %v7887
    %v9270 = vunpack.c.h.b16 %v7887
    %v9271 = vunpack.c.l.b16 %v7888
    %v9272 = vunpack.c.h.b16 %v7888
    %v9273 = vunpack.c.l.b16 %v7889
    %v9274 = vunpack.c.h.b16 %v7889
    %v9275 = vunpack.c.l.b16 %v7890
    %v9276 = vunpack.c.h.b16 %v7890
    %v9277 = vunpack.c.l.b16 %v7891
    %v9278 = vunpack.c.h.b16 %v7891
    %v9279 = vunpack.c.l.b16 %v7892
    %v9280 = vunpack.c.h.b16 %v7892
    %v9281 = vunpack.c.l.b16 %v7893
    %v9282 = vunpack.c.h.b16 %v7893
    %v9283 = vunpack.c.l.b16 %v7894
    %v9284 = vunpack.c.h.b16 %v7894
    %v9285 = vunpack.c.l.b16 %v7895
    %v9286 = vunpack.c.h.b16 %v7895
    %v9287 = vunpack.c.l.b16 %v7896
    %v9288 = vunpack.c.h.b16 %v7896
    %v9289 = vunpack.c.l.b16 %v7897
    %v9290 = vunpack.c.h.b16 %v7897
    %v9291 = vunpack.c.l.b16 %v7898
    %v9292 = vunpack.c.h.b16 %v7898
    %v9293 = vunpack.c.l.b16 %v7899
    %v9294 = vunpack.c.h.b16 %v7899
    %v9295 = vunpack.c.l.b16 %v7900
    %v9296 = vunpack.c.h.b16 %v7900
    %v9297 = vunpack.c.l.b16 %v7901
    %v9298 = vunpack.c.h.b16 %v7901
    %v9299 = vunpack.c.l.b16 %v7902
    %v9300 = vunpack.c.h.b16 %v7902
    %v9301 = vunpack.c.l.b16 %v7903
    %v9302 = vunpack.c.h.b16 %v7903
    %v9303 = vunpack.c.l.b16 %v7904
    %v9304 = vunpack.c.h.b16 %v7904
    %v9305 = vunpack.c.l.b16 %v7905
    %v9306 = vunpack.c.h.b16 %v7905
    %v9307 = vunpack.c.l.b16 %v7906
    %v9308 = vunpack.c.h.b16 %v7906
    %v9309 = vunpack.c.l.b16 %v7907
    %v9310 = vunpack.c.h.b16 %v7907
    %v9311 = vunpack.c.l.b16 %v7908
    %v9312 = vunpack.c.h.b16 %v7908
    %v9313 = vunpack.c.l.b16 %v7909
    %v9314 = vunpack.c.h.b16 %v7909
    %v9315 = vunpack.c.l.b16 %v7910
    %v9316 = vunpack.c.h.b16 %v7910
    %v9317 = vunpack.c.l.b16 %v7911
    %v9318 = vunpack.c.h.b16 %v7911
    %v9319 = vunpack.c.l.b16 %v7912
    %v9320 = vunpack.c.h.b16 %v7912
    %v9321 = vunpack.c.l.b16 %v7913
    %v9322 = vunpack.c.h.b16 %v7913
    %v9323 = vunpack.c.l.b16 %v7914
    %v9324 = vunpack.c.h.b16 %v7914
    %v9325 = vunpack.c.l.b16 %v7915
    %v9326 = vunpack.c.h.b16 %v7915
    %v9327 = vunpack.c.l.b16 %v7916
    %v9328 = vunpack.c.h.b16 %v7916
    %v9329 = vunpack.c.l.b16 %v7917
    %v9330 = vunpack.c.h.b16 %v7917
    %v9331 = vunpack.c.l.b16 %v7918
    %v9332 = vunpack.c.h.b16 %v7918
    %v9333 = vunpack.c.l.b16 %v7919
    %v9334 = vunpack.c.h.b16 %v7919
    %v9335 = vunpack.c.l.b16 %v7920
    %v9336 = vunpack.c.h.b16 %v7920
    %v9337 = vunpack.c.l.b16 %v7921
    %v9338 = vunpack.c.h.b16 %v7921
    %v9339 = vunpack.c.l.b16 %v7922
    %v9340 = vunpack.c.h.b16 %v7922
    %v9341 = vunpack.c.l.b16 %v7923
    %v9342 = vunpack.c.h.b16 %v7923
    %v9343 = vunpack.c.l.b16 %v7924
    %v9344 = vunpack.c.h.b16 %v7924
    %v9345 = vunpack.c.l.b16 %v7925
    %v9346 = vunpack.c.h.b16 %v7925
    %v9347 = vunpack.c.l.b16 %v7926
    %v9348 = vunpack.c.h.b16 %v7926
    %v9349 = vunpack.c.l.b16 %v7927
    %v9350 = vunpack.c.h.b16 %v7927
    %v9351 = vunpack.c.l.b16 %v7928
    %v9352 = vunpack.c.h.b16 %v7928
    %v9353 = vunpack.c.l.b16 %v7929
    %v9354 = vunpack.c.h.b16 %v7929
    %v9355 = vunpack.c.l.b16 %v7930
    %v9356 = vunpack.c.h.b16 %v7930
    %v9357 = vunpack.c.l.b16 %v7931
    %v9358 = vunpack.c.h.b16 %v7931
    %v9359 = vunpack.c.l.b16 %v7932
    %v9360 = vunpack.c.h.b16 %v7932
    %v9361 = vunpack.c.l.b16 %v7933
    %v9362 = vunpack.c.h.b16 %v7933
    %v9363 = vunpack.c.l.b16 %v7934
    %v9364 = vunpack.c.h.b16 %v7934
    %v9365 = vunpack.c.l.b16 %v7935
    %v9366 = vunpack.c.h.b16 %v7935
    %v9367 = vunpack.c.l.b16 %v7936
    %v9368 = vunpack.c.h.b16 %v7936
    %v9369 = vunpack.c.l.b16 %v7937
    %v9370 = vunpack.c.h.b16 %v7937
    %v9371 = vunpack.c.l.b16 %v7938
    %v9372 = vunpack.c.h.b16 %v7938
    %v9373 = vunpack.c.l.b16 %v7939
    %v9374 = vunpack.c.h.b16 %v7939
    %v9375 = vunpack.c.l.b16 %v7940
    %v9376 = vunpack.c.h.b16 %v7940
    %v9377 = vunpack.c.l.b16 %v7941
    %v9378 = vunpack.c.h.b16 %v7941
    %v9379 = vunpack.c.l.b16 %v7942
    %v9380 = vunpack.c.h.b16 %v7942
    %v9381 = vunpack.c.l.b16 %v7943
    %v9382 = vunpack.c.h.b16 %v7943
    %v9383 = vunpack.c.l.b16 %v7944
    %v9384 = vunpack.c.h.b16 %v7944
    %v9385 = vunpack.c.l.b16 %v7945
    %v9386 = vunpack.c.h.b16 %v7945
    %v9387 = vunpack.c.l.b16 %v7946
    %v9388 = vunpack.c.h.b16 %v7946
    %v9389 = vunpack.c.l.b16 %v7947
    %v9390 = vunpack.c.h.b16 %v7947
    %v9391 = vunpack.c.l.b16 %v7948
    %v9392 = vunpack.c.h.b16 %v7948
    %v9393 = vunpack.c.l.b16 %v7949
    %v9394 = vunpack.c.h.b16 %v7949
    %v9395 = vunpack.c.l.b16 %v7950
    %v9396 = vunpack.c.h.b16 %v7950
    %v9397 = vunpack.c.l.b16 %v7951
    %v9398 = vunpack.c.h.b16 %v7951
    %v9399 = vunpack.c.l.b16 %v7952
    %v9400 = vunpack.c.h.b16 %v7952
    %v9401 = vunpack.c.l.b16 %v7953
    %v9402 = vunpack.c.h.b16 %v7953
    %v9403 = vunpack.c.l.b16 %v7954
    %v9404 = vunpack.c.h.b16 %v7954
    %v9405 = vunpack.c.l.b16 %v7955
    %v9406 = vunpack.c.h.b16 %v7955
    %v9407 = vunpack.c.l.b16 %v7956
    %v9408 = vunpack.c.h.b16 %v7956
    %v9409 = vunpack.c.l.b16 %v7957
    %v9410 = vunpack.c.h.b16 %v7957
    %v9411 = vunpack.c.l.b16 %v7958
    %v9412 = vunpack.c.h.b16 %v7958
    %v9413 = vunpack.c.l.b16 %v7959
    %v9414 = vunpack.c.h.b16 %v7959
    %v9415 = vunpack.c.l.b16 %v7960
    %v9416 = vunpack.c.h.b16 %v7960
    %v9417 = vunpack.c.l.b16 %v7961
    %v9418 = vunpack.c.h.b16 %v7961
    %v9419 = vunpack.c.l.b16 %v7962
    %v9420 = vunpack.c.h.b16 %v7962
    %v9421 = vunpack.c.l.b16 %v7963
    %v9422 = vunpack.c.h.b16 %v7963
    %v9423 = vunpack.c.l.b16 %v7964
    %v9424 = vunpack.c.h.b16 %v7964
    %v9425 = vunpack.c.l.b16 %v7965
    %v9426 = vunpack.c.h.b16 %v7965
    %v9427 = vunpack.c.l.b16 %v7966
    %v9428 = vunpack.c.h.b16 %v7966
    %v9429 = vunpack.c.l.b16 %v7967
    %v9430 = vunpack.c.h.b16 %v7967
    %v9431 = vunpack.c.l.b16 %v7968
    %v9432 = vunpack.c.h.b16 %v7968
    %v9433 = vunpack.c.l.b16 %v7969
    %v9434 = vunpack.c.h.b16 %v7969
    %v9435 = vunpack.c.l.b16 %v7970
    %v9436 = vunpack.c.h.b16 %v7970
    %v9437 = vunpack.c.l.b16 %v7971
    %v9438 = vunpack.c.h.b16 %v7971
    %v9439 = vunpack.c.l.b16 %v7972
    %v9440 = vunpack.c.h.b16 %v7972
    %v9441 = vunpack.c.l.b16 %v7973
    %v9442 = vunpack.c.h.b16 %v7973
    %v9443 = vunpack.c.l.b16 %v7974
    %v9444 = vunpack.c.h.b16 %v7974
    %v9445 = vunpack.c.l.b16 %v7975
    %v9446 = vunpack.c.h.b16 %v7975
    %v9447 = vunpack.c.l.b16 %v7976
    %v9448 = vunpack.c.h.b16 %v7976
    %v9449 = vunpack.c.l.b16 %v7977
    %v9450 = vunpack.c.h.b16 %v7977
    %v9451 = vunpack.c.l.b16 %v7978
    %v9452 = vunpack.c.h.b16 %v7978
    %v9453 = vunpack.c.l.b16 %v7979
    %v9454 = vunpack.c.h.b16 %v7979
    %v9455 = vunpack.c.l.b16 %v7980
    %v9456 = vunpack.c.h.b16 %v7980
    %v9457 = vunpack.c.l.b16 %v7981
    %v9458 = vunpack.c.h.b16 %v7981
    %v9459 = vunpack.c.l.b16 %v7982
    %v9460 = vunpack.c.h.b16 %v7982
    %v9461 = vunpack.c.l.b16 %v7983
    %v9462 = vunpack.c.h.b16 %v7983
    %v9463 = vunpack.c.l.b16 %v7984
    %v9464 = vunpack.c.h.b16 %v7984
    %v9465 = vunpack.c.l.b16 %v7985
    %v9466 = vunpack.c.h.b16 %v7985
    %v9467 = vunpack.c.l.b16 %v7986
    %v9468 = vunpack.c.h.b16 %v7986
    %v9469 = vunpack.c.l.b16 %v7987
    %v9470 = vunpack.c.h.b16 %v7987
    %v9471 = vunpack.c.l.b16 %v7988
    %v9472 = vunpack.c.h.b16 %v7988
    %v9473 = vunpack.c.l.b16 %v7989
    %v9474 = vunpack.c.h.b16 %v7989
    %v9475 = vunpack.c.l.b16 %v7990
    %v9476 = vunpack.c.h.b16 %v7990
    %v9477 = vunpack.c.l.b16 %v7991
    %v9478 = vunpack.c.h.b16 %v7991
    %v9479 = vunpack.c.l.b16 %v7992
    %v9480 = vunpack.c.h.b16 %v7992
    %v9481 = vunpack.c.l.b16 %v7993
    %v9482 = vunpack.c.h.b16 %v7993
    %v9483 = vunpack.c.l.b16 %v7994
    %v9484 = vunpack.c.h.b16 %v7994
    %v9485 = vunpack.c.l.b16 %v7995
    %v9486 = vunpack.c.h.b16 %v7995
    %v9487 = vunpack.c.l.b16 %v7996
    %v9488 = vunpack.c.h.b16 %v7996
    %v9489 = vunpack.c.l.b16 %v7997
    %v9490 = vunpack.c.h.b16 %v7997
    %v9491 = vunpack.c.l.b16 %v7998
    %v9492 = vunpack.c.h.b16 %v7998
    %v9493 = vunpack.c.l.b16 %v7999
    %v9494 = vunpack.c.h.b16 %v7999
    %v9495 = vunpack.c.l.b16 %v8000
    %v9496 = vunpack.c.h.b16 %v8000
    %v9497 = vunpack.c.l.b16 %v8001
    %v9498 = vunpack.c.h.b16 %v8001
    %v9499 = vunpack.c.l.b16 %v8002
    %v9500 = vunpack.c.h.b16 %v8002
    %v9501 = vunpack.c.l.b16 %v8003
    %v9502 = vunpack.c.h.b16 %v8003
    %v9503 = vunpack.c.l.b16 %v8004
    %v9504 = vunpack.c.h.b16 %v8004
    %v9505 = vunpack.c.l.b16 %v8005
    %v9506 = vunpack.c.h.b16 %v8005
    %v9507 = vunpack.c.l.b16 %v8006
    %v9508 = vunpack.c.h.b16 %v8006
    %v9509 = vunpack.c.l.b16 %v8007
    %v9510 = vunpack.c.h.b16 %v8007
    %v9511 = vunpack.c.l.b16 %v8008
    %v9512 = vunpack.c.h.b16 %v8008
    %v9513 = vunpack.c.l.b16 %v8009
    %v9514 = vunpack.c.h.b16 %v8009
    %v9515 = vunpack.c.l.b16 %v8010
    %v9516 = vunpack.c.h.b16 %v8010
    %v9517 = vunpack.c.l.b16 %v8011
    %v9518 = vunpack.c.h.b16 %v8011
    %v9519 = vunpack.c.l.b16 %v8012
    %v9520 = vunpack.c.h.b16 %v8012
    %v9521 = vunpack.c.l.b16 %v8013
    %v9522 = vunpack.c.h.b16 %v8013
    %v9523 = vunpack.c.l.b16 %v8014
    %v9524 = vunpack.c.h.b16 %v8014
    %v9525 = vunpack.c.l.b16 %v8015
    %v9526 = vunpack.c.h.b16 %v8015
    %v9527 = vunpack.c.l.b16 %v8016
    %v9528 = vunpack.c.h.b16 %v8016
    %v9529 = vunpack.c.l.b16 %v8017
    %v9530 = vunpack.c.h.b16 %v8017
    %v9531 = vunpack.c.l.b16 %v8018
    %v9532 = vunpack.c.h.b16 %v8018
    %v9533 = vunpack.c.l.b16 %v8019
    %v9534 = vunpack.c.h.b16 %v8019
    %v9535 = vunpack.c.l.b16 %v8020
    %v9536 = vunpack.c.h.b16 %v8020
    %v9537 = vunpack.c.l.b16 %v8021
    %v9538 = vunpack.c.h.b16 %v8021
    %v9539 = vunpack.c.l.b16 %v8022
    %v9540 = vunpack.c.h.b16 %v8022
    %v9541 = vunpack.c.l.b16 %v8023
    %v9542 = vunpack.c.h.b16 %v8023
    %v9543 = vunpack.c.l.b16 %v8024
    %v9544 = vunpack.c.h.b16 %v8024
    %v9545 = vunpack.c.l.b16 %v8025
    %v9546 = vunpack.c.h.b16 %v8025
    %v9547 = vunpack.c.l.b16 %v8026
    %v9548 = vunpack.c.h.b16 %v8026
    %v9549 = vunpack.c.l.b16 %v8027
    %v9550 = vunpack.c.h.b16 %v8027
    %v9551 = vunpack.c.l.b16 %v8028
    %v9552 = vunpack.c.h.b16 %v8028
    %v9553 = vunpack.c.l.b16 %v8029
    %v9554 = vunpack.c.h.b16 %v8029
    %v9555 = vunpack.c.l.b16 %v8030
    %v9556 = vunpack.c.h.b16 %v8030
    %v9557 = vunpack.c.l.b16 %v8031
    %v9558 = vunpack.c.h.b16 %v8031
    %v9559 = vunpack.c.l.b16 %v8032
    %v9560 = vunpack.c.h.b16 %v8032
    %v9561 = vunpack.c.l.b16 %v8033
    %v9562 = vunpack.c.h.b16 %v8033
    %v9563 = vunpack.c.l.b16 %v8034
    %v9564 = vunpack.c.h.b16 %v8034
    %v9565 = vunpack.c.l.b16 %v8035
    %v9566 = vunpack.c.h.b16 %v8035
    %v9567 = vunpack.c.l.b16 %v8036
    %v9568 = vunpack.c.h.b16 %v8036
    %v9569 = vunpack.c.l.b16 %v8037
    %v9570 = vunpack.c.h.b16 %v8037
    %v9571 = vunpack.c.l.b16 %v8038
    %v9572 = vunpack.c.h.b16 %v8038
    %v9573 = vunpack.c.l.b16 %v8039
    %v9574 = vunpack.c.h.b16 %v8039
    %v9575 = vunpack.c.l.b16 %v8040
    %v9576 = vunpack.c.h.b16 %v8040
    %v9577 = vunpack.c.l.b16 %v8041
    %v9578 = vunpack.c.h.b16 %v8041
    %v9579 = vunpack.c.l.b16 %v8042
    %v9580 = vunpack.c.h.b16 %v8042
    %v9581 = vunpack.c.l.b16 %v8043
    %v9582 = vunpack.c.h.b16 %v8043
    %v9583 = vunpack.c.l.b16 %v8044
    %v9584 = vunpack.c.h.b16 %v8044
    %v9585 = vunpack.c.l.b16 %v8045
    %v9586 = vunpack.c.h.b16 %v8045
    %v9587 = vunpack.c.l.b16 %v8046
    %v9588 = vunpack.c.h.b16 %v8046
    %v9589 = vunpack.c.l.b16 %v8047
    %v9590 = vunpack.c.h.b16 %v8047
    %v9591 = vunpack.c.l.b16 %v8048
    %v9592 = vunpack.c.h.b16 %v8048
    %v9593 = vunpack.c.l.b16 %v8049
    %v9594 = vunpack.c.h.b16 %v8049
    %v9595 = vunpack.c.l.b16 %v8050
    %v9596 = vunpack.c.h.b16 %v8050
    %v9597 = vunpack.c.l.b16 %v8051
    %v9598 = vunpack.c.h.b16 %v8051
    %v9599 = vunpack.c.l.b16 %v8052
    %v9600 = vunpack.c.h.b16 %v8052
    %v9601 = vunpack.c.l.b16 %v8053
    %v9602 = vunpack.c.h.b16 %v8053
    %v9603 = vunpack.c.l.b16 %v8054
    %v9604 = vunpack.c.h.b16 %v8054
    %v9605 = vunpack.c.l.b16 %v8055
    %v9606 = vunpack.c.h.b16 %v8055
    %v9607 = vunpack.c.l.b16 %v8056
    %v9608 = vunpack.c.h.b16 %v8056
    %v9609 = vunpack.c.l.b16 %v8057
    %v9610 = vunpack.c.h.b16 %v8057
    %v9611 = vunpack.c.l.b16 %v8058
    %v9612 = vunpack.c.h.b16 %v8058
    %v9613 = vunpack.c.l.b16 %v8059
    %v9614 = vunpack.c.h.b16 %v8059
    %v9615 = vunpack.c.l.b16 %v8060
    %v9616 = vunpack.c.h.b16 %v8060
    %v9617 = vunpack.c.l.b16 %v8061
    %v9618 = vunpack.c.h.b16 %v8061
    %v9619 = vunpack.c.l.b16 %v8062
    %v9620 = vunpack.c.h.b16 %v8062
    %v9621 = vunpack.c.l.b16 %v8063
    %v9622 = vunpack.c.h.b16 %v8063
    %v9623 = vunpack.c.l.b16 %v8064
    %v9624 = vunpack.c.h.b16 %v8064
    %v9625 = vunpack.c.l.b16 %v8065
    %v9626 = vunpack.c.h.b16 %v8065
    %v9627 = vunpack.c.l.b16 %v8066
    %v9628 = vunpack.c.h.b16 %v8066
    %v9629 = vunpack.c.l.b16 %v8067
    %v9630 = vunpack.c.h.b16 %v8067
    %v9631 = vunpack.c.l.b16 %v8068
    %v9632 = vunpack.c.h.b16 %v8068
    %v9633 = vunpack.c.l.b16 %v8069
    %v9634 = vunpack.c.h.b16 %v8069
    %v9635 = vunpack.c.l.b16 %v8070
    %v9636 = vunpack.c.h.b16 %v8070
    %v9637 = vunpack.c.l.b16 %v8071
    %v9638 = vunpack.c.h.b16 %v8071
    %v9639 = vunpack.c.l.b16 %v8072
    %v9640 = vunpack.c.h.b16 %v8072
    %v9641 = vunpack.c.l.b16 %v8073
    %v9642 = vunpack.c.h.b16 %v8073
    %v9643 = vunpack.c.l.b16 %v8074
    %v9644 = vunpack.c.h.b16 %v8074
    %v9645 = vunpack.c.l.b16 %v8075
    %v9646 = vunpack.c.h.b16 %v8075
    %v9647 = vunpack.c.l.b16 %v8076
    %v9648 = vunpack.c.h.b16 %v8076
    %v9649 = vunpack.c.l.b16 %v8077
    %v9650 = vunpack.c.h.b16 %v8077
    %v9651 = vunpack.c.l.b16 %v8078
    %v9652 = vunpack.c.h.b16 %v8078
    %v9653 = vunpack.c.l.b16 %v8079
    %v9654 = vunpack.c.h.b16 %v8079
    %v9655 = vunpack.c.l.b16 %v8080
    %v9656 = vunpack.c.h.b16 %v8080
    %v9657 = vunpack.c.l.b16 %v8081
    %v9658 = vunpack.c.h.b16 %v8081
    %v9659 = vunpack.c.l.b16 %v8082
    %v9660 = vunpack.c.h.b16 %v8082
    %v9661 = vunpack.c.l.b16 %v8083
    %v9662 = vunpack.c.h.b16 %v8083
    %v9663 = vunpack.c.l.b16 %v8084
    %v9664 = vunpack.c.h.b16 %v8084
    %v9665 = vunpack.c.l.b16 %v8085
    %v9666 = vunpack.c.h.b16 %v8085
    %v9667 = vunpack.c.l.b16 %v8086
    %v9668 = vunpack.c.h.b16 %v8086
    %v9669 = vunpack.c.l.b16 %v8087
    %v9670 = vunpack.c.h.b16 %v8087
    %v9671 = vunpack.c.l.b16 %v8088
    %v9672 = vunpack.c.h.b16 %v8088
    %v9673 = vunpack.c.l.b16 %v8089
    %v9674 = vunpack.c.h.b16 %v8089
    %v9675 = vunpack.c.l.b16 %v8090
    %v9676 = vunpack.c.h.b16 %v8090
    %v9677 = vunpack.c.l.b16 %v8091
    %v9678 = vunpack.c.h.b16 %v8091
    %v9679 = vunpack.c.l.b16 %v8092
    %v9680 = vunpack.c.h.b16 %v8092
    %v9681 = vunpack.c.l.b16 %v8093
    %v9682 = vunpack.c.h.b16 %v8093
    %v9683 = vunpack.c.l.b16 %v8094
    %v9684 = vunpack.c.h.b16 %v8094
    %v9685 = vunpack.c.l.b16 %v8095
    %v9686 = vunpack.c.h.b16 %v8095
    %v9687 = vunpack.c.l.b16 %v8096
    %v9688 = vunpack.c.h.b16 %v8096
    %v9689 = vunpack.c.l.b16 %v8097
    %v9690 = vunpack.c.h.b16 %v8097
    %v9691 = vunpack.c.l.b16 %v8098
    %v9692 = vunpack.c.h.b16 %v8098
    %v9693 = vunpack.c.l.b16 %v8099
    %v9694 = vunpack.c.h.b16 %v8099
    %v9695 = vunpack.c.l.b16 %v8100
    %v9696 = vunpack.c.h.b16 %v8100
    %v9697 = vunpack.c.l.b16 %v8101
    %v9698 = vunpack.c.h.b16 %v8101
    %v9699 = vunpack.c.l.b16 %v8102
    %v9700 = vunpack.c.h.b16 %v8102
    %v9701 = vunpack.c.l.b16 %v8103
    %v9702 = vunpack.c.h.b16 %v8103
    %v9703 = vunpack.c.l.b16 %v8104
    %v9704 = vunpack.c.h.b16 %v8104
    %v9705 = vunpack.c.l.b16 %v8105
    %v9706 = vunpack.c.h.b16 %v8105
    %v9707 = vunpack.c.l.b16 %v8106
    %v9708 = vunpack.c.h.b16 %v8106
    %v9709 = vunpack.c.l.b16 %v8107
    %v9710 = vunpack.c.h.b16 %v8107
    %v9711 = vunpack.c.l.b16 %v8108
    %v9712 = vunpack.c.h.b16 %v8108
    %v9713 = vunpack.c.l.b16 %v8109
    %v9714 = vunpack.c.h.b16 %v8109
    %v9715 = vunpack.c.l.b16 %v8110
    %v9716 = vunpack.c.h.b16 %v8110
    %v9717 = vunpack.c.l.b16 %v8111
    %v9718 = vunpack.c.h.b16 %v8111
    %v9719 = vunpack.c.l.b16 %v8112
    %v9720 = vunpack.c.h.b16 %v8112
    %v9721 = vunpack.c.l.b16 %v8113
    %v9722 = vunpack.c.h.b16 %v8113
    %v9723 = vunpack.c.l.b16 %v8114
    %v9724 = vunpack.c.h.b16 %v8114
    %v9725 = vunpack.c.l.b16 %v8115
    %v9726 = vunpack.c.h.b16 %v8115
    %v9727 = vunpack.c.l.b16 %v8116
    %v9728 = vunpack.c.h.b16 %v8116
    %v9729 = vunpack.c.l.b16 %v8117
    %v9730 = vunpack.c.h.b16 %v8117
    %v9731 = vunpack.c.l.b16 %v8118
    %v9732 = vunpack.c.h.b16 %v8118
    %v9733 = vunpack.c.l.b16 %v8119
    %v9734 = vunpack.c.h.b16 %v8119
    %v9735 = vunpack.c.l.b16 %v8120
    %v9736 = vunpack.c.h.b16 %v8120
    %v9737 = vunpack.c.l.b16 %v8121
    %v9738 = vunpack.c.h.b16 %v8121
    %v9739 = vunpack.c.l.b16 %v8122
    %v9740 = vunpack.c.h.b16 %v8122
    %v9741 = vunpack.c.l.b16 %v8123
    %v9742 = vunpack.c.h.b16 %v8123
    %v9743 = vunpack.c.l.b16 %v8124
    %v9744 = vunpack.c.h.b16 %v8124
    %v9745 = vunpack.c.l.b16 %v8125
    %v9746 = vunpack.c.h.b16 %v8125
    %v9747 = vunpack.c.l.b16 %v8126
    %v9748 = vunpack.c.h.b16 %v8126
    %v9749 = vunpack.c.l.b16 %v8127
    %v9750 = vunpack.c.h.b16 %v8127
    %v9751 = vunpack.c.l.b16 %v8128
    %v9752 = vunpack.c.h.b16 %v8128
    %v9753 = vunpack.c.l.b16 %v8129
    %v9754 = vunpack.c.h.b16 %v8129
    %v9755 = vunpack.c.l.b16 %v8130
    %v9756 = vunpack.c.h.b16 %v8130
    %v9757 = vunpack.c.l.b16 %v8131
    %v9758 = vunpack.c.h.b16 %v8131
    %v9759 = vunpack.c.l.b16 %v8132
    %v9760 = vunpack.c.h.b16 %v8132
    %v9761 = vunpack.c.l.b16 %v8133
    %v9762 = vunpack.c.h.b16 %v8133
    %v9763 = vunpack.c.l.b16 %v8134
    %v9764 = vunpack.c.h.b16 %v8134
    %v9765 = vunpack.c.l.b16 %v8135
    %v9766 = vunpack.c.h.b16 %v8135
    %v9767 = vunpack.c.l.b16 %v8136
    %v9768 = vunpack.c.h.b16 %v8136
    %v9769 = vunpack.c.l.b16 %v8137
    %v9770 = vunpack.c.h.b16 %v8137
    %v9771 = vunpack.c.l.b16 %v8138
    %v9772 = vunpack.c.h.b16 %v8138
    %v9773 = vunpack.c.l.b16 %v8139
    %v9774 = vunpack.c.h.b16 %v8139
    %v9775 = vunpack.c.l.b16 %v8140
    %v9776 = vunpack.c.h.b16 %v8140
    %v9777 = vunpack.c.l.b16 %v8141
    %v9778 = vunpack.c.h.b16 %v8141
    %v9779 = vunpack.c.l.b16 %v8142
    %v9780 = vunpack.c.h.b16 %v8142
    %v9781 = vunpack.c.l.b16 %v8143
    %v9782 = vunpack.c.h.b16 %v8143
    %v9783 = vunpack.c.l.b16 %v8144
    %v9784 = vunpack.c.h.b16 %v8144
    %v9785 = vunpack.c.l.b16 %v8145
    %v9786 = vunpack.c.h.b16 %v8145
    %v9787 = vunpack.c.l.b16 %v8146
    %v9788 = vunpack.c.h.b16 %v8146
    %v9789 = vunpack.c.l.b16 %v8147
    %v9790 = vunpack.c.h.b16 %v8147
    %v9791 = vunpack.c.l.b16 %v8148
    %v9792 = vunpack.c.h.b16 %v8148
    %v9793 = vunpack.c.l.b16 %v8149
    %v9794 = vunpack.c.h.b16 %v8149
    %v9795 = vunpack.c.l.b16 %v8150
    %v9796 = vunpack.c.h.b16 %v8150
    %v9797 = vunpack.c.l.b16 %v8151
    %v9798 = vunpack.c.h.b16 %v8151
    %v9799 = vunpack.c.l.b16 %v8152
    %v9800 = vunpack.c.h.b16 %v8152
    %v9801 = vunpack.c.l.b16 %v8153
    %v9802 = vunpack.c.h.b16 %v8153
    %v9803 = vunpack.c.l.b16 %v8154
    %v9804 = vunpack.c.h.b16 %v8154
    %v9805 = vunpack.c.l.b16 %v8155
    %v9806 = vunpack.c.h.b16 %v8155
    %v9807 = vunpack.c.l.b16 %v8156
    %v9808 = vunpack.c.h.b16 %v8156
    %v9809 = vunpack.c.l.b16 %v8157
    %v9810 = vunpack.c.h.b16 %v8157
    %v9811 = vunpack.c.l.b16 %v8158
    %v9812 = vunpack.c.h.b16 %v8158
    %v9813 = vunpack.c.l.b16 %v8159
    %v9814 = vunpack.c.h.b16 %v8159
    %v9815 = vunpack.c.l.b16 %v8160
    %v9816 = vunpack.c.h.b16 %v8160
    %v9817 = vunpack.c.l.b16 %v8161
    %v9818 = vunpack.c.h.b16 %v8161
    %v9819 = vunpack.c.l.b16 %v8162
    %v9820 = vunpack.c.h.b16 %v8162
    %v9821 = vunpack.c.l.b16 %v8163
    %v9822 = vunpack.c.h.b16 %v8163
    %v9823 = vunpack.c.l.b16 %v8164
    %v9824 = vunpack.c.h.b16 %v8164
    %v9825 = vunpack.c.l.b16 %v8165
    %v9826 = vunpack.c.h.b16 %v8165
    %v9827 = vunpack.c.l.b16 %v8166
    %v9828 = vunpack.c.h.b16 %v8166
    %v9829 = vunpack.c.l.b16 %v8167
    %v9830 = vunpack.c.h.b16 %v8167
    %v9831 = vunpack.c.l.b16 %v8168
    %v9832 = vunpack.c.h.b16 %v8168
    %v9833 = vunpack.c.l.b16 %v8169
    %v9834 = vunpack.c.h.b16 %v8169
    %v9835 = vunpack.c.l.b16 %v8170
    %v9836 = vunpack.c.h.b16 %v8170
    %v9837 = vunpack.c.l.b16 %v8171
    %v9838 = vunpack.c.h.b16 %v8171
    %v9839 = vunpack.c.l.b16 %v8172
    %v9840 = vunpack.c.h.b16 %v8172
    %v9841 = vunpack.c.l.b16 %v8173
    %v9842 = vunpack.c.h.b16 %v8173
    %v9843 = vunpack.c.l.b16 %v8174
    %v9844 = vunpack.c.h.b16 %v8174
    %v9845 = vunpack.c.l.b16 %v8175
    %v9846 = vunpack.c.h.b16 %v8175
    %v9847 = vunpack.c.l.b16 %v8176
    %v9848 = vunpack.c.h.b16 %v8176
    %v9849 = vunpack.c.l.b16 %v8177
    %v9850 = vunpack.c.h.b16 %v8177
    %v9851 = vunpack.c.l.b16 %v8178
    %v9852 = vunpack.c.h.b16 %v8178
    %v9853 = vunpack.c.l.b16 %v8179
    %v9854 = vunpack.c.h.b16 %v8179
    %v9855 = vunpack.c.l.b16 %v8180
    %v9856 = vunpack.c.h.b16 %v8180
    %v9857 = vunpack.c.l.b16 %v8181
    %v9858 = vunpack.c.h.b16 %v8181
    %v9859 = vunpack.c.l.b16 %v8182
    %v9860 = vunpack.c.h.b16 %v8182
    %v9861 = vunpack.c.l.b16 %v8183
    %v9862 = vunpack.c.h.b16 %v8183
    %v9863 = vunpack.c.l.b16 %v8184
    %v9864 = vunpack.c.h.b16 %v8184
    %v9865 = vunpack.c.l.b16 %v8185
    %v9866 = vunpack.c.h.b16 %v8185
    %v9867 = vunpack.c.l.b16 %v8186
    %v9868 = vunpack.c.h.b16 %v8186
    %v9869 = vunpack.c.l.b16 %v8187
    %v9870 = vunpack.c.h.b16 %v8187
    %v9871 = vunpack.c.l.b16 %v8188
    %v9872 = vunpack.c.h.b16 %v8188
    %v9873 = vunpack.c.l.b16 %v8189
    %v9874 = vunpack.c.h.b16 %v8189
    %v9875 = vunpack.c.l.b16 %v8190
    %v9876 = vunpack.c.h.b16 %v8190
    %v9877 = vunpack.c.l.b16 %v8191
    %v9878 = vunpack.c.h.b16 %v8191
    %v9879 = vunpack.c.l.b16 %v8192
    %v9880 = vunpack.c.h.b16 %v8192
    %v9881 = vunpack.c.l.b16 %v8193
    %v9882 = vunpack.c.h.b16 %v8193
    %v9883 = vunpack.c.l.b16 %v8194
    %v9884 = vunpack.c.h.b16 %v8194
    %v9885 = vunpack.c.l.b16 %v8195
    %v9886 = vunpack.c.h.b16 %v8195
    %v9887 = vunpack.c.l.b16 %v8196
    %v9888 = vunpack.c.h.b16 %v8196
    %v9889 = vunpack.c.l.b16 %v8197
    %v9890 = vunpack.c.h.b16 %v8197
    %v9891 = vunpack.c.l.b16 %v8198
    %v9892 = vunpack.c.h.b16 %v8198
    %v9893 = vunpack.c.l.b16 %v8199
    %v9894 = vunpack.c.h.b16 %v8199
    %v9895 = vunpack.c.l.b16 %v8200
    %v9896 = vunpack.c.h.b16 %v8200
    %v9897 = vunpack.c.l.b16 %v8201
    %v9898 = vunpack.c.h.b16 %v8201
    %v9899 = vunpack.c.l.b16 %v8202
    %v9900 = vunpack.c.h.b16 %v8202
    %v9901 = vunpack.c.l.b16 %v8203
    %v9902 = vunpack.c.h.b16 %v8203
    %v9903 = vunpack.c.l.b16 %v8204
    %v9904 = vunpack.c.h.b16 %v8204
    %v9905 = vunpack.c.l.b16 %v8205
    %v9906 = vunpack.c.h.b16 %v8205
    %v9907 = vunpack.c.l.b16 %v8206
    %v9908 = vunpack.c.h.b16 %v8206
    %v9909 = vunpack.c.l.b16 %v8207
    %v9910 = vunpack.c.h.b16 %v8207
    %v9911 = vunpack.c.l.b16 %v8208
    %v9912 = vunpack.c.h.b16 %v8208
    %v9913 = vunpack.c.l.b16 %v8209
    %v9914 = vunpack.c.h.b16 %v8209
    %v9915 = vunpack.c.l.b16 %v8210
    %v9916 = vunpack.c.h.b16 %v8210
    %v9917 = vunpack.c.l.b16 %v8211
    %v9918 = vunpack.c.h.b16 %v8211
    %v9919 = vunpack.c.l.b16 %v8212
    %v9920 = vunpack.c.h.b16 %v8212
    %v9921 = vunpack.c.l.b16 %v8213
    %v9922 = vunpack.c.h.b16 %v8213
    %v9923 = vunpack.c.l.b16 %v8214
    %v9924 = vunpack.c.h.b16 %v8214
    %v9925 = vunpack.c.l.b16 %v8215
    %v9926 = vunpack.c.h.b16 %v8215
    %v9927 = vunpack.c.l.b16 %v8216
    %v9928 = vunpack.c.h.b16 %v8216
    %v9929 = vunpack.c.l.b16 %v8217
    %v9930 = vunpack.c.h.b16 %v8217
    %v9931 = vunpack.c.l.b16 %v8218
    %v9932 = vunpack.c.h.b16 %v8218
    %v9933 = vunpack.c.l.b16 %v8219
    %v9934 = vunpack.c.h.b16 %v8219
    %v9935 = vunpack.c.l.b16 %v8220
    %v9936 = vunpack.c.h.b16 %v8220
    %v9937 = vunpack.c.l.b16 %v8221
    %v9938 = vunpack.c.h.b16 %v8221
    %v9939 = vunpack.c.l.b16 %v8222
    %v9940 = vunpack.c.h.b16 %v8222
    %v9941 = vunpack.c.l.b16 %v8223
    %v9942 = vunpack.c.h.b16 %v8223
    %v9943 = vunpack.c.l.b16 %v8224
    %v9944 = vunpack.c.h.b16 %v8224
    %v9945 = vunpack.c.l.b16 %v8225
    %v9946 = vunpack.c.h.b16 %v8225
    %v9947 = vunpack.c.l.b16 %v8226
    %v9948 = vunpack.c.h.b16 %v8226
    %v9949 = vunpack.c.l.b16 %v8227
    %v9950 = vunpack.c.h.b16 %v8227
    %v9951 = vunpack.c.l.b16 %v8228
    %v9952 = vunpack.c.h.b16 %v8228
    %v9953 = vunpack.c.l.b16 %v8229
    %v9954 = vunpack.c.h.b16 %v8229
    %v9955 = vunpack.c.l.b16 %v8230
    %v9956 = vunpack.c.h.b16 %v8230
    %v9957 = vunpack.c.l.b16 %v8231
    %v9958 = vunpack.c.h.b16 %v8231
    %v9959 = vunpack.c.l.b16 %v8232
    %v9960 = vunpack.c.h.b16 %v8232
    %v9961 = vunpack.c.l.b16 %v8233
    %v9962 = vunpack.c.h.b16 %v8233
    %v9963 = vunpack.c.l.b16 %v8234
    %v9964 = vunpack.c.h.b16 %v8234
    %v9965 = vunpack.c.l.b16 %v8235
    %v9966 = vunpack.c.h.b16 %v8235
    %v9967 = vunpack.c.l.b16 %v8236
    %v9968 = vunpack.c.h.b16 %v8236
    %v9969 = vunpack.c.l.b16 %v8237
    %v9970 = vunpack.c.h.b16 %v8237
    %v9971 = vunpack.c.l.b16 %v8238
    %v9972 = vunpack.c.h.b16 %v8238
    %v9973 = vunpack.c.l.b16 %v8239
    %v9974 = vunpack.c.h.b16 %v8239
    %v9975 = vunpack.c.l.b16 %v8240
    %v9976 = vunpack.c.h.b16 %v8240
    %v9977 = vunpack.c.l.b16 %v8241
    %v9978 = vunpack.c.h.b16 %v8241
    %v9979 = vunpack.c.l.b16 %v8242
    %v9980 = vunpack.c.h.b16 %v8242
    %v9981 = vunpack.c.l.b16 %v8243
    %v9982 = vunpack.c.h.b16 %v8243
    %v9983 = vunpack.c.l.b16 %v8244
    %v9984 = vunpack.c.h.b16 %v8244
    %v9985 = vunpack.c.l.b16 %v8245
    %v9986 = vunpack.c.h.b16 %v8245
    %v9987 = vunpack.c.l.b16 %v8246
    %v9988 = vunpack.c.h.b16 %v8246
    %v9989 = vunpack.c.l.b16 %v8247
    %v9990 = vunpack.c.h.b16 %v8247
    %v9991 = vunpack.c.l.b16 %v8248
    %v9992 = vunpack.c.h.b16 %v8248
    %v9993 = vunpack.c.l.b16 %v8249
    %v9994 = vunpack.c.h.b16 %v8249
    %v9995 = vunpack.c.l.b16 %v8250
    %v9996 = vunpack.c.h.b16 %v8250
    %v9997 = vunpack.c.l.b16 %v8251
    %v9998 = vunpack.c.h.b16 %v8251
    %v9999 = vunpack.c.l.b16 %v8252
    %v10000 = vunpack.c.h.b16 %v8252
    %v10001 = vunpack.c.l.b16 %v8253
    %v10002 = vunpack.c.h.b16 %v8253
    %v10003 = vunpack.c.l.b16 %v8254
    %v10004 = vunpack.c.h.b16 %v8254
    %v10005 = vunpack.c.l.b16 %v8255
    %v10006 = vunpack.c.h.b16 %v8255
    %v10007 = vunpack.c.l.b16 %v8256
    %v10008 = vunpack.c.h.b16 %v8256
    %v10009 = vunpack.c.l.b16 %v8257
    %v10010 = vunpack.c.h.b16 %v8257
    %v10011 = vunpack.c.l.b16 %v8258
    %v10012 = vunpack.c.h.b16 %v8258
    %v10013 = vunpack.c.l.b16 %v8259
    %v10014 = vunpack.c.h.b16 %v8259
    %v10015 = vunpack.c.l.b16 %v8260
    %v10016 = vunpack.c.h.b16 %v8260
    %v10017 = vunpack.c.l.b16 %v8261
    %v10018 = vunpack.c.h.b16 %v8261
    %v10019 = vunpack.c.l.b16 %v8262
    %v10020 = vunpack.c.h.b16 %v8262
    %v10021 = vunpack.c.l.b16 %v8263
    %v10022 = vunpack.c.h.b16 %v8263
    %v10023 = vunpack.c.l.b16 %v8264
    %v10024 = vunpack.c.h.b16 %v8264
    %v10025 = vunpack.c.l.b16 %v8265
    %v10026 = vunpack.c.h.b16 %v8265
    %v10027 = vunpack.c.l.b16 %v8266
    %v10028 = vunpack.c.h.b16 %v8266
    %v10029 = vunpack.c.l.b16 %v8267
    %v10030 = vunpack.c.h.b16 %v8267
    %v10031 = vunpack.c.l.b16 %v8268
    %v10032 = vunpack.c.h.b16 %v8268
    %v10033 = vunpack.c.l.b16 %v8269
    %v10034 = vunpack.c.h.b16 %v8269
    %v10035 = vunpack.c.l.b16 %v8270
    %v10036 = vunpack.c.h.b16 %v8270
    %v10037 = vunpack.c.l.b16 %v8271
    %v10038 = vunpack.c.h.b16 %v8271
    %v10039 = vunpack.c.l.b16 %v8272
    %v10040 = vunpack.c.h.b16 %v8272
    %v10041 = vunpack.c.l.b16 %v8273
    %v10042 = vunpack.c.h.b16 %v8273
    %v10043 = vunpack.c.l.b16 %v8274
    %v10044 = vunpack.c.h.b16 %v8274
    %v10045 = vunpack.c.l.b16 %v8275
    %v10046 = vunpack.c.h.b16 %v8275
    %v10047 = vunpack.c.l.b16 %v8276
    %v10048 = vunpack.c.h.b16 %v8276
    %v10049 = vunpack.c.l.b16 %v8277
    %v10050 = vunpack.c.h.b16 %v8277
    %v10051 = vunpack.c.l.b16 %v8278
    %v10052 = vunpack.c.h.b16 %v8278
    %v10053 = vunpack.c.l.b16 %v8279
    %v10054 = vunpack.c.h.b16 %v8279
    %v10055 = vunpack.c.l.b16 %v8280
    %v10056 = vunpack.c.h.b16 %v8280
    %v10057 = vunpack.c.l.b16 %v8281
    %v10058 = vunpack.c.h.b16 %v8281
    %v10059 = vunpack.c.l.b16 %v8282
    %v10060 = vunpack.c.h.b16 %v8282
    %v10061 = vunpack.c.l.b16 %v8283
    %v10062 = vunpack.c.h.b16 %v8283
    %v10063 = vunpack.c.l.b16 %v8284
    %v10064 = vunpack.c.h.b16 %v8284
    %v10065 = vunpack.c.l.b16 %v8285
    %v10066 = vunpack.c.h.b16 %v8285
    %v10067 = vunpack.c.l.b16 %v8286
    %v10068 = vunpack.c.h.b16 %v8286
    %v10069 = vunpack.c.l.b16 %v8287
    %v10070 = vunpack.c.h.b16 %v8287
    %v10071 = vunpack.c.l.b16 %v8288
    %v10072 = vunpack.c.h.b16 %v8288
    %v10073 = vunpack.c.l.b16 %v8289
    %v10074 = vunpack.c.h.b16 %v8289
    %v10075 = vunpack.c.l.b16 %v8290
    %v10076 = vunpack.c.h.b16 %v8290
    %v10077 = vunpack.c.l.b16 %v8291
    %v10078 = vunpack.c.h.b16 %v8291
    %v10079 = vunpack.c.l.b16 %v8292
    %v10080 = vunpack.c.h.b16 %v8292
    %v10081 = vunpack.c.l.b16 %v8293
    %v10082 = vunpack.c.h.b16 %v8293
    %v10083 = vunpack.c.l.b16 %v8294
    %v10084 = vunpack.c.h.b16 %v8294
    %v10085 = vunpack.c.l.b16 %v8295
    %v10086 = vunpack.c.h.b16 %v8295
    %v10087 = vunpack.c.l.b16 %v8296
    %v10088 = vunpack.c.h.b16 %v8296
    %v10089 = vunpack.c.l.b16 %v8297
    %v10090 = vunpack.c.h.b16 %v8297
    %v10091 = vunpack.c.l.b16 %v8298
    %v10092 = vunpack.c.h.b16 %v8298
    %v10093 = vunpack.c.l.b16 %v8299
    %v10094 = vunpack.c.h.b16 %v8299
    %v10095 = vunpack.c.l.b16 %v8300
    %v10096 = vunpack.c.h.b16 %v8300
    %v10097 = vunpack.c.l.b16 %v8301
    %v10098 = vunpack.c.h.b16 %v8301
    %v10099 = vunpack.c.l.b16 %v8302
    %v10100 = vunpack.c.h.b16 %v8302
    %v10101 = vunpack.c.l.b16 %v8303
    %v10102 = vunpack.c.h.b16 %v8303
    %v10103 = vunpack.c.l.b16 %v8304
    %v10104 = vunpack.c.h.b16 %v8304
    %v10105 = vunpack.c.l.b16 %v8305
    %v10106 = vunpack.c.h.b16 %v8305
    %v10107 = vunpack.c.l.b16 %v8306
    %v10108 = vunpack.c.h.b16 %v8306
    %v10109 = vunpack.c.l.b16 %v8307
    %v10110 = vunpack.c.h.b16 %v8307
    %v10111 = vunpack.c.l.b16 %v8308
    %v10112 = vunpack.c.h.b16 %v8308
    %v10113 = vunpack.c.l.b16 %v8309
    %v10114 = vunpack.c.h.b16 %v8309
    %v10115 = vunpack.c.l.b16 %v8310
    %v10116 = vunpack.c.h.b16 %v8310
    %v10117 = vunpack.c.l.b16 %v8311
    %v10118 = vunpack.c.h.b16 %v8311
    %v10119 = vunpack.c.l.b16 %v8312
    %v10120 = vunpack.c.h.b16 %v8312
    %v10121 = vunpack.c.l.b16 %v8313
    %v10122 = vunpack.c.h.b16 %v8313
    %v10123 = vunpack.c.l.b16 %v8314
    %v10124 = vunpack.c.h.b16 %v8314
    %v10125 = vunpack.c.l.b16 %v8315
    %v10126 = vunpack.c.h.b16 %v8315
    %v10127 = vunpack.c.l.b16 %v8316
    %v10128 = vunpack.c.h.b16 %v8316
    %v10129 = vunpack.c.l.b16 %v8317
    %v10130 = vunpack.c.h.b16 %v8317
    %v10131 = vunpack.c.l.b16 %v8318
    %v10132 = vunpack.c.h.b16 %v8318
    %v10133 = vunpack.c.l.b16 %v8319
    %v10134 = vunpack.c.h.b16 %v8319
    %v10135 = vunpack.c.l.b16 %v8320
    %v10136 = vunpack.c.h.b16 %v8320
    %v10137 = vunpack.c.l.b16 %v8321
    %v10138 = vunpack.c.h.b16 %v8321
    %v10139 = vunpack.c.l.b16 %v8322
    %v10140 = vunpack.c.h.b16 %v8322
    %v10141 = vunpack.c.l.b16 %v8323
    %v10142 = vunpack.c.h.b16 %v8323
    %v10143 = vunpack.c.l.b16 %v8324
    %v10144 = vunpack.c.h.b16 %v8324
    %v10145 = vunpack.c.l.b16 %v8325
    %v10146 = vunpack.c.h.b16 %v8325
    %v10147 = vunpack.c.l.b16 %v8326
    %v10148 = vunpack.c.h.b16 %v8326
    %v10149 = vunpack.c.l.b16 %v8327
    %v10150 = vunpack.c.h.b16 %v8327
    %v10151 = vunpack.c.l.b16 %v8328
    %v10152 = vunpack.c.h.b16 %v8328
    %v10153 = vunpack.c.l.b16 %v8329
    %v10154 = vunpack.c.h.b16 %v8329
    %v10155 = vunpack.c.l.b16 %v8330
    %v10156 = vunpack.c.h.b16 %v8330
    %v10157 = vunpack.c.l.b16 %v8331
    %v10158 = vunpack.c.h.b16 %v8331
    %v10159 = vunpack.c.l.b16 %v8332
    %v10160 = vunpack.c.h.b16 %v8332
    %v10161 = vunpack.c.l.b16 %v8333
    %v10162 = vunpack.c.h.b16 %v8333
    %v10163 = vunpack.c.l.b16 %v8334
    %v10164 = vunpack.c.h.b16 %v8334
    %v10165 = vunpack.c.l.b16 %v8335
    %v10166 = vunpack.c.h.b16 %v8335
    %v10167 = vunpack.c.l.b16 %v8336
    %v10168 = vunpack.c.h.b16 %v8336
    %v10169 = vunpack.c.l.b16 %v8337
    %v10170 = vunpack.c.h.b16 %v8337
    %v10171 = vunpack.c.l.b16 %v8338
    %v10172 = vunpack.c.h.b16 %v8338
    %v10173 = vunpack.c.l.b16 %v8339
    %v10174 = vunpack.c.h.b16 %v8339
    %v10175 = vunpack.c.l.b16 %v8340
    %v10176 = vunpack.c.h.b16 %v8340
    %v10177 = vunpack.c.l.b16 %v8341
    %v10178 = vunpack.c.h.b16 %v8341
    %v10179 = vunpack.c.l.b16 %v8342
    %v10180 = vunpack.c.h.b16 %v8342
    %v10181 = vunpack.c.l.b16 %v8343
    %v10182 = vunpack.c.h.b16 %v8343
    %v10183 = vunpack.c.l.b16 %v8344
    %v10184 = vunpack.c.h.b16 %v8344
    %v10185 = vunpack.c.l.b16 %v8345
    %v10186 = vunpack.c.h.b16 %v8345
    %v10187 = vunpack.c.l.b16 %v8346
    %v10188 = vunpack.c.h.b16 %v8346
    %v10189 = vunpack.c.l.b16 %v8347
    %v10190 = vunpack.c.h.b16 %v8347
    %v10191 = vunpack.c.l.b16 %v8348
    %v10192 = vunpack.c.h.b16 %v8348
    %v10193 = vunpack.c.l.b16 %v8349
    %v10194 = vunpack.c.h.b16 %v8349
    %v10195 = vunpack.c.l.b16 %v8350
    %v10196 = vunpack.c.h.b16 %v8350
    %v10197 = vunpack.c.l.b16 %v8351
    %v10198 = vunpack.c.h.b16 %v8351
    %v10199 = vunpack.c.l.b16 %v8352
    %v10200 = vunpack.c.h.b16 %v8352
    %v10201 = vunpack.c.l.b16 %v8353
    %v10202 = vunpack.c.h.b16 %v8353
    %v10203 = vunpack.c.l.b16 %v8354
    %v10204 = vunpack.c.h.b16 %v8354
    %v10205 = vunpack.c.l.b16 %v8355
    %v10206 = vunpack.c.h.b16 %v8355
    %v10207 = vunpack.c.l.b16 %v8356
    %v10208 = vunpack.c.h.b16 %v8356
    %v10209 = vunpack.c.l.b16 %v8357
    %v10210 = vunpack.c.h.b16 %v8357
    %v10211 = vunpack.c.l.b16 %v8358
    %v10212 = vunpack.c.h.b16 %v8358
    %v10213 = vunpack.c.l.b16 %v8359
    %v10214 = vunpack.c.h.b16 %v8359
    %v10215 = vunpack.c.l.b16 %v8360
    %v10216 = vunpack.c.h.b16 %v8360
    %v10217 = vunpack.c.l.b16 %v8361
    %v10218 = vunpack.c.h.b16 %v8361
    %v10219 = vunpack.c.l.b16 %v8362
    %v10220 = vunpack.c.h.b16 %v8362
    %v10221 = vunpack.c.l.b16 %v8363
    %v10222 = vunpack.c.h.b16 %v8363
    %v10223 = vunpack.c.l.b16 %v8364
    %v10224 = vunpack.c.h.b16 %v8364
    %v10225 = vunpack.c.l.b16 %v8365
    %v10226 = vunpack.c.h.b16 %v8365
    %v10227 = vunpack.c.l.b16 %v8366
    %v10228 = vunpack.c.h.b16 %v8366
    %v10229 = vunpack.c.l.b16 %v8367
    %v10230 = vunpack.c.h.b16 %v8367
    %v10231 = vunpack.c.l.b16 %v8368
    %v10232 = vunpack.c.h.b16 %v8368
    %v10233 = vunpack.c.l.b16 %v8369
    %v10234 = vunpack.c.h.b16 %v8369
    %v10235 = vunpack.c.l.b16 %v8370
    %v10236 = vunpack.c.h.b16 %v8370
    %v10237 = vunpack.c.l.b16 %v8371
    %v10238 = vunpack.c.h.b16 %v8371
    %v10239 = vunpack.c.l.b16 %v8372
    %v10240 = vunpack.c.h.b16 %v8372
    %v10241 = vunpack.c.l.b16 %v8373
    %v10242 = vunpack.c.h.b16 %v8373
    %v10243 = vunpack.c.l.b16 %v8374
    %v10244 = vunpack.c.h.b16 %v8374
    %v10245 = vunpack.c.l.b16 %v8375
    %v10246 = vunpack.c.h.b16 %v8375
    %v10247 = vunpack.c.l.b16 %v8376
    %v10248 = vunpack.c.h.b16 %v8376
    %v10249 = vunpack.c.l.b16 %v8377
    %v10250 = vunpack.c.h.b16 %v8377
    %v10251 = vunpack.c.l.b16 %v8378
    %v10252 = vunpack.c.h.b16 %v8378
    %v10253 = vunpack.c.l.b16 %v8379
    %v10254 = vunpack.c.h.b16 %v8379
    %v10255 = vunpack.c.l.b16 %v8380
    %v10256 = vunpack.c.h.b16 %v8380
    %v10257 = vunpack.c.l.b16 %v8381
    %v10258 = vunpack.c.h.b16 %v8381
    %v10259 = vunpack.c.l.b16 %v8382
    %v10260 = vunpack.c.h.b16 %v8382
    %v10261 = vunpack.c.l.b16 %v8383
    %v10262 = vunpack.c.h.b16 %v8383
    %v10263 = vunpack.c.l.b16 %v8384
    %v10264 = vunpack.c.h.b16 %v8384
    %v10265 = vunpack.c.l.b16 %v8385
    %v10266 = vunpack.c.h.b16 %v8385
    %v10267 = vunpack.c.l.b16 %v8386
    %v10268 = vunpack.c.h.b16 %v8386
    %v10269 = vunpack.c.l.b16 %v8387
    %v10270 = vunpack.c.h.b16 %v8387
    %v10271 = vunpack.c.l.b16 %v8388
    %v10272 = vunpack.c.h.b16 %v8388
    %v10273 = vunpack.c.l.b16 %v8389
    %v10274 = vunpack.c.h.b16 %v8389
    %v10275 = vunpack.c.l.b16 %v8390
    %v10276 = vunpack.c.h.b16 %v8390
    %v10277 = vunpack.c.l.b16 %v8391
    %v10278 = vunpack.c.h.b16 %v8391
    %v10279 = vunpack.c.l.b16 %v8392
    %v10280 = vunpack.c.h.b16 %v8392
    %v10281 = vunpack.c.l.b16 %v8393
    %v10282 = vunpack.c.h.b16 %v8393
    %v10283 = vunpack.c.l.b16 %v8394
    %v10284 = vunpack.c.h.b16 %v8394
    %v10285 = vunpack.c.l.b16 %v8395
    %v10286 = vunpack.c.h.b16 %v8395
    %v10287 = vunpack.c.l.b16 %v8396
    %v10288 = vunpack.c.h.b16 %v8396
    %v10289 = vunpack.c.l.b16 %v8397
    %v10290 = vunpack.c.h.b16 %v8397
    %v10291 = vunpack.c.l.b16 %v8398
    %v10292 = vunpack.c.h.b16 %v8398
    %v10293 = vunpack.c.l.b16 %v8399
    %v10294 = vunpack.c.h.b16 %v8399
    %v10295 = vunpack.c.l.b16 %v8400
    %v10296 = vunpack.c.h.b16 %v8400
    %v10297 = vunpack.c.l.b16 %v8401
    %v10298 = vunpack.c.h.b16 %v8401
    %v10299 = vunpack.c.l.b16 %v8402
    %v10300 = vunpack.c.h.b16 %v8402
    %v10301 = vunpack.c.l.b16 %v8403
    %v10302 = vunpack.c.h.b16 %v8403
    %v10303 = vunpack.c.l.b16 %v8404
    %v10304 = vunpack.c.h.b16 %v8404
    %v10305 = vunpack.c.l.b16 %v8405
    %v10306 = vunpack.c.h.b16 %v8405
    %v10307 = vunpack.c.l.b16 %v8406
    %v10308 = vunpack.c.h.b16 %v8406
    %v10309 = vunpack.c.l.b16 %v8407
    %v10310 = vunpack.c.h.b16 %v8407
    %v10311 = vunpack.c.l.b16 %v8408
    %v10312 = vunpack.c.h.b16 %v8408
    %v10313 = vunpack.c.l.b16 %v8409
    %v10314 = vunpack.c.h.b16 %v8409
    %v10315 = vunpack.c.l.b16 %v8410
    %v10316 = vunpack.c.h.b16 %v8410
    %v10317 = vunpack.c.l.b16 %v8411
    %v10318 = vunpack.c.h.b16 %v8411
    %v10319 = vunpack.c.l.b16 %v8412
    %v10320 = vunpack.c.h.b16 %v8412
    %v10321 = vunpack.c.l.b16 %v8413
    %v10322 = vunpack.c.h.b16 %v8413
    %v10323 = vunpack.c.l.b16 %v8414
    %v10324 = vunpack.c.h.b16 %v8414
    %v10325 = vunpack.c.l.b16 %v8415
    %v10326 = vunpack.c.h.b16 %v8415
    %v10327 = vunpack.c.l.b16 %v8416
    %v10328 = vunpack.c.h.b16 %v8416
    %v10329 = vunpack.c.l.b16 %v8417
    %v10330 = vunpack.c.h.b16 %v8417
    %v10331 = vunpack.c.l.b16 %v8418
    %v10332 = vunpack.c.h.b16 %v8418
    %v10333 = vunpack.c.l.b16 %v8419
    %v10334 = vunpack.c.h.b16 %v8419
    %v10335 = vunpack.c.l.b16 %v8420
    %v10336 = vunpack.c.h.b16 %v8420
    %v10337 = vunpack.c.l.b16 %v8421
    %v10338 = vunpack.c.h.b16 %v8421
    %v10339 = vunpack.c.l.b16 %v8422
    %v10340 = vunpack.c.h.b16 %v8422
    %v10341 = vunpack.c.l.b16 %v8423
    %v10342 = vunpack.c.h.b16 %v8423
    %v10343 = vunpack.c.l.b16 %v8424
    %v10344 = vunpack.c.h.b16 %v8424
    %v10345 = vunpack.c.l.b16 %v8425
    %v10346 = vunpack.c.h.b16 %v8425
    %v10347 = vunpack.c.l.b16 %v8426
    %v10348 = vunpack.c.h.b16 %v8426
    %v10349 = vunpack.c.l.b16 %v8427
    %v10350 = vunpack.c.h.b16 %v8427
    %v10351 = vunpack.c.l.b16 %v8428
    %v10352 = vunpack.c.h.b16 %v8428
    %v10353 = vunpack.c.l.b16 %v8429
    %v10354 = vunpack.c.h.b16 %v8429
    %v10355 = vunpack.c.l.b16 %v8430
    %v10356 = vunpack.c.h.b16 %v8430
    %v10357 = vunpack.c.l.b16 %v8431
    %v10358 = vunpack.c.h.b16 %v8431
    %v10359 = vunpack.c.l.b16 %v8432
    %v10360 = vunpack.c.h.b16 %v8432
    %v10361 = vunpack.c.l.b16 %v8433
    %v10362 = vunpack.c.h.b16 %v8433
    %v10363 = vunpack.c.l.b16 %v8434
    %v10364 = vunpack.c.h.b16 %v8434
    %v10365 = vunpack.c.l.b16 %v8435
    %v10366 = vunpack.c.h.b16 %v8435
    %v10367 = vunpack.c.l.b16 %v8436
    %v10368 = vunpack.c.h.b16 %v8436
    %v10369 = vunpack.c.l.b16 %v8437
    %v10370 = vunpack.c.h.b16 %v8437
    %v10371 = vunpack.c.l.b16 %v8438
    %v10372 = vunpack.c.h.b16 %v8438
    %v10373 = vunpack.c.l.b16 %v8439
    %v10374 = vunpack.c.h.b16 %v8439
    %v10375 = vunpack.c.l.b16 %v8440
    %v10376 = vunpack.c.h.b16 %v8440
    %v10377 = vunpack.c.l.b16 %v8441
    %v10378 = vunpack.c.h.b16 %v8441
    %v10379 = vunpack.c.l.b16 %v8442
    %v10380 = vunpack.c.h.b16 %v8442
    %v10381 = vunpack.c.l.b16 %v8443
    %v10382 = vunpack.c.h.b16 %v8443
    %v10383 = vunpack.c.l.b16 %v8444
    %v10384 = vunpack.c.h.b16 %v8444
    %v10385 = vunpack.c.l.b16 %v8445
    %v10386 = vunpack.c.h.b16 %v8445
    %v10387 = vunpack.c.l.b16 %v8446
    %v10388 = vunpack.c.h.b16 %v8446
    %v10389 = vunpack.c.l.b16 %v8447
    %v10390 = vunpack.c.h.b16 %v8447
    %v10391 = vunpack.c.l.b16 %v8448
    %v10392 = vunpack.c.h.b16 %v8448
    %v10393 = vunpack.c.l.b16 %v8449
    %v10394 = vunpack.c.h.b16 %v8449
    %v10395 = vunpack.c.l.b16 %v8450
    %v10396 = vunpack.c.h.b16 %v8450
    %v10397 = vunpack.c.l.b16 %v8451
    %v10398 = vunpack.c.h.b16 %v8451
    %v10399 = vunpack.c.l.b16 %v8452
    %v10400 = vunpack.c.h.b16 %v8452
    %v10401 = vunpack.c.l.b16 %v8453
    %v10402 = vunpack.c.h.b16 %v8453
    %v10403 = vunpack.c.l.b16 %v8454
    %v10404 = vunpack.c.h.b16 %v8454
    %v10405 = vunpack.c.l.b16 %v8455
    %v10406 = vunpack.c.h.b16 %v8455
    %v10407 = vunpack.c.l.b16 %v8456
    %v10408 = vunpack.c.h.b16 %v8456
    %v10409 = vunpack.c.l.b16 %v8457
    %v10410 = vunpack.c.h.b16 %v8457
    %v10411 = vunpack.c.l.b16 %v8458
    %v10412 = vunpack.c.h.b16 %v8458
    %v10413 = vunpack.c.l.b16 %v8459
    %v10414 = vunpack.c.h.b16 %v8459
    %v10415 = vunpack.c.l.b16 %v8460
    %v10416 = vunpack.c.h.b16 %v8460
    %v10417 = vunpack.c.l.b16 %v8461
    %v10418 = vunpack.c.h.b16 %v8461
    %v10419 = vunpack.c.l.b16 %v8462
    %v10420 = vunpack.c.h.b16 %v8462
    %v10421 = vunpack.c.l.b16 %v8463
    %v10422 = vunpack.c.h.b16 %v8463
    %v10423 = vunpack.c.l.b16 %v8464
    %v10424 = vunpack.c.h.b16 %v8464
    %v10425 = vunpack.c.l.b16 %v8465
    %v10426 = vunpack.c.h.b16 %v8465
    %v10427 = vunpack.c.l.b16 %v8466
    %v10428 = vunpack.c.h.b16 %v8466
    %v10429 = vunpack.c.l.b16 %v8467
    %v10430 = vunpack.c.h.b16 %v8467
    %v10431 = vunpack.c.l.b16 %v8468
    %v10432 = vunpack.c.h.b16 %v8468
    %v10433 = vunpack.c.l.b16 %v8469
    %v10434 = vunpack.c.h.b16 %v8469
    %v10435 = vunpack.c.l.b16 %v8470
    %v10436 = vunpack.c.h.b16 %v8470
    %v10437 = vunpack.c.l.b16 %v8471
    %v10438 = vunpack.c.h.b16 %v8471
    %v10439 = vunpack.c.l.b16 %v8472
    %v10440 = vunpack.c.h.b16 %v8472
    %v10441 = vunpack.c.l.b16 %v8473
    %v10442 = vunpack.c.h.b16 %v8473
    %v10443 = vunpack.c.l.b16 %v8474
    %v10444 = vunpack.c.h.b16 %v8474
    %v10445 = vunpack.c.l.b16 %v8475
    %v10446 = vunpack.c.h.b16 %v8475
    %v10447 = vunpack.c.l.b16 %v8476
    %v10448 = vunpack.c.h.b16 %v8476
    %v10449 = vunpack.c.l.b16 %v8477
    %v10450 = vunpack.c.h.b16 %v8477
    %v10451 = vunpack.c.l.b16 %v8478
    %v10452 = vunpack.c.h.b16 %v8478
    %v10453 = vpack.c.b16 %v9261, %v9253
    %v10454 = vpack.c.b16 %v9262, %v9254
    %v10455 = vpack.c.b16 %v9263, %v9255
    %v10456 = vpack.c.b16 %v9264, %v9256
    %v10457 = vpack.c.b16 %v9265, %v9257
    %v10458 = vpack.c.b16 %v9266, %v9258
    %v10459 = vpack.c.b16 %v9267, %v9259
    %v10460 = vpack.c.b16 %v9268, %v9260
    %v10461 = vpack.c.b16 %v9277, %v9269
    %v10462 = vpack.c.b16 %v9278, %v9270
    %v10463 = vpack.c.b16 %v9279, %v9271
    %v10464 = vpack.c.b16 %v9280, %v9272
    %v10465 = vpack.c.b16 %v9281, %v9273
    %v10466 = vpack.c.b16 %v9282, %v9274
    %v10467 = vpack.c.b16 %v9283, %v9275
    %v10468 = vpack.c.b16 %v9284, %v9276
    %v10469 = vpack.c.b16 %v9293, %v9285
    %v10470 = vpack.c.b16 %v9294, %v9286
    %v10471 = vpack.c.b16 %v9295, %v9287
    %v10472 = vpack.c.b16 %v9296, %v9288
    %v10473 = vpack.c.b16 %v9297, %v9289
    %v10474 = vpack.c.b16 %v9298, %v9290
    %v10475 = vpack.c.b16 %v9299, %v9291
    %v10476 = vpack.c.b16 %v9300, %v9292
    %v10477 = vpack.c.b16 %v9309, %v9301
    %v10478 = vpack.c.b16 %v9310, %v9302
    %v10479 = vpack.c.b16 %v9311, %v9303
    %v10480 = vpack.c.b16 %v9312, %v9304
    %v10481 = vpack.c.b16 %v9313, %v9305
    %v10482 = vpack.c.b16 %v9314, %v9306
    %v10483 = vpack.c.b16 %v9315, %v9307
    %v10484 = vpack.c.b16 %v9316, %v9308
    %v10485 = vpack.c.b16 %v9325, %v9317
    %v10486 = vpack.c.b16 %v9326, %v9318
    %v10487 = vpack.c.b16 %v9327, %v9319
    %v10488 = vpack.c.b16 %v9328, %v9320
    %v10489 = vpack.c.b16 %v9329, %v9321
    %v10490 = vpack.c.b16 %v9330, %v9322
    %v10491 = vpack.c.b16 %v9331, %v9323
    %v10492 = vpack.c.b16 %v9332, %v9324
    %v10493 = vpack.c.b16 %v9341, %v9333
    %v10494 = vpack.c.b16 %v9342, %v9334
    %v10495 = vpack.c.b16 %v9343, %v9335
    %v10496 = vpack.c.b16 %v9344, %v9336
    %v10497 = vpack.c.b16 %v9345, %v9337
    %v10498 = vpack.c.b16 %v9346, %v9338
    %v10499 = vpack.c.b16 %v9347, %v9339
    %v10500 = vpack.c.b16 %v9348, %v9340
    %v10501 = vpack.c.b16 %v9357, %v9349
    %v10502 = vpack.c.b16 %v9358, %v9350
    %v10503 = vpack.c.b16 %v9359, %v9351
    %v10504 = vpack.c.b16 %v9360, %v9352
    %v10505 = vpack.c.b16 %v9361, %v9353
    %v10506 = vpack.c.b16 %v9362, %v9354
    %v10507 = vpack.c.b16 %v9363, %v9355
    %v10508 = vpack.c.b16 %v9364, %v9356
    %v10509 = vpack.c.b16 %v9373, %v9365
    %v10510 = vpack.c.b16 %v9374, %v9366
    %v10511 = vpack.c.b16 %v9375, %v9367
    %v10512 = vpack.c.b16 %v9376, %v9368
    %v10513 = vpack.c.b16 %v9377, %v9369
    %v10514 = vpack.c.b16 %v9378, %v9370
    %v10515 = vpack.c.b16 %v9379, %v9371
    %v10516 = vpack.c.b16 %v9380, %v9372
    %v10517 = vpack.c.b16 %v9389, %v9381
    %v10518 = vpack.c.b16 %v9390, %v9382
    %v10519 = vpack.c.b16 %v9391, %v9383
    %v10520 = vpack.c.b16 %v9392, %v9384
    %v10521 = vpack.c.b16 %v9393, %v9385
    %v10522 = vpack.c.b16 %v9394, %v9386
    %v10523 = vpack.c.b16 %v9395, %v9387
    %v10524 = vpack.c.b16 %v9396, %v9388
    %v10525 = vpack.c.b16 %v9405, %v9397
    %v10526 = vpack.c.b16 %v9406, %v9398
    %v10527 = vpack.c.b16 %v9407, %v9399
    %v10528 = vpack.c.b16 %v9408, %v9400
    %v10529 = vpack.c.b16 %v9409, %v9401
    %v10530 = vpack.c.b16 %v9410, %v9402
    %v10531 = vpack.c.b16 %v9411, %v9403
    %v10532 = vpack.c.b16 %v9412, %v9404
    %v10533 = vpack.c.b16 %v9421, %v9413
    %v10534 = vpack.c.b16 %v9422, %v9414
    %v10535 = vpack.c.b16 %v9423, %v9415
    %v10536 = vpack.c.b16 %v9424, %v9416
    %v10537 = vpack.c.b16 %v9425, %v9417
    %v10538 = vpack.c.b16 %v9426, %v9418
    %v10539 = vpack.c.b16 %v9427, %v9419
    %v10540 = vpack.c.b16 %v9428, %v9420
    %v10541 = vpack.c.b16 %v9437, %v9429
    %v10542 = vpack.c.b16 %v9438, %v9430
    %v10543 = vpack.c.b16 %v9439, %v9431
    %v10544 = vpack.c.b16 %v9440, %v9432
    %v10545 = vpack.c.b16 %v9441, %v9433
    %v10546 = vpack.c.b16 %v9442, %v9434
    %v10547 = vpack.c.b16 %v9443, %v9435
    %v10548 = vpack.c.b16 %v9444, %v9436
    %v10549 = vpack.c.b16 %v9453, %v9445
    %v10550 = vpack.c.b16 %v9454, %v9446
    %v10551 = vpack.c.b16 %v9455, %v9447
    %v10552 = vpack.c.b16 %v9456, %v9448
    %v10553 = vpack.c.b16 %v9457, %v9449
    %v10554 = vpack.c.b16 %v9458, %v9450
    %v10555 = vpack.c.b16 %v9459, %v9451
    %v10556 = vpack.c.b16 %v9460, %v9452
    %v10557 = vpack.c.b16 %v9469, %v9461
    %v10558 = vpack.c.b16 %v9470, %v9462
    %v10559 = vpack.c.b16 %v9471, %v9463
    %v10560 = vpack.c.b16 %v9472, %v9464
    %v10561 = vpack.c.b16 %v9473, %v9465
    %v10562 = vpack.c.b16 %v9474, %v9466
    %v10563 = vpack.c.b16 %v9475, %v9467
    %v10564 = vpack.c.b16 %v9476, %v9468
    %v10565 = vpack.c.b16 %v9485, %v9477
    %v10566 = vpack.c.b16 %v9486, %v9478
    %v10567 = vpack.c.b16 %v9487, %v9479
    %v10568 = vpack.c.b16 %v9488, %v9480
    %v10569 = vpack.c.b16 %v9489, %v9481
    %v10570 = vpack.c.b16 %v9490, %v9482
    %v10571 = vpack.c.b16 %v9491, %v9483
    %v10572 = vpack.c.b16 %v9492, %v9484
    %v10573 = vpack.c.b16 %v9501, %v9493
    %v10574 = vpack.c.b16 %v9502, %v9494
    %v10575 = vpack.c.b16 %v9503, %v9495
    %v10576 = vpack.c.b16 %v9504, %v9496
    %v10577 = vpack.c.b16 %v9505, %v9497
    %v10578 = vpack.c.b16 %v9506, %v9498
    %v10579 = vpack.c.b16 %v9507, %v9499
    %v10580 = vpack.c.b16 %v9508, %v9500
    %v10581 = vpack.c.b16 %v9517, %v9509
    %v10582 = vpack.c.b16 %v9518, %v9510
    %v10583 = vpack.c.b16 %v9519, %v9511
    %v10584 = vpack.c.b16 %v9520, %v9512
    %v10585 = vpack.c.b16 %v9521, %v9513
    %v10586 = vpack.c.b16 %v9522, %v9514
    %v10587 = vpack.c.b16 %v9523, %v9515
    %v10588 = vpack.c.b16 %v9524, %v9516
    %v10589 = vpack.c.b16 %v9533, %v9525
    %v10590 = vpack.c.b16 %v9534, %v9526
    %v10591 = vpack.c.b16 %v9535, %v9527
    %v10592 = vpack.c.b16 %v9536, %v9528
    %v10593 = vpack.c.b16 %v9537, %v9529
    %v10594 = vpack.c.b16 %v9538, %v9530
    %v10595 = vpack.c.b16 %v9539, %v9531
    %v10596 = vpack.c.b16 %v9540, %v9532
    %v10597 = vpack.c.b16 %v9549, %v9541
    %v10598 = vpack.c.b16 %v9550, %v9542
    %v10599 = vpack.c.b16 %v9551, %v9543
    %v10600 = vpack.c.b16 %v9552, %v9544
    %v10601 = vpack.c.b16 %v9553, %v9545
    %v10602 = vpack.c.b16 %v9554, %v9546
    %v10603 = vpack.c.b16 %v9555, %v9547
    %v10604 = vpack.c.b16 %v9556, %v9548
    %v10605 = vpack.c.b16 %v9565, %v9557
    %v10606 = vpack.c.b16 %v9566, %v9558
    %v10607 = vpack.c.b16 %v9567, %v9559
    %v10608 = vpack.c.b16 %v9568, %v9560
    %v10609 = vpack.c.b16 %v9569, %v9561
    %v10610 = vpack.c.b16 %v9570, %v9562
    %v10611 = vpack.c.b16 %v9571, %v9563
    %v10612 = vpack.c.b16 %v9572, %v9564
    %v10613 = vpack.c.b16 %v9581, %v9573
    %v10614 = vpack.c.b16 %v9582, %v9574
    %v10615 = vpack.c.b16 %v9583, %v9575
    %v10616 = vpack.c.b16 %v9584, %v9576
    %v10617 = vpack.c.b16 %v9585, %v9577
    %v10618 = vpack.c.b16 %v9586, %v9578
    %v10619 = vpack.c.b16 %v9587, %v9579
    %v10620 = vpack.c.b16 %v9588, %v9580
    %v10621 = vpack.c.b16 %v9597, %v9589
    %v10622 = vpack.c.b16 %v9598, %v9590
    %v10623 = vpack.c.b16 %v9599, %v9591
    %v10624 = vpack.c.b16 %v9600, %v9592
    %v10625 = vpack.c.b16 %v9601, %v9593
    %v10626 = vpack.c.b16 %v9602, %v9594
    %v10627 = vpack.c.b16 %v9603, %v9595
    %v10628 = vpack.c.b16 %v9604, %v9596
    %v10629 = vpack.c.b16 %v9613, %v9605
    %v10630 = vpack.c.b16 %v9614, %v9606
    %v10631 = vpack.c.b16 %v9615, %v9607
    %v10632 = vpack.c.b16 %v9616, %v9608
    %v10633 = vpack.c.b16 %v9617, %v9609
    %v10634 = vpack.c.b16 %v9618, %v9610
    %v10635 = vpack.c.b16 %v9619, %v9611
    %v10636 = vpack.c.b16 %v9620, %v9612
    %v10637 = vpack.c.b16 %v9629, %v9621
    %v10638 = vpack.c.b16 %v9630, %v9622
    %v10639 = vpack.c.b16 %v9631, %v9623
    %v10640 = vpack.c.b16 %v9632, %v9624
    %v10641 = vpack.c.b16 %v9633, %v9625
    %v10642 = vpack.c.b16 %v9634, %v9626
    %v10643 = vpack.c.b16 %v9635, %v9627
    %v10644 = vpack.c.b16 %v9636, %v9628
    %v10645 = vpack.c.b16 %v9645, %v9637
    %v10646 = vpack.c.b16 %v9646, %v9638
    %v10647 = vpack.c.b16 %v9647, %v9639
    %v10648 = vpack.c.b16 %v9648, %v9640
    %v10649 = vpack.c.b16 %v9649, %v9641
    %v10650 = vpack.c.b16 %v9650, %v9642
    %v10651 = vpack.c.b16 %v9651, %v9643
    %v10652 = vpack.c.b16 %v9652, %v9644
    %v10653 = vpack.c.b16 %v9661, %v9653
    %v10654 = vpack.c.b16 %v9662, %v9654
    %v10655 = vpack.c.b16 %v9663, %v9655
    %v10656 = vpack.c.b16 %v9664, %v9656
    %v10657 = vpack.c.b16 %v9665, %v9657
    %v10658 = vpack.c.b16 %v9666, %v9658
    %v10659 = vpack.c.b16 %v9667, %v9659
    %v10660 = vpack.c.b16 %v9668, %v9660
    %v10661 = vpack.c.b16 %v9677, %v9669
    %v10662 = vpack.c.b16 %v9678, %v9670
    %v10663 = vpack.c.b16 %v9679, %v9671
    %v10664 = vpack.c.b16 %v9680, %v9672
    %v10665 = vpack.c.b16 %v9681, %v9673
    %v10666 = vpack.c.b16 %v9682, %v9674
    %v10667 = vpack.c.b16 %v9683, %v9675
    %v10668 = vpack.c.b16 %v9684, %v9676
    %v10669 = vpack.c.b16 %v9693, %v9685
    %v10670 = vpack.c.b16 %v9694, %v9686
    %v10671 = vpack.c.b16 %v9695, %v9687
    %v10672 = vpack.c.b16 %v9696, %v9688
    %v10673 = vpack.c.b16 %v9697, %v9689
    %v10674 = vpack.c.b16 %v9698, %v9690
    %v10675 = vpack.c.b16 %v9699, %v9691
    %v10676 = vpack.c.b16 %v9700, %v9692
    %v10677 = vpack.c.b16 %v9709, %v9701
    %v10678 = vpack.c.b16 %v9710, %v9702
    %v10679 = vpack.c.b16 %v9711, %v9703
    %v10680 = vpack.c.b16 %v9712, %v9704
    %v10681 = vpack.c.b16 %v9713, %v9705
    %v10682 = vpack.c.b16 %v9714, %v9706
    %v10683 = vpack.c.b16 %v9715, %v9707
    %v10684 = vpack.c.b16 %v9716, %v9708
    %v10685 = vpack.c.b16 %v9725, %v9717
    %v10686 = vpack.c.b16 %v9726, %v9718
    %v10687 = vpack.c.b16 %v9727, %v9719
    %v10688 = vpack.c.b16 %v9728, %v9720
    %v10689 = vpack.c.b16 %v9729, %v9721
    %v10690 = vpack.c.b16 %v9730, %v9722
    %v10691 = vpack.c.b16 %v9731, %v9723
    %v10692 = vpack.c.b16 %v9732, %v9724
    %v10693 = vpack.c.b16 %v9741, %v9733
    %v10694 = vpack.c.b16 %v9742, %v9734
    %v10695 = vpack.c.b16 %v9743, %v9735
    %v10696 = vpack.c.b16 %v9744, %v9736
    %v10697 = vpack.c.b16 %v9745, %v9737
    %v10698 = vpack.c.b16 %v9746, %v9738
    %v10699 = vpack.c.b16 %v9747, %v9739
    %v10700 = vpack.c.b16 %v9748, %v9740
    %v10701 = vpack.c.b16 %v9757, %v9749
    %v10702 = vpack.c.b16 %v9758, %v9750
    %v10703 = vpack.c.b16 %v9759, %v9751
    %v10704 = vpack.c.b16 %v9760, %v9752
    %v10705 = vpack.c.b16 %v9761, %v9753
    %v10706 = vpack.c.b16 %v9762, %v9754
    %v10707 = vpack.c.b16 %v9763, %v9755
    %v10708 = vpack.c.b16 %v9764, %v9756
    %v10709 = vpack.c.b16 %v9773, %v9765
    %v10710 = vpack.c.b16 %v9774, %v9766
    %v10711 = vpack.c.b16 %v9775, %v9767
    %v10712 = vpack.c.b16 %v9776, %v9768
    %v10713 = vpack.c.b16 %v9777, %v9769
    %v10714 = vpack.c.b16 %v9778, %v9770
    %v10715 = vpack.c.b16 %v9779, %v9771
    %v10716 = vpack.c.b16 %v9780, %v9772
    %v10717 = vpack.c.b16 %v9789, %v9781
    %v10718 = vpack.c.b16 %v9790, %v9782
    %v10719 = vpack.c.b16 %v9791, %v9783
    %v10720 = vpack.c.b16 %v9792, %v9784
    %v10721 = vpack.c.b16 %v9793, %v9785
    %v10722 = vpack.c.b16 %v9794, %v9786
    %v10723 = vpack.c.b16 %v9795, %v9787
    %v10724 = vpack.c.b16 %v9796, %v9788
    %v10725 = vpack.c.b16 %v9805, %v9797
    %v10726 = vpack.c.b16 %v9806, %v9798
    %v10727 = vpack.c.b16 %v9807, %v9799
    %v10728 = vpack.c.b16 %v9808, %v9800
    %v10729 = vpack.c.b16 %v9809, %v9801
    %v10730 = vpack.c.b16 %v9810, %v9802
    %v10731 = vpack.c.b16 %v9811, %v9803
    %v10732 = vpack.c.b16 %v9812, %v9804
    %v10733 = vpack.c.b16 %v9821, %v9813
    %v10734 = vpack.c.b16 %v9822, %v9814
    %v10735 = vpack.c.b16 %v9823, %v9815
    %v10736 = vpack.c.b16 %v9824, %v9816
    %v10737 = vpack.c.b16 %v9825, %v9817
    %v10738 = vpack.c.b16 %v9826, %v9818
    %v10739 = vpack.c.b16 %v9827, %v9819
    %v10740 = vpack.c.b16 %v9828, %v9820
    %v10741 = vpack.c.b16 %v9837, %v9829
    %v10742 = vpack.c.b16 %v9838, %v9830
    %v10743 = vpack.c.b16 %v9839, %v9831
    %v10744 = vpack.c.b16 %v9840, %v9832
    %v10745 = vpack.c.b16 %v9841, %v9833
    %v10746 = vpack.c.b16 %v9842, %v9834
    %v10747 = vpack.c.b16 %v9843, %v9835
    %v10748 = vpack.c.b16 %v9844, %v9836
    %v10749 = vpack.c.b16 %v9853, %v9845
    %v10750 = vpack.c.b16 %v9854, %v9846
    %v10751 = vpack.c.b16 %v9855, %v9847
    %v10752 = vpack.c.b16 %v9856, %v9848
    %v10753 = vpack.c.b16 %v9857, %v9849
    %v10754 = vpack.c.b16 %v9858, %v9850
    %v10755 = vpack.c.b16 %v9859, %v9851
    %v10756 = vpack.c.b16 %v9860, %v9852
    %v10757 = vpack.c.b16 %v9869, %v9861
    %v10758 = vpack.c.b16 %v9870, %v9862
    %v10759 = vpack.c.b16 %v9871, %v9863
    %v10760 = vpack.c.b16 %v9872, %v9864
    %v10761 = vpack.c.b16 %v9873, %v9865
    %v10762 = vpack.c.b16 %v9874, %v9866
    %v10763 = vpack.c.b16 %v9875, %v9867
    %v10764 = vpack.c.b16 %v9876, %v9868
    %v10765 = vpack.c.b16 %v9885, %v9877
    %v10766 = vpack.c.b16 %v9886, %v9878
    %v10767 = vpack.c.b16 %v9887, %v9879
    %v10768 = vpack.c.b16 %v9888, %v9880
    %v10769 = vpack.c.b16 %v9889, %v9881
    %v10770 = vpack.c.b16 %v9890, %v9882
    %v10771 = vpack.c.b16 %v9891, %v9883
    %v10772 = vpack.c.b16 %v9892, %v9884
    %v10773 = vpack.c.b16 %v9901, %v9893
    %v10774 = vpack.c.b16 %v9902, %v9894
    %v10775 = vpack.c.b16 %v9903, %v9895
    %v10776 = vpack.c.b16 %v9904, %v9896
    %v10777 = vpack.c.b16 %v9905, %v9897
    %v10778 = vpack.c.b16 %v9906, %v9898
    %v10779 = vpack.c.b16 %v9907, %v9899
    %v10780 = vpack.c.b16 %v9908, %v9900
    %v10781 = vpack.c.b16 %v9917, %v9909
    %v10782 = vpack.c.b16 %v9918, %v9910
    %v10783 = vpack.c.b16 %v9919, %v9911
    %v10784 = vpack.c.b16 %v9920, %v9912
    %v10785 = vpack.c.b16 %v9921, %v9913
    %v10786 = vpack.c.b16 %v9922, %v9914
    %v10787 = vpack.c.b16 %v9923, %v9915
    %v10788 = vpack.c.b16 %v9924, %v9916
    %v10789 = vpack.c.b16 %v9933, %v9925
    %v10790 = vpack.c.b16 %v9934, %v9926
    %v10791 = vpack.c.b16 %v9935, %v9927
    %v10792 = vpack.c.b16 %v9936, %v9928
    %v10793 = vpack.c.b16 %v9937, %v9929
    %v10794 = vpack.c.b16 %v9938, %v9930
    %v10795 = vpack.c.b16 %v9939, %v9931
    %v10796 = vpack.c.b16 %v9940, %v9932
    %v10797 = vpack.c.b16 %v9949, %v9941
    %v10798 = vpack.c.b16 %v9950, %v9942
    %v10799 = vpack.c.b16 %v9951, %v9943
    %v10800 = vpack.c.b16 %v9952, %v9944
    %v10801 = vpack.c.b16 %v9953, %v9945
    %v10802 = vpack.c.b16 %v9954, %v9946
    %v10803 = vpack.c.b16 %v9955, %v9947
    %v10804 = vpack.c.b16 %v9956, %v9948
    %v10805 = vpack.c.b16 %v9965, %v9957
    %v10806 = vpack.c.b16 %v9966, %v9958
    %v10807 = vpack.c.b16 %v9967, %v9959
    %v10808 = vpack.c.b16 %v9968, %v9960
    %v10809 = vpack.c.b16 %v9969, %v9961
    %v10810 = vpack.c.b16 %v9970, %v9962
    %v10811 = vpack.c.b16 %v9971, %v9963
    %v10812 = vpack.c.b16 %v9972, %v9964
    %v10813 = vpack.c.b16 %v9981, %v9973
    %v10814 = vpack.c.b16 %v9982, %v9974
    %v10815 = vpack.c.b16 %v9983, %v9975
    %v10816 = vpack.c.b16 %v9984, %v9976
    %v10817 = vpack.c.b16 %v9985, %v9977
    %v10818 = vpack.c.b16 %v9986, %v9978
    %v10819 = vpack.c.b16 %v9987, %v9979
    %v10820 = vpack.c.b16 %v9988, %v9980
    %v10821 = vpack.c.b16 %v9997, %v9989
    %v10822 = vpack.c.b16 %v9998, %v9990
    %v10823 = vpack.c.b16 %v9999, %v9991
    %v10824 = vpack.c.b16 %v10000, %v9992
    %v10825 = vpack.c.b16 %v10001, %v9993
    %v10826 = vpack.c.b16 %v10002, %v9994
    %v10827 = vpack.c.b16 %v10003, %v9995
    %v10828 = vpack.c.b16 %v10004, %v9996
    %v10829 = vpack.c.b16 %v10013, %v10005
    %v10830 = vpack.c.b16 %v10014, %v10006
    %v10831 = vpack.c.b16 %v10015, %v10007
    %v10832 = vpack.c.b16 %v10016, %v10008
    %v10833 = vpack.c.b16 %v10017, %v10009
    %v10834 = vpack.c.b16 %v10018, %v10010
    %v10835 = vpack.c.b16 %v10019, %v10011
    %v10836 = vpack.c.b16 %v10020, %v10012
    %v10837 = vpack.c.b16 %v10029, %v10021
    %v10838 = vpack.c.b16 %v10030, %v10022
    %v10839 = vpack.c.b16 %v10031, %v10023
    %v10840 = vpack.c.b16 %v10032, %v10024
    %v10841 = vpack.c.b16 %v10033, %v10025
    %v10842 = vpack.c.b16 %v10034, %v10026
    %v10843 = vpack.c.b16 %v10035, %v10027
    %v10844 = vpack.c.b16 %v10036, %v10028
    %v10845 = vpack.c.b16 %v10045, %v10037
    %v10846 = vpack.c.b16 %v10046, %v10038
    %v10847 = vpack.c.b16 %v10047, %v10039
    %v10848 = vpack.c.b16 %v10048, %v10040
    %v10849 = vpack.c.b16 %v10049, %v10041
    %v10850 = vpack.c.b16 %v10050, %v10042
    %v10851 = vpack.c.b16 %v10051, %v10043
    %v10852 = vpack.c.b16 %v10052, %v10044
    %v10853 = vpack.c.b16 %v10061, %v10053
    %v10854 = vpack.c.b16 %v10062, %v10054
    %v10855 = vpack.c.b16 %v10063, %v10055
    %v10856 = vpack.c.b16 %v10064, %v10056
    %v10857 = vpack.c.b16 %v10065, %v10057
    %v10858 = vpack.c.b16 %v10066, %v10058
    %v10859 = vpack.c.b16 %v10067, %v10059
    %v10860 = vpack.c.b16 %v10068, %v10060
    %v10861 = vpack.c.b16 %v10077, %v10069
    %v10862 = vpack.c.b16 %v10078, %v10070
    %v10863 = vpack.c.b16 %v10079, %v10071
    %v10864 = vpack.c.b16 %v10080, %v10072
    %v10865 = vpack.c.b16 %v10081, %v10073
    %v10866 = vpack.c.b16 %v10082, %v10074
    %v10867 = vpack.c.b16 %v10083, %v10075
    %v10868 = vpack.c.b16 %v10084, %v10076
    %v10869 = vpack.c.b16 %v10093, %v10085
    %v10870 = vpack.c.b16 %v10094, %v10086
    %v10871 = vpack.c.b16 %v10095, %v10087
    %v10872 = vpack.c.b16 %v10096, %v10088
    %v10873 = vpack.c.b16 %v10097, %v10089
    %v10874 = vpack.c.b16 %v10098, %v10090
    %v10875 = vpack.c.b16 %v10099, %v10091
    %v10876 = vpack.c.b16 %v10100, %v10092
    %v10877 = vpack.c.b16 %v10109, %v10101
    %v10878 = vpack.c.b16 %v10110, %v10102
    %v10879 = vpack.c.b16 %v10111, %v10103
    %v10880 = vpack.c.b16 %v10112, %v10104
    %v10881 = vpack.c.b16 %v10113, %v10105
    %v10882 = vpack.c.b16 %v10114, %v10106
    %v10883 = vpack.c.b16 %v10115, %v10107
    %v10884 = vpack.c.b16 %v10116, %v10108
    %v10885 = vpack.c.b16 %v10125, %v10117
    %v10886 = vpack.c.b16 %v10126, %v10118
    %v10887 = vpack.c.b16 %v10127, %v10119
    %v10888 = vpack.c.b16 %v10128, %v10120
    %v10889 = vpack.c.b16 %v10129, %v10121
    %v10890 = vpack.c.b16 %v10130, %v10122
    %v10891 = vpack.c.b16 %v10131, %v10123
    %v10892 = vpack.c.b16 %v10132, %v10124
    %v10893 = vpack.c.b16 %v10141, %v10133
    %v10894 = vpack.c.b16 %v10142, %v10134
    %v10895 = vpack.c.b16 %v10143, %v10135
    %v10896 = vpack.c.b16 %v10144, %v10136
    %v10897 = vpack.c.b16 %v10145, %v10137
    %v10898 = vpack.c.b16 %v10146, %v10138
    %v10899 = vpack.c.b16 %v10147, %v10139
    %v10900 = vpack.c.b16 %v10148, %v10140
    %v10901 = vpack.c.b16 %v10157, %v10149
    %v10902 = vpack.c.b16 %v10158, %v10150
    %v10903 = vpack.c.b16 %v10159, %v10151
    %v10904 = vpack.c.b16 %v10160, %v10152
    %v10905 = vpack.c.b16 %v10161, %v10153
    %v10906 = vpack.c.b16 %v10162, %v10154
    %v10907 = vpack.c.b16 %v10163, %v10155
    %v10908 = vpack.c.b16 %v10164, %v10156
    %v10909 = vpack.c.b16 %v10173, %v10165
    %v10910 = vpack.c.b16 %v10174, %v10166
    %v10911 = vpack.c.b16 %v10175, %v10167
    %v10912 = vpack.c.b16 %v10176, %v10168
    %v10913 = vpack.c.b16 %v10177, %v10169
    %v10914 = vpack.c.b16 %v10178, %v10170
    %v10915 = vpack.c.b16 %v10179, %v10171
    %v10916 = vpack.c.b16 %v10180, %v10172
    %v10917 = vpack.c.b16 %v10189, %v10181
    %v10918 = vpack.c.b16 %v10190, %v10182
    %v10919 = vpack.c.b16 %v10191, %v10183
    %v10920 = vpack.c.b16 %v10192, %v10184
    %v10921 = vpack.c.b16 %v10193, %v10185
    %v10922 = vpack.c.b16 %v10194, %v10186
    %v10923 = vpack.c.b16 %v10195, %v10187
    %v10924 = vpack.c.b16 %v10196, %v10188
    %v10925 = vpack.c.b16 %v10205, %v10197
    %v10926 = vpack.c.b16 %v10206, %v10198
    %v10927 = vpack.c.b16 %v10207, %v10199
    %v10928 = vpack.c.b16 %v10208, %v10200
    %v10929 = vpack.c.b16 %v10209, %v10201
    %v10930 = vpack.c.b16 %v10210, %v10202
    %v10931 = vpack.c.b16 %v10211, %v10203
    %v10932 = vpack.c.b16 %v10212, %v10204
    %v10933 = vpack.c.b16 %v10221, %v10213
    %v10934 = vpack.c.b16 %v10222, %v10214
    %v10935 = vpack.c.b16 %v10223, %v10215
    %v10936 = vpack.c.b16 %v10224, %v10216
    %v10937 = vpack.c.b16 %v10225, %v10217
    %v10938 = vpack.c.b16 %v10226, %v10218
    %v10939 = vpack.c.b16 %v10227, %v10219
    %v10940 = vpack.c.b16 %v10228, %v10220
    %v10941 = vpack.c.b16 %v10237, %v10229
    %v10942 = vpack.c.b16 %v10238, %v10230
    %v10943 = vpack.c.b16 %v10239, %v10231
    %v10944 = vpack.c.b16 %v10240, %v10232
    %v10945 = vpack.c.b16 %v10241, %v10233
    %v10946 = vpack.c.b16 %v10242, %v10234
    %v10947 = vpack.c.b16 %v10243, %v10235
    %v10948 = vpack.c.b16 %v10244, %v10236
    %v10949 = vpack.c.b16 %v10253, %v10245
    %v10950 = vpack.c.b16 %v10254, %v10246
    %v10951 = vpack.c.b16 %v10255, %v10247
    %v10952 = vpack.c.b16 %v10256, %v10248
    %v10953 = vpack.c.b16 %v10257, %v10249
    %v10954 = vpack.c.b16 %v10258, %v10250
    %v10955 = vpack.c.b16 %v10259, %v10251
    %v10956 = vpack.c.b16 %v10260, %v10252
    %v10957 = vpack.c.b16 %v10269, %v10261
    %v10958 = vpack.c.b16 %v10270, %v10262
    %v10959 = vpack.c.b16 %v10271, %v10263
    %v10960 = vpack.c.b16 %v10272, %v10264
    %v10961 = vpack.c.b16 %v10273, %v10265
    %v10962 = vpack.c.b16 %v10274, %v10266
    %v10963 = vpack.c.b16 %v10275, %v10267
    %v10964 = vpack.c.b16 %v10276, %v10268
    %v10965 = vpack.c.b16 %v10285, %v10277
    %v10966 = vpack.c.b16 %v10286, %v10278
    %v10967 = vpack.c.b16 %v10287, %v10279
    %v10968 = vpack.c.b16 %v10288, %v10280
    %v10969 = vpack.c.b16 %v10289, %v10281
    %v10970 = vpack.c.b16 %v10290, %v10282
    %v10971 = vpack.c.b16 %v10291, %v10283
    %v10972 = vpack.c.b16 %v10292, %v10284
    %v10973 = vpack.c.b16 %v10301, %v10293
    %v10974 = vpack.c.b16 %v10302, %v10294
    %v10975 = vpack.c.b16 %v10303, %v10295
    %v10976 = vpack.c.b16 %v10304, %v10296
    %v10977 = vpack.c.b16 %v10305, %v10297
    %v10978 = vpack.c.b16 %v10306, %v10298
    %v10979 = vpack.c.b16 %v10307, %v10299
    %v10980 = vpack.c.b16 %v10308, %v10300
    %v10981 = vpack.c.b16 %v10317, %v10309
    %v10982 = vpack.c.b16 %v10318, %v10310
    %v10983 = vpack.c.b16 %v10319, %v10311
    %v10984 = vpack.c.b16 %v10320, %v10312
    %v10985 = vpack.c.b16 %v10321, %v10313
    %v10986 = vpack.c.b16 %v10322, %v10314
    %v10987 = vpack.c.b16 %v10323, %v10315
    %v10988 = vpack.c.b16 %v10324, %v10316
    %v10989 = vpack.c.b16 %v10333, %v10325
    %v10990 = vpack.c.b16 %v10334, %v10326
    %v10991 = vpack.c.b16 %v10335, %v10327
    %v10992 = vpack.c.b16 %v10336, %v10328
    %v10993 = vpack.c.b16 %v10337, %v10329
    %v10994 = vpack.c.b16 %v10338, %v10330
    %v10995 = vpack.c.b16 %v10339, %v10331
    %v10996 = vpack.c.b16 %v10340, %v10332
    %v10997 = vpack.c.b16 %v10349, %v10341
    %v10998 = vpack.c.b16 %v10350, %v10342
    %v10999 = vpack.c.b16 %v10351, %v10343
    %v11000 = vpack.c.b16 %v10352, %v10344
    %v11001 = vpack.c.b16 %v10353, %v10345
    %v11002 = vpack.c.b16 %v10354, %v10346
    %v11003 = vpack.c.b16 %v10355, %v10347
    %v11004 = vpack.c.b16 %v10356, %v10348
    %v11005 = vpack.c.b16 %v10365, %v10357
    %v11006 = vpack.c.b16 %v10366, %v10358
    %v11007 = vpack.c.b16 %v10367, %v10359
    %v11008 = vpack.c.b16 %v10368, %v10360
    %v11009 = vpack.c.b16 %v10369, %v10361
    %v11010 = vpack.c.b16 %v10370, %v10362
    %v11011 = vpack.c.b16 %v10371, %v10363
    %v11012 = vpack.c.b16 %v10372, %v10364
    %v11013 = vpack.c.b16 %v10381, %v10373
    %v11014 = vpack.c.b16 %v10382, %v10374
    %v11015 = vpack.c.b16 %v10383, %v10375
    %v11016 = vpack.c.b16 %v10384, %v10376
    %v11017 = vpack.c.b16 %v10385, %v10377
    %v11018 = vpack.c.b16 %v10386, %v10378
    %v11019 = vpack.c.b16 %v10387, %v10379
    %v11020 = vpack.c.b16 %v10388, %v10380
    %v11021 = vpack.c.b16 %v10397, %v10389
    %v11022 = vpack.c.b16 %v10398, %v10390
    %v11023 = vpack.c.b16 %v10399, %v10391
    %v11024 = vpack.c.b16 %v10400, %v10392
    %v11025 = vpack.c.b16 %v10401, %v10393
    %v11026 = vpack.c.b16 %v10402, %v10394
    %v11027 = vpack.c.b16 %v10403, %v10395
    %v11028 = vpack.c.b16 %v10404, %v10396
    %v11029 = vpack.c.b16 %v10413, %v10405
    %v11030 = vpack.c.b16 %v10414, %v10406
    %v11031 = vpack.c.b16 %v10415, %v10407
    %v11032 = vpack.c.b16 %v10416, %v10408
    %v11033 = vpack.c.b16 %v10417, %v10409
    %v11034 = vpack.c.b16 %v10418, %v10410
    %v11035 = vpack.c.b16 %v10419, %v10411
    %v11036 = vpack.c.b16 %v10420, %v10412
    %v11037 = vpack.c.b16 %v10429, %v10421
    %v11038 = vpack.c.b16 %v10430, %v10422
    %v11039 = vpack.c.b16 %v10431, %v10423
    %v11040 = vpack.c.b16 %v10432, %v10424
    %v11041 = vpack.c.b16 %v10433, %v10425
    %v11042 = vpack.c.b16 %v10434, %v10426
    %v11043 = vpack.c.b16 %v10435, %v10427
    %v11044 = vpack.c.b16 %v10436, %v10428
    %v11045 = vpack.c.b16 %v10445, %v10437
    %v11046 = vpack.c.b16 %v10446, %v10438
    %v11047 = vpack.c.b16 %v10447, %v10439
    %v11048 = vpack.c.b16 %v10448, %v10440
    %v11049 = vpack.c.b16 %v10449, %v10441
    %v11050 = vpack.c.b16 %v10450, %v10442
    %v11051 = vpack.c.b16 %v10451, %v10443
    %v11052 = vpack.c.b16 %v10452, %v10444
    %v11654 = vsel %vm7648, %v8643, 0
    %11656 = vmatprep.subr.bf16.mxu0 %v10510
    %11657 = vmatpush1.bf16.msra.mxu0 %v10509
    %11658 = vmatprep.subr.bf16.mxu0 %v10502
    %11659 = vmatpush1.bf16.msra.mxu0 %v10501
    %11660 = vmatprep.subr.bf16.mxu0 %v10494
    %11661 = vmatpush1.bf16.msra.mxu0 %v10493
    %11662 = vmatprep.subr.bf16.mxu0 %v10486
    %11663 = vmatpush1.bf16.msra.mxu0 %v10485
    %11664 = vmatprep.subr.bf16.mxu0 %v10478
    %11665 = vmatpush1.bf16.msra.mxu0 %v10477
    %11666 = vmatprep.subr.bf16.mxu0 %v10470
    %11667 = vmatpush1.bf16.msra.mxu0 %v10469
    %11668 = vmatprep.subr.bf16.mxu0 %v10462
    %11669 = vmatpush1.bf16.msra.mxu0 %v10461
    %11670 = vmatprep.subr.bf16.mxu0 %v10454
    %11671 = vmatpush1.bf16.msra.mxu0 %v10453
    %11672 = vmatprep.subr.bf16.mxu0 %v10574
    %11673 = vmatpush2.bf16.msra.mxu0 %v10573
    %11674 = vmatprep.subr.bf16.mxu0 %v10566
    %11675 = vmatpush2.bf16.msra.mxu0 %v10565
    %11676 = vmatprep.subr.bf16.mxu0 %v10558
    %11677 = vmatpush2.bf16.msra.mxu0 %v10557
    %11678 = vmatprep.subr.bf16.mxu0 %v10550
    %11679 = vmatpush2.bf16.msra.mxu0 %v10549
    %11680 = vmatprep.subr.bf16.mxu0 %v10542
    %11681 = vmatpush2.bf16.msra.mxu0 %v10541
    %11682 = vmatprep.subr.bf16.mxu0 %v10534
    %11683 = vmatpush2.bf16.msra.mxu0 %v10533
    %11684 = vmatprep.subr.bf16.mxu0 %v10526
    %11685 = vmatpush2.bf16.msra.mxu0 %v10525
    %11686 = vmatprep.subr.bf16.mxu0 %v10518
    %11687 = vmatpush2.bf16.msra.mxu0 %v10517
    %11688 = vmatprep.mubr.bf16.mxu0 %v8635
    %11689 = vmatmul.mubr.bf16.gmra.mxu0 %v8634
    %v11690 = vpop.f32.mrf.mxu0
    %v11691 = vadd.f32 %v8484, %v11690
    %v11692 = vpop.f32.mrf.mxu0
    %v11693 = vadd.f32 %v8488, %v11692
    %v11694 = vpop.f32.mrf.mxu0
    %v11695 = vpop.f32.mrf.mxu0
    %11696 = vdwg.mxu0
    %11697 = vmatprep.subr.bf16.mxu0 %v10638
    %11698 = vmatpush1.bf16.msra.mxu0 %v10637
    %11699 = vmatprep.subr.bf16.mxu0 %v10630
    %11700 = vmatpush1.bf16.msra.mxu0 %v10629
    %11701 = vmatprep.subr.bf16.mxu0 %v10622
    %11702 = vmatpush1.bf16.msra.mxu0 %v10621
    %11703 = vmatprep.subr.bf16.mxu0 %v10614
    %11704 = vmatpush1.bf16.msra.mxu0 %v10613
    %11705 = vmatprep.subr.bf16.mxu0 %v10606
    %11706 = vmatpush1.bf16.msra.mxu0 %v10605
    %11707 = vmatprep.subr.bf16.mxu0 %v10598
    %11708 = vmatpush1.bf16.msra.mxu0 %v10597
    %11709 = vmatprep.subr.bf16.mxu0 %v10590
    %11710 = vmatpush1.bf16.msra.mxu0 %v10589
    %11711 = vmatprep.subr.bf16.mxu0 %v10582
    %11712 = vmatpush1.bf16.msra.mxu0 %v10581
    %11713 = vmatprep.subr.bf16.mxu0 %v10702
    %11714 = vmatpush2.bf16.msra.mxu0 %v10701
    %11715 = vmatprep.subr.bf16.mxu0 %v10694
    %11716 = vmatpush2.bf16.msra.mxu0 %v10693
    %11717 = vmatprep.subr.bf16.mxu0 %v10686
    %11718 = vmatpush2.bf16.msra.mxu0 %v10685
    %11719 = vmatprep.subr.bf16.mxu0 %v10678
    %11720 = vmatpush2.bf16.msra.mxu0 %v10677
    %11721 = vmatprep.subr.bf16.mxu0 %v10670
    %11722 = vmatpush2.bf16.msra.mxu0 %v10669
    %11723 = vmatprep.subr.bf16.mxu0 %v10662
    %11724 = vmatpush2.bf16.msra.mxu0 %v10661
    %11725 = vmatprep.subr.bf16.mxu0 %v10654
    %11726 = vmatpush2.bf16.msra.mxu0 %v10653
    %11727 = vmatprep.subr.bf16.mxu0 %v10646
    %11728 = vmatpush2.bf16.msra.mxu0 %v10645
    %11729 = vmatprep.mubr.bf16.mxu0 %v8637
    %11730 = vmatmul.mubr.bf16.gmra.mxu0 %v8636
    %v11731 = vpop.f32.mrf.mxu0
    %v11732 = vadd.f32 %v11691, %v11731
    %v11733 = vpop.f32.mrf.mxu0
    %v11734 = vadd.f32 %v11693, %v11733
    %v11735 = vpop.f32.mrf.mxu0
    %v11736 = vpop.f32.mrf.mxu0
    %11737 = vdwg.mxu0
    %11738 = vmatprep.subr.bf16.mxu0 %v10766
    %11739 = vmatpush1.bf16.msra.mxu0 %v10765
    %11740 = vmatprep.subr.bf16.mxu0 %v10758
    %11741 = vmatpush1.bf16.msra.mxu0 %v10757
    %11742 = vmatprep.subr.bf16.mxu0 %v10750
    %11743 = vmatpush1.bf16.msra.mxu0 %v10749
    %11744 = vmatprep.subr.bf16.mxu0 %v10742
    %11745 = vmatpush1.bf16.msra.mxu0 %v10741
    %11746 = vmatprep.subr.bf16.mxu0 %v10734
    %11747 = vmatpush1.bf16.msra.mxu0 %v10733
    %11748 = vmatprep.subr.bf16.mxu0 %v10726
    %11749 = vmatpush1.bf16.msra.mxu0 %v10725
    %11750 = vmatprep.subr.bf16.mxu0 %v10718
    %11751 = vmatpush1.bf16.msra.mxu0 %v10717
    %11752 = vmatprep.subr.bf16.mxu0 %v10710
    %11753 = vmatpush1.bf16.msra.mxu0 %v10709
    %11754 = vmatprep.subr.bf16.mxu0 %v10830
    %11755 = vmatpush2.bf16.msra.mxu0 %v10829
    %11756 = vmatprep.subr.bf16.mxu0 %v10822
    %11757 = vmatpush2.bf16.msra.mxu0 %v10821
    %11758 = vmatprep.subr.bf16.mxu0 %v10814
    %11759 = vmatpush2.bf16.msra.mxu0 %v10813
    %11760 = vmatprep.subr.bf16.mxu0 %v10806
    %11761 = vmatpush2.bf16.msra.mxu0 %v10805
    %11762 = vmatprep.subr.bf16.mxu0 %v10798
    %11763 = vmatpush2.bf16.msra.mxu0 %v10797
    %11764 = vmatprep.subr.bf16.mxu0 %v10790
    %11765 = vmatpush2.bf16.msra.mxu0 %v10789
    %11766 = vmatprep.subr.bf16.mxu0 %v10782
    %11767 = vmatpush2.bf16.msra.mxu0 %v10781
    %11768 = vmatprep.subr.bf16.mxu0 %v10774
    %11769 = vmatpush2.bf16.msra.mxu0 %v10773
    %11770 = vmatprep.mubr.bf16.mxu0 %v8639
    %11771 = vmatmul.mubr.bf16.gmra.mxu0 %v8638
    %v11772 = vpop.f32.mrf.mxu0
    %v11773 = vadd.f32 %v11732, %v11772
    %v11774 = vpop.f32.mrf.mxu0
    %v11775 = vadd.f32 %v11734, %v11774
    %v11776 = vpop.f32.mrf.mxu0
    %v11777 = vpop.f32.mrf.mxu0
    %11778 = vdwg.mxu0
    %11779 = vmatprep.subr.bf16.mxu0 %v10894
    %11780 = vmatpush1.bf16.msra.mxu0 %v10893
    %11781 = vmatprep.subr.bf16.mxu0 %v10886
    %11782 = vmatpush1.bf16.msra.mxu0 %v10885
    %11783 = vmatprep.subr.bf16.mxu0 %v10878
    %11784 = vmatpush1.bf16.msra.mxu0 %v10877
    %11785 = vmatprep.subr.bf16.mxu0 %v10870
    %11786 = vmatpush1.bf16.msra.mxu0 %v10869
    %11787 = vmatprep.subr.bf16.mxu0 %v10862
    %11788 = vmatpush1.bf16.msra.mxu0 %v10861
    %11789 = vmatprep.subr.bf16.mxu0 %v10854
    %11790 = vmatpush1.bf16.msra.mxu0 %v10853
    %11791 = vmatprep.subr.bf16.mxu0 %v10846
    %11792 = vmatpush1.bf16.msra.mxu0 %v10845
    %11793 = vmatprep.subr.bf16.mxu0 %v10838
    %11794 = vmatpush1.bf16.msra.mxu0 %v10837
    %11795 = vmatprep.subr.bf16.mxu0 %v10958
    %11796 = vmatpush2.bf16.msra.mxu0 %v10957
    %11797 = vmatprep.subr.bf16.mxu0 %v10950
    %11798 = vmatpush2.bf16.msra.mxu0 %v10949
    %11799 = vmatprep.subr.bf16.mxu0 %v10942
    %11800 = vmatpush2.bf16.msra.mxu0 %v10941
    %11801 = vmatprep.subr.bf16.mxu0 %v10934
    %11802 = vmatpush2.bf16.msra.mxu0 %v10933
    %11803 = vmatprep.subr.bf16.mxu0 %v10926
    %11804 = vmatpush2.bf16.msra.mxu0 %v10925
    %11805 = vmatprep.subr.bf16.mxu0 %v10918
    %11806 = vmatpush2.bf16.msra.mxu0 %v10917
    %11807 = vmatprep.subr.bf16.mxu0 %v10910
    %11808 = vmatpush2.bf16.msra.mxu0 %v10909
    %11809 = vmatprep.subr.bf16.mxu0 %v10902
    %11810 = vmatpush2.bf16.msra.mxu0 %v10901
    %11811 = vmatprep.mubr.bf16.mxu0 %v8641
    %11812 = vmatmul.mubr.bf16.gmra.mxu0 %v8640
    %v11813 = vpop.f32.mrf.mxu0
    %v11814 = vadd.f32 %v11773, %v11813
    %v11815 = vpop.f32.mrf.mxu0
    %v11816 = vadd.f32 %v11775, %v11815
    %v11817 = vpop.f32.mrf.mxu0
    %v11818 = vpop.f32.mrf.mxu0
    %11819 = vdwg.mxu0
    %11820 = vmatprep.subr.bf16.mxu0 %v11022
    %11821 = vmatpush1.bf16.msra.mxu0 %v11021
    %11822 = vmatprep.subr.bf16.mxu0 %v11014
    %11823 = vmatpush1.bf16.msra.mxu0 %v11013
    %11824 = vmatprep.subr.bf16.mxu0 %v11006
    %11825 = vmatpush1.bf16.msra.mxu0 %v11005
    %11826 = vmatprep.subr.bf16.mxu0 %v10998
    %11827 = vmatpush1.bf16.msra.mxu0 %v10997
    %11828 = vmatprep.subr.bf16.mxu0 %v10990
    %11829 = vmatpush1.bf16.msra.mxu0 %v10989
    %11830 = vmatprep.subr.bf16.mxu0 %v10982
    %11831 = vmatpush1.bf16.msra.mxu0 %v10981
    %11832 = vmatprep.subr.bf16.mxu0 %v10974
    %11833 = vmatpush1.bf16.msra.mxu0 %v10973
    %11834 = vmatprep.subr.bf16.mxu0 %v10966
    %11835 = vmatpush1.bf16.msra.mxu0 %v10965
    %11836 = vmatprep.subr.bf16.mxu0 0
    %11837 = vmatpush2.bf16.msra.mxu0 0
    %11838 = vmatprep.subr.bf16.mxu0 0
    %11839 = vmatpush2.bf16.msra.mxu0 0
    %11840 = vmatprep.subr.bf16.mxu0 0
    %11841 = vmatpush2.bf16.msra.mxu0 0
    %11842 = vmatprep.subr.bf16.mxu0 0
    %11843 = vmatpush2.bf16.msra.mxu0 0
    %11844 = vmatprep.subr.bf16.mxu0 0
    %11845 = vmatpush2.bf16.msra.mxu0 0
    %11846 = vmatprep.subr.bf16.mxu0 %v11046
    %11847 = vmatpush2.bf16.msra.mxu0 %v11045
    %11848 = vmatprep.subr.bf16.mxu0 %v11038
    %11849 = vmatpush2.bf16.msra.mxu0 %v11037
    %11850 = vmatprep.subr.bf16.mxu0 %v11030
    %11851 = vmatpush2.bf16.msra.mxu0 %v11029
    %11852 = vmatprep.mubr.bf16.mxu0 %v11654
    %11853 = vmatmul.mubr.bf16.gmra.mxu0 %v8642
    %v11854 = vpop.f32.mrf.mxu0
    %v11855 = vadd.f32 %v11814, %v11854
    %v11856 = vpop.f32.mrf.mxu0
    %v11857 = vadd.f32 %v11816, %v11856
    %v11858 = vpop.f32.mrf.mxu0
    %v11859 = vpop.f32.mrf.mxu0
    %11860 = vdwg.mxu0
    %11861 = vmatprep.subr.bf16.mxu0 %v10512
    %11862 = vmatpush1.bf16.msra.mxu0 %v10511
    %11863 = vmatprep.subr.bf16.mxu0 %v10504
    %11864 = vmatpush1.bf16.msra.mxu0 %v10503
    %11865 = vmatprep.subr.bf16.mxu0 %v10496
    %11866 = vmatpush1.bf16.msra.mxu0 %v10495
    %11867 = vmatprep.subr.bf16.mxu0 %v10488
    %11868 = vmatpush1.bf16.msra.mxu0 %v10487
    %11869 = vmatprep.subr.bf16.mxu0 %v10480
    %11870 = vmatpush1.bf16.msra.mxu0 %v10479
    %11871 = vmatprep.subr.bf16.mxu0 %v10472
    %11872 = vmatpush1.bf16.msra.mxu0 %v10471
    %11873 = vmatprep.subr.bf16.mxu0 %v10464
    %11874 = vmatpush1.bf16.msra.mxu0 %v10463
    %11875 = vmatprep.subr.bf16.mxu0 %v10456
    %11876 = vmatpush1.bf16.msra.mxu0 %v10455
    %11877 = vmatprep.subr.bf16.mxu0 %v10576
    %11878 = vmatpush2.bf16.msra.mxu0 %v10575
    %11879 = vmatprep.subr.bf16.mxu0 %v10568
    %11880 = vmatpush2.bf16.msra.mxu0 %v10567
    %11881 = vmatprep.subr.bf16.mxu0 %v10560
    %11882 = vmatpush2.bf16.msra.mxu0 %v10559
    %11883 = vmatprep.subr.bf16.mxu0 %v10552
    %11884 = vmatpush2.bf16.msra.mxu0 %v10551
    %11885 = vmatprep.subr.bf16.mxu0 %v10544
    %11886 = vmatpush2.bf16.msra.mxu0 %v10543
    %11887 = vmatprep.subr.bf16.mxu0 %v10536
    %11888 = vmatpush2.bf16.msra.mxu0 %v10535
    %11889 = vmatprep.subr.bf16.mxu0 %v10528
    %11890 = vmatpush2.bf16.msra.mxu0 %v10527
    %11891 = vmatprep.subr.bf16.mxu0 %v10520
    %11892 = vmatpush2.bf16.msra.mxu0 %v10519
    %11893 = vmatprep.mubr.bf16.mxu0 %v8635
    %11894 = vmatmul.mubr.bf16.gmra.mxu0 %v8634
    %v11895 = vpop.f32.mrf.mxu0
    %v11896 = vadd.f32 %v8492, %v11895
    %v11897 = vpop.f32.mrf.mxu0
    %v11898 = vadd.f32 %v8496, %v11897
    %v11899 = vpop.f32.mrf.mxu0
    %v11900 = vpop.f32.mrf.mxu0
    %11901 = vdwg.mxu0
    %11902 = vmatprep.subr.bf16.mxu0 %v10640
    %11903 = vmatpush1.bf16.msra.mxu0 %v10639
    %11904 = vmatprep.subr.bf16.mxu0 %v10632
    %11905 = vmatpush1.bf16.msra.mxu0 %v10631
    %11906 = vmatprep.subr.bf16.mxu0 %v10624
    %11907 = vmatpush1.bf16.msra.mxu0 %v10623
    %11908 = vmatprep.subr.bf16.mxu0 %v10616
    %11909 = vmatpush1.bf16.msra.mxu0 %v10615
    %11910 = vmatprep.subr.bf16.mxu0 %v10608
    %11911 = vmatpush1.bf16.msra.mxu0 %v10607
    %11912 = vmatprep.subr.bf16.mxu0 %v10600
    %11913 = vmatpush1.bf16.msra.mxu0 %v10599
    %11914 = vmatprep.subr.bf16.mxu0 %v10592
    %11915 = vmatpush1.bf16.msra.mxu0 %v10591
    %11916 = vmatprep.subr.bf16.mxu0 %v10584
    %11917 = vmatpush1.bf16.msra.mxu0 %v10583
    %11918 = vmatprep.subr.bf16.mxu0 %v10704
    %11919 = vmatpush2.bf16.msra.mxu0 %v10703
    %11920 = vmatprep.subr.bf16.mxu0 %v10696
    %11921 = vmatpush2.bf16.msra.mxu0 %v10695
    %11922 = vmatprep.subr.bf16.mxu0 %v10688
    %11923 = vmatpush2.bf16.msra.mxu0 %v10687
    %11924 = vmatprep.subr.bf16.mxu0 %v10680
    %11925 = vmatpush2.bf16.msra.mxu0 %v10679
    %11926 = vmatprep.subr.bf16.mxu0 %v10672
    %11927 = vmatpush2.bf16.msra.mxu0 %v10671
    %11928 = vmatprep.subr.bf16.mxu0 %v10664
    %11929 = vmatpush2.bf16.msra.mxu0 %v10663
    %11930 = vmatprep.subr.bf16.mxu0 %v10656
    %11931 = vmatpush2.bf16.msra.mxu0 %v10655
    %11932 = vmatprep.subr.bf16.mxu0 %v10648
    %11933 = vmatpush2.bf16.msra.mxu0 %v10647
    %11934 = vmatprep.mubr.bf16.mxu0 %v8637
    %11935 = vmatmul.mubr.bf16.gmra.mxu0 %v8636
    %v11936 = vpop.f32.mrf.mxu0
    %v11937 = vadd.f32 %v11896, %v11936
    %v11938 = vpop.f32.mrf.mxu0
    %v11939 = vadd.f32 %v11898, %v11938
    %v11940 = vpop.f32.mrf.mxu0
    %v11941 = vpop.f32.mrf.mxu0
    %11942 = vdwg.mxu0
    %11943 = vmatprep.subr.bf16.mxu0 %v10768
    %11944 = vmatpush1.bf16.msra.mxu0 %v10767
    %11945 = vmatprep.subr.bf16.mxu0 %v10760
    %11946 = vmatpush1.bf16.msra.mxu0 %v10759
    %11947 = vmatprep.subr.bf16.mxu0 %v10752
    %11948 = vmatpush1.bf16.msra.mxu0 %v10751
    %11949 = vmatprep.subr.bf16.mxu0 %v10744
    %11950 = vmatpush1.bf16.msra.mxu0 %v10743
    %11951 = vmatprep.subr.bf16.mxu0 %v10736
    %11952 = vmatpush1.bf16.msra.mxu0 %v10735
    %11953 = vmatprep.subr.bf16.mxu0 %v10728
    %11954 = vmatpush1.bf16.msra.mxu0 %v10727
    %11955 = vmatprep.subr.bf16.mxu0 %v10720
    %11956 = vmatpush1.bf16.msra.mxu0 %v10719
    %11957 = vmatprep.subr.bf16.mxu0 %v10712
    %11958 = vmatpush1.bf16.msra.mxu0 %v10711
    %11959 = vmatprep.subr.bf16.mxu0 %v10832
    %11960 = vmatpush2.bf16.msra.mxu0 %v10831
    %11961 = vmatprep.subr.bf16.mxu0 %v10824
    %11962 = vmatpush2.bf16.msra.mxu0 %v10823
    %11963 = vmatprep.subr.bf16.mxu0 %v10816
    %11964 = vmatpush2.bf16.msra.mxu0 %v10815
    %11965 = vmatprep.subr.bf16.mxu0 %v10808
    %11966 = vmatpush2.bf16.msra.mxu0 %v10807
    %11967 = vmatprep.subr.bf16.mxu0 %v10800
    %11968 = vmatpush2.bf16.msra.mxu0 %v10799
    %11969 = vmatprep.subr.bf16.mxu0 %v10792
    %11970 = vmatpush2.bf16.msra.mxu0 %v10791
    %11971 = vmatprep.subr.bf16.mxu0 %v10784
    %11972 = vmatpush2.bf16.msra.mxu0 %v10783
    %11973 = vmatprep.subr.bf16.mxu0 %v10776
    %11974 = vmatpush2.bf16.msra.mxu0 %v10775
    %11975 = vmatprep.mubr.bf16.mxu0 %v8639
    %11976 = vmatmul.mubr.bf16.gmra.mxu0 %v8638
    %v11977 = vpop.f32.mrf.mxu0
    %v11978 = vadd.f32 %v11937, %v11977
    %v11979 = vpop.f32.mrf.mxu0
    %v11980 = vadd.f32 %v11939, %v11979
    %v11981 = vpop.f32.mrf.mxu0
    %v11982 = vpop.f32.mrf.mxu0
    %11983 = vdwg.mxu0
    %11984 = vmatprep.subr.bf16.mxu0 %v10896
    %11985 = vmatpush1.bf16.msra.mxu0 %v10895
    %11986 = vmatprep.subr.bf16.mxu0 %v10888
    %11987 = vmatpush1.bf16.msra.mxu0 %v10887
    %11988 = vmatprep.subr.bf16.mxu0 %v10880
    %11989 = vmatpush1.bf16.msra.mxu0 %v10879
    %11990 = vmatprep.subr.bf16.mxu0 %v10872
    %11991 = vmatpush1.bf16.msra.mxu0 %v10871
    %11992 = vmatprep.subr.bf16.mxu0 %v10864
    %11993 = vmatpush1.bf16.msra.mxu0 %v10863
    %11994 = vmatprep.subr.bf16.mxu0 %v10856
    %11995 = vmatpush1.bf16.msra.mxu0 %v10855
    %11996 = vmatprep.subr.bf16.mxu0 %v10848
    %11997 = vmatpush1.bf16.msra.mxu0 %v10847
    %11998 = vmatprep.subr.bf16.mxu0 %v10840
    %11999 = vmatpush1.bf16.msra.mxu0 %v10839
    %12000 = vmatprep.subr.bf16.mxu0 %v10960
    %12001 = vmatpush2.bf16.msra.mxu0 %v10959
    %12002 = vmatprep.subr.bf16.mxu0 %v10952
    %12003 = vmatpush2.bf16.msra.mxu0 %v10951
    %12004 = vmatprep.subr.bf16.mxu0 %v10944
    %12005 = vmatpush2.bf16.msra.mxu0 %v10943
    %12006 = vmatprep.subr.bf16.mxu0 %v10936
    %12007 = vmatpush2.bf16.msra.mxu0 %v10935
    %12008 = vmatprep.subr.bf16.mxu0 %v10928
    %12009 = vmatpush2.bf16.msra.mxu0 %v10927
    %12010 = vmatprep.subr.bf16.mxu0 %v10920
    %12011 = vmatpush2.bf16.msra.mxu0 %v10919
    %12012 = vmatprep.subr.bf16.mxu0 %v10912
    %12013 = vmatpush2.bf16.msra.mxu0 %v10911
    %12014 = vmatprep.subr.bf16.mxu0 %v10904
    %12015 = vmatpush2.bf16.msra.mxu0 %v10903
    %12016 = vmatprep.mubr.bf16.mxu0 %v8641
    %12017 = vmatmul.mubr.bf16.gmra.mxu0 %v8640
    %v12018 = vpop.f32.mrf.mxu0
    %v12019 = vadd.f32 %v11978, %v12018
    %v12020 = vpop.f32.mrf.mxu0
    %v12021 = vadd.f32 %v11980, %v12020
    %v12022 = vpop.f32.mrf.mxu0
    %v12023 = vpop.f32.mrf.mxu0
    %12024 = vdwg.mxu0
    %12025 = vmatprep.subr.bf16.mxu0 %v11024
    %12026 = vmatpush1.bf16.msra.mxu0 %v11023
    %12027 = vmatprep.subr.bf16.mxu0 %v11016
    %12028 = vmatpush1.bf16.msra.mxu0 %v11015
    %12029 = vmatprep.subr.bf16.mxu0 %v11008
    %12030 = vmatpush1.bf16.msra.mxu0 %v11007
    %12031 = vmatprep.subr.bf16.mxu0 %v11000
    %12032 = vmatpush1.bf16.msra.mxu0 %v10999
    %12033 = vmatprep.subr.bf16.mxu0 %v10992
    %12034 = vmatpush1.bf16.msra.mxu0 %v10991
    %12035 = vmatprep.subr.bf16.mxu0 %v10984
    %12036 = vmatpush1.bf16.msra.mxu0 %v10983
    %12037 = vmatprep.subr.bf16.mxu0 %v10976
    %12038 = vmatpush1.bf16.msra.mxu0 %v10975
    %12039 = vmatprep.subr.bf16.mxu0 %v10968
    %12040 = vmatpush1.bf16.msra.mxu0 %v10967
    %12041 = vmatprep.subr.bf16.mxu0 0
    %12042 = vmatpush2.bf16.msra.mxu0 0
    %12043 = vmatprep.subr.bf16.mxu0 0
    %12044 = vmatpush2.bf16.msra.mxu0 0
    %12045 = vmatprep.subr.bf16.mxu0 0
    %12046 = vmatpush2.bf16.msra.mxu0 0
    %12047 = vmatprep.subr.bf16.mxu0 0
    %12048 = vmatpush2.bf16.msra.mxu0 0
    %12049 = vmatprep.subr.bf16.mxu0 0
    %12050 = vmatpush2.bf16.msra.mxu0 0
    %12051 = vmatprep.subr.bf16.mxu0 %v11048
    %12052 = vmatpush2.bf16.msra.mxu0 %v11047
    %12053 = vmatprep.subr.bf16.mxu0 %v11040
    %12054 = vmatpush2.bf16.msra.mxu0 %v11039
    %12055 = vmatprep.subr.bf16.mxu0 %v11032
    %12056 = vmatpush2.bf16.msra.mxu0 %v11031
    %12057 = vmatprep.mubr.bf16.mxu0 %v11654
    %12058 = vmatmul.mubr.bf16.gmra.mxu0 %v8642
    %v12059 = vpop.f32.mrf.mxu0
    %v12060 = vadd.f32 %v12019, %v12059
    %v12061 = vpop.f32.mrf.mxu0
    %v12062 = vadd.f32 %v12021, %v12061
    %v12063 = vpop.f32.mrf.mxu0
    %v12064 = vpop.f32.mrf.mxu0
    %12065 = vdwg.mxu0
    %12066 = vmatprep.subr.bf16.mxu0 %v10514
    %12067 = vmatpush1.bf16.msra.mxu0 %v10513
    %12068 = vmatprep.subr.bf16.mxu0 %v10506
    %12069 = vmatpush1.bf16.msra.mxu0 %v10505
    %12070 = vmatprep.subr.bf16.mxu0 %v10498
    %12071 = vmatpush1.bf16.msra.mxu0 %v10497
    %12072 = vmatprep.subr.bf16.mxu0 %v10490
    %12073 = vmatpush1.bf16.msra.mxu0 %v10489
    %12074 = vmatprep.subr.bf16.mxu0 %v10482
    %12075 = vmatpush1.bf16.msra.mxu0 %v10481
    %12076 = vmatprep.subr.bf16.mxu0 %v10474
    %12077 = vmatpush1.bf16.msra.mxu0 %v10473
    %12078 = vmatprep.subr.bf16.mxu0 %v10466
    %12079 = vmatpush1.bf16.msra.mxu0 %v10465
    %12080 = vmatprep.subr.bf16.mxu0 %v10458
    %12081 = vmatpush1.bf16.msra.mxu0 %v10457
    %12082 = vmatprep.subr.bf16.mxu0 %v10578
    %12083 = vmatpush2.bf16.msra.mxu0 %v10577
    %12084 = vmatprep.subr.bf16.mxu0 %v10570
    %12085 = vmatpush2.bf16.msra.mxu0 %v10569
    %12086 = vmatprep.subr.bf16.mxu0 %v10562
    %12087 = vmatpush2.bf16.msra.mxu0 %v10561
    %12088 = vmatprep.subr.bf16.mxu0 %v10554
    %12089 = vmatpush2.bf16.msra.mxu0 %v10553
    %12090 = vmatprep.subr.bf16.mxu0 %v10546
    %12091 = vmatpush2.bf16.msra.mxu0 %v10545
    %12092 = vmatprep.subr.bf16.mxu0 %v10538
    %12093 = vmatpush2.bf16.msra.mxu0 %v10537
    %12094 = vmatprep.subr.bf16.mxu0 %v10530
    %12095 = vmatpush2.bf16.msra.mxu0 %v10529
    %12096 = vmatprep.subr.bf16.mxu0 %v10522
    %12097 = vmatpush2.bf16.msra.mxu0 %v10521
    %12098 = vmatprep.mubr.bf16.mxu0 %v8635
    %12099 = vmatmul.mubr.bf16.gmra.mxu0 %v8634
    %v12100 = vpop.f32.mrf.mxu0
    %v12101 = vadd.f32 %v8500, %v12100
    %v12102 = vpop.f32.mrf.mxu0
    %v12103 = vadd.f32 %v8504, %v12102
    %v12104 = vpop.f32.mrf.mxu0
    %v12105 = vpop.f32.mrf.mxu0
    %12106 = vdwg.mxu0
    %12107 = vmatprep.subr.bf16.mxu0 %v10642
    %12108 = vmatpush1.bf16.msra.mxu0 %v10641
    %12109 = vmatprep.subr.bf16.mxu0 %v10634
    %12110 = vmatpush1.bf16.msra.mxu0 %v10633
    %12111 = vmatprep.subr.bf16.mxu0 %v10626
    %12112 = vmatpush1.bf16.msra.mxu0 %v10625
    %12113 = vmatprep.subr.bf16.mxu0 %v10618
    %12114 = vmatpush1.bf16.msra.mxu0 %v10617
    %12115 = vmatprep.subr.bf16.mxu0 %v10610
    %12116 = vmatpush1.bf16.msra.mxu0 %v10609
    %12117 = vmatprep.subr.bf16.mxu0 %v10602
    %12118 = vmatpush1.bf16.msra.mxu0 %v10601
    %12119 = vmatprep.subr.bf16.mxu0 %v10594
    %12120 = vmatpush1.bf16.msra.mxu0 %v10593
    %12121 = vmatprep.subr.bf16.mxu0 %v10586
    %12122 = vmatpush1.bf16.msra.mxu0 %v10585
    %12123 = vmatprep.subr.bf16.mxu0 %v10706
    %12124 = vmatpush2.bf16.msra.mxu0 %v10705
    %12125 = vmatprep.subr.bf16.mxu0 %v10698
    %12126 = vmatpush2.bf16.msra.mxu0 %v10697
    %12127 = vmatprep.subr.bf16.mxu0 %v10690
    %12128 = vmatpush2.bf16.msra.mxu0 %v10689
    %12129 = vmatprep.subr.bf16.mxu0 %v10682
    %12130 = vmatpush2.bf16.msra.mxu0 %v10681
    %12131 = vmatprep.subr.bf16.mxu0 %v10674
    %12132 = vmatpush2.bf16.msra.mxu0 %v10673
    %12133 = vmatprep.subr.bf16.mxu0 %v10666
    %12134 = vmatpush2.bf16.msra.mxu0 %v10665
    %12135 = vmatprep.subr.bf16.mxu0 %v10658
    %12136 = vmatpush2.bf16.msra.mxu0 %v10657
    %12137 = vmatprep.subr.bf16.mxu0 %v10650
    %12138 = vmatpush2.bf16.msra.mxu0 %v10649
    %12139 = vmatprep.mubr.bf16.mxu0 %v8637
    %12140 = vmatmul.mubr.bf16.gmra.mxu0 %v8636
    %v12141 = vpop.f32.mrf.mxu0
    %v12142 = vadd.f32 %v12101, %v12141
    %v12143 = vpop.f32.mrf.mxu0
    %v12144 = vadd.f32 %v12103, %v12143
    %v12145 = vpop.f32.mrf.mxu0
    %v12146 = vpop.f32.mrf.mxu0
    %12147 = vdwg.mxu0
    %12148 = vmatprep.subr.bf16.mxu0 %v10770
    %12149 = vmatpush1.bf16.msra.mxu0 %v10769
    %12150 = vmatprep.subr.bf16.mxu0 %v10762
    %12151 = vmatpush1.bf16.msra.mxu0 %v10761
    %12152 = vmatprep.subr.bf16.mxu0 %v10754
    %12153 = vmatpush1.bf16.msra.mxu0 %v10753
    %12154 = vmatprep.subr.bf16.mxu0 %v10746
    %12155 = vmatpush1.bf16.msra.mxu0 %v10745
    %12156 = vmatprep.subr.bf16.mxu0 %v10738
    %12157 = vmatpush1.bf16.msra.mxu0 %v10737
    %12158 = vmatprep.subr.bf16.mxu0 %v10730
    %12159 = vmatpush1.bf16.msra.mxu0 %v10729
    %12160 = vmatprep.subr.bf16.mxu0 %v10722
    %12161 = vmatpush1.bf16.msra.mxu0 %v10721
    %12162 = vmatprep.subr.bf16.mxu0 %v10714
    %12163 = vmatpush1.bf16.msra.mxu0 %v10713
    %12164 = vmatprep.subr.bf16.mxu0 %v10834
    %12165 = vmatpush2.bf16.msra.mxu0 %v10833
    %12166 = vmatprep.subr.bf16.mxu0 %v10826
    %12167 = vmatpush2.bf16.msra.mxu0 %v10825
    %12168 = vmatprep.subr.bf16.mxu0 %v10818
    %12169 = vmatpush2.bf16.msra.mxu0 %v10817
    %12170 = vmatprep.subr.bf16.mxu0 %v10810
    %12171 = vmatpush2.bf16.msra.mxu0 %v10809
    %12172 = vmatprep.subr.bf16.mxu0 %v10802
    %12173 = vmatpush2.bf16.msra.mxu0 %v10801
    %12174 = vmatprep.subr.bf16.mxu0 %v10794
    %12175 = vmatpush2.bf16.msra.mxu0 %v10793
    %12176 = vmatprep.subr.bf16.mxu0 %v10786
    %12177 = vmatpush2.bf16.msra.mxu0 %v10785
    %12178 = vmatprep.subr.bf16.mxu0 %v10778
    %12179 = vmatpush2.bf16.msra.mxu0 %v10777
    %12180 = vmatprep.mubr.bf16.mxu0 %v8639
    %12181 = vmatmul.mubr.bf16.gmra.mxu0 %v8638
    %v12182 = vpop.f32.mrf.mxu0
    %v12183 = vadd.f32 %v12142, %v12182
    %v12184 = vpop.f32.mrf.mxu0
    %v12185 = vadd.f32 %v12144, %v12184
    %v12186 = vpop.f32.mrf.mxu0
    %v12187 = vpop.f32.mrf.mxu0
    %12188 = vdwg.mxu0
    %12189 = vmatprep.subr.bf16.mxu0 %v10898
    %12190 = vmatpush1.bf16.msra.mxu0 %v10897
    %12191 = vmatprep.subr.bf16.mxu0 %v10890
    %12192 = vmatpush1.bf16.msra.mxu0 %v10889
    %12193 = vmatprep.subr.bf16.mxu0 %v10882
    %12194 = vmatpush1.bf16.msra.mxu0 %v10881
    %12195 = vmatprep.subr.bf16.mxu0 %v10874
    %12196 = vmatpush1.bf16.msra.mxu0 %v10873
    %12197 = vmatprep.subr.bf16.mxu0 %v10866
    %12198 = vmatpush1.bf16.msra.mxu0 %v10865
    %12199 = vmatprep.subr.bf16.mxu0 %v10858
    %12200 = vmatpush1.bf16.msra.mxu0 %v10857
    %12201 = vmatprep.subr.bf16.mxu0 %v10850
    %12202 = vmatpush1.bf16.msra.mxu0 %v10849
    %12203 = vmatprep.subr.bf16.mxu0 %v10842
    %12204 = vmatpush1.bf16.msra.mxu0 %v10841
    %12205 = vmatprep.subr.bf16.mxu0 %v10962
    %12206 = vmatpush2.bf16.msra.mxu0 %v10961
    %12207 = vmatprep.subr.bf16.mxu0 %v10954
    %12208 = vmatpush2.bf16.msra.mxu0 %v10953
    %12209 = vmatprep.subr.bf16.mxu0 %v10946
    %12210 = vmatpush2.bf16.msra.mxu0 %v10945
    %12211 = vmatprep.subr.bf16.mxu0 %v10938
    %12212 = vmatpush2.bf16.msra.mxu0 %v10937
    %12213 = vmatprep.subr.bf16.mxu0 %v10930
    %12214 = vmatpush2.bf16.msra.mxu0 %v10929
    %12215 = vmatprep.subr.bf16.mxu0 %v10922
    %12216 = vmatpush2.bf16.msra.mxu0 %v10921
    %12217 = vmatprep.subr.bf16.mxu0 %v10914
    %12218 = vmatpush2.bf16.msra.mxu0 %v10913
    %12219 = vmatprep.subr.bf16.mxu0 %v10906
    %12220 = vmatpush2.bf16.msra.mxu0 %v10905
    %12221 = vmatprep.mubr.bf16.mxu0 %v8641
    %12222 = vmatmul.mubr.bf16.gmra.mxu0 %v8640
    %v12223 = vpop.f32.mrf.mxu0
    %v12224 = vadd.f32 %v12183, %v12223
    %v12225 = vpop.f32.mrf.mxu0
    %v12226 = vadd.f32 %v12185, %v12225
    %v12227 = vpop.f32.mrf.mxu0
    %v12228 = vpop.f32.mrf.mxu0
    %12229 = vdwg.mxu0
    %12230 = vmatprep.subr.bf16.mxu0 %v11026
    %12231 = vmatpush1.bf16.msra.mxu0 %v11025
    %12232 = vmatprep.subr.bf16.mxu0 %v11018
    %12233 = vmatpush1.bf16.msra.mxu0 %v11017
    %12234 = vmatprep.subr.bf16.mxu0 %v11010
    %12235 = vmatpush1.bf16.msra.mxu0 %v11009
    %12236 = vmatprep.subr.bf16.mxu0 %v11002
    %12237 = vmatpush1.bf16.msra.mxu0 %v11001
    %12238 = vmatprep.subr.bf16.mxu0 %v10994
    %12239 = vmatpush1.bf16.msra.mxu0 %v10993
    %12240 = vmatprep.subr.bf16.mxu0 %v10986
    %12241 = vmatpush1.bf16.msra.mxu0 %v10985
    %12242 = vmatprep.subr.bf16.mxu0 %v10978
    %12243 = vmatpush1.bf16.msra.mxu0 %v10977
    %12244 = vmatprep.subr.bf16.mxu0 %v10970
    %12245 = vmatpush1.bf16.msra.mxu0 %v10969
    %12246 = vmatprep.subr.bf16.mxu0 0
    %12247 = vmatpush2.bf16.msra.mxu0 0
    %12248 = vmatprep.subr.bf16.mxu0 0
    %12249 = vmatpush2.bf16.msra.mxu0 0
    %12250 = vmatprep.subr.bf16.mxu0 0
    %12251 = vmatpush2.bf16.msra.mxu0 0
    %12252 = vmatprep.subr.bf16.mxu0 0
    %12253 = vmatpush2.bf16.msra.mxu0 0
    %12254 = vmatprep.subr.bf16.mxu0 0
    %12255 = vmatpush2.bf16.msra.mxu0 0
    %12256 = vmatprep.subr.bf16.mxu0 %v11050
    %12257 = vmatpush2.bf16.msra.mxu0 %v11049
    %12258 = vmatprep.subr.bf16.mxu0 %v11042
    %12259 = vmatpush2.bf16.msra.mxu0 %v11041
    %12260 = vmatprep.subr.bf16.mxu0 %v11034
    %12261 = vmatpush2.bf16.msra.mxu0 %v11033
    %12262 = vmatprep.mubr.bf16.mxu0 %v11654
    %12263 = vmatmul.mubr.bf16.gmra.mxu0 %v8642
    %v12264 = vpop.f32.mrf.mxu0
    %v12265 = vadd.f32 %v12224, %v12264
    %v12266 = vpop.f32.mrf.mxu0
    %v12267 = vadd.f32 %v12226, %v12266
    %v12268 = vpop.f32.mrf.mxu0
    %v12269 = vpop.f32.mrf.mxu0
    %12270 = vdwg.mxu0
    %12271 = vmatprep.subr.bf16.mxu0 %v10516
    %12272 = vmatpush1.bf16.msra.mxu0 %v10515
    %12273 = vmatprep.subr.bf16.mxu0 %v10508
    %12274 = vmatpush1.bf16.msra.mxu0 %v10507
    %12275 = vmatprep.subr.bf16.mxu0 %v10500
    %12276 = vmatpush1.bf16.msra.mxu0 %v10499
    %12277 = vmatprep.subr.bf16.mxu0 %v10492
    %12278 = vmatpush1.bf16.msra.mxu0 %v10491
    %12279 = vmatprep.subr.bf16.mxu0 %v10484
    %12280 = vmatpush1.bf16.msra.mxu0 %v10483
    %12281 = vmatprep.subr.bf16.mxu0 %v10476
    %12282 = vmatpush1.bf16.msra.mxu0 %v10475
    %12283 = vmatprep.subr.bf16.mxu0 %v10468
    %12284 = vmatpush1.bf16.msra.mxu0 %v10467
    %12285 = vmatprep.subr.bf16.mxu0 %v10460
    %12286 = vmatpush1.bf16.msra.mxu0 %v10459
    %12287 = vmatprep.subr.bf16.mxu0 %v10580
    %12288 = vmatpush2.bf16.msra.mxu0 %v10579
    %12289 = vmatprep.subr.bf16.mxu0 %v10572
    %12290 = vmatpush2.bf16.msra.mxu0 %v10571
    %12291 = vmatprep.subr.bf16.mxu0 %v10564
    %12292 = vmatpush2.bf16.msra.mxu0 %v10563
    %12293 = vmatprep.subr.bf16.mxu0 %v10556
    %12294 = vmatpush2.bf16.msra.mxu0 %v10555
    %12295 = vmatprep.subr.bf16.mxu0 %v10548
    %12296 = vmatpush2.bf16.msra.mxu0 %v10547
    %12297 = vmatprep.subr.bf16.mxu0 %v10540
    %12298 = vmatpush2.bf16.msra.mxu0 %v10539
    %12299 = vmatprep.subr.bf16.mxu0 %v10532
    %12300 = vmatpush2.bf16.msra.mxu0 %v10531
    %12301 = vmatprep.subr.bf16.mxu0 %v10524
    %12302 = vmatpush2.bf16.msra.mxu0 %v10523
    %12303 = vmatprep.mubr.bf16.mxu0 %v8635
    %12304 = vmatmul.mubr.bf16.gmra.mxu0 %v8634
    %v12305 = vpop.f32.mrf.mxu0
    %v12306 = vadd.f32 %v8508, %v12305
    %v12307 = vpop.f32.mrf.mxu0
    %v12308 = vadd.f32 %v8512, %v12307
    %v12309 = vpop.f32.mrf.mxu0
    %v12310 = vpop.f32.mrf.mxu0
    %12311 = vdwg.mxu0
    %12312 = vmatprep.subr.bf16.mxu0 %v10644
    %12313 = vmatpush1.bf16.msra.mxu0 %v10643
    %12314 = vmatprep.subr.bf16.mxu0 %v10636
    %12315 = vmatpush1.bf16.msra.mxu0 %v10635
    %12316 = vmatprep.subr.bf16.mxu0 %v10628
    %12317 = vmatpush1.bf16.msra.mxu0 %v10627
    %12318 = vmatprep.subr.bf16.mxu0 %v10620
    %12319 = vmatpush1.bf16.msra.mxu0 %v10619
    %12320 = vmatprep.subr.bf16.mxu0 %v10612
    %12321 = vmatpush1.bf16.msra.mxu0 %v10611
    %12322 = vmatprep.subr.bf16.mxu0 %v10604
    %12323 = vmatpush1.bf16.msra.mxu0 %v10603
    %12324 = vmatprep.subr.bf16.mxu0 %v10596
    %12325 = vmatpush1.bf16.msra.mxu0 %v10595
    %12326 = vmatprep.subr.bf16.mxu0 %v10588
    %12327 = vmatpush1.bf16.msra.mxu0 %v10587
    %12328 = vmatprep.subr.bf16.mxu0 %v10708
    %12329 = vmatpush2.bf16.msra.mxu0 %v10707
    %12330 = vmatprep.subr.bf16.mxu0 %v10700
    %12331 = vmatpush2.bf16.msra.mxu0 %v10699
    %12332 = vmatprep.subr.bf16.mxu0 %v10692
    %12333 = vmatpush2.bf16.msra.mxu0 %v10691
    %12334 = vmatprep.subr.bf16.mxu0 %v10684
    %12335 = vmatpush2.bf16.msra.mxu0 %v10683
    %12336 = vmatprep.subr.bf16.mxu0 %v10676
    %12337 = vmatpush2.bf16.msra.mxu0 %v10675
    %12338 = vmatprep.subr.bf16.mxu0 %v10668
    %12339 = vmatpush2.bf16.msra.mxu0 %v10667
    %12340 = vmatprep.subr.bf16.mxu0 %v10660
    %12341 = vmatpush2.bf16.msra.mxu0 %v10659
    %12342 = vmatprep.subr.bf16.mxu0 %v10652
    %12343 = vmatpush2.bf16.msra.mxu0 %v10651
    %12344 = vmatprep.mubr.bf16.mxu0 %v8637
    %12345 = vmatmul.mubr.bf16.gmra.mxu0 %v8636
    %v12346 = vpop.f32.mrf.mxu0
    %v12347 = vadd.f32 %v12306, %v12346
    %v12348 = vpop.f32.mrf.mxu0
    %v12349 = vadd.f32 %v12308, %v12348
    %v12350 = vpop.f32.mrf.mxu0
    %v12351 = vpop.f32.mrf.mxu0
    %12352 = vdwg.mxu0
    %12353 = vmatprep.subr.bf16.mxu0 %v10772
    %12354 = vmatpush1.bf16.msra.mxu0 %v10771
    %12355 = vmatprep.subr.bf16.mxu0 %v10764
    %12356 = vmatpush1.bf16.msra.mxu0 %v10763
    %12357 = vmatprep.subr.bf16.mxu0 %v10756
    %12358 = vmatpush1.bf16.msra.mxu0 %v10755
    %12359 = vmatprep.subr.bf16.mxu0 %v10748
    %12360 = vmatpush1.bf16.msra.mxu0 %v10747
    %12361 = vmatprep.subr.bf16.mxu0 %v10740
    %12362 = vmatpush1.bf16.msra.mxu0 %v10739
    %12363 = vmatprep.subr.bf16.mxu0 %v10732
    %12364 = vmatpush1.bf16.msra.mxu0 %v10731
    %12365 = vmatprep.subr.bf16.mxu0 %v10724
    %12366 = vmatpush1.bf16.msra.mxu0 %v10723
    %12367 = vmatprep.subr.bf16.mxu0 %v10716
    %12368 = vmatpush1.bf16.msra.mxu0 %v10715
    %12369 = vmatprep.subr.bf16.mxu0 %v10836
    %12370 = vmatpush2.bf16.msra.mxu0 %v10835
    %12371 = vmatprep.subr.bf16.mxu0 %v10828
    %12372 = vmatpush2.bf16.msra.mxu0 %v10827
    %12373 = vmatprep.subr.bf16.mxu0 %v10820
    %12374 = vmatpush2.bf16.msra.mxu0 %v10819
    %12375 = vmatprep.subr.bf16.mxu0 %v10812
    %12376 = vmatpush2.bf16.msra.mxu0 %v10811
    %12377 = vmatprep.subr.bf16.mxu0 %v10804
    %12378 = vmatpush2.bf16.msra.mxu0 %v10803
    %12379 = vmatprep.subr.bf16.mxu0 %v10796
    %12380 = vmatpush2.bf16.msra.mxu0 %v10795
    %12381 = vmatprep.subr.bf16.mxu0 %v10788
    %12382 = vmatpush2.bf16.msra.mxu0 %v10787
    %12383 = vmatprep.subr.bf16.mxu0 %v10780
    %12384 = vmatpush2.bf16.msra.mxu0 %v10779
    %12385 = vmatprep.mubr.bf16.mxu0 %v8639
    %12386 = vmatmul.mubr.bf16.gmra.mxu0 %v8638
    %v12387 = vpop.f32.mrf.mxu0
    %v12388 = vadd.f32 %v12347, %v12387
    %v12389 = vpop.f32.mrf.mxu0
    %v12390 = vadd.f32 %v12349, %v12389
    %v12391 = vpop.f32.mrf.mxu0
    %v12392 = vpop.f32.mrf.mxu0
    %12393 = vdwg.mxu0
    %12394 = vmatprep.subr.bf16.mxu0 %v10900
    %12395 = vmatpush1.bf16.msra.mxu0 %v10899
    %12396 = vmatprep.subr.bf16.mxu0 %v10892
    %12397 = vmatpush1.bf16.msra.mxu0 %v10891
    %12398 = vmatprep.subr.bf16.mxu0 %v10884
    %12399 = vmatpush1.bf16.msra.mxu0 %v10883
    %12400 = vmatprep.subr.bf16.mxu0 %v10876
    %12401 = vmatpush1.bf16.msra.mxu0 %v10875
    %12402 = vmatprep.subr.bf16.mxu0 %v10868
    %12403 = vmatpush1.bf16.msra.mxu0 %v10867
    %12404 = vmatprep.subr.bf16.mxu0 %v10860
    %12405 = vmatpush1.bf16.msra.mxu0 %v10859
    %12406 = vmatprep.subr.bf16.mxu0 %v10852
    %12407 = vmatpush1.bf16.msra.mxu0 %v10851
    %12408 = vmatprep.subr.bf16.mxu0 %v10844
    %12409 = vmatpush1.bf16.msra.mxu0 %v10843
    %12410 = vmatprep.subr.bf16.mxu0 %v10964
    %12411 = vmatpush2.bf16.msra.mxu0 %v10963
    %12412 = vmatprep.subr.bf16.mxu0 %v10956
    %12413 = vmatpush2.bf16.msra.mxu0 %v10955
    %12414 = vmatprep.subr.bf16.mxu0 %v10948
    %12415 = vmatpush2.bf16.msra.mxu0 %v10947
    %12416 = vmatprep.subr.bf16.mxu0 %v10940
    %12417 = vmatpush2.bf16.msra.mxu0 %v10939
    %12418 = vmatprep.subr.bf16.mxu0 %v10932
    %12419 = vmatpush2.bf16.msra.mxu0 %v10931
    %12420 = vmatprep.subr.bf16.mxu0 %v10924
    %12421 = vmatpush2.bf16.msra.mxu0 %v10923
    %12422 = vmatprep.subr.bf16.mxu0 %v10916
    %12423 = vmatpush2.bf16.msra.mxu0 %v10915
    %12424 = vmatprep.subr.bf16.mxu0 %v10908
    %12425 = vmatpush2.bf16.msra.mxu0 %v10907
    %12426 = vmatprep.mubr.bf16.mxu0 %v8641
    %12427 = vmatmul.mubr.bf16.gmra.mxu0 %v8640
    %v12428 = vpop.f32.mrf.mxu0
    %v12429 = vadd.f32 %v12388, %v12428
    %v12430 = vpop.f32.mrf.mxu0
    %v12431 = vadd.f32 %v12390, %v12430
    %v12432 = vpop.f32.mrf.mxu0
    %v12433 = vpop.f32.mrf.mxu0
    %12434 = vdwg.mxu0
    %12435 = vmatprep.subr.bf16.mxu0 %v11028
    %12436 = vmatpush1.bf16.msra.mxu0 %v11027
    %12437 = vmatprep.subr.bf16.mxu0 %v11020
    %12438 = vmatpush1.bf16.msra.mxu0 %v11019
    %12439 = vmatprep.subr.bf16.mxu0 %v11012
    %12440 = vmatpush1.bf16.msra.mxu0 %v11011
    %12441 = vmatprep.subr.bf16.mxu0 %v11004
    %12442 = vmatpush1.bf16.msra.mxu0 %v11003
    %12443 = vmatprep.subr.bf16.mxu0 %v10996
    %12444 = vmatpush1.bf16.msra.mxu0 %v10995
    %12445 = vmatprep.subr.bf16.mxu0 %v10988
    %12446 = vmatpush1.bf16.msra.mxu0 %v10987
    %12447 = vmatprep.subr.bf16.mxu0 %v10980
    %12448 = vmatpush1.bf16.msra.mxu0 %v10979
    %12449 = vmatprep.subr.bf16.mxu0 %v10972
    %12450 = vmatpush1.bf16.msra.mxu0 %v10971
    %12451 = vmatprep.subr.bf16.mxu0 0
    %12452 = vmatpush2.bf16.msra.mxu0 0
    %12453 = vmatprep.subr.bf16.mxu0 0
    %12454 = vmatpush2.bf16.msra.mxu0 0
    %12455 = vmatprep.subr.bf16.mxu0 0
    %12456 = vmatpush2.bf16.msra.mxu0 0
    %12457 = vmatprep.subr.bf16.mxu0 0
    %12458 = vmatpush2.bf16.msra.mxu0 0
    %12459 = vmatprep.subr.bf16.mxu0 0
    %12460 = vmatpush2.bf16.msra.mxu0 0
    %12461 = vmatprep.subr.bf16.mxu0 %v11052
    %12462 = vmatpush2.bf16.msra.mxu0 %v11051
    %12463 = vmatprep.subr.bf16.mxu0 %v11044
    %12464 = vmatpush2.bf16.msra.mxu0 %v11043
    %12465 = vmatprep.subr.bf16.mxu0 %v11036
    %12466 = vmatpush2.bf16.msra.mxu0 %v11035
    %12467 = vmatprep.mubr.bf16.mxu0 %v11654
    %12468 = vmatmul.mubr.bf16.gmra.mxu0 %v8642
    %v12469 = vpop.f32.mrf.mxu0
    %v12470 = vadd.f32 %v12429, %v12469
    %v12471 = vpop.f32.mrf.mxu0
    %v12472 = vadd.f32 %v12431, %v12471
    %v12473 = vpop.f32.mrf.mxu0
    %v12474 = vpop.f32.mrf.mxu0
    %12475 = vdwg.mxu0
    %vm12476 = vcmp.ge.f32.partialorder %v11855, 0.0
    %vm12477 = vcmp.ge.f32.partialorder %v11857, 0.0
    %vm12478 = vcmp.ge.f32.partialorder %v12060, 0.0
    %vm12479 = vcmp.ge.f32.partialorder %v12062, 0.0
    %vm12480 = vcmp.ge.f32.partialorder %v12265, 0.0
    %vm12481 = vcmp.ge.f32.partialorder %v12267, 0.0
    %vm12482 = vcmp.ge.f32.partialorder %v12470, 0.0
    %vm12483 = vcmp.ge.f32.partialorder %v12472, 0.0
    %v12484 = vmul.f32 %v11855, 0.2
    %v12485 = vmul.f32 %v11857, 0.2
    %v12486 = vmul.f32 %v12060, 0.2
    %v12487 = vmul.f32 %v12062, 0.2
    %v12488 = vmul.f32 %v12265, 0.2
    %v12489 = vmul.f32 %v12267, 0.2
    %v12490 = vmul.f32 %v12470, 0.2
    %v12491 = vmul.f32 %v12472, 0.2
    %v12492 = vsel %vm12476, %v11855, %v12484
    %v12493 = vsel %vm12477, %v11857, %v12485
    %v12494 = vsel %vm12478, %v12060, %v12486
    %v12495 = vsel %vm12479, %v12062, %v12487
    %v12496 = vsel %vm12480, %v12265, %v12488
    %v12497 = vsel %vm12481, %v12267, %v12489
    %v12498 = vsel %vm12482, %v12470, %v12490
    %v12499 = vsel %vm12483, %v12472, %v12491
    %v12500 = vld [vmem:[#allocation20] sm:$0xff]
    %v12502 = vlaneseq
    %v12503 = vshrl.u32 %v12502, 7
    %v12504 = vsub.s32 0, %v12503
    %v12505 = vrot.slane %v12500, %v12504
    %v12506 = vlaneseq
    %v12507 = vshrl.u32 %v12506, 7
    %v12508 = vsub.s32 1, %v12507
    %v12509 = vrot.slane %v12500, %v12508
    %v12510 = vlaneseq
    %v12511 = vshrl.u32 %v12510, 7
    %v12512 = vsub.s32 2, %v12511
    %v12513 = vrot.slane %v12500, %v12512
    %v12514 = vlaneseq
    %v12515 = vshrl.u32 %v12514, 7
    %v12516 = vsub.s32 3, %v12515
    %v12517 = vrot.slane %v12500, %v12516
    %v12518 = vlaneseq
    %v12519 = vshrl.u32 %v12518, 7
    %v12520 = vsub.s32 4, %v12519
    %v12521 = vrot.slane %v12500, %v12520
    %v12522 = vlaneseq
    %v12523 = vshrl.u32 %v12522, 7
    %v12524 = vsub.s32 5, %v12523
    %v12525 = vrot.slane %v12500, %v12524
    %v12526 = vlaneseq
    %v12527 = vshrl.u32 %v12526, 7
    %v12528 = vsub.s32 6, %v12527
    %v12529 = vrot.slane %v12500, %v12528
    %v12530 = vlaneseq
    %v12531 = vshrl.u32 %v12530, 7
    %v12532 = vsub.s32 7, %v12531
    %v12533 = vrot.slane %v12500, %v12532
    %v12542 = vmul.f32 %v12492, %v12505
    %v12543 = vmul.f32 %v12493, %v12509
    %v12544 = vmul.f32 %v12494, %v12513
    %v12545 = vmul.f32 %v12495, %v12517
    %v12546 = vmul.f32 %v12496, %v12521
    %v12547 = vmul.f32 %v12497, %v12525
    %v12548 = vmul.f32 %v12498, %v12529
    %v12549 = vmul.f32 %v12499, %v12533
    %vm12550 = vcmask 1043456
    %v12551 = vsel %vm12550, %v12542, 0.0
    %v12552 = vsel %vm12550, %v12543, 0.0
    %v12553 = vadd.f32 %v12551, %v12552
    %v12554 = vsel %vm12550, %v12544, 0.0
    %v12555 = vadd.f32 %v12553, %v12554
    %v12556 = vsel %vm12550, %v12545, 0.0
    %v12557 = vadd.f32 %v12555, %v12556
    %v12558 = vsel %vm12550, %v12546, 0.0
    %v12559 = vadd.f32 %v12557, %v12558
    %v12560 = vsel %vm12550, %v12547, 0.0
    %v12561 = vadd.f32 %v12559, %v12560
    %v12562 = vsel %vm12550, %v12548, 0.0
    %v12563 = vadd.f32 %v12561, %v12562
    %v12564 = vsel %vm12550, %v12549, 0.0
    %v12565 = vadd.f32 %v12563, %v12564
    %12566 = vadd.xlane.f32.xlu0 %v12565
    %v12567 = vpop.xlane.xlu0 %12566
    %v12568 = vld [vmem:[#allocation2] sm:$0x1]
    %v12570 = vlaneseq
    %v12571 = vshrl.u32 %v12570, 7
    %v12572 = vsub.s32 0, %v12571
    %v12573 = vrot.slane %v12568, %v12572
    %v12575 = vadd.f32 %v12567, %v12573
    %vm12576 = vcmask 3072
    %12577 = vst.msk [vmem:[%s16] sm:$0xf] %vm12576, %v12575
    // Predicated region
    $region114: #{fused_matching.1} parent=1 // pred_check
      _
    $region115: #{fused_matching.1} parent=1 // pred_check_branch
      %12579 = sbr.rel (0) target = $region117
    $region116: #{fused_matching.1} parent=1 // pred_region
      _
    $region117: #{fused_matching.1} parent=1 // pred_fallthru
      _
    // Predicated region
    $region118: #{fused_matching.1} parent=1 // pred_check
      _
    $region119: #{fused_matching.1} parent=1 // pred_check_branch
      %12581 = sbr.rel (0) target = $region121
    $region120: #{fused_matching.1} parent=1 // pred_region
      _
    $region121: #{fused_matching.1} parent=1 // pred_fallthru
      _
    %12582 = vsyncpa [#allocation4], 1
    %12583 = vsyncpa [#allocation6], 1
    %12584 = vsyncpa [#allocation9], 1
    %12585 = vsyncpa [#allocation12], 1
    %12586 = vsyncpa [#allocation15], 1
    %12587 = vsyncpa [#allocation18], 1
    %12588 = vsyncpa [#allocation21], 1

</llo_original>
